<compile_context>
chip_gen: v7x
topology: tpu7x:2x2x1
jax: 0.10.0
libtpu: 0.0.40
codegen_flags: <defaults>
</compile_context>

<pallas_src>
import jax
import jax.numpy as jnp
from jax import lax
from jax.experimental import pallas as pl
from jax.experimental.pallas import tpu as pltpu

EPS = 1e-5
K1 = 128   # padded input lane width  (3ch * 32  =  96 -> 128)
P1 = 384   # padded pool1 lane width  (20ch * 15 = 300 -> 384) per column parity
P2 = 256   # padded pool2 lane width  (40ch * 6  = 240 -> 256) per column parity


# --------------------------------------------------------------------------
# Expanded-weight builders (run once at parameter-preparation time, in XLA)
# --------------------------------------------------------------------------
def conv_row_mats_merged(W, L_in, K_pad, W_out, N_half):
    """Per-kernel-row matmul matrices with BOTH column parities merged.

    W: (Cout, Cin, k, k) torch-layout conv weight.
    Input lane layout:  ci*L_in + w   (zero-padded up to K_pad lanes).
    Output lane layout: par*N_half + co*W_out + w_out, evaluating the conv at
    column positions 2*w_out + par (the two columns feeding each 2x2 pool).
    Returns M: (k, K_pad, 2*N_half) with
      M[dh, ci*L_in + 2*w_out + par + dw, par*N_half + co*W_out + w_out]
        = W[co, ci, dh, dw].
    """
    Cout, Cin, k, _ = W.shape
    M = jnp.zeros((k, K_pad, 2 * N_half), jnp.float32)
    wo = jnp.arange(W_out)
    ci = jnp.arange(Cin)
    co = jnp.arange(Cout)
    for par in range(2):
        for dh in range(k):
            for dw in range(k):
                rows = ci[:, None] * L_in + (2 * wo[None, :] + par + dw)       # (Cin, W_out)
                cols = par * N_half + co[:, None] * W_out + wo[None, :]        # (Cout, W_out)
                vals = jnp.broadcast_to(W[:, :, dh, dw][:, :, None],
                                        (Cout, Cin, W_out))
                M = M.at[dh, rows[None, :, :], cols[:, None, :]].set(vals)
    return M


def bn_fold(conv_bias, gamma, beta, rm, rv):
    """Eval-mode BN folded into per-channel (scale, bias); conv/fc bias folded in."""
    s = gamma / jnp.sqrt(rv + EPS)
    t = (conv_bias - rm) * s + beta
    return s, t


# --------------------------------------------------------------------------
# The fused, batch-blocked Pallas kernel (B images per grid step)
# --------------------------------------------------------------------------
def _make_kernel(B):
    f32 = jnp.float32
    bf16 = jnp.bfloat16

    def kernel(x_ref, m1_ref, s1_ref, t1_ref, m2_ref, s2_ref, t2_ref,
               f1_ref, sf1_ref, tf1_ref, wf2_ref, sf2_ref, tf2_ref,
               wf3_ref, bf3_ref, out_ref):
        # x[r, q*B + b, ci*32 + w] = image b's input row (4*q + r), lane-padded.
        x = x_ref[0]                                     # (4, 8*B, 128) bf16
        s1 = s1_ref[...]; t1 = t1_ref[...]               # (1, 2*P1) f32
        s2 = s2_ref[...]; t2 = t2_ref[...]               # (1, 2*P2) f32

        # ---- conv1 (3x3, 3->20) + bn1 + relu + 2x2 maxpool -----------------
        # conv rows grouped by residue mod 4; both column parities come out of
        # one wide matmul and the pool is an elementwise max over lane halves
        # and residue pairs (relu commutes with max; BN is applied before max).
        pooled1 = []
        for m_lo in (0, 2):                              # (m_lo, m_lo+1) -> one pooled-row class
            q_m = 8 if m_lo == 0 else 7
            row_max = None
            for m in (m_lo, m_lo + 1):
                acc = None
                for dh in range(3):
                    c = m + dh                           # input row 4*q + c
                    lhs = x[c % 4, (c // 4) * B:(c // 4 + q_m) * B, :]   # (q_m*B, 128)
                    d = jnp.dot(lhs, m1_ref[dh], preferred_element_type=f32)
                    acc = d if acc is None else acc + d  # (q_m*B, 2*P1)
                bn = acc * s1 + t1
                cand = jnp.maximum(bn[:, :P1], bn[:, P1:])        # column-parity max
                row_max = cand if row_max is None else jnp.maximum(row_max, cand)
            pooled1.append(jnp.maximum(row_max, 0.0).astype(bf16))
        p1e, p1o = pooled1          # (8*B, P1) even pooled rows, (7*B, P1) odd pooled rows

        # ---- conv2 (4x4, 20->40) + bn2 + relu + 2x2 maxpool ----------------
        p2 = None
        for a in range(2):                               # conv2 output-row parity
            acc = None
            for dh in range(4):
                c = a + dh                               # pooled1 row 2*h'' + c
                src = p1e if c % 2 == 0 else p1o
                lhs = src[(c // 2) * B:(c // 2 + 6) * B, :]          # (6*B, P1)
                d = jnp.dot(lhs, m2_ref[dh], preferred_element_type=f32)
                acc = d if acc is None else acc + d      # (6*B, 2*P2)
            bn = acc * s2 + t2
            cand = jnp.maximum(bn[:, :P2], bn[:, P2:])   # column-parity max
            p2 = cand if p2 is None else jnp.maximum(p2, cand)
        p2 = jnp.maximum(p2, 0.0).astype(bf16)           # (6*B, P2), rows (h'', b)

        # ---- fc1 + bnfc1 + relu (NCHW flatten folded into f1's row order) ---
        z = None
        for h in range(6):
            d = jnp.dot(p2[h * B:(h + 1) * B, :], f1_ref[h],
                        preferred_element_type=f32)      # (B, 128)
            z = d if z is None else z + d
        z = jnp.maximum(z * sf1_ref[...] + tf1_ref[...], 0.0)
        # dropout(p=0.46): identity in eval mode
        # ---- fc2 + bnfc2 + relu ---------------------------------------------
        z = jnp.dot(z.astype(bf16), wf2_ref[...], preferred_element_type=f32)
        z = jnp.maximum(z * sf2_ref[...] + tf2_ref[...], 0.0)
        # ---- fc3 (padded to 128 lanes; valid logits in columns 0..9) --------
        z = jnp.dot(z.astype(bf16), wf3_ref[...], preferred_element_type=f32) + bf3_ref[...]
        out_ref[...] = z                                 # (B, 128) f32

    return kernel


# --------------------------------------------------------------------------
# Parameter preparation (torch-layout params -> kernel operands)
# --------------------------------------------------------------------------
def prepare_params(p):
    w1, b1 = p["conv1"]
    w2, b2 = p["conv2"]
    wf1, bfc1 = p["fc1"]
    wf2, bfc2 = p["fc2"]
    wf3, bfc3 = p["fc3"]

    s1, t1 = bn_fold(b1, *p["bn1"])
    s2, t2 = bn_fold(b2, *p["bn2"])
    sf1, tf1 = bn_fold(bfc1, *p["bnfc1"])
    sf2, tf2 = bn_fold(bfc2, *p["bnfc2"])

    # conv1: input width 32 (lane-padded to 128), pooled output width 15 (-> P1).
    m1 = conv_row_mats_merged(w1, 32, K1, 15, P1)        # (3, 128, 768)
    # conv2: input width 15 (pool1, lane-padded to P1), pooled output width 6 (-> P2).
    m2 = conv_row_mats_merged(w2, 15, P1, 6, P2)         # (4, 384, 512)

    def chan_vec(v, width, half):
        v = jnp.repeat(v, width)                         # per-lane
        v = jnp.pad(v, (0, half - v.shape[0]))           # pad to lane-aligned half
        return jnp.tile(v, 2).reshape(1, 2 * half)       # same affine for both parities

    # fc1 weight re-ordered so the row index is (h'', co*6 + w'') -> folds the
    # NCHW flatten permutation; rows padded 240 -> P2.
    f1 = jnp.transpose(wf1.T.reshape(40, 6, 6, 128), (1, 0, 2, 3)).reshape(6, 240, 128)
    f1 = jnp.pad(f1, ((0, 0), (0, P2 - 240), (0, 0)))    # (6, 256, 128)

    wf3p = jnp.zeros((128, 128), jnp.float32).at[:, :10].set(wf3.T)
    bf3p = jnp.zeros((1, 128), jnp.float32).at[0, :10].set(bfc3)

    bf16 = jnp.bfloat16
    return dict(
        m1=m1.astype(bf16),
        s1=chan_vec(s1, 15, P1), t1=chan_vec(t1, 15, P1),
        m2=m2.astype(bf16),
        s2=chan_vec(s2, 6, P2), t2=chan_vec(t2, 6, P2),
        f1=f1.astype(bf16),
        sf1=sf1.reshape(1, 128), tf1=tf1.reshape(1, 128),
        wf2=wf2.T.astype(bf16),
        sf2=sf2.reshape(1, 128), tf2=tf2.reshape(1, 128),
        wf3=wf3p.astype(bf16), bf3=bf3p,
    )


# --------------------------------------------------------------------------
# Forward pass
# --------------------------------------------------------------------------
def _round_up(n, m):
    return ((n + m - 1) // m) * m


def forward(prep, x_nchw, batch_block=32):
    N = x_nchw.shape[0]
    B = min(batch_block, _round_up(N, 8))                # images per grid step
    assert B % 8 == 0, "batch_block must be a multiple of 8"
    G = pl.cdiv(N, B)
    Npad = G * B

    x = x_nchw
    if Npad != N:
        x = jnp.pad(x, ((0, Npad - N), (0, 0), (0, 0), (0, 0)))

    # NCHW -> per-image row map [h, ci*32 + w], lane-padded 96 -> 128, rows
    # regrouped by residue (h mod 4) and batch-stacked:
    #   xr[g, r, q*B + b, lane] = image (g*B + b)'s input row (4*q + r).
    # TODO(synk): for a production input pipeline this relayout should be done
    # once upstream instead of inside every forward call.
    x2d = jnp.transpose(x, (0, 2, 1, 3)).reshape(Npad, 32, 96)
    x2d = jnp.pad(x2d, ((0, 0), (0, 0), (0, K1 - 96)))
    xr = jnp.transpose(x2d.reshape(G, B, 8, 4, K1), (0, 3, 2, 1, 4))
    xr = xr.reshape(G, 4, 8 * B, K1).astype(jnp.bfloat16)

    operands = [xr, prep["m1"], prep["s1"], prep["t1"], prep["m2"], prep["s2"],
                prep["t2"], prep["f1"], prep["sf1"], prep["tf1"], prep["wf2"],
                prep["sf2"], prep["tf2"], prep["wf3"], prep["bf3"]]

    def const_spec(shape):
        nd = len(shape)
        return pl.BlockSpec(tuple(shape), lambda g, _nd=nd: (0,) * _nd)

    in_specs = [pl.BlockSpec((1, 4, 8 * B, K1), lambda g: (g, 0, 0, 0))]
    in_specs += [const_spec(o.shape) for o in operands[1:]]

    # Advisory cost: expanded-weight MACs actually issued to the MXU.
    flops = 2 * Npad * (3 * 30 * K1 * 2 * P1          # conv1 (3 dh x 30 rows/img)
                        + 8 * 6 * P1 * 2 * P2         # conv2 (2 parities x 4 dh x 6 rows)
                        + 6 * P2 * 128                # fc1
                        + 2 * 128 * 128)              # fc2 + fc3
    w_bytes = sum(int(o.size) * o.dtype.itemsize for o in operands[1:])
    bytes_accessed = int(xr.size) * 2 + Npad * 128 * 4 + w_bytes

    out = pl.pallas_call(
        _make_kernel(B),
        out_shape=jax.ShapeDtypeStruct((Npad, 128), jnp.float32),
        grid=(G,),
        in_specs=in_specs,
        out_specs=pl.BlockSpec((B, 128), lambda g: (g, 0)),
        compiler_params=pltpu.CompilerParams(
            dimension_semantics=("parallel",),
            vmem_limit_bytes=32 * 1024 * 1024,
        ),
        cost_estimate=pl.CostEstimate(flops=flops, transcendentals=0,
                                      bytes_accessed=bytes_accessed),
    )(*operands)
    return out[:N, :10]


# --------------------------------------------------------------------------
# Pure-JAX reference (mirrors the PyTorch eval-mode forward)
# --------------------------------------------------------------------------
def reference_forward(params, x):
    def bn2d(y, g, b, rm, rv):
        s = g / jnp.sqrt(rv + EPS)
        return y * s[None, :, None, None] + (b - rm * s)[None, :, None, None]

    def bn1d(z, g, b, rm, rv):
        s = g / jnp.sqrt(rv + EPS)
        return z * s[None, :] + (b - rm * s)[None, :]

    def pool(y):
        return lax.reduce_window(y, -jnp.inf, lax.max, (1, 1, 2, 2), (1, 1, 2, 2), "VALID")

    w1, b1 = params["conv1"]
    y = lax.conv_general_dilated(x, w1, (1, 1), "VALID",
                                 dimension_numbers=("NCHW", "OIHW", "NCHW"))
    y = y + b1[None, :, None, None]
    y = pool(jnp.maximum(bn2d(y, *params["bn1"]), 0.0))
    w2, b2 = params["conv2"]
    y = lax.conv_general_dilated(y, w2, (1, 1), "VALID",
                                 dimension_numbers=("NCHW", "OIHW", "NCHW"))
    y = y + b2[None, :, None, None]
    y = pool(jnp.maximum(bn2d(y, *params["bn2"]), 0.0))
    f = y.reshape(y.shape[0], -1)
    wf1, bfc1 = params["fc1"]
    z = jnp.maximum(bn1d(f @ wf1.T + bfc1, *params["bnfc1"]), 0.0)
    wf2, bfc2 = params["fc2"]
    z = jnp.maximum(bn1d(z @ wf2.T + bfc2, *params["bnfc2"]), 0.0)
    wf3, bfc3 = params["fc3"]
    return z @ wf3.T + bfc3


# --------------------------------------------------------------------------
# Deterministic synthetic parameters (torch layout)
# --------------------------------------------------------------------------
def init_params(key):
    keys = iter(jax.random.split(key, 32))

    def conv_p(cout, cin, k):
        w = jax.random.normal(next(keys), (cout, cin, k, k), jnp.float32) * 0.05
        b = jax.random.normal(next(keys), (cout,), jnp.float32) * 0.05
        return w, b

    def lin_p(fout, fin):
        w = jax.random.normal(next(keys), (fout, fin), jnp.float32) * 0.05
        b = jax.random.normal(next(keys), (fout,), jnp.float32) * 0.05
        return w, b

    def bn_p(c):
        gamma = 1.0 + 0.1 * jax.random.normal(next(keys), (c,), jnp.float32)
        beta = 0.1 * jax.random.normal(next(keys), (c,), jnp.float32)
        rm = 0.1 * jax.random.normal(next(keys), (c,), jnp.float32)
        rv = 0.5 + jax.random.uniform(next(keys), (c,), jnp.float32)
        return gamma, beta, rm, rv

    return dict(
        conv1=conv_p(20, 3, 3), bn1=bn_p(20),
        conv2=conv_p(40, 20, 4), bn2=bn_p(40),
        fc1=lin_p(128, 40 * 6 * 6), bnfc1=bn_p(128),
        fc2=lin_p(128, 128), bnfc2=bn_p(128),
        fc3=lin_p(10, 128),
    )


if __name__ == "__main__":
    key = jax.random.PRNGKey(0)
    pkey, xkey = jax.random.split(key)
    params = init_params(pkey)
    # fc1 expects 40*6*6 features -> 3x32x32 (CIFAR) input.
    x = jax.random.normal(xkey, (2, 3, 32, 32), jnp.float32)

    prep = prepare_params(params)
    fwd = jax.jit(forward, static_argnames=("batch_block",))
    out = jax.block_until_ready(fwd(prep, x))

    assert out.shape == (2, 10), out.shape
    assert bool(jnp.all(jnp.isfinite(out)))

    ref = jax.block_until_ready(jax.jit(reference_forward)(params, x))
    err = float(jnp.max(jnp.abs(out - ref)))
    assert err < 5e-2, f"kernel/reference mismatch: max abs err {err}"

    print("KERNEL_OK")
</pallas_src>

<mosaic_0001>
module attributes {stable_mosaic.version = 11 : i64} {
  func.func @kernel(%arg0: i32, %arg1: memref<1x4x64x128xbf16, #tpu.memory_space<vmem>>, %arg2: memref<3x128x768xbf16, #tpu.memory_space<vmem>>, %arg3: memref<1x768xf32, #tpu.memory_space<vmem>>, %arg4: memref<1x768xf32, #tpu.memory_space<vmem>>, %arg5: memref<4x384x512xbf16, #tpu.memory_space<vmem>>, %arg6: memref<1x512xf32, #tpu.memory_space<vmem>>, %arg7: memref<1x512xf32, #tpu.memory_space<vmem>>, %arg8: memref<6x256x128xbf16, #tpu.memory_space<vmem>>, %arg9: memref<1x128xf32, #tpu.memory_space<vmem>>, %arg10: memref<1x128xf32, #tpu.memory_space<vmem>>, %arg11: memref<128x128xbf16, #tpu.memory_space<vmem>>, %arg12: memref<1x128xf32, #tpu.memory_space<vmem>>, %arg13: memref<1x128xf32, #tpu.memory_space<vmem>>, %arg14: memref<128x128xbf16, #tpu.memory_space<vmem>>, %arg15: memref<1x128xf32, #tpu.memory_space<vmem>>, %arg16: memref<8x128xf32, #tpu.memory_space<vmem>>) attributes {dimension_semantics = [#tpu.dimension_semantics<parallel>], iteration_bounds = array<i64: 1>, scalar_prefetch = 0 : i64, scratch_operands = 0 : i64, tpu.core_type = #tpu.core_type<tc>, window_params = [{transform_indices = @transform_0, window_bounds = array<i64: 1, 4, 64, 128>}, {pipeline_mode = #tpu.pipeline_mode<synchronous>, transform_indices = @transform_1, window_bounds = array<i64: 3, 128, 768>}, {pipeline_mode = #tpu.pipeline_mode<synchronous>, transform_indices = @transform_2, window_bounds = array<i64: 1, 768>}, {pipeline_mode = #tpu.pipeline_mode<synchronous>, transform_indices = @transform_3, window_bounds = array<i64: 1, 768>}, {pipeline_mode = #tpu.pipeline_mode<synchronous>, transform_indices = @transform_4, window_bounds = array<i64: 4, 384, 512>}, {pipeline_mode = #tpu.pipeline_mode<synchronous>, transform_indices = @transform_5, window_bounds = array<i64: 1, 512>}, {pipeline_mode = #tpu.pipeline_mode<synchronous>, transform_indices = @transform_6, window_bounds = array<i64: 1, 512>}, {pipeline_mode = #tpu.pipeline_mode<synchronous>, transform_indices = @transform_7, window_bounds = array<i64: 6, 256, 128>}, {pipeline_mode = #tpu.pipeline_mode<synchronous>, transform_indices = @transform_8, window_bounds = array<i64: 1, 128>}, {pipeline_mode = #tpu.pipeline_mode<synchronous>, transform_indices = @transform_9, window_bounds = array<i64: 1, 128>}, {pipeline_mode = #tpu.pipeline_mode<synchronous>, transform_indices = @transform_10, window_bounds = array<i64: 128, 128>}, {pipeline_mode = #tpu.pipeline_mode<synchronous>, transform_indices = @transform_11, window_bounds = array<i64: 1, 128>}, {pipeline_mode = #tpu.pipeline_mode<synchronous>, transform_indices = @transform_12, window_bounds = array<i64: 1, 128>}, {pipeline_mode = #tpu.pipeline_mode<synchronous>, transform_indices = @transform_13, window_bounds = array<i64: 128, 128>}, {pipeline_mode = #tpu.pipeline_mode<synchronous>, transform_indices = @transform_14, window_bounds = array<i64: 1, 128>}, {transform_indices = @transform_15, window_bounds = array<i64: 8, 128>}]} {
    %c0 = arith.constant 0 : index
    %c0_0 = arith.constant 0 : index
    %c0_1 = arith.constant 0 : index
    %c0_2 = arith.constant 0 : index
    %0 = vector.load %arg1[%c0, %c0_0, %c0_1, %c0_2] : memref<1x4x64x128xbf16, #tpu.memory_space<vmem>>, vector<1x4x64x128xbf16>
    %1 = vector.shape_cast %0 : vector<1x4x64x128xbf16> to vector<4x64x128xbf16>
    %c0_3 = arith.constant 0 : index
    %c0_4 = arith.constant 0 : index
    %2 = vector.load %arg3[%c0_3, %c0_4] : memref<1x768xf32, #tpu.memory_space<vmem>>, vector<1x768xf32>
    %c0_5 = arith.constant 0 : index
    %c0_6 = arith.constant 0 : index
    %3 = vector.load %arg4[%c0_5, %c0_6] : memref<1x768xf32, #tpu.memory_space<vmem>>, vector<1x768xf32>
    %c0_7 = arith.constant 0 : index
    %c0_8 = arith.constant 0 : index
    %4 = vector.load %arg6[%c0_7, %c0_8] : memref<1x512xf32, #tpu.memory_space<vmem>>, vector<1x512xf32>
    %c0_9 = arith.constant 0 : index
    %c0_10 = arith.constant 0 : index
    %5 = vector.load %arg7[%c0_9, %c0_10] : memref<1x512xf32, #tpu.memory_space<vmem>>, vector<1x512xf32>
    %6 = vector.extract_strided_slice %1 {offsets = [0, 0, 0], sizes = [1, 64, 128], strides = [1, 1, 1]} : vector<4x64x128xbf16> to vector<1x64x128xbf16>
    %7 = vector.shape_cast %6 : vector<1x64x128xbf16> to vector<64x128xbf16>
    %c0_11 = arith.constant 0 : index
    %c0_12 = arith.constant 0 : index
    %c0_13 = arith.constant 0 : index
    %8 = vector.load %arg2[%c0_11, %c0_12, %c0_13] : memref<3x128x768xbf16, #tpu.memory_space<vmem>>, vector<1x128x768xbf16>
    %9 = vector.shape_cast %8 : vector<1x128x768xbf16> to vector<128x768xbf16>
    %cst = arith.constant dense<0.000000e+00> : vector<64x768xf32>
    %10 = tpu.matmul %7, %9, %cst {dimension_numbers = #tpu.dot_dimension_numbers<[1], [0], [0], [1], [0, 0, 1, 1], [], []>} : vector<64x128xbf16>, vector<128x768xbf16>, vector<64x768xf32> -> vector<64x768xf32>
    %11 = vector.extract_strided_slice %1 {offsets = [1, 0, 0], sizes = [1, 64, 128], strides = [1, 1, 1]} : vector<4x64x128xbf16> to vector<1x64x128xbf16>
    %12 = vector.shape_cast %11 : vector<1x64x128xbf16> to vector<64x128xbf16>
    %c1 = arith.constant 1 : index
    %c0_14 = arith.constant 0 : index
    %c0_15 = arith.constant 0 : index
    %13 = vector.load %arg2[%c1, %c0_14, %c0_15] : memref<3x128x768xbf16, #tpu.memory_space<vmem>>, vector<1x128x768xbf16>
    %14 = vector.shape_cast %13 : vector<1x128x768xbf16> to vector<128x768xbf16>
    %cst_16 = arith.constant dense<0.000000e+00> : vector<64x768xf32>
    %15 = tpu.matmul %12, %14, %cst_16 {dimension_numbers = #tpu.dot_dimension_numbers<[1], [0], [0], [1], [0, 0, 1, 1], [], []>} : vector<64x128xbf16>, vector<128x768xbf16>, vector<64x768xf32> -> vector<64x768xf32>
    %16 = arith.addf %10, %15 : vector<64x768xf32>
    %17 = vector.extract_strided_slice %1 {offsets = [2, 0, 0], sizes = [1, 64, 128], strides = [1, 1, 1]} : vector<4x64x128xbf16> to vector<1x64x128xbf16>
    %18 = vector.shape_cast %17 : vector<1x64x128xbf16> to vector<64x128xbf16>
    %c2 = arith.constant 2 : index
    %c0_17 = arith.constant 0 : index
    %c0_18 = arith.constant 0 : index
    %19 = vector.load %arg2[%c2, %c0_17, %c0_18] : memref<3x128x768xbf16, #tpu.memory_space<vmem>>, vector<1x128x768xbf16>
    %20 = vector.shape_cast %19 : vector<1x128x768xbf16> to vector<128x768xbf16>
    %cst_19 = arith.constant dense<0.000000e+00> : vector<64x768xf32>
    %21 = tpu.matmul %18, %20, %cst_19 {dimension_numbers = #tpu.dot_dimension_numbers<[1], [0], [0], [1], [0, 0, 1, 1], [], []>} : vector<64x128xbf16>, vector<128x768xbf16>, vector<64x768xf32> -> vector<64x768xf32>
    %22 = arith.addf %16, %21 : vector<64x768xf32>
    %23 = vector.broadcast %2 : vector<1x768xf32> to vector<64x768xf32>
    %24 = arith.mulf %22, %23 : vector<64x768xf32>
    %25 = vector.broadcast %3 : vector<1x768xf32> to vector<64x768xf32>
    %26 = arith.addf %24, %25 : vector<64x768xf32>
    %27 = vector.extract_strided_slice %26 {offsets = [0, 0], sizes = [64, 384], strides = [1, 1]} : vector<64x768xf32> to vector<64x384xf32>
    %28 = vector.extract_strided_slice %26 {offsets = [0, 384], sizes = [64, 384], strides = [1, 1]} : vector<64x768xf32> to vector<64x384xf32>
    %29 = arith.maximumf %27, %28 : vector<64x384xf32>
    %30 = vector.extract_strided_slice %1 {offsets = [1, 0, 0], sizes = [1, 64, 128], strides = [1, 1, 1]} : vector<4x64x128xbf16> to vector<1x64x128xbf16>
    %31 = vector.shape_cast %30 : vector<1x64x128xbf16> to vector<64x128xbf16>
    %c0_20 = arith.constant 0 : index
    %c0_21 = arith.constant 0 : index
    %c0_22 = arith.constant 0 : index
    %32 = vector.load %arg2[%c0_20, %c0_21, %c0_22] : memref<3x128x768xbf16, #tpu.memory_space<vmem>>, vector<1x128x768xbf16>
    %33 = vector.shape_cast %32 : vector<1x128x768xbf16> to vector<128x768xbf16>
    %cst_23 = arith.constant dense<0.000000e+00> : vector<64x768xf32>
    %34 = tpu.matmul %31, %33, %cst_23 {dimension_numbers = #tpu.dot_dimension_numbers<[1], [0], [0], [1], [0, 0, 1, 1], [], []>} : vector<64x128xbf16>, vector<128x768xbf16>, vector<64x768xf32> -> vector<64x768xf32>
    %35 = vector.extract_strided_slice %1 {offsets = [2, 0, 0], sizes = [1, 64, 128], strides = [1, 1, 1]} : vector<4x64x128xbf16> to vector<1x64x128xbf16>
    %36 = vector.shape_cast %35 : vector<1x64x128xbf16> to vector<64x128xbf16>
    %c1_24 = arith.constant 1 : index
    %c0_25 = arith.constant 0 : index
    %c0_26 = arith.constant 0 : index
    %37 = vector.load %arg2[%c1_24, %c0_25, %c0_26] : memref<3x128x768xbf16, #tpu.memory_space<vmem>>, vector<1x128x768xbf16>
    %38 = vector.shape_cast %37 : vector<1x128x768xbf16> to vector<128x768xbf16>
    %cst_27 = arith.constant dense<0.000000e+00> : vector<64x768xf32>
    %39 = tpu.matmul %36, %38, %cst_27 {dimension_numbers = #tpu.dot_dimension_numbers<[1], [0], [0], [1], [0, 0, 1, 1], [], []>} : vector<64x128xbf16>, vector<128x768xbf16>, vector<64x768xf32> -> vector<64x768xf32>
    %40 = arith.addf %34, %39 : vector<64x768xf32>
    %41 = vector.extract_strided_slice %1 {offsets = [3, 0, 0], sizes = [1, 64, 128], strides = [1, 1, 1]} : vector<4x64x128xbf16> to vector<1x64x128xbf16>
    %42 = vector.shape_cast %41 : vector<1x64x128xbf16> to vector<64x128xbf16>
    %c2_28 = arith.constant 2 : index
    %c0_29 = arith.constant 0 : index
    %c0_30 = arith.constant 0 : index
    %43 = vector.load %arg2[%c2_28, %c0_29, %c0_30] : memref<3x128x768xbf16, #tpu.memory_space<vmem>>, vector<1x128x768xbf16>
    %44 = vector.shape_cast %43 : vector<1x128x768xbf16> to vector<128x768xbf16>
    %cst_31 = arith.constant dense<0.000000e+00> : vector<64x768xf32>
    %45 = tpu.matmul %42, %44, %cst_31 {dimension_numbers = #tpu.dot_dimension_numbers<[1], [0], [0], [1], [0, 0, 1, 1], [], []>} : vector<64x128xbf16>, vector<128x768xbf16>, vector<64x768xf32> -> vector<64x768xf32>
    %46 = arith.addf %40, %45 : vector<64x768xf32>
    %47 = vector.broadcast %2 : vector<1x768xf32> to vector<64x768xf32>
    %48 = arith.mulf %46, %47 : vector<64x768xf32>
    %49 = vector.broadcast %3 : vector<1x768xf32> to vector<64x768xf32>
    %50 = arith.addf %48, %49 : vector<64x768xf32>
    %51 = vector.extract_strided_slice %50 {offsets = [0, 0], sizes = [64, 384], strides = [1, 1]} : vector<64x768xf32> to vector<64x384xf32>
    %52 = vector.extract_strided_slice %50 {offsets = [0, 384], sizes = [64, 384], strides = [1, 1]} : vector<64x768xf32> to vector<64x384xf32>
    %53 = arith.maximumf %51, %52 : vector<64x384xf32>
    %54 = arith.maximumf %29, %53 : vector<64x384xf32>
    %cst_32 = arith.constant 0.000000e+00 : f32
    %55 = vector.broadcast %cst_32 : f32 to vector<64x384xf32>
    %56 = arith.maximumf %54, %55 : vector<64x384xf32>
    %57 = arith.truncf %56 : vector<64x384xf32> to vector<64x384xbf16>
    %58 = vector.extract_strided_slice %1 {offsets = [2, 0, 0], sizes = [1, 56, 128], strides = [1, 1, 1]} : vector<4x64x128xbf16> to vector<1x56x128xbf16>
    %59 = vector.shape_cast %58 : vector<1x56x128xbf16> to vector<56x128xbf16>
    %c0_33 = arith.constant 0 : index
    %c0_34 = arith.constant 0 : index
    %c0_35 = arith.constant 0 : index
    %60 = vector.load %arg2[%c0_33, %c0_34, %c0_35] : memref<3x128x768xbf16, #tpu.memory_space<vmem>>, vector<1x128x768xbf16>
    %61 = vector.shape_cast %60 : vector<1x128x768xbf16> to vector<128x768xbf16>
    %cst_36 = arith.constant dense<0.000000e+00> : vector<56x768xf32>
    %62 = tpu.matmul %59, %61, %cst_36 {dimension_numbers = #tpu.dot_dimension_numbers<[1], [0], [0], [1], [0, 0, 1, 1], [], []>} : vector<56x128xbf16>, vector<128x768xbf16>, vector<56x768xf32> -> vector<56x768xf32>
    %63 = vector.extract_strided_slice %1 {offsets = [3, 0, 0], sizes = [1, 56, 128], strides = [1, 1, 1]} : vector<4x64x128xbf16> to vector<1x56x128xbf16>
    %64 = vector.shape_cast %63 : vector<1x56x128xbf16> to vector<56x128xbf16>
    %c1_37 = arith.constant 1 : index
    %c0_38 = arith.constant 0 : index
    %c0_39 = arith.constant 0 : index
    %65 = vector.load %arg2[%c1_37, %c0_38, %c0_39] : memref<3x128x768xbf16, #tpu.memory_space<vmem>>, vector<1x128x768xbf16>
    %66 = vector.shape_cast %65 : vector<1x128x768xbf16> to vector<128x768xbf16>
    %cst_40 = arith.constant dense<0.000000e+00> : vector<56x768xf32>
    %67 = tpu.matmul %64, %66, %cst_40 {dimension_numbers = #tpu.dot_dimension_numbers<[1], [0], [0], [1], [0, 0, 1, 1], [], []>} : vector<56x128xbf16>, vector<128x768xbf16>, vector<56x768xf32> -> vector<56x768xf32>
    %68 = arith.addf %62, %67 : vector<56x768xf32>
    %69 = vector.extract_strided_slice %1 {offsets = [0, 8, 0], sizes = [1, 56, 128], strides = [1, 1, 1]} : vector<4x64x128xbf16> to vector<1x56x128xbf16>
    %70 = vector.shape_cast %69 : vector<1x56x128xbf16> to vector<56x128xbf16>
    %c2_41 = arith.constant 2 : index
    %c0_42 = arith.constant 0 : index
    %c0_43 = arith.constant 0 : index
    %71 = vector.load %arg2[%c2_41, %c0_42, %c0_43] : memref<3x128x768xbf16, #tpu.memory_space<vmem>>, vector<1x128x768xbf16>
    %72 = vector.shape_cast %71 : vector<1x128x768xbf16> to vector<128x768xbf16>
    %cst_44 = arith.constant dense<0.000000e+00> : vector<56x768xf32>
    %73 = tpu.matmul %70, %72, %cst_44 {dimension_numbers = #tpu.dot_dimension_numbers<[1], [0], [0], [1], [0, 0, 1, 1], [], []>} : vector<56x128xbf16>, vector<128x768xbf16>, vector<56x768xf32> -> vector<56x768xf32>
    %74 = arith.addf %68, %73 : vector<56x768xf32>
    %75 = vector.broadcast %2 : vector<1x768xf32> to vector<56x768xf32>
    %76 = arith.mulf %74, %75 : vector<56x768xf32>
    %77 = vector.broadcast %3 : vector<1x768xf32> to vector<56x768xf32>
    %78 = arith.addf %76, %77 : vector<56x768xf32>
    %79 = vector.extract_strided_slice %78 {offsets = [0, 0], sizes = [56, 384], strides = [1, 1]} : vector<56x768xf32> to vector<56x384xf32>
    %80 = vector.extract_strided_slice %78 {offsets = [0, 384], sizes = [56, 384], strides = [1, 1]} : vector<56x768xf32> to vector<56x384xf32>
    %81 = arith.maximumf %79, %80 : vector<56x384xf32>
    %82 = vector.extract_strided_slice %1 {offsets = [3, 0, 0], sizes = [1, 56, 128], strides = [1, 1, 1]} : vector<4x64x128xbf16> to vector<1x56x128xbf16>
    %83 = vector.shape_cast %82 : vector<1x56x128xbf16> to vector<56x128xbf16>
    %c0_45 = arith.constant 0 : index
    %c0_46 = arith.constant 0 : index
    %c0_47 = arith.constant 0 : index
    %84 = vector.load %arg2[%c0_45, %c0_46, %c0_47] : memref<3x128x768xbf16, #tpu.memory_space<vmem>>, vector<1x128x768xbf16>
    %85 = vector.shape_cast %84 : vector<1x128x768xbf16> to vector<128x768xbf16>
    %cst_48 = arith.constant dense<0.000000e+00> : vector<56x768xf32>
    %86 = tpu.matmul %83, %85, %cst_48 {dimension_numbers = #tpu.dot_dimension_numbers<[1], [0], [0], [1], [0, 0, 1, 1], [], []>} : vector<56x128xbf16>, vector<128x768xbf16>, vector<56x768xf32> -> vector<56x768xf32>
    %87 = vector.extract_strided_slice %1 {offsets = [0, 8, 0], sizes = [1, 56, 128], strides = [1, 1, 1]} : vector<4x64x128xbf16> to vector<1x56x128xbf16>
    %88 = vector.shape_cast %87 : vector<1x56x128xbf16> to vector<56x128xbf16>
    %c1_49 = arith.constant 1 : index
    %c0_50 = arith.constant 0 : index
    %c0_51 = arith.constant 0 : index
    %89 = vector.load %arg2[%c1_49, %c0_50, %c0_51] : memref<3x128x768xbf16, #tpu.memory_space<vmem>>, vector<1x128x768xbf16>
    %90 = vector.shape_cast %89 : vector<1x128x768xbf16> to vector<128x768xbf16>
    %cst_52 = arith.constant dense<0.000000e+00> : vector<56x768xf32>
    %91 = tpu.matmul %88, %90, %cst_52 {dimension_numbers = #tpu.dot_dimension_numbers<[1], [0], [0], [1], [0, 0, 1, 1], [], []>} : vector<56x128xbf16>, vector<128x768xbf16>, vector<56x768xf32> -> vector<56x768xf32>
    %92 = arith.addf %86, %91 : vector<56x768xf32>
    %93 = vector.extract_strided_slice %1 {offsets = [1, 8, 0], sizes = [1, 56, 128], strides = [1, 1, 1]} : vector<4x64x128xbf16> to vector<1x56x128xbf16>
    %94 = vector.shape_cast %93 : vector<1x56x128xbf16> to vector<56x128xbf16>
    %c2_53 = arith.constant 2 : index
    %c0_54 = arith.constant 0 : index
    %c0_55 = arith.constant 0 : index
    %95 = vector.load %arg2[%c2_53, %c0_54, %c0_55] : memref<3x128x768xbf16, #tpu.memory_space<vmem>>, vector<1x128x768xbf16>
    %96 = vector.shape_cast %95 : vector<1x128x768xbf16> to vector<128x768xbf16>
    %cst_56 = arith.constant dense<0.000000e+00> : vector<56x768xf32>
    %97 = tpu.matmul %94, %96, %cst_56 {dimension_numbers = #tpu.dot_dimension_numbers<[1], [0], [0], [1], [0, 0, 1, 1], [], []>} : vector<56x128xbf16>, vector<128x768xbf16>, vector<56x768xf32> -> vector<56x768xf32>
    %98 = arith.addf %92, %97 : vector<56x768xf32>
    %99 = vector.broadcast %2 : vector<1x768xf32> to vector<56x768xf32>
    %100 = arith.mulf %98, %99 : vector<56x768xf32>
    %101 = vector.broadcast %3 : vector<1x768xf32> to vector<56x768xf32>
    %102 = arith.addf %100, %101 : vector<56x768xf32>
    %103 = vector.extract_strided_slice %102 {offsets = [0, 0], sizes = [56, 384], strides = [1, 1]} : vector<56x768xf32> to vector<56x384xf32>
    %104 = vector.extract_strided_slice %102 {offsets = [0, 384], sizes = [56, 384], strides = [1, 1]} : vector<56x768xf32> to vector<56x384xf32>
    %105 = arith.maximumf %103, %104 : vector<56x384xf32>
    %106 = arith.maximumf %81, %105 : vector<56x384xf32>
    %cst_57 = arith.constant 0.000000e+00 : f32
    %107 = vector.broadcast %cst_57 : f32 to vector<56x384xf32>
    %108 = arith.maximumf %106, %107 : vector<56x384xf32>
    %109 = arith.truncf %108 : vector<56x384xf32> to vector<56x384xbf16>
    %110 = vector.extract_strided_slice %57 {offsets = [0, 0], sizes = [48, 384], strides = [1, 1]} : vector<64x384xbf16> to vector<48x384xbf16>
    %c0_58 = arith.constant 0 : index
    %c0_59 = arith.constant 0 : index
    %c0_60 = arith.constant 0 : index
    %111 = vector.load %arg5[%c0_58, %c0_59, %c0_60] : memref<4x384x512xbf16, #tpu.memory_space<vmem>>, vector<1x384x512xbf16>
    %112 = vector.shape_cast %111 : vector<1x384x512xbf16> to vector<384x512xbf16>
    %cst_61 = arith.constant dense<0.000000e+00> : vector<48x512xf32>
    %113 = tpu.matmul %110, %112, %cst_61 {dimension_numbers = #tpu.dot_dimension_numbers<[1], [0], [0], [1], [0, 0, 1, 1], [], []>} : vector<48x384xbf16>, vector<384x512xbf16>, vector<48x512xf32> -> vector<48x512xf32>
    %114 = vector.extract_strided_slice %109 {offsets = [0, 0], sizes = [48, 384], strides = [1, 1]} : vector<56x384xbf16> to vector<48x384xbf16>
    %c1_62 = arith.constant 1 : index
    %c0_63 = arith.constant 0 : index
    %c0_64 = arith.constant 0 : index
    %115 = vector.load %arg5[%c1_62, %c0_63, %c0_64] : memref<4x384x512xbf16, #tpu.memory_space<vmem>>, vector<1x384x512xbf16>
    %116 = vector.shape_cast %115 : vector<1x384x512xbf16> to vector<384x512xbf16>
    %cst_65 = arith.constant dense<0.000000e+00> : vector<48x512xf32>
    %117 = tpu.matmul %114, %116, %cst_65 {dimension_numbers = #tpu.dot_dimension_numbers<[1], [0], [0], [1], [0, 0, 1, 1], [], []>} : vector<48x384xbf16>, vector<384x512xbf16>, vector<48x512xf32> -> vector<48x512xf32>
    %118 = arith.addf %113, %117 : vector<48x512xf32>
    %119 = vector.extract_strided_slice %57 {offsets = [8, 0], sizes = [48, 384], strides = [1, 1]} : vector<64x384xbf16> to vector<48x384xbf16>
    %c2_66 = arith.constant 2 : index
    %c0_67 = arith.constant 0 : index
    %c0_68 = arith.constant 0 : index
    %120 = vector.load %arg5[%c2_66, %c0_67, %c0_68] : memref<4x384x512xbf16, #tpu.memory_space<vmem>>, vector<1x384x512xbf16>
    %121 = vector.shape_cast %120 : vector<1x384x512xbf16> to vector<384x512xbf16>
    %cst_69 = arith.constant dense<0.000000e+00> : vector<48x512xf32>
    %122 = tpu.matmul %119, %121, %cst_69 {dimension_numbers = #tpu.dot_dimension_numbers<[1], [0], [0], [1], [0, 0, 1, 1], [], []>} : vector<48x384xbf16>, vector<384x512xbf16>, vector<48x512xf32> -> vector<48x512xf32>
    %123 = arith.addf %118, %122 : vector<48x512xf32>
    %124 = vector.extract_strided_slice %109 {offsets = [8, 0], sizes = [48, 384], strides = [1, 1]} : vector<56x384xbf16> to vector<48x384xbf16>
    %c3 = arith.constant 3 : index
    %c0_70 = arith.constant 0 : index
    %c0_71 = arith.constant 0 : index
    %125 = vector.load %arg5[%c3, %c0_70, %c0_71] : memref<4x384x512xbf16, #tpu.memory_space<vmem>>, vector<1x384x512xbf16>
    %126 = vector.shape_cast %125 : vector<1x384x512xbf16> to vector<384x512xbf16>
    %cst_72 = arith.constant dense<0.000000e+00> : vector<48x512xf32>
    %127 = tpu.matmul %124, %126, %cst_72 {dimension_numbers = #tpu.dot_dimension_numbers<[1], [0], [0], [1], [0, 0, 1, 1], [], []>} : vector<48x384xbf16>, vector<384x512xbf16>, vector<48x512xf32> -> vector<48x512xf32>
    %128 = arith.addf %123, %127 : vector<48x512xf32>
    %129 = vector.broadcast %4 : vector<1x512xf32> to vector<48x512xf32>
    %130 = arith.mulf %128, %129 : vector<48x512xf32>
    %131 = vector.broadcast %5 : vector<1x512xf32> to vector<48x512xf32>
    %132 = arith.addf %130, %131 : vector<48x512xf32>
    %133 = vector.extract_strided_slice %132 {offsets = [0, 0], sizes = [48, 256], strides = [1, 1]} : vector<48x512xf32> to vector<48x256xf32>
    %134 = vector.extract_strided_slice %132 {offsets = [0, 256], sizes = [48, 256], strides = [1, 1]} : vector<48x512xf32> to vector<48x256xf32>
    %135 = arith.maximumf %133, %134 : vector<48x256xf32>
    %136 = vector.extract_strided_slice %109 {offsets = [0, 0], sizes = [48, 384], strides = [1, 1]} : vector<56x384xbf16> to vector<48x384xbf16>
    %c0_73 = arith.constant 0 : index
    %c0_74 = arith.constant 0 : index
    %c0_75 = arith.constant 0 : index
    %137 = vector.load %arg5[%c0_73, %c0_74, %c0_75] : memref<4x384x512xbf16, #tpu.memory_space<vmem>>, vector<1x384x512xbf16>
    %138 = vector.shape_cast %137 : vector<1x384x512xbf16> to vector<384x512xbf16>
    %cst_76 = arith.constant dense<0.000000e+00> : vector<48x512xf32>
    %139 = tpu.matmul %136, %138, %cst_76 {dimension_numbers = #tpu.dot_dimension_numbers<[1], [0], [0], [1], [0, 0, 1, 1], [], []>} : vector<48x384xbf16>, vector<384x512xbf16>, vector<48x512xf32> -> vector<48x512xf32>
    %140 = vector.extract_strided_slice %57 {offsets = [8, 0], sizes = [48, 384], strides = [1, 1]} : vector<64x384xbf16> to vector<48x384xbf16>
    %c1_77 = arith.constant 1 : index
    %c0_78 = arith.constant 0 : index
    %c0_79 = arith.constant 0 : index
    %141 = vector.load %arg5[%c1_77, %c0_78, %c0_79] : memref<4x384x512xbf16, #tpu.memory_space<vmem>>, vector<1x384x512xbf16>
    %142 = vector.shape_cast %141 : vector<1x384x512xbf16> to vector<384x512xbf16>
    %cst_80 = arith.constant dense<0.000000e+00> : vector<48x512xf32>
    %143 = tpu.matmul %140, %142, %cst_80 {dimension_numbers = #tpu.dot_dimension_numbers<[1], [0], [0], [1], [0, 0, 1, 1], [], []>} : vector<48x384xbf16>, vector<384x512xbf16>, vector<48x512xf32> -> vector<48x512xf32>
    %144 = arith.addf %139, %143 : vector<48x512xf32>
    %145 = vector.extract_strided_slice %109 {offsets = [8, 0], sizes = [48, 384], strides = [1, 1]} : vector<56x384xbf16> to vector<48x384xbf16>
    %c2_81 = arith.constant 2 : index
    %c0_82 = arith.constant 0 : index
    %c0_83 = arith.constant 0 : index
    %146 = vector.load %arg5[%c2_81, %c0_82, %c0_83] : memref<4x384x512xbf16, #tpu.memory_space<vmem>>, vector<1x384x512xbf16>
    %147 = vector.shape_cast %146 : vector<1x384x512xbf16> to vector<384x512xbf16>
    %cst_84 = arith.constant dense<0.000000e+00> : vector<48x512xf32>
    %148 = tpu.matmul %145, %147, %cst_84 {dimension_numbers = #tpu.dot_dimension_numbers<[1], [0], [0], [1], [0, 0, 1, 1], [], []>} : vector<48x384xbf16>, vector<384x512xbf16>, vector<48x512xf32> -> vector<48x512xf32>
    %149 = arith.addf %144, %148 : vector<48x512xf32>
    %150 = vector.extract_strided_slice %57 {offsets = [16, 0], sizes = [48, 384], strides = [1, 1]} : vector<64x384xbf16> to vector<48x384xbf16>
    %c3_85 = arith.constant 3 : index
    %c0_86 = arith.constant 0 : index
    %c0_87 = arith.constant 0 : index
    %151 = vector.load %arg5[%c3_85, %c0_86, %c0_87] : memref<4x384x512xbf16, #tpu.memory_space<vmem>>, vector<1x384x512xbf16>
    %152 = vector.shape_cast %151 : vector<1x384x512xbf16> to vector<384x512xbf16>
    %cst_88 = arith.constant dense<0.000000e+00> : vector<48x512xf32>
    %153 = tpu.matmul %150, %152, %cst_88 {dimension_numbers = #tpu.dot_dimension_numbers<[1], [0], [0], [1], [0, 0, 1, 1], [], []>} : vector<48x384xbf16>, vector<384x512xbf16>, vector<48x512xf32> -> vector<48x512xf32>
    %154 = arith.addf %149, %153 : vector<48x512xf32>
    %155 = vector.broadcast %4 : vector<1x512xf32> to vector<48x512xf32>
    %156 = arith.mulf %154, %155 : vector<48x512xf32>
    %157 = vector.broadcast %5 : vector<1x512xf32> to vector<48x512xf32>
    %158 = arith.addf %156, %157 : vector<48x512xf32>
    %159 = vector.extract_strided_slice %158 {offsets = [0, 0], sizes = [48, 256], strides = [1, 1]} : vector<48x512xf32> to vector<48x256xf32>
    %160 = vector.extract_strided_slice %158 {offsets = [0, 256], sizes = [48, 256], strides = [1, 1]} : vector<48x512xf32> to vector<48x256xf32>
    %161 = arith.maximumf %159, %160 : vector<48x256xf32>
    %162 = arith.maximumf %135, %161 : vector<48x256xf32>
    %cst_89 = arith.constant 0.000000e+00 : f32
    %163 = vector.broadcast %cst_89 : f32 to vector<48x256xf32>
    %164 = arith.maximumf %162, %163 : vector<48x256xf32>
    %165 = arith.truncf %164 : vector<48x256xf32> to vector<48x256xbf16>
    %166 = vector.extract_strided_slice %165 {offsets = [0, 0], sizes = [8, 256], strides = [1, 1]} : vector<48x256xbf16> to vector<8x256xbf16>
    %c0_90 = arith.constant 0 : index
    %c0_91 = arith.constant 0 : index
    %c0_92 = arith.constant 0 : index
    %167 = vector.load %arg8[%c0_90, %c0_91, %c0_92] : memref<6x256x128xbf16, #tpu.memory_space<vmem>>, vector<1x256x128xbf16>
    %168 = vector.shape_cast %167 : vector<1x256x128xbf16> to vector<256x128xbf16>
    %cst_93 = arith.constant dense<0.000000e+00> : vector<8x128xf32>
    %169 = tpu.matmul %166, %168, %cst_93 {dimension_numbers = #tpu.dot_dimension_numbers<[1], [0], [0], [1], [0, 0, 1, 1], [], []>} : vector<8x256xbf16>, vector<256x128xbf16>, vector<8x128xf32> -> vector<8x128xf32>
    %170 = vector.extract_strided_slice %165 {offsets = [8, 0], sizes = [8, 256], strides = [1, 1]} : vector<48x256xbf16> to vector<8x256xbf16>
    %c1_94 = arith.constant 1 : index
    %c0_95 = arith.constant 0 : index
    %c0_96 = arith.constant 0 : index
    %171 = vector.load %arg8[%c1_94, %c0_95, %c0_96] : memref<6x256x128xbf16, #tpu.memory_space<vmem>>, vector<1x256x128xbf16>
    %172 = vector.shape_cast %171 : vector<1x256x128xbf16> to vector<256x128xbf16>
    %cst_97 = arith.constant dense<0.000000e+00> : vector<8x128xf32>
    %173 = tpu.matmul %170, %172, %cst_97 {dimension_numbers = #tpu.dot_dimension_numbers<[1], [0], [0], [1], [0, 0, 1, 1], [], []>} : vector<8x256xbf16>, vector<256x128xbf16>, vector<8x128xf32> -> vector<8x128xf32>
    %174 = arith.addf %169, %173 : vector<8x128xf32>
    %175 = vector.extract_strided_slice %165 {offsets = [16, 0], sizes = [8, 256], strides = [1, 1]} : vector<48x256xbf16> to vector<8x256xbf16>
    %c2_98 = arith.constant 2 : index
    %c0_99 = arith.constant 0 : index
    %c0_100 = arith.constant 0 : index
    %176 = vector.load %arg8[%c2_98, %c0_99, %c0_100] : memref<6x256x128xbf16, #tpu.memory_space<vmem>>, vector<1x256x128xbf16>
    %177 = vector.shape_cast %176 : vector<1x256x128xbf16> to vector<256x128xbf16>
    %cst_101 = arith.constant dense<0.000000e+00> : vector<8x128xf32>
    %178 = tpu.matmul %175, %177, %cst_101 {dimension_numbers = #tpu.dot_dimension_numbers<[1], [0], [0], [1], [0, 0, 1, 1], [], []>} : vector<8x256xbf16>, vector<256x128xbf16>, vector<8x128xf32> -> vector<8x128xf32>
    %179 = arith.addf %174, %178 : vector<8x128xf32>
    %180 = vector.extract_strided_slice %165 {offsets = [24, 0], sizes = [8, 256], strides = [1, 1]} : vector<48x256xbf16> to vector<8x256xbf16>
    %c3_102 = arith.constant 3 : index
    %c0_103 = arith.constant 0 : index
    %c0_104 = arith.constant 0 : index
    %181 = vector.load %arg8[%c3_102, %c0_103, %c0_104] : memref<6x256x128xbf16, #tpu.memory_space<vmem>>, vector<1x256x128xbf16>
    %182 = vector.shape_cast %181 : vector<1x256x128xbf16> to vector<256x128xbf16>
    %cst_105 = arith.constant dense<0.000000e+00> : vector<8x128xf32>
    %183 = tpu.matmul %180, %182, %cst_105 {dimension_numbers = #tpu.dot_dimension_numbers<[1], [0], [0], [1], [0, 0, 1, 1], [], []>} : vector<8x256xbf16>, vector<256x128xbf16>, vector<8x128xf32> -> vector<8x128xf32>
    %184 = arith.addf %179, %183 : vector<8x128xf32>
    %185 = vector.extract_strided_slice %165 {offsets = [32, 0], sizes = [8, 256], strides = [1, 1]} : vector<48x256xbf16> to vector<8x256xbf16>
    %c4 = arith.constant 4 : index
    %c0_106 = arith.constant 0 : index
    %c0_107 = arith.constant 0 : index
    %186 = vector.load %arg8[%c4, %c0_106, %c0_107] : memref<6x256x128xbf16, #tpu.memory_space<vmem>>, vector<1x256x128xbf16>
    %187 = vector.shape_cast %186 : vector<1x256x128xbf16> to vector<256x128xbf16>
    %cst_108 = arith.constant dense<0.000000e+00> : vector<8x128xf32>
    %188 = tpu.matmul %185, %187, %cst_108 {dimension_numbers = #tpu.dot_dimension_numbers<[1], [0], [0], [1], [0, 0, 1, 1], [], []>} : vector<8x256xbf16>, vector<256x128xbf16>, vector<8x128xf32> -> vector<8x128xf32>
    %189 = arith.addf %184, %188 : vector<8x128xf32>
    %190 = vector.extract_strided_slice %165 {offsets = [40, 0], sizes = [8, 256], strides = [1, 1]} : vector<48x256xbf16> to vector<8x256xbf16>
    %c5 = arith.constant 5 : index
    %c0_109 = arith.constant 0 : index
    %c0_110 = arith.constant 0 : index
    %191 = vector.load %arg8[%c5, %c0_109, %c0_110] : memref<6x256x128xbf16, #tpu.memory_space<vmem>>, vector<1x256x128xbf16>
    %192 = vector.shape_cast %191 : vector<1x256x128xbf16> to vector<256x128xbf16>
    %cst_111 = arith.constant dense<0.000000e+00> : vector<8x128xf32>
    %193 = tpu.matmul %190, %192, %cst_111 {dimension_numbers = #tpu.dot_dimension_numbers<[1], [0], [0], [1], [0, 0, 1, 1], [], []>} : vector<8x256xbf16>, vector<256x128xbf16>, vector<8x128xf32> -> vector<8x128xf32>
    %194 = arith.addf %189, %193 : vector<8x128xf32>
    %c0_112 = arith.constant 0 : index
    %c0_113 = arith.constant 0 : index
    %195 = vector.load %arg9[%c0_112, %c0_113] : memref<1x128xf32, #tpu.memory_space<vmem>>, vector<1x128xf32>
    %196 = vector.broadcast %195 : vector<1x128xf32> to vector<8x128xf32>
    %197 = arith.mulf %194, %196 : vector<8x128xf32>
    %c0_114 = arith.constant 0 : index
    %c0_115 = arith.constant 0 : index
    %198 = vector.load %arg10[%c0_114, %c0_115] : memref<1x128xf32, #tpu.memory_space<vmem>>, vector<1x128xf32>
    %199 = vector.broadcast %198 : vector<1x128xf32> to vector<8x128xf32>
    %200 = arith.addf %197, %199 : vector<8x128xf32>
    %cst_116 = arith.constant 0.000000e+00 : f32
    %201 = vector.broadcast %cst_116 : f32 to vector<8x128xf32>
    %202 = arith.maximumf %200, %201 : vector<8x128xf32>
    %203 = arith.truncf %202 : vector<8x128xf32> to vector<8x128xbf16>
    %c0_117 = arith.constant 0 : index
    %c0_118 = arith.constant 0 : index
    %204 = vector.load %arg11[%c0_117, %c0_118] : memref<128x128xbf16, #tpu.memory_space<vmem>>, vector<128x128xbf16>
    %cst_119 = arith.constant dense<0.000000e+00> : vector<8x128xf32>
    %205 = tpu.matmul %203, %204, %cst_119 {dimension_numbers = #tpu.dot_dimension_numbers<[1], [0], [0], [1], [0, 0, 1, 1], [], []>} : vector<8x128xbf16>, vector<128x128xbf16>, vector<8x128xf32> -> vector<8x128xf32>
    %c0_120 = arith.constant 0 : index
    %c0_121 = arith.constant 0 : index
    %206 = vector.load %arg12[%c0_120, %c0_121] : memref<1x128xf32, #tpu.memory_space<vmem>>, vector<1x128xf32>
    %207 = vector.broadcast %206 : vector<1x128xf32> to vector<8x128xf32>
    %208 = arith.mulf %205, %207 : vector<8x128xf32>
    %c0_122 = arith.constant 0 : index
    %c0_123 = arith.constant 0 : index
    %209 = vector.load %arg13[%c0_122, %c0_123] : memref<1x128xf32, #tpu.memory_space<vmem>>, vector<1x128xf32>
    %210 = vector.broadcast %209 : vector<1x128xf32> to vector<8x128xf32>
    %211 = arith.addf %208, %210 : vector<8x128xf32>
    %cst_124 = arith.constant 0.000000e+00 : f32
    %212 = vector.broadcast %cst_124 : f32 to vector<8x128xf32>
    %213 = arith.maximumf %211, %212 : vector<8x128xf32>
    %214 = arith.truncf %213 : vector<8x128xf32> to vector<8x128xbf16>
    %c0_125 = arith.constant 0 : index
    %c0_126 = arith.constant 0 : index
    %215 = vector.load %arg14[%c0_125, %c0_126] : memref<128x128xbf16, #tpu.memory_space<vmem>>, vector<128x128xbf16>
    %cst_127 = arith.constant dense<0.000000e+00> : vector<8x128xf32>
    %216 = tpu.matmul %214, %215, %cst_127 {dimension_numbers = #tpu.dot_dimension_numbers<[1], [0], [0], [1], [0, 0, 1, 1], [], []>} : vector<8x128xbf16>, vector<128x128xbf16>, vector<8x128xf32> -> vector<8x128xf32>
    %c0_128 = arith.constant 0 : index
    %c0_129 = arith.constant 0 : index
    %217 = vector.load %arg15[%c0_128, %c0_129] : memref<1x128xf32, #tpu.memory_space<vmem>>, vector<1x128xf32>
    %218 = vector.broadcast %217 : vector<1x128xf32> to vector<8x128xf32>
    %219 = arith.addf %216, %218 : vector<8x128xf32>
    %c0_130 = arith.constant 0 : index
    %c0_131 = arith.constant 0 : index
    %220 = vector.load %arg16[%c0_130, %c0_131] : memref<8x128xf32, #tpu.memory_space<vmem>>, vector<8x128xf32>
    tpu.vector_store %arg16[%c0_130, %c0_131], %219 {strides = array<i32>} : memref<8x128xf32, #tpu.memory_space<vmem>>, vector<8x128xf32>,
    return
  }
  func.func @transform_0(%arg0: i32) -> (i32, i32, i32, i32) {
    %c0_i32 = arith.constant 0 : i32
    %c0_i32_0 = arith.constant 0 : i32
    %c0_i32_1 = arith.constant 0 : i32
    %c0_i32_2 = arith.constant 0 : i32
    return %arg0, %c0_i32, %c0_i32_0, %c0_i32_1 : i32, i32, i32, i32
  }
  func.func @transform_1(%arg0: i32) -> (i32, i32, i32) {
    %c0_i32 = arith.constant 0 : i32
    %c0_i32_0 = arith.constant 0 : i32
    %c0_i32_1 = arith.constant 0 : i32
    %c0_i32_2 = arith.constant 0 : i32
    return %c0_i32, %c0_i32_0, %c0_i32_1 : i32, i32, i32
  }
  func.func @transform_2(%arg0: i32) -> (i32, i32) {
    %c0_i32 = arith.constant 0 : i32
    %c0_i32_0 = arith.constant 0 : i32
    %c0_i32_1 = arith.constant 0 : i32
    return %c0_i32, %c0_i32_0 : i32, i32
  }
  func.func @transform_3(%arg0: i32) -> (i32, i32) {
    %c0_i32 = arith.constant 0 : i32
    %c0_i32_0 = arith.constant 0 : i32
    %c0_i32_1 = arith.constant 0 : i32
    return %c0_i32, %c0_i32_0 : i32, i32
  }
  func.func @transform_4(%arg0: i32) -> (i32, i32, i32) {
    %c0_i32 = arith.constant 0 : i32
    %c0_i32_0 = arith.constant 0 : i32
    %c0_i32_1 = arith.constant 0 : i32
    %c0_i32_2 = arith.constant 0 : i32
    return %c0_i32, %c0_i32_0, %c0_i32_1 : i32, i32, i32
  }
  func.func @transform_5(%arg0: i32) -> (i32, i32) {
    %c0_i32 = arith.constant 0 : i32
    %c0_i32_0 = arith.constant 0 : i32
    %c0_i32_1 = arith.constant 0 : i32
    return %c0_i32, %c0_i32_0 : i32, i32
  }
  func.func @transform_6(%arg0: i32) -> (i32, i32) {
    %c0_i32 = arith.constant 0 : i32
    %c0_i32_0 = arith.constant 0 : i32
    %c0_i32_1 = arith.constant 0 : i32
    return %c0_i32, %c0_i32_0 : i32, i32
  }
  func.func @transform_7(%arg0: i32) -> (i32, i32, i32) {
    %c0_i32 = arith.constant 0 : i32
    %c0_i32_0 = arith.constant 0 : i32
    %c0_i32_1 = arith.constant 0 : i32
    %c0_i32_2 = arith.constant 0 : i32
    return %c0_i32, %c0_i32_0, %c0_i32_1 : i32, i32, i32
  }
  func.func @transform_8(%arg0: i32) -> (i32, i32) {
    %c0_i32 = arith.constant 0 : i32
    %c0_i32_0 = arith.constant 0 : i32
    %c0_i32_1 = arith.constant 0 : i32
    return %c0_i32, %c0_i32_0 : i32, i32
  }
  func.func @transform_9(%arg0: i32) -> (i32, i32) {
    %c0_i32 = arith.constant 0 : i32
    %c0_i32_0 = arith.constant 0 : i32
    %c0_i32_1 = arith.constant 0 : i32
    return %c0_i32, %c0_i32_0 : i32, i32
  }
  func.func @transform_10(%arg0: i32) -> (i32, i32) {
    %c0_i32 = arith.constant 0 : i32
    %c0_i32_0 = arith.constant 0 : i32
    %c0_i32_1 = arith.constant 0 : i32
    return %c0_i32, %c0_i32_0 : i32, i32
  }
  func.func @transform_11(%arg0: i32) -> (i32, i32) {
    %c0_i32 = arith.constant 0 : i32
    %c0_i32_0 = arith.constant 0 : i32
    %c0_i32_1 = arith.constant 0 : i32
    return %c0_i32, %c0_i32_0 : i32, i32
  }
  func.func @transform_12(%arg0: i32) -> (i32, i32) {
    %c0_i32 = arith.constant 0 : i32
    %c0_i32_0 = arith.constant 0 : i32
    %c0_i32_1 = arith.constant 0 : i32
    return %c0_i32, %c0_i32_0 : i32, i32
  }
  func.func @transform_13(%arg0: i32) -> (i32, i32) {
    %c0_i32 = arith.constant 0 : i32
    %c0_i32_0 = arith.constant 0 : i32
    %c0_i32_1 = arith.constant 0 : i32
    return %c0_i32, %c0_i32_0 : i32, i32
  }
  func.func @transform_14(%arg0: i32) -> (i32, i32) {
    %c0_i32 = arith.constant 0 : i32
    %c0_i32_0 = arith.constant 0 : i32
    %c0_i32_1 = arith.constant 0 : i32
    return %c0_i32, %c0_i32_0 : i32, i32
  }
  func.func @transform_15(%arg0: i32) -> (i32, i32) {
    %c0_i32 = arith.constant 0 : i32
    %c0_i32_0 = arith.constant 0 : i32
    return %arg0, %c0_i32 : i32, i32
  }
}

</mosaic_0001>

<llo_original>
// kernel: forward.1
$region0: #{forward.1}
  #allocation0 [shape = 'u32[]', space=smem, size = 0x4, offset = 0x4, fixed_abs, tag = 'smem constant byte address 0x4 - core index']
  #allocation1 [shape = 'u32[144,128]{1,0:T(1,128)}', space=vmem, size = 0x12000, scoped, tag = 'internal scratch']
  %s0 = inlined_call_operand.vmem [shape: bf16[1,4,64,128], index: 0, kind: input, shape index: {}]
  %s1 = inlined_call_operand.vmem [shape: bf16[3,128,768], index: 1, kind: input, shape index: {}]
  %s2 = inlined_call_operand.hbm [shape: f32[1,768], index: 2, kind: input, shape index: {}]
  %s3 = inlined_call_operand.hbm [shape: f32[1,768], index: 3, kind: input, shape index: {}]
  %s4 = inlined_call_operand.hbm [shape: bf16[4,384,512], index: 4, kind: input, shape index: {}]
  %s5 = inlined_call_operand.hbm [shape: f32[1,512], index: 5, kind: input, shape index: {}]
  %s6 = inlined_call_operand.hbm [shape: f32[1,512], index: 6, kind: input, shape index: {}]
  %s7 = inlined_call_operand.vmem [shape: bf16[6,256,128], index: 7, kind: input, shape index: {}]
  %s8 = inlined_call_operand.hbm [shape: f32[1,128], index: 8, kind: input, shape index: {}]
  %s9 = inlined_call_operand.hbm [shape: f32[1,128], index: 9, kind: input, shape index: {}]
  %s10 = inlined_call_operand.hbm [shape: bf16[128,128], index: 10, kind: input, shape index: {}]
  %s11 = inlined_call_operand.hbm [shape: f32[1,128], index: 11, kind: input, shape index: {}]
  %s12 = inlined_call_operand.hbm [shape: f32[1,128], index: 12, kind: input, shape index: {}]
  %s13 = inlined_call_operand.hbm [shape: bf16[128,128], index: 13, kind: input, shape index: {}]
  %s14 = inlined_call_operand.hbm [shape: f32[1,128], index: 14, kind: input, shape index: {}]
  %s15 = inlined_call_operand.vmem [shape: f32[8,128], index: 15, kind: output, shape index: {}]
  %s16 = sld [smem:[#allocation0]]
  $region118: #{forward.1} parent=0
    _
  %s18 = ssub.s32 1, %s16
  %s19 = scalar_select 0, %s18, %s16
  $region1: #{forward.1} parent=0
    #allocation2 [shape = 'u8[3072]{0}', space=vmem, size = 0xc00, scoped, tag = 'input window, operand 2, single buffered']
    #allocation3 [shape = 's32[1]{0}', space=sflag, size = 0x4, scoped, tag = 'scoped memory for forward.1']
    #allocation4 [shape = 'u8[3072]{0}', space=vmem, size = 0xc00, scoped, tag = 'input window, operand 3, single buffered']
    #allocation5 [shape = 's32[1]{0}', space=sflag, size = 0x4, scoped, tag = 'scoped memory for forward.1']
    #allocation6 [shape = 'u8[1572864]{0}', space=vmem, size = 0x180000, scoped, tag = 'input window, operand 4, single buffered']
    #allocation7 [shape = 'u8[2048]{0}', space=vmem, size = 0x800, scoped, tag = 'input window, operand 5, single buffered']
    #allocation8 [shape = 's32[1]{0}', space=sflag, size = 0x4, scoped, tag = 'scoped memory for forward.1']
    #allocation9 [shape = 'u8[2048]{0}', space=vmem, size = 0x800, scoped, tag = 'input window, operand 6, single buffered']
    #allocation10 [shape = 'u8[512]{0}', space=vmem, size = 0x400, scoped, tag = 'input window, operand 8, single buffered']
    #allocation11 [shape = 's32[1]{0}', space=sflag, size = 0x4, scoped, tag = 'scoped memory for forward.1']
    #allocation12 [shape = 'u8[512]{0}', space=vmem, size = 0x400, scoped, tag = 'input window, operand 9, single buffered']
    #allocation13 [shape = 'u8[32768]{0}', space=vmem, size = 0x8000, scoped, tag = 'input window, operand 10, single buffered']
    #allocation14 [shape = 's32[1]{0}', space=sflag, size = 0x4, scoped, tag = 'scoped memory for forward.1']
    #allocation15 [shape = 'u8[512]{0}', space=vmem, size = 0x400, scoped, tag = 'input window, operand 11, single buffered']
    #allocation16 [shape = 'u8[512]{0}', space=vmem, size = 0x400, scoped, tag = 'input window, operand 12, single buffered']
    #allocation17 [shape = 's32[1]{0}', space=sflag, size = 0x4, scoped, tag = 'scoped memory for forward.1']
    #allocation18 [shape = 'u8[32768]{0}', space=vmem, size = 0x8000, scoped, tag = 'input window, operand 13, single buffered']
    #allocation19 [shape = 'u8[512]{0}', space=vmem, size = 0x400, scoped, tag = 'input window, operand 14, single buffered']
    #allocation20 [shape = 's32[1]{0}', space=sflag, size = 0x4, scoped, tag = 'scoped memory for forward.1']
    %20 = vsyncpa [#allocation3], 0
    %21 = vsyncpa [#allocation5], 0
    %22 = vsyncpa [#allocation8], 0
    %23 = vsyncpa [#allocation11], 0
    %24 = vsyncpa [#allocation14], 0
    %25 = vsyncpa [#allocation17], 0
    %26 = vsyncpa [#allocation20], 0
    // Predicated region
    $region2: #{forward.1} parent=1 // pred_check
      _
    $region3: #{forward.1} parent=1 // pred_check_branch
      %28 = sbr.rel (0) target = $region5
    $region4: #{forward.1} parent=1 // pred_region
      _
    $region5: #{forward.1} parent=1 // pred_fallthru
      _
    // Predicated region
    $region6: #{forward.1} parent=1 // pred_check
      _
    $region7: #{forward.1} parent=1 // pred_check_branch
      %30 = sbr.rel (0) target = $region9
    $region8: #{forward.1} parent=1 // pred_region
      _
    $region9: #{forward.1} parent=1 // pred_fallthru
      _
    // Predicated region
    $region10: #{forward.1} parent=1 // pred_check
      _
    $region11: #{forward.1} parent=1 // pred_check_branch
      %32 = sbr.rel (0) target = $region13
    $region12: #{forward.1} parent=1 // pred_region
      %s34 = ssub.s32 96, 96
      %35 = vsyncadd [#allocation3], %s34
      %s37 = sshll.u32 [#allocation2], 4
      %s38 = int_to_ptr.vmem [resolvable:$true] %s37
      %40 = dma.hbm_to_vmem [thread:$0]  %s2, 96, %s38, [#allocation3]
    $region13: #{forward.1} parent=1 // pred_fallthru
      _
    // Predicated region
    $region14: #{forward.1} parent=1 // pred_check
      _
    $region15: #{forward.1} parent=1 // pred_check_branch
      %42 = sbr.rel (0) target = $region17
    $region16: #{forward.1} parent=1 // pred_region
      %s44 = ssub.s32 96, 96
      %45 = vsyncadd [#allocation5], %s44
      %s47 = sshll.u32 [#allocation4], 4
      %s48 = int_to_ptr.vmem [resolvable:$true] %s47
      %50 = dma.hbm_to_vmem [thread:$0]  %s3, 96, %s48, [#allocation5]
    $region17: #{forward.1} parent=1 // pred_fallthru
      _
    // Predicated region
    $region18: #{forward.1} parent=1 // pred_check
      _
    $region19: #{forward.1} parent=1 // pred_check_branch
      %52 = sbr.rel (0) target = $region21
    $region20: #{forward.1} parent=1 // pred_region
      %s54 = ssub.s32 49152, 49152
      %55 = vsyncadd [#allocation5], %s54
      %s56 = sshll.u32 [#allocation6], 4
      %s57 = int_to_ptr.vmem [resolvable:$true] %s56
      %62 = dma.hbm_to_vmem [thread:$0]  %s4, 49152, %s57, [#allocation5], 256, 256, 16
    $region21: #{forward.1} parent=1 // pred_fallthru
      _
    // Predicated region
    $region22: #{forward.1} parent=1 // pred_check
      _
    $region23: #{forward.1} parent=1 // pred_check_branch
      %64 = sbr.rel (0) target = $region25
    $region24: #{forward.1} parent=1 // pred_region
      %s66 = ssub.s32 64, 64
      %67 = vsyncadd [#allocation8], %s66
      %s69 = sshll.u32 [#allocation7], 4
      %s70 = int_to_ptr.vmem [resolvable:$true] %s69
      %72 = dma.hbm_to_vmem [thread:$0]  %s5, 64, %s70, [#allocation8]
    $region25: #{forward.1} parent=1 // pred_fallthru
      _
    // Predicated region
    $region26: #{forward.1} parent=1 // pred_check
      _
    $region27: #{forward.1} parent=1 // pred_check_branch
      %74 = sbr.rel (0) target = $region29
    $region28: #{forward.1} parent=1 // pred_region
      %s76 = ssub.s32 64, 64
      %77 = vsyncadd [#allocation8], %s76
      %s79 = sshll.u32 [#allocation9], 4
      %s80 = int_to_ptr.vmem [resolvable:$true] %s79
      %82 = dma.hbm_to_vmem [thread:$0]  %s6, 64, %s80, [#allocation8]
    $region29: #{forward.1} parent=1 // pred_fallthru
      _
    // Predicated region
    $region30: #{forward.1} parent=1 // pred_check
      _
    $region31: #{forward.1} parent=1 // pred_check_branch
      %84 = sbr.rel (0) target = $region33
    $region32: #{forward.1} parent=1 // pred_region
      _
    $region33: #{forward.1} parent=1 // pred_fallthru
      _
    // Predicated region
    $region34: #{forward.1} parent=1 // pred_check
      _
    $region35: #{forward.1} parent=1 // pred_check_branch
      %86 = sbr.rel (0) target = $region37
    $region36: #{forward.1} parent=1 // pred_region
      %s88 = ssub.s32 16, 16
      %89 = vsyncadd [#allocation11], %s88
      %s91 = sshll.u32 [#allocation10], 4
      %s92 = int_to_ptr.vmem [resolvable:$true] %s91
      %94 = dma.hbm_to_vmem [thread:$0]  %s8, 16, %s92, [#allocation11]
    $region37: #{forward.1} parent=1 // pred_fallthru
      _
    // Predicated region
    $region38: #{forward.1} parent=1 // pred_check
      _
    $region39: #{forward.1} parent=1 // pred_check_branch
      %96 = sbr.rel (0) target = $region41
    $region40: #{forward.1} parent=1 // pred_region
      %s98 = ssub.s32 16, 16
      %99 = vsyncadd [#allocation11], %s98
      %s101 = sshll.u32 [#allocation12], 4
      %s102 = int_to_ptr.vmem [resolvable:$true] %s101
      %104 = dma.hbm_to_vmem [thread:$0]  %s9, 16, %s102, [#allocation11]
    $region41: #{forward.1} parent=1 // pred_fallthru
      _
    // Predicated region
    $region42: #{forward.1} parent=1 // pred_check
      _
    $region43: #{forward.1} parent=1 // pred_check_branch
      %106 = sbr.rel (0) target = $region45
    $region44: #{forward.1} parent=1 // pred_region
      %s108 = ssub.s32 1024, 1024
      %109 = vsyncadd [#allocation14], %s108
      %s110 = sshll.u32 [#allocation13], 4
      %s111 = int_to_ptr.vmem [resolvable:$true] %s110
      %116 = dma.hbm_to_vmem [thread:$0]  %s10, 1024, %s111, [#allocation14], 64, 64, 4
    $region45: #{forward.1} parent=1 // pred_fallthru
      _
    // Predicated region
    $region46: #{forward.1} parent=1 // pred_check
      _
    $region47: #{forward.1} parent=1 // pred_check_branch
      %118 = sbr.rel (0) target = $region49
    $region48: #{forward.1} parent=1 // pred_region
      %s120 = ssub.s32 16, 16
      %121 = vsyncadd [#allocation14], %s120
      %s123 = sshll.u32 [#allocation15], 4
      %s124 = int_to_ptr.vmem [resolvable:$true] %s123
      %126 = dma.hbm_to_vmem [thread:$0]  %s11, 16, %s124, [#allocation14]
    $region49: #{forward.1} parent=1 // pred_fallthru
      _
    // Predicated region
    $region50: #{forward.1} parent=1 // pred_check
      _
    $region51: #{forward.1} parent=1 // pred_check_branch
      %128 = sbr.rel (0) target = $region53
    $region52: #{forward.1} parent=1 // pred_region
      %s130 = ssub.s32 16, 16
      %131 = vsyncadd [#allocation17], %s130
      %s133 = sshll.u32 [#allocation16], 4
      %s134 = int_to_ptr.vmem [resolvable:$true] %s133
      %136 = dma.hbm_to_vmem [thread:$0]  %s12, 16, %s134, [#allocation17]
    $region53: #{forward.1} parent=1 // pred_fallthru
      _
    // Predicated region
    $region54: #{forward.1} parent=1 // pred_check
      _
    $region55: #{forward.1} parent=1 // pred_check_branch
      %138 = sbr.rel (0) target = $region57
    $region56: #{forward.1} parent=1 // pred_region
      %s140 = ssub.s32 1024, 1024
      %141 = vsyncadd [#allocation17], %s140
      %s142 = sshll.u32 [#allocation18], 4
      %s143 = int_to_ptr.vmem [resolvable:$true] %s142
      %148 = dma.hbm_to_vmem [thread:$0]  %s13, 1024, %s143, [#allocation17], 64, 64, 4
    $region57: #{forward.1} parent=1 // pred_fallthru
      _
    // Predicated region
    $region58: #{forward.1} parent=1 // pred_check
      _
    $region59: #{forward.1} parent=1 // pred_check_branch
      %150 = sbr.rel (0) target = $region61
    $region60: #{forward.1} parent=1 // pred_region
      %s152 = ssub.s32 16, 16
      %153 = vsyncadd [#allocation20], %s152
      %s155 = sshll.u32 [#allocation19], 4
      %s156 = int_to_ptr.vmem [resolvable:$true] %s155
      %158 = dma.hbm_to_vmem [thread:$0]  %s14, 16, %s156, [#allocation20]
    $region61: #{forward.1} parent=1 // pred_fallthru
      _
    // Predicated region
    $region62: #{forward.1} parent=1 // pred_check
      _
    $region63: #{forward.1} parent=1 // pred_check_branch
      %160 = sbr.rel (0) target = $region65
    $region64: #{forward.1} parent=1 // pred_region
      %161 = dma.done [#allocation3], 96
    $region65: #{forward.1} parent=1 // pred_fallthru
      _
    // Predicated region
    $region66: #{forward.1} parent=1 // pred_check
      _
    $region67: #{forward.1} parent=1 // pred_check_branch
      %163 = sbr.rel (0) target = $region69
    $region68: #{forward.1} parent=1 // pred_region
      %164 = dma.done [#allocation5], 96
    $region69: #{forward.1} parent=1 // pred_fallthru
      _
    // Predicated region
    $region70: #{forward.1} parent=1 // pred_check
      _
    $region71: #{forward.1} parent=1 // pred_check_branch
      %166 = sbr.rel (0) target = $region73
    $region72: #{forward.1} parent=1 // pred_region
      %167 = dma.done [#allocation5], 49152
    $region73: #{forward.1} parent=1 // pred_fallthru
      _
    // Predicated region
    $region74: #{forward.1} parent=1 // pred_check
      _
    $region75: #{forward.1} parent=1 // pred_check_branch
      %169 = sbr.rel (0) target = $region77
    $region76: #{forward.1} parent=1 // pred_region
      %170 = dma.done [#allocation8], 64
    $region77: #{forward.1} parent=1 // pred_fallthru
      _
    // Predicated region
    $region78: #{forward.1} parent=1 // pred_check
      _
    $region79: #{forward.1} parent=1 // pred_check_branch
      %172 = sbr.rel (0) target = $region81
    $region80: #{forward.1} parent=1 // pred_region
      %173 = dma.done [#allocation8], 64
    $region81: #{forward.1} parent=1 // pred_fallthru
      _
    // Predicated region
    $region82: #{forward.1} parent=1 // pred_check
      _
    $region83: #{forward.1} parent=1 // pred_check_branch
      %175 = sbr.rel (0) target = $region85
    $region84: #{forward.1} parent=1 // pred_region
      %176 = dma.done [#allocation11], 16
    $region85: #{forward.1} parent=1 // pred_fallthru
      _
    // Predicated region
    $region86: #{forward.1} parent=1 // pred_check
      _
    $region87: #{forward.1} parent=1 // pred_check_branch
      %178 = sbr.rel (0) target = $region89
    $region88: #{forward.1} parent=1 // pred_region
      %179 = dma.done [#allocation11], 16
    $region89: #{forward.1} parent=1 // pred_fallthru
      _
    // Predicated region
    $region90: #{forward.1} parent=1 // pred_check
      _
    $region91: #{forward.1} parent=1 // pred_check_branch
      %181 = sbr.rel (0) target = $region93
    $region92: #{forward.1} parent=1 // pred_region
      %182 = dma.done [#allocation14], 1024
    $region93: #{forward.1} parent=1 // pred_fallthru
      _
    // Predicated region
    $region94: #{forward.1} parent=1 // pred_check
      _
    $region95: #{forward.1} parent=1 // pred_check_branch
      %184 = sbr.rel (0) target = $region97
    $region96: #{forward.1} parent=1 // pred_region
      %185 = dma.done [#allocation14], 16
    $region97: #{forward.1} parent=1 // pred_fallthru
      _
    // Predicated region
    $region98: #{forward.1} parent=1 // pred_check
      _
    $region99: #{forward.1} parent=1 // pred_check_branch
      %187 = sbr.rel (0) target = $region101
    $region100: #{forward.1} parent=1 // pred_region
      %188 = dma.done [#allocation17], 16
    $region101: #{forward.1} parent=1 // pred_fallthru
      _
    // Predicated region
    $region102: #{forward.1} parent=1 // pred_check
      _
    $region103: #{forward.1} parent=1 // pred_check_branch
      %190 = sbr.rel (0) target = $region105
    $region104: #{forward.1} parent=1 // pred_region
      %191 = dma.done [#allocation17], 1024
    $region105: #{forward.1} parent=1 // pred_fallthru
      _
    // Predicated region
    $region106: #{forward.1} parent=1 // pred_check
      _
    $region107: #{forward.1} parent=1 // pred_check_branch
      %193 = sbr.rel (0) target = $region109
    $region108: #{forward.1} parent=1 // pred_region
      %194 = dma.done [#allocation20], 16
    $region109: #{forward.1} parent=1 // pred_fallthru
      _
    %v196 = vld [vmem:[%s0] sm:$0xf]
    %v197 = vld [vmem:[%s0 + $0x4] sm:$0xf]
    %v198 = vld [vmem:[%s0 + $0x8] sm:$0xf]
    %v199 = vld [vmem:[%s0 + $0xc] sm:$0xf]
    %v200 = vld [vmem:[%s0 + $0x10] sm:$0xf]
    %v201 = vld [vmem:[%s0 + $0x14] sm:$0xf]
    %v202 = vld [vmem:[%s0 + $0x18] sm:$0xf]
    %v203 = vld [vmem:[%s0 + $0x1c] sm:$0xf]
    %v204 = vld [vmem:[%s0 + $0x20] sm:$0xf]
    %v205 = vld [vmem:[%s0 + $0x24] sm:$0xf]
    %v206 = vld [vmem:[%s0 + $0x28] sm:$0xf]
    %v207 = vld [vmem:[%s0 + $0x2c] sm:$0xf]
    %v208 = vld [vmem:[%s0 + $0x30] sm:$0xf]
    %v209 = vld [vmem:[%s0 + $0x34] sm:$0xf]
    %v210 = vld [vmem:[%s0 + $0x38] sm:$0xf]
    %v211 = vld [vmem:[%s0 + $0x3c] sm:$0xf]
    %v212 = vld [vmem:[%s0 + $0x40] sm:$0xf]
    %v213 = vld [vmem:[%s0 + $0x44] sm:$0xf]
    %v214 = vld [vmem:[%s0 + $0x48] sm:$0xf]
    %v215 = vld [vmem:[%s0 + $0x4c] sm:$0xf]
    %v216 = vld [vmem:[%s0 + $0x50] sm:$0xf]
    %v217 = vld [vmem:[%s0 + $0x54] sm:$0xf]
    %v218 = vld [vmem:[%s0 + $0x58] sm:$0xf]
    %v219 = vld [vmem:[%s0 + $0x5c] sm:$0xf]
    %v220 = vld [vmem:[%s0 + $0x60] sm:$0xf]
    %v221 = vld [vmem:[%s0 + $0x64] sm:$0xf]
    %v222 = vld [vmem:[%s0 + $0x68] sm:$0xf]
    %v223 = vld [vmem:[%s0 + $0x6c] sm:$0xf]
    %v224 = vld [vmem:[%s0 + $0x70] sm:$0xf]
    %v225 = vld [vmem:[%s0 + $0x74] sm:$0xf]
    %v226 = vld [vmem:[%s0 + $0x78] sm:$0xf]
    %v227 = vld [vmem:[%s0 + $0x7c] sm:$0xf]
    %v228 = vld [vmem:[#allocation2] sm:$0x3f]
    %v229 = vld [vmem:[#allocation4] sm:$0x3f]
    %v230 = vld [vmem:[#allocation7] sm:$0xf]
    %v231 = vld [vmem:[#allocation9] sm:$0xf]
    %v232 = vld [vmem:[%s1] sm:$0xff]
    %v233 = vld [vmem:[%s1 + $0x8] sm:$0xff]
    %v234 = vld [vmem:[%s1 + $0x10] sm:$0xff]
    %v235 = vld [vmem:[%s1 + $0x18] sm:$0xff]
    %v236 = vld [vmem:[%s1 + $0x20] sm:$0xff]
    %v237 = vld [vmem:[%s1 + $0x28] sm:$0xff]
    %v238 = vld [vmem:[%s1 + $0x30] sm:$0xff]
    %v239 = vld [vmem:[%s1 + $0x38] sm:$0xff]
    %v240 = vld [vmem:[%s1 + $0x40] sm:$0xff]
    %v241 = vld [vmem:[%s1 + $0x48] sm:$0xff]
    %v242 = vld [vmem:[%s1 + $0x50] sm:$0xff]
    %v243 = vld [vmem:[%s1 + $0x58] sm:$0xff]
    %v244 = vld [vmem:[%s1 + $0x60] sm:$0xff]
    %v245 = vld [vmem:[%s1 + $0x68] sm:$0xff]
    %v246 = vld [vmem:[%s1 + $0x70] sm:$0xff]
    %v247 = vld [vmem:[%s1 + $0x78] sm:$0xff]
    %v248 = vld [vmem:[%s1 + $0x80] sm:$0xff]
    %v249 = vld [vmem:[%s1 + $0x88] sm:$0xff]
    %v250 = vld [vmem:[%s1 + $0x90] sm:$0xff]
    %v251 = vld [vmem:[%s1 + $0x98] sm:$0xff]
    %v252 = vld [vmem:[%s1 + $0xa0] sm:$0xff]
    %v253 = vld [vmem:[%s1 + $0xa8] sm:$0xff]
    %v254 = vld [vmem:[%s1 + $0xb0] sm:$0xff]
    %v255 = vld [vmem:[%s1 + $0xb8] sm:$0xff]
    %v256 = vld [vmem:[%s1 + $0xc0] sm:$0xff]
    %v257 = vld [vmem:[%s1 + $0xc8] sm:$0xff]
    %v258 = vld [vmem:[%s1 + $0xd0] sm:$0xff]
    %v259 = vld [vmem:[%s1 + $0xd8] sm:$0xff]
    %v260 = vld [vmem:[%s1 + $0xe0] sm:$0xff]
    %v261 = vld [vmem:[%s1 + $0xe8] sm:$0xff]
    %v262 = vld [vmem:[%s1 + $0xf0] sm:$0xff]
    %v263 = vld [vmem:[%s1 + $0xf8] sm:$0xff]
    %v264 = vld [vmem:[%s1 + $0x100] sm:$0xff]
    %v265 = vld [vmem:[%s1 + $0x108] sm:$0xff]
    %v266 = vld [vmem:[%s1 + $0x110] sm:$0xff]
    %v267 = vld [vmem:[%s1 + $0x118] sm:$0xff]
    %v268 = vld [vmem:[%s1 + $0x120] sm:$0xff]
    %v269 = vld [vmem:[%s1 + $0x128] sm:$0xff]
    %v270 = vld [vmem:[%s1 + $0x130] sm:$0xff]
    %v271 = vld [vmem:[%s1 + $0x138] sm:$0xff]
    %v272 = vld [vmem:[%s1 + $0x140] sm:$0xff]
    %v273 = vld [vmem:[%s1 + $0x148] sm:$0xff]
    %v274 = vld [vmem:[%s1 + $0x150] sm:$0xff]
    %v275 = vld [vmem:[%s1 + $0x158] sm:$0xff]
    %v276 = vld [vmem:[%s1 + $0x160] sm:$0xff]
    %v277 = vld [vmem:[%s1 + $0x168] sm:$0xff]
    %v278 = vld [vmem:[%s1 + $0x170] sm:$0xff]
    %v279 = vld [vmem:[%s1 + $0x178] sm:$0xff]
    %s280 = scalar_lea.vmem %s1, 384
    %v281 = vld [vmem:[%s280] sm:$0xff]
    %v282 = vld [vmem:[%s280 + $0x8] sm:$0xff]
    %v283 = vld [vmem:[%s280 + $0x10] sm:$0xff]
    %v284 = vld [vmem:[%s280 + $0x18] sm:$0xff]
    %v285 = vld [vmem:[%s280 + $0x20] sm:$0xff]
    %v286 = vld [vmem:[%s280 + $0x28] sm:$0xff]
    %v287 = vld [vmem:[%s280 + $0x30] sm:$0xff]
    %v288 = vld [vmem:[%s280 + $0x38] sm:$0xff]
    %v289 = vld [vmem:[%s280 + $0x40] sm:$0xff]
    %v290 = vld [vmem:[%s280 + $0x48] sm:$0xff]
    %v291 = vld [vmem:[%s280 + $0x50] sm:$0xff]
    %v292 = vld [vmem:[%s280 + $0x58] sm:$0xff]
    %v293 = vld [vmem:[%s280 + $0x60] sm:$0xff]
    %v294 = vld [vmem:[%s280 + $0x68] sm:$0xff]
    %v295 = vld [vmem:[%s280 + $0x70] sm:$0xff]
    %v296 = vld [vmem:[%s280 + $0x78] sm:$0xff]
    %v297 = vld [vmem:[%s280 + $0x80] sm:$0xff]
    %v298 = vld [vmem:[%s280 + $0x88] sm:$0xff]
    %v299 = vld [vmem:[%s280 + $0x90] sm:$0xff]
    %v300 = vld [vmem:[%s280 + $0x98] sm:$0xff]
    %v301 = vld [vmem:[%s280 + $0xa0] sm:$0xff]
    %v302 = vld [vmem:[%s280 + $0xa8] sm:$0xff]
    %v303 = vld [vmem:[%s280 + $0xb0] sm:$0xff]
    %v304 = vld [vmem:[%s280 + $0xb8] sm:$0xff]
    %v305 = vld [vmem:[%s280 + $0xc0] sm:$0xff]
    %v306 = vld [vmem:[%s280 + $0xc8] sm:$0xff]
    %v307 = vld [vmem:[%s280 + $0xd0] sm:$0xff]
    %v308 = vld [vmem:[%s280 + $0xd8] sm:$0xff]
    %v309 = vld [vmem:[%s280 + $0xe0] sm:$0xff]
    %v310 = vld [vmem:[%s280 + $0xe8] sm:$0xff]
    %v311 = vld [vmem:[%s280 + $0xf0] sm:$0xff]
    %v312 = vld [vmem:[%s280 + $0xf8] sm:$0xff]
    %v313 = vld [vmem:[%s280 + $0x100] sm:$0xff]
    %v314 = vld [vmem:[%s280 + $0x108] sm:$0xff]
    %v315 = vld [vmem:[%s280 + $0x110] sm:$0xff]
    %v316 = vld [vmem:[%s280 + $0x118] sm:$0xff]
    %v317 = vld [vmem:[%s280 + $0x120] sm:$0xff]
    %v318 = vld [vmem:[%s280 + $0x128] sm:$0xff]
    %v319 = vld [vmem:[%s280 + $0x130] sm:$0xff]
    %v320 = vld [vmem:[%s280 + $0x138] sm:$0xff]
    %v321 = vld [vmem:[%s280 + $0x140] sm:$0xff]
    %v322 = vld [vmem:[%s280 + $0x148] sm:$0xff]
    %v323 = vld [vmem:[%s280 + $0x150] sm:$0xff]
    %v324 = vld [vmem:[%s280 + $0x158] sm:$0xff]
    %v325 = vld [vmem:[%s280 + $0x160] sm:$0xff]
    %v326 = vld [vmem:[%s280 + $0x168] sm:$0xff]
    %v327 = vld [vmem:[%s280 + $0x170] sm:$0xff]
    %v328 = vld [vmem:[%s280 + $0x178] sm:$0xff]
    %v337 = vunpack.c.l.b16 %v204
    %v338 = vunpack.c.l.b16 %v205
    %v339 = vunpack.c.l.b16 %v206
    %v340 = vunpack.c.l.b16 %v207
    %v341 = vunpack.c.l.b16 %v208
    %v342 = vunpack.c.l.b16 %v209
    %v343 = vunpack.c.l.b16 %v210
    %v344 = vunpack.c.l.b16 %v211
    %v345 = vpack.c.b16 %v338, %v337
    %v346 = vpack.c.b16 %v340, %v339
    %v347 = vpack.c.b16 %v342, %v341
    %v348 = vpack.c.b16 %v344, %v343
    %v401 = vunpack.c.l.b16 %v281
    %v402 = vunpack.c.h.b16 %v281
    %v403 = vunpack.c.l.b16 %v282
    %v404 = vunpack.c.h.b16 %v282
    %v405 = vunpack.c.l.b16 %v283
    %v406 = vunpack.c.h.b16 %v283
    %v407 = vunpack.c.l.b16 %v284
    %v408 = vunpack.c.h.b16 %v284
    %v409 = vunpack.c.l.b16 %v285
    %v410 = vunpack.c.h.b16 %v285
    %v411 = vunpack.c.l.b16 %v286
    %v412 = vunpack.c.h.b16 %v286
    %v413 = vunpack.c.l.b16 %v287
    %v414 = vunpack.c.h.b16 %v287
    %v415 = vunpack.c.l.b16 %v288
    %v416 = vunpack.c.h.b16 %v288
    %v417 = vunpack.c.l.b16 %v289
    %v418 = vunpack.c.h.b16 %v289
    %v419 = vunpack.c.l.b16 %v290
    %v420 = vunpack.c.h.b16 %v290
    %v421 = vunpack.c.l.b16 %v291
    %v422 = vunpack.c.h.b16 %v291
    %v423 = vunpack.c.l.b16 %v292
    %v424 = vunpack.c.h.b16 %v292
    %v425 = vunpack.c.l.b16 %v293
    %v426 = vunpack.c.h.b16 %v293
    %v427 = vunpack.c.l.b16 %v294
    %v428 = vunpack.c.h.b16 %v294
    %v429 = vunpack.c.l.b16 %v295
    %v430 = vunpack.c.h.b16 %v295
    %v431 = vunpack.c.l.b16 %v296
    %v432 = vunpack.c.h.b16 %v296
    %v433 = vunpack.c.l.b16 %v297
    %v434 = vunpack.c.h.b16 %v297
    %v435 = vunpack.c.l.b16 %v298
    %v436 = vunpack.c.h.b16 %v298
    %v437 = vunpack.c.l.b16 %v299
    %v438 = vunpack.c.h.b16 %v299
    %v439 = vunpack.c.l.b16 %v300
    %v440 = vunpack.c.h.b16 %v300
    %v441 = vunpack.c.l.b16 %v301
    %v442 = vunpack.c.h.b16 %v301
    %v443 = vunpack.c.l.b16 %v302
    %v444 = vunpack.c.h.b16 %v302
    %v445 = vunpack.c.l.b16 %v303
    %v446 = vunpack.c.h.b16 %v303
    %v447 = vunpack.c.l.b16 %v304
    %v448 = vunpack.c.h.b16 %v304
    %v449 = vunpack.c.l.b16 %v305
    %v450 = vunpack.c.h.b16 %v305
    %v451 = vunpack.c.l.b16 %v306
    %v452 = vunpack.c.h.b16 %v306
    %v453 = vunpack.c.l.b16 %v307
    %v454 = vunpack.c.h.b16 %v307
    %v455 = vunpack.c.l.b16 %v308
    %v456 = vunpack.c.h.b16 %v308
    %v457 = vunpack.c.l.b16 %v309
    %v458 = vunpack.c.h.b16 %v309
    %v459 = vunpack.c.l.b16 %v310
    %v460 = vunpack.c.h.b16 %v310
    %v461 = vunpack.c.l.b16 %v311
    %v462 = vunpack.c.h.b16 %v311
    %v463 = vunpack.c.l.b16 %v312
    %v464 = vunpack.c.h.b16 %v312
    %v465 = vunpack.c.l.b16 %v313
    %v466 = vunpack.c.h.b16 %v313
    %v467 = vunpack.c.l.b16 %v314
    %v468 = vunpack.c.h.b16 %v314
    %v469 = vunpack.c.l.b16 %v315
    %v470 = vunpack.c.h.b16 %v315
    %v471 = vunpack.c.l.b16 %v316
    %v472 = vunpack.c.h.b16 %v316
    %v473 = vunpack.c.l.b16 %v317
    %v474 = vunpack.c.h.b16 %v317
    %v475 = vunpack.c.l.b16 %v318
    %v476 = vunpack.c.h.b16 %v318
    %v477 = vunpack.c.l.b16 %v319
    %v478 = vunpack.c.h.b16 %v319
    %v479 = vunpack.c.l.b16 %v320
    %v480 = vunpack.c.h.b16 %v320
    %v481 = vunpack.c.l.b16 %v321
    %v482 = vunpack.c.h.b16 %v321
    %v483 = vunpack.c.l.b16 %v322
    %v484 = vunpack.c.h.b16 %v322
    %v485 = vunpack.c.l.b16 %v323
    %v486 = vunpack.c.h.b16 %v323
    %v487 = vunpack.c.l.b16 %v324
    %v488 = vunpack.c.h.b16 %v324
    %v489 = vunpack.c.l.b16 %v325
    %v490 = vunpack.c.h.b16 %v325
    %v491 = vunpack.c.l.b16 %v326
    %v492 = vunpack.c.h.b16 %v326
    %v493 = vunpack.c.l.b16 %v327
    %v494 = vunpack.c.h.b16 %v327
    %v495 = vunpack.c.l.b16 %v328
    %v496 = vunpack.c.h.b16 %v328
    %v497 = vpack.c.b16 %v407, %v401
    %v498 = vpack.c.b16 %v408, %v402
    %v499 = vpack.c.b16 %v409, %v403
    %v500 = vpack.c.b16 %v410, %v404
    %v501 = vpack.c.b16 %v411, %v405
    %v502 = vpack.c.b16 %v412, %v406
    %v503 = vpack.c.b16 %v419, %v413
    %v504 = vpack.c.b16 %v420, %v414
    %v505 = vpack.c.b16 %v421, %v415
    %v506 = vpack.c.b16 %v422, %v416
    %v507 = vpack.c.b16 %v423, %v417
    %v508 = vpack.c.b16 %v424, %v418
    %v509 = vpack.c.b16 %v431, %v425
    %v510 = vpack.c.b16 %v432, %v426
    %v511 = vpack.c.b16 %v433, %v427
    %v512 = vpack.c.b16 %v434, %v428
    %v513 = vpack.c.b16 %v435, %v429
    %v514 = vpack.c.b16 %v436, %v430
    %v515 = vpack.c.b16 %v443, %v437
    %v516 = vpack.c.b16 %v444, %v438
    %v517 = vpack.c.b16 %v445, %v439
    %v518 = vpack.c.b16 %v446, %v440
    %v519 = vpack.c.b16 %v447, %v441
    %v520 = vpack.c.b16 %v448, %v442
    %v521 = vpack.c.b16 %v455, %v449
    %v522 = vpack.c.b16 %v456, %v450
    %v523 = vpack.c.b16 %v457, %v451
    %v524 = vpack.c.b16 %v458, %v452
    %v525 = vpack.c.b16 %v459, %v453
    %v526 = vpack.c.b16 %v460, %v454
    %v527 = vpack.c.b16 %v467, %v461
    %v528 = vpack.c.b16 %v468, %v462
    %v529 = vpack.c.b16 %v469, %v463
    %v530 = vpack.c.b16 %v470, %v464
    %v531 = vpack.c.b16 %v471, %v465
    %v532 = vpack.c.b16 %v472, %v466
    %v533 = vpack.c.b16 %v479, %v473
    %v534 = vpack.c.b16 %v480, %v474
    %v535 = vpack.c.b16 %v481, %v475
    %v536 = vpack.c.b16 %v482, %v476
    %v537 = vpack.c.b16 %v483, %v477
    %v538 = vpack.c.b16 %v484, %v478
    %v539 = vpack.c.b16 %v491, %v485
    %v540 = vpack.c.b16 %v492, %v486
    %v541 = vpack.c.b16 %v493, %v487
    %v542 = vpack.c.b16 %v494, %v488
    %v543 = vpack.c.b16 %v495, %v489
    %v544 = vpack.c.b16 %v496, %v490
    %593 = vmatprep.subr.bf16.mxu0 %v498
    %594 = vmatpush1.bf16.msra.mxu0 %v497
    %595 = vmatprep.subr.bf16.mxu0 %v504
    %596 = vmatpush1.bf16.msra.mxu0 %v503
    %597 = vmatprep.subr.bf16.mxu0 %v510
    %598 = vmatpush1.bf16.msra.mxu0 %v509
    %599 = vmatprep.subr.bf16.mxu0 %v516
    %600 = vmatpush1.bf16.msra.mxu0 %v515
    %601 = vmatprep.subr.bf16.mxu0 %v522
    %602 = vmatpush1.bf16.msra.mxu0 %v521
    %603 = vmatprep.subr.bf16.mxu0 %v528
    %604 = vmatpush1.bf16.msra.mxu0 %v527
    %605 = vmatprep.subr.bf16.mxu0 %v534
    %606 = vmatpush1.bf16.msra.mxu0 %v533
    %607 = vmatprep.subr.bf16.mxu0 %v540
    %608 = vmatpush1.bf16.msra.mxu0 %v539
    %609 = vmatprep.subr.bf16.mxu0 0
    %610 = vmatpush1.bf16.msra.mxu0 0
    %611 = vmatprep.subr.bf16.mxu0 0
    %612 = vmatpush1.bf16.msra.mxu0 0
    %613 = vmatprep.subr.bf16.mxu0 0
    %614 = vmatpush1.bf16.msra.mxu0 0
    %615 = vmatprep.subr.bf16.mxu0 0
    %616 = vmatpush1.bf16.msra.mxu0 0
    %617 = vmatprep.subr.bf16.mxu0 0
    %618 = vmatpush1.bf16.msra.mxu0 0
    %619 = vmatprep.subr.bf16.mxu0 0
    %620 = vmatpush1.bf16.msra.mxu0 0
    %621 = vmatprep.subr.bf16.mxu0 0
    %622 = vmatpush1.bf16.msra.mxu0 0
    %623 = vmatprep.subr.bf16.mxu0 0
    %624 = vmatpush1.bf16.msra.mxu0 0
    %625 = vmatprep.mubr.bf16.mxu0 0
    %626 = vmatmul.mubr.bf16.gmra.mrb[0].mxu0 %v345
    %v627 = vpop.f32.mrb[0].mxu0
    %v628 = vadd.f32 0.0, %v627
    %v629 = vpop.f32.mrb[0].mxu0
    %v630 = vadd.f32 0.0, %v629
    %v631 = vpop.f32.mrb[0].mxu0
    %v632 = vadd.f32 0.0, %v631
    %v633 = vpop.f32.mrb[0].mxu0
    %v634 = vadd.f32 0.0, %v633
    %635 = vmatprep.mubr.bf16.mxu0 0
    %636 = vmatmul.mubr.bf16.gmra.mrb[0].mxu0 %v346
    %v637 = vpop.f32.mrb[0].mxu0
    %v638 = vadd.f32 0.0, %v637
    %v639 = vpop.f32.mrb[0].mxu0
    %v640 = vadd.f32 0.0, %v639
    %v641 = vpop.f32.mrb[0].mxu0
    %v642 = vadd.f32 0.0, %v641
    %v643 = vpop.f32.mrb[0].mxu0
    %v644 = vadd.f32 0.0, %v643
    %645 = vmatprep.mubr.bf16.mxu0 0
    %646 = vmatmul.mubr.bf16.gmra.mrb[0].mxu0 %v347
    %v647 = vpop.f32.mrb[0].mxu0
    %v648 = vadd.f32 0.0, %v647
    %v649 = vpop.f32.mrb[0].mxu0
    %v650 = vadd.f32 0.0, %v649
    %v651 = vpop.f32.mrb[0].mxu0
    %v652 = vadd.f32 0.0, %v651
    %v653 = vpop.f32.mrb[0].mxu0
    %v654 = vadd.f32 0.0, %v653
    %655 = vmatprep.mubr.bf16.mxu0 0
    %656 = vmatmul.mubr.bf16.gmra.mrb[0].mxu0 %v348
    %v657 = vpop.f32.mrb[0].mxu0
    %v658 = vadd.f32 0.0, %v657
    %v659 = vpop.f32.mrb[0].mxu0
    %v660 = vadd.f32 0.0, %v659
    %v661 = vpop.f32.mrb[0].mxu0
    %v662 = vadd.f32 0.0, %v661
    %v663 = vpop.f32.mrb[0].mxu0
    %v664 = vadd.f32 0.0, %v663
    %665 = vdwg.mxu0
    %666 = vmatprep.subr.bf16.mxu0 %v500
    %667 = vmatpush1.bf16.msra.mxu0 %v499
    %668 = vmatprep.subr.bf16.mxu0 %v506
    %669 = vmatpush1.bf16.msra.mxu0 %v505
    %670 = vmatprep.subr.bf16.mxu0 %v512
    %671 = vmatpush1.bf16.msra.mxu0 %v511
    %672 = vmatprep.subr.bf16.mxu0 %v518
    %673 = vmatpush1.bf16.msra.mxu0 %v517
    %674 = vmatprep.subr.bf16.mxu0 %v524
    %675 = vmatpush1.bf16.msra.mxu0 %v523
    %676 = vmatprep.subr.bf16.mxu0 %v530
    %677 = vmatpush1.bf16.msra.mxu0 %v529
    %678 = vmatprep.subr.bf16.mxu0 %v536
    %679 = vmatpush1.bf16.msra.mxu0 %v535
    %680 = vmatprep.subr.bf16.mxu0 %v542
    %681 = vmatpush1.bf16.msra.mxu0 %v541
    %682 = vmatprep.subr.bf16.mxu0 0
    %683 = vmatpush1.bf16.msra.mxu0 0
    %684 = vmatprep.subr.bf16.mxu0 0
    %685 = vmatpush1.bf16.msra.mxu0 0
    %686 = vmatprep.subr.bf16.mxu0 0
    %687 = vmatpush1.bf16.msra.mxu0 0
    %688 = vmatprep.subr.bf16.mxu0 0
    %689 = vmatpush1.bf16.msra.mxu0 0
    %690 = vmatprep.subr.bf16.mxu0 0
    %691 = vmatpush1.bf16.msra.mxu0 0
    %692 = vmatprep.subr.bf16.mxu0 0
    %693 = vmatpush1.bf16.msra.mxu0 0
    %694 = vmatprep.subr.bf16.mxu0 0
    %695 = vmatpush1.bf16.msra.mxu0 0
    %696 = vmatprep.subr.bf16.mxu0 0
    %697 = vmatpush1.bf16.msra.mxu0 0
    %698 = vmatprep.mubr.bf16.mxu0 0
    %699 = vmatmul.mubr.bf16.gmra.mrb[0].mxu0 %v345
    %v700 = vpop.f32.mrb[0].mxu0
    %v701 = vadd.f32 0.0, %v700
    %v702 = vpop.f32.mrb[0].mxu0
    %v703 = vadd.f32 0.0, %v702
    %v704 = vpop.f32.mrb[0].mxu0
    %v705 = vadd.f32 0.0, %v704
    %v706 = vpop.f32.mrb[0].mxu0
    %v707 = vadd.f32 0.0, %v706
    %708 = vmatprep.mubr.bf16.mxu0 0
    %709 = vmatmul.mubr.bf16.gmra.mrb[0].mxu0 %v346
    %v710 = vpop.f32.mrb[0].mxu0
    %v711 = vadd.f32 0.0, %v710
    %v712 = vpop.f32.mrb[0].mxu0
    %v713 = vadd.f32 0.0, %v712
    %v714 = vpop.f32.mrb[0].mxu0
    %v715 = vadd.f32 0.0, %v714
    %v716 = vpop.f32.mrb[0].mxu0
    %v717 = vadd.f32 0.0, %v716
    %718 = vmatprep.mubr.bf16.mxu0 0
    %719 = vmatmul.mubr.bf16.gmra.mrb[0].mxu0 %v347
    %v720 = vpop.f32.mrb[0].mxu0
    %v721 = vadd.f32 0.0, %v720
    %v722 = vpop.f32.mrb[0].mxu0
    %v723 = vadd.f32 0.0, %v722
    %v724 = vpop.f32.mrb[0].mxu0
    %v725 = vadd.f32 0.0, %v724
    %v726 = vpop.f32.mrb[0].mxu0
    %v727 = vadd.f32 0.0, %v726
    %728 = vmatprep.mubr.bf16.mxu0 0
    %729 = vmatmul.mubr.bf16.gmra.mrb[0].mxu0 %v348
    %v730 = vpop.f32.mrb[0].mxu0
    %v731 = vadd.f32 0.0, %v730
    %v732 = vpop.f32.mrb[0].mxu0
    %v733 = vadd.f32 0.0, %v732
    %v734 = vpop.f32.mrb[0].mxu0
    %v735 = vadd.f32 0.0, %v734
    %v736 = vpop.f32.mrb[0].mxu0
    %v737 = vadd.f32 0.0, %v736
    %738 = vdwg.mxu0
    %739 = vmatprep.subr.bf16.mxu0 %v502
    %740 = vmatpush1.bf16.msra.mxu0 %v501
    %741 = vmatprep.subr.bf16.mxu0 %v508
    %742 = vmatpush1.bf16.msra.mxu0 %v507
    %743 = vmatprep.subr.bf16.mxu0 %v514
    %744 = vmatpush1.bf16.msra.mxu0 %v513
    %745 = vmatprep.subr.bf16.mxu0 %v520
    %746 = vmatpush1.bf16.msra.mxu0 %v519
    %747 = vmatprep.subr.bf16.mxu0 %v526
    %748 = vmatpush1.bf16.msra.mxu0 %v525
    %749 = vmatprep.subr.bf16.mxu0 %v532
    %750 = vmatpush1.bf16.msra.mxu0 %v531
    %751 = vmatprep.subr.bf16.mxu0 %v538
    %752 = vmatpush1.bf16.msra.mxu0 %v537
    %753 = vmatprep.subr.bf16.mxu0 %v544
    %754 = vmatpush1.bf16.msra.mxu0 %v543
    %755 = vmatprep.subr.bf16.mxu0 0
    %756 = vmatpush1.bf16.msra.mxu0 0
    %757 = vmatprep.subr.bf16.mxu0 0
    %758 = vmatpush1.bf16.msra.mxu0 0
    %759 = vmatprep.subr.bf16.mxu0 0
    %760 = vmatpush1.bf16.msra.mxu0 0
    %761 = vmatprep.subr.bf16.mxu0 0
    %762 = vmatpush1.bf16.msra.mxu0 0
    %763 = vmatprep.subr.bf16.mxu0 0
    %764 = vmatpush1.bf16.msra.mxu0 0
    %765 = vmatprep.subr.bf16.mxu0 0
    %766 = vmatpush1.bf16.msra.mxu0 0
    %767 = vmatprep.subr.bf16.mxu0 0
    %768 = vmatpush1.bf16.msra.mxu0 0
    %769 = vmatprep.subr.bf16.mxu0 0
    %770 = vmatpush1.bf16.msra.mxu0 0
    %771 = vmatprep.mubr.bf16.mxu0 0
    %772 = vmatmul.mubr.bf16.gmra.mrb[0].mxu0 %v345
    %v773 = vpop.f32.mrb[0].mxu0
    %v774 = vadd.f32 0.0, %v773
    %v775 = vpop.f32.mrb[0].mxu0
    %v776 = vadd.f32 0.0, %v775
    %v777 = vpop.f32.mrb[0].mxu0
    %v778 = vadd.f32 0.0, %v777
    %v779 = vpop.f32.mrb[0].mxu0
    %v780 = vadd.f32 0.0, %v779
    %781 = vmatprep.mubr.bf16.mxu0 0
    %782 = vmatmul.mubr.bf16.gmra.mrb[0].mxu0 %v346
    %v783 = vpop.f32.mrb[0].mxu0
    %v784 = vadd.f32 0.0, %v783
    %v785 = vpop.f32.mrb[0].mxu0
    %v786 = vadd.f32 0.0, %v785
    %v787 = vpop.f32.mrb[0].mxu0
    %v788 = vadd.f32 0.0, %v787
    %v789 = vpop.f32.mrb[0].mxu0
    %v790 = vadd.f32 0.0, %v789
    %791 = vmatprep.mubr.bf16.mxu0 0
    %792 = vmatmul.mubr.bf16.gmra.mrb[0].mxu0 %v347
    %v793 = vpop.f32.mrb[0].mxu0
    %v794 = vadd.f32 0.0, %v793
    %v795 = vpop.f32.mrb[0].mxu0
    %v796 = vadd.f32 0.0, %v795
    %v797 = vpop.f32.mrb[0].mxu0
    %v798 = vadd.f32 0.0, %v797
    %v799 = vpop.f32.mrb[0].mxu0
    %v800 = vadd.f32 0.0, %v799
    %801 = vmatprep.mubr.bf16.mxu0 0
    %802 = vmatmul.mubr.bf16.gmra.mrb[0].mxu0 %v348
    %v803 = vpop.f32.mrb[0].mxu0
    %v804 = vadd.f32 0.0, %v803
    %v805 = vpop.f32.mrb[0].mxu0
    %v806 = vadd.f32 0.0, %v805
    %v807 = vpop.f32.mrb[0].mxu0
    %v808 = vadd.f32 0.0, %v807
    %v809 = vpop.f32.mrb[0].mxu0
    %v810 = vadd.f32 0.0, %v809
    %811 = vdwg.mxu0
    %v820 = vunpack.c.l.b16 %v196
    %v821 = vunpack.c.l.b16 %v197
    %v822 = vunpack.c.l.b16 %v198
    %v823 = vunpack.c.l.b16 %v199
    %v824 = vunpack.c.l.b16 %v200
    %v825 = vunpack.c.l.b16 %v201
    %v826 = vunpack.c.l.b16 %v202
    %v827 = vunpack.c.l.b16 %v203
    %v828 = vpack.c.b16 %v821, %v820
    %v829 = vpack.c.b16 %v823, %v822
    %v830 = vpack.c.b16 %v825, %v824
    %v831 = vpack.c.b16 %v827, %v826
    %v884 = vunpack.c.l.b16 %v232
    %v885 = vunpack.c.h.b16 %v232
    %v886 = vunpack.c.l.b16 %v233
    %v887 = vunpack.c.h.b16 %v233
    %v888 = vunpack.c.l.b16 %v234
    %v889 = vunpack.c.h.b16 %v234
    %v890 = vunpack.c.l.b16 %v235
    %v891 = vunpack.c.h.b16 %v235
    %v892 = vunpack.c.l.b16 %v236
    %v893 = vunpack.c.h.b16 %v236
    %v894 = vunpack.c.l.b16 %v237
    %v895 = vunpack.c.h.b16 %v237
    %v896 = vunpack.c.l.b16 %v238
    %v897 = vunpack.c.h.b16 %v238
    %v898 = vunpack.c.l.b16 %v239
    %v899 = vunpack.c.h.b16 %v239
    %v900 = vunpack.c.l.b16 %v240
    %v901 = vunpack.c.h.b16 %v240
    %v902 = vunpack.c.l.b16 %v241
    %v903 = vunpack.c.h.b16 %v241
    %v904 = vunpack.c.l.b16 %v242
    %v905 = vunpack.c.h.b16 %v242
    %v906 = vunpack.c.l.b16 %v243
    %v907 = vunpack.c.h.b16 %v243
    %v908 = vunpack.c.l.b16 %v244
    %v909 = vunpack.c.h.b16 %v244
    %v910 = vunpack.c.l.b16 %v245
    %v911 = vunpack.c.h.b16 %v245
    %v912 = vunpack.c.l.b16 %v246
    %v913 = vunpack.c.h.b16 %v246
    %v914 = vunpack.c.l.b16 %v247
    %v915 = vunpack.c.h.b16 %v247
    %v916 = vunpack.c.l.b16 %v248
    %v917 = vunpack.c.h.b16 %v248
    %v918 = vunpack.c.l.b16 %v249
    %v919 = vunpack.c.h.b16 %v249
    %v920 = vunpack.c.l.b16 %v250
    %v921 = vunpack.c.h.b16 %v250
    %v922 = vunpack.c.l.b16 %v251
    %v923 = vunpack.c.h.b16 %v251
    %v924 = vunpack.c.l.b16 %v252
    %v925 = vunpack.c.h.b16 %v252
    %v926 = vunpack.c.l.b16 %v253
    %v927 = vunpack.c.h.b16 %v253
    %v928 = vunpack.c.l.b16 %v254
    %v929 = vunpack.c.h.b16 %v254
    %v930 = vunpack.c.l.b16 %v255
    %v931 = vunpack.c.h.b16 %v255
    %v932 = vunpack.c.l.b16 %v256
    %v933 = vunpack.c.h.b16 %v256
    %v934 = vunpack.c.l.b16 %v257
    %v935 = vunpack.c.h.b16 %v257
    %v936 = vunpack.c.l.b16 %v258
    %v937 = vunpack.c.h.b16 %v258
    %v938 = vunpack.c.l.b16 %v259
    %v939 = vunpack.c.h.b16 %v259
    %v940 = vunpack.c.l.b16 %v260
    %v941 = vunpack.c.h.b16 %v260
    %v942 = vunpack.c.l.b16 %v261
    %v943 = vunpack.c.h.b16 %v261
    %v944 = vunpack.c.l.b16 %v262
    %v945 = vunpack.c.h.b16 %v262
    %v946 = vunpack.c.l.b16 %v263
    %v947 = vunpack.c.h.b16 %v263
    %v948 = vunpack.c.l.b16 %v264
    %v949 = vunpack.c.h.b16 %v264
    %v950 = vunpack.c.l.b16 %v265
    %v951 = vunpack.c.h.b16 %v265
    %v952 = vunpack.c.l.b16 %v266
    %v953 = vunpack.c.h.b16 %v266
    %v954 = vunpack.c.l.b16 %v267
    %v955 = vunpack.c.h.b16 %v267
    %v956 = vunpack.c.l.b16 %v268
    %v957 = vunpack.c.h.b16 %v268
    %v958 = vunpack.c.l.b16 %v269
    %v959 = vunpack.c.h.b16 %v269
    %v960 = vunpack.c.l.b16 %v270
    %v961 = vunpack.c.h.b16 %v270
    %v962 = vunpack.c.l.b16 %v271
    %v963 = vunpack.c.h.b16 %v271
    %v964 = vunpack.c.l.b16 %v272
    %v965 = vunpack.c.h.b16 %v272
    %v966 = vunpack.c.l.b16 %v273
    %v967 = vunpack.c.h.b16 %v273
    %v968 = vunpack.c.l.b16 %v274
    %v969 = vunpack.c.h.b16 %v274
    %v970 = vunpack.c.l.b16 %v275
    %v971 = vunpack.c.h.b16 %v275
    %v972 = vunpack.c.l.b16 %v276
    %v973 = vunpack.c.h.b16 %v276
    %v974 = vunpack.c.l.b16 %v277
    %v975 = vunpack.c.h.b16 %v277
    %v976 = vunpack.c.l.b16 %v278
    %v977 = vunpack.c.h.b16 %v278
    %v978 = vunpack.c.l.b16 %v279
    %v979 = vunpack.c.h.b16 %v279
    %v980 = vpack.c.b16 %v890, %v884
    %v981 = vpack.c.b16 %v891, %v885
    %v982 = vpack.c.b16 %v892, %v886
    %v983 = vpack.c.b16 %v893, %v887
    %v984 = vpack.c.b16 %v894, %v888
    %v985 = vpack.c.b16 %v895, %v889
    %v986 = vpack.c.b16 %v902, %v896
    %v987 = vpack.c.b16 %v903, %v897
    %v988 = vpack.c.b16 %v904, %v898
    %v989 = vpack.c.b16 %v905, %v899
    %v990 = vpack.c.b16 %v906, %v900
    %v991 = vpack.c.b16 %v907, %v901
    %v992 = vpack.c.b16 %v914, %v908
    %v993 = vpack.c.b16 %v915, %v909
    %v994 = vpack.c.b16 %v916, %v910
    %v995 = vpack.c.b16 %v917, %v911
    %v996 = vpack.c.b16 %v918, %v912
    %v997 = vpack.c.b16 %v919, %v913
    %v998 = vpack.c.b16 %v926, %v920
    %v999 = vpack.c.b16 %v927, %v921
    %v1000 = vpack.c.b16 %v928, %v922
    %v1001 = vpack.c.b16 %v929, %v923
    %v1002 = vpack.c.b16 %v930, %v924
    %v1003 = vpack.c.b16 %v931, %v925
    %v1004 = vpack.c.b16 %v938, %v932
    %v1005 = vpack.c.b16 %v939, %v933
    %v1006 = vpack.c.b16 %v940, %v934
    %v1007 = vpack.c.b16 %v941, %v935
    %v1008 = vpack.c.b16 %v942, %v936
    %v1009 = vpack.c.b16 %v943, %v937
    %v1010 = vpack.c.b16 %v950, %v944
    %v1011 = vpack.c.b16 %v951, %v945
    %v1012 = vpack.c.b16 %v952, %v946
    %v1013 = vpack.c.b16 %v953, %v947
    %v1014 = vpack.c.b16 %v954, %v948
    %v1015 = vpack.c.b16 %v955, %v949
    %v1016 = vpack.c.b16 %v962, %v956
    %v1017 = vpack.c.b16 %v963, %v957
    %v1018 = vpack.c.b16 %v964, %v958
    %v1019 = vpack.c.b16 %v965, %v959
    %v1020 = vpack.c.b16 %v966, %v960
    %v1021 = vpack.c.b16 %v967, %v961
    %v1022 = vpack.c.b16 %v974, %v968
    %v1023 = vpack.c.b16 %v975, %v969
    %v1024 = vpack.c.b16 %v976, %v970
    %v1025 = vpack.c.b16 %v977, %v971
    %v1026 = vpack.c.b16 %v978, %v972
    %v1027 = vpack.c.b16 %v979, %v973
    %1076 = vmatprep.subr.bf16.mxu0 %v981
    %1077 = vmatpush1.bf16.msra.mxu0 %v980
    %1078 = vmatprep.subr.bf16.mxu0 %v987
    %1079 = vmatpush1.bf16.msra.mxu0 %v986
    %1080 = vmatprep.subr.bf16.mxu0 %v993
    %1081 = vmatpush1.bf16.msra.mxu0 %v992
    %1082 = vmatprep.subr.bf16.mxu0 %v999
    %1083 = vmatpush1.bf16.msra.mxu0 %v998
    %1084 = vmatprep.subr.bf16.mxu0 %v1005
    %1085 = vmatpush1.bf16.msra.mxu0 %v1004
    %1086 = vmatprep.subr.bf16.mxu0 %v1011
    %1087 = vmatpush1.bf16.msra.mxu0 %v1010
    %1088 = vmatprep.subr.bf16.mxu0 %v1017
    %1089 = vmatpush1.bf16.msra.mxu0 %v1016
    %1090 = vmatprep.subr.bf16.mxu0 %v1023
    %1091 = vmatpush1.bf16.msra.mxu0 %v1022
    %1092 = vmatprep.subr.bf16.mxu0 0
    %1093 = vmatpush1.bf16.msra.mxu0 0
    %1094 = vmatprep.subr.bf16.mxu0 0
    %1095 = vmatpush1.bf16.msra.mxu0 0
    %1096 = vmatprep.subr.bf16.mxu0 0
    %1097 = vmatpush1.bf16.msra.mxu0 0
    %1098 = vmatprep.subr.bf16.mxu0 0
    %1099 = vmatpush1.bf16.msra.mxu0 0
    %1100 = vmatprep.subr.bf16.mxu0 0
    %1101 = vmatpush1.bf16.msra.mxu0 0
    %1102 = vmatprep.subr.bf16.mxu0 0
    %1103 = vmatpush1.bf16.msra.mxu0 0
    %1104 = vmatprep.subr.bf16.mxu0 0
    %1105 = vmatpush1.bf16.msra.mxu0 0
    %1106 = vmatprep.subr.bf16.mxu0 0
    %1107 = vmatpush1.bf16.msra.mxu0 0
    %1108 = vmatprep.mubr.bf16.mxu0 0
    %1109 = vmatmul.mubr.bf16.gmra.mrb[0].mxu0 %v828
    %v1110 = vpop.f32.mrb[0].mxu0
    %v1111 = vadd.f32 %v628, %v1110
    %v1112 = vpop.f32.mrb[0].mxu0
    %v1113 = vadd.f32 %v630, %v1112
    %v1114 = vpop.f32.mrb[0].mxu0
    %v1115 = vadd.f32 %v632, %v1114
    %v1116 = vpop.f32.mrb[0].mxu0
    %v1117 = vadd.f32 %v634, %v1116
    %1118 = vmatprep.mubr.bf16.mxu0 0
    %1119 = vmatmul.mubr.bf16.gmra.mrb[0].mxu0 %v829
    %v1120 = vpop.f32.mrb[0].mxu0
    %v1121 = vadd.f32 %v638, %v1120
    %v1122 = vpop.f32.mrb[0].mxu0
    %v1123 = vadd.f32 %v640, %v1122
    %v1124 = vpop.f32.mrb[0].mxu0
    %v1125 = vadd.f32 %v642, %v1124
    %v1126 = vpop.f32.mrb[0].mxu0
    %v1127 = vadd.f32 %v644, %v1126
    %1128 = vmatprep.mubr.bf16.mxu0 0
    %1129 = vmatmul.mubr.bf16.gmra.mrb[0].mxu0 %v830
    %v1130 = vpop.f32.mrb[0].mxu0
    %v1131 = vadd.f32 %v648, %v1130
    %v1132 = vpop.f32.mrb[0].mxu0
    %v1133 = vadd.f32 %v650, %v1132
    %v1134 = vpop.f32.mrb[0].mxu0
    %v1135 = vadd.f32 %v652, %v1134
    %v1136 = vpop.f32.mrb[0].mxu0
    %v1137 = vadd.f32 %v654, %v1136
    %1138 = vmatprep.mubr.bf16.mxu0 0
    %1139 = vmatmul.mubr.bf16.gmra.mrb[0].mxu0 %v831
    %v1140 = vpop.f32.mrb[0].mxu0
    %v1141 = vadd.f32 %v658, %v1140
    %v1142 = vpop.f32.mrb[0].mxu0
    %v1143 = vadd.f32 %v660, %v1142
    %v1144 = vpop.f32.mrb[0].mxu0
    %v1145 = vadd.f32 %v662, %v1144
    %v1146 = vpop.f32.mrb[0].mxu0
    %v1147 = vadd.f32 %v664, %v1146
    %1148 = vdwg.mxu0
    %1149 = vmatprep.subr.bf16.mxu0 %v983
    %1150 = vmatpush1.bf16.msra.mxu0 %v982
    %1151 = vmatprep.subr.bf16.mxu0 %v989
    %1152 = vmatpush1.bf16.msra.mxu0 %v988
    %1153 = vmatprep.subr.bf16.mxu0 %v995
    %1154 = vmatpush1.bf16.msra.mxu0 %v994
    %1155 = vmatprep.subr.bf16.mxu0 %v1001
    %1156 = vmatpush1.bf16.msra.mxu0 %v1000
    %1157 = vmatprep.subr.bf16.mxu0 %v1007
    %1158 = vmatpush1.bf16.msra.mxu0 %v1006
    %1159 = vmatprep.subr.bf16.mxu0 %v1013
    %1160 = vmatpush1.bf16.msra.mxu0 %v1012
    %1161 = vmatprep.subr.bf16.mxu0 %v1019
    %1162 = vmatpush1.bf16.msra.mxu0 %v1018
    %1163 = vmatprep.subr.bf16.mxu0 %v1025
    %1164 = vmatpush1.bf16.msra.mxu0 %v1024
    %1165 = vmatprep.subr.bf16.mxu0 0
    %1166 = vmatpush1.bf16.msra.mxu0 0
    %1167 = vmatprep.subr.bf16.mxu0 0
    %1168 = vmatpush1.bf16.msra.mxu0 0
    %1169 = vmatprep.subr.bf16.mxu0 0
    %1170 = vmatpush1.bf16.msra.mxu0 0
    %1171 = vmatprep.subr.bf16.mxu0 0
    %1172 = vmatpush1.bf16.msra.mxu0 0
    %1173 = vmatprep.subr.bf16.mxu0 0
    %1174 = vmatpush1.bf16.msra.mxu0 0
    %1175 = vmatprep.subr.bf16.mxu0 0
    %1176 = vmatpush1.bf16.msra.mxu0 0
    %1177 = vmatprep.subr.bf16.mxu0 0
    %1178 = vmatpush1.bf16.msra.mxu0 0
    %1179 = vmatprep.subr.bf16.mxu0 0
    %1180 = vmatpush1.bf16.msra.mxu0 0
    %1181 = vmatprep.mubr.bf16.mxu0 0
    %1182 = vmatmul.mubr.bf16.gmra.mrb[0].mxu0 %v828
    %v1183 = vpop.f32.mrb[0].mxu0
    %v1184 = vadd.f32 %v701, %v1183
    %v1185 = vpop.f32.mrb[0].mxu0
    %v1186 = vadd.f32 %v703, %v1185
    %v1187 = vpop.f32.mrb[0].mxu0
    %v1188 = vadd.f32 %v705, %v1187
    %v1189 = vpop.f32.mrb[0].mxu0
    %v1190 = vadd.f32 %v707, %v1189
    %1191 = vmatprep.mubr.bf16.mxu0 0
    %1192 = vmatmul.mubr.bf16.gmra.mrb[0].mxu0 %v829
    %v1193 = vpop.f32.mrb[0].mxu0
    %v1194 = vadd.f32 %v711, %v1193
    %v1195 = vpop.f32.mrb[0].mxu0
    %v1196 = vadd.f32 %v713, %v1195
    %v1197 = vpop.f32.mrb[0].mxu0
    %v1198 = vadd.f32 %v715, %v1197
    %v1199 = vpop.f32.mrb[0].mxu0
    %v1200 = vadd.f32 %v717, %v1199
    %1201 = vmatprep.mubr.bf16.mxu0 0
    %1202 = vmatmul.mubr.bf16.gmra.mrb[0].mxu0 %v830
    %v1203 = vpop.f32.mrb[0].mxu0
    %v1204 = vadd.f32 %v721, %v1203
    %v1205 = vpop.f32.mrb[0].mxu0
    %v1206 = vadd.f32 %v723, %v1205
    %v1207 = vpop.f32.mrb[0].mxu0
    %v1208 = vadd.f32 %v725, %v1207
    %v1209 = vpop.f32.mrb[0].mxu0
    %v1210 = vadd.f32 %v727, %v1209
    %1211 = vmatprep.mubr.bf16.mxu0 0
    %1212 = vmatmul.mubr.bf16.gmra.mrb[0].mxu0 %v831
    %v1213 = vpop.f32.mrb[0].mxu0
    %v1214 = vadd.f32 %v731, %v1213
    %v1215 = vpop.f32.mrb[0].mxu0
    %v1216 = vadd.f32 %v733, %v1215
    %v1217 = vpop.f32.mrb[0].mxu0
    %v1218 = vadd.f32 %v735, %v1217
    %v1219 = vpop.f32.mrb[0].mxu0
    %v1220 = vadd.f32 %v737, %v1219
    %1221 = vdwg.mxu0
    %1222 = vmatprep.subr.bf16.mxu0 %v985
    %1223 = vmatpush1.bf16.msra.mxu0 %v984
    %1224 = vmatprep.subr.bf16.mxu0 %v991
    %1225 = vmatpush1.bf16.msra.mxu0 %v990
    %1226 = vmatprep.subr.bf16.mxu0 %v997
    %1227 = vmatpush1.bf16.msra.mxu0 %v996
    %1228 = vmatprep.subr.bf16.mxu0 %v1003
    %1229 = vmatpush1.bf16.msra.mxu0 %v1002
    %1230 = vmatprep.subr.bf16.mxu0 %v1009
    %1231 = vmatpush1.bf16.msra.mxu0 %v1008
    %1232 = vmatprep.subr.bf16.mxu0 %v1015
    %1233 = vmatpush1.bf16.msra.mxu0 %v1014
    %1234 = vmatprep.subr.bf16.mxu0 %v1021
    %1235 = vmatpush1.bf16.msra.mxu0 %v1020
    %1236 = vmatprep.subr.bf16.mxu0 %v1027
    %1237 = vmatpush1.bf16.msra.mxu0 %v1026
    %1238 = vmatprep.subr.bf16.mxu0 0
    %1239 = vmatpush1.bf16.msra.mxu0 0
    %1240 = vmatprep.subr.bf16.mxu0 0
    %1241 = vmatpush1.bf16.msra.mxu0 0
    %1242 = vmatprep.subr.bf16.mxu0 0
    %1243 = vmatpush1.bf16.msra.mxu0 0
    %1244 = vmatprep.subr.bf16.mxu0 0
    %1245 = vmatpush1.bf16.msra.mxu0 0
    %1246 = vmatprep.subr.bf16.mxu0 0
    %1247 = vmatpush1.bf16.msra.mxu0 0
    %1248 = vmatprep.subr.bf16.mxu0 0
    %1249 = vmatpush1.bf16.msra.mxu0 0
    %1250 = vmatprep.subr.bf16.mxu0 0
    %1251 = vmatpush1.bf16.msra.mxu0 0
    %1252 = vmatprep.subr.bf16.mxu0 0
    %1253 = vmatpush1.bf16.msra.mxu0 0
    %1254 = vmatprep.mubr.bf16.mxu0 0
    %1255 = vmatmul.mubr.bf16.gmra.mrb[0].mxu0 %v828
    %v1256 = vpop.f32.mrb[0].mxu0
    %v1257 = vadd.f32 %v774, %v1256
    %v1258 = vpop.f32.mrb[0].mxu0
    %v1259 = vadd.f32 %v776, %v1258
    %v1260 = vpop.f32.mrb[0].mxu0
    %v1261 = vadd.f32 %v778, %v1260
    %v1262 = vpop.f32.mrb[0].mxu0
    %v1263 = vadd.f32 %v780, %v1262
    %1264 = vmatprep.mubr.bf16.mxu0 0
    %1265 = vmatmul.mubr.bf16.gmra.mrb[0].mxu0 %v829
    %v1266 = vpop.f32.mrb[0].mxu0
    %v1267 = vadd.f32 %v784, %v1266
    %v1268 = vpop.f32.mrb[0].mxu0
    %v1269 = vadd.f32 %v786, %v1268
    %v1270 = vpop.f32.mrb[0].mxu0
    %v1271 = vadd.f32 %v788, %v1270
    %v1272 = vpop.f32.mrb[0].mxu0
    %v1273 = vadd.f32 %v790, %v1272
    %1274 = vmatprep.mubr.bf16.mxu0 0
    %1275 = vmatmul.mubr.bf16.gmra.mrb[0].mxu0 %v830
    %v1276 = vpop.f32.mrb[0].mxu0
    %v1277 = vadd.f32 %v794, %v1276
    %v1278 = vpop.f32.mrb[0].mxu0
    %v1279 = vadd.f32 %v796, %v1278
    %v1280 = vpop.f32.mrb[0].mxu0
    %v1281 = vadd.f32 %v798, %v1280
    %v1282 = vpop.f32.mrb[0].mxu0
    %v1283 = vadd.f32 %v800, %v1282
    %1284 = vmatprep.mubr.bf16.mxu0 0
    %1285 = vmatmul.mubr.bf16.gmra.mrb[0].mxu0 %v831
    %v1286 = vpop.f32.mrb[0].mxu0
    %v1287 = vadd.f32 %v804, %v1286
    %v1288 = vpop.f32.mrb[0].mxu0
    %v1289 = vadd.f32 %v806, %v1288
    %v1290 = vpop.f32.mrb[0].mxu0
    %v1291 = vadd.f32 %v808, %v1290
    %v1292 = vpop.f32.mrb[0].mxu0
    %v1293 = vadd.f32 %v810, %v1292
    %1294 = vdwg.mxu0
    %s1295 = scalar_lea.vmem %s1, 768
    %v1296 = vld [vmem:[%s1295] sm:$0xff]
    %v1297 = vld [vmem:[%s1295 + $0x8] sm:$0xff]
    %v1298 = vld [vmem:[%s1295 + $0x10] sm:$0xff]
    %v1299 = vld [vmem:[%s1295 + $0x18] sm:$0xff]
    %v1300 = vld [vmem:[%s1295 + $0x20] sm:$0xff]
    %v1301 = vld [vmem:[%s1295 + $0x28] sm:$0xff]
    %v1302 = vld [vmem:[%s1295 + $0x30] sm:$0xff]
    %v1303 = vld [vmem:[%s1295 + $0x38] sm:$0xff]
    %v1304 = vld [vmem:[%s1295 + $0x40] sm:$0xff]
    %v1305 = vld [vmem:[%s1295 + $0x48] sm:$0xff]
    %v1306 = vld [vmem:[%s1295 + $0x50] sm:$0xff]
    %v1307 = vld [vmem:[%s1295 + $0x58] sm:$0xff]
    %v1308 = vld [vmem:[%s1295 + $0x60] sm:$0xff]
    %v1309 = vld [vmem:[%s1295 + $0x68] sm:$0xff]
    %v1310 = vld [vmem:[%s1295 + $0x70] sm:$0xff]
    %v1311 = vld [vmem:[%s1295 + $0x78] sm:$0xff]
    %v1312 = vld [vmem:[%s1295 + $0x80] sm:$0xff]
    %v1313 = vld [vmem:[%s1295 + $0x88] sm:$0xff]
    %v1314 = vld [vmem:[%s1295 + $0x90] sm:$0xff]
    %v1315 = vld [vmem:[%s1295 + $0x98] sm:$0xff]
    %v1316 = vld [vmem:[%s1295 + $0xa0] sm:$0xff]
    %v1317 = vld [vmem:[%s1295 + $0xa8] sm:$0xff]
    %v1318 = vld [vmem:[%s1295 + $0xb0] sm:$0xff]
    %v1319 = vld [vmem:[%s1295 + $0xb8] sm:$0xff]
    %v1320 = vld [vmem:[%s1295 + $0xc0] sm:$0xff]
    %v1321 = vld [vmem:[%s1295 + $0xc8] sm:$0xff]
    %v1322 = vld [vmem:[%s1295 + $0xd0] sm:$0xff]
    %v1323 = vld [vmem:[%s1295 + $0xd8] sm:$0xff]
    %v1324 = vld [vmem:[%s1295 + $0xe0] sm:$0xff]
    %v1325 = vld [vmem:[%s1295 + $0xe8] sm:$0xff]
    %v1326 = vld [vmem:[%s1295 + $0xf0] sm:$0xff]
    %v1327 = vld [vmem:[%s1295 + $0xf8] sm:$0xff]
    %v1328 = vld [vmem:[%s1295 + $0x100] sm:$0xff]
    %v1329 = vld [vmem:[%s1295 + $0x108] sm:$0xff]
    %v1330 = vld [vmem:[%s1295 + $0x110] sm:$0xff]
    %v1331 = vld [vmem:[%s1295 + $0x118] sm:$0xff]
    %v1332 = vld [vmem:[%s1295 + $0x120] sm:$0xff]
    %v1333 = vld [vmem:[%s1295 + $0x128] sm:$0xff]
    %v1334 = vld [vmem:[%s1295 + $0x130] sm:$0xff]
    %v1335 = vld [vmem:[%s1295 + $0x138] sm:$0xff]
    %v1336 = vld [vmem:[%s1295 + $0x140] sm:$0xff]
    %v1337 = vld [vmem:[%s1295 + $0x148] sm:$0xff]
    %v1338 = vld [vmem:[%s1295 + $0x150] sm:$0xff]
    %v1339 = vld [vmem:[%s1295 + $0x158] sm:$0xff]
    %v1340 = vld [vmem:[%s1295 + $0x160] sm:$0xff]
    %v1341 = vld [vmem:[%s1295 + $0x168] sm:$0xff]
    %v1342 = vld [vmem:[%s1295 + $0x170] sm:$0xff]
    %v1343 = vld [vmem:[%s1295 + $0x178] sm:$0xff]
    %v1352 = vunpack.c.l.b16 %v212
    %v1353 = vunpack.c.l.b16 %v213
    %v1354 = vunpack.c.l.b16 %v214
    %v1355 = vunpack.c.l.b16 %v215
    %v1356 = vunpack.c.l.b16 %v216
    %v1357 = vunpack.c.l.b16 %v217
    %v1358 = vunpack.c.l.b16 %v218
    %v1359 = vunpack.c.l.b16 %v219
    %v1360 = vpack.c.b16 %v1353, %v1352
    %v1361 = vpack.c.b16 %v1355, %v1354
    %v1362 = vpack.c.b16 %v1357, %v1356
    %v1363 = vpack.c.b16 %v1359, %v1358
    %v1416 = vunpack.c.l.b16 %v1296
    %v1417 = vunpack.c.h.b16 %v1296
    %v1418 = vunpack.c.l.b16 %v1297
    %v1419 = vunpack.c.h.b16 %v1297
    %v1420 = vunpack.c.l.b16 %v1298
    %v1421 = vunpack.c.h.b16 %v1298
    %v1422 = vunpack.c.l.b16 %v1299
    %v1423 = vunpack.c.h.b16 %v1299
    %v1424 = vunpack.c.l.b16 %v1300
    %v1425 = vunpack.c.h.b16 %v1300
    %v1426 = vunpack.c.l.b16 %v1301
    %v1427 = vunpack.c.h.b16 %v1301
    %v1428 = vunpack.c.l.b16 %v1302
    %v1429 = vunpack.c.h.b16 %v1302
    %v1430 = vunpack.c.l.b16 %v1303
    %v1431 = vunpack.c.h.b16 %v1303
    %v1432 = vunpack.c.l.b16 %v1304
    %v1433 = vunpack.c.h.b16 %v1304
    %v1434 = vunpack.c.l.b16 %v1305
    %v1435 = vunpack.c.h.b16 %v1305
    %v1436 = vunpack.c.l.b16 %v1306
    %v1437 = vunpack.c.h.b16 %v1306
    %v1438 = vunpack.c.l.b16 %v1307
    %v1439 = vunpack.c.h.b16 %v1307
    %v1440 = vunpack.c.l.b16 %v1308
    %v1441 = vunpack.c.h.b16 %v1308
    %v1442 = vunpack.c.l.b16 %v1309
    %v1443 = vunpack.c.h.b16 %v1309
    %v1444 = vunpack.c.l.b16 %v1310
    %v1445 = vunpack.c.h.b16 %v1310
    %v1446 = vunpack.c.l.b16 %v1311
    %v1447 = vunpack.c.h.b16 %v1311
    %v1448 = vunpack.c.l.b16 %v1312
    %v1449 = vunpack.c.h.b16 %v1312
    %v1450 = vunpack.c.l.b16 %v1313
    %v1451 = vunpack.c.h.b16 %v1313
    %v1452 = vunpack.c.l.b16 %v1314
    %v1453 = vunpack.c.h.b16 %v1314
    %v1454 = vunpack.c.l.b16 %v1315
    %v1455 = vunpack.c.h.b16 %v1315
    %v1456 = vunpack.c.l.b16 %v1316
    %v1457 = vunpack.c.h.b16 %v1316
    %v1458 = vunpack.c.l.b16 %v1317
    %v1459 = vunpack.c.h.b16 %v1317
    %v1460 = vunpack.c.l.b16 %v1318
    %v1461 = vunpack.c.h.b16 %v1318
    %v1462 = vunpack.c.l.b16 %v1319
    %v1463 = vunpack.c.h.b16 %v1319
    %v1464 = vunpack.c.l.b16 %v1320
    %v1465 = vunpack.c.h.b16 %v1320
    %v1466 = vunpack.c.l.b16 %v1321
    %v1467 = vunpack.c.h.b16 %v1321
    %v1468 = vunpack.c.l.b16 %v1322
    %v1469 = vunpack.c.h.b16 %v1322
    %v1470 = vunpack.c.l.b16 %v1323
    %v1471 = vunpack.c.h.b16 %v1323
    %v1472 = vunpack.c.l.b16 %v1324
    %v1473 = vunpack.c.h.b16 %v1324
    %v1474 = vunpack.c.l.b16 %v1325
    %v1475 = vunpack.c.h.b16 %v1325
    %v1476 = vunpack.c.l.b16 %v1326
    %v1477 = vunpack.c.h.b16 %v1326
    %v1478 = vunpack.c.l.b16 %v1327
    %v1479 = vunpack.c.h.b16 %v1327
    %v1480 = vunpack.c.l.b16 %v1328
    %v1481 = vunpack.c.h.b16 %v1328
    %v1482 = vunpack.c.l.b16 %v1329
    %v1483 = vunpack.c.h.b16 %v1329
    %v1484 = vunpack.c.l.b16 %v1330
    %v1485 = vunpack.c.h.b16 %v1330
    %v1486 = vunpack.c.l.b16 %v1331
    %v1487 = vunpack.c.h.b16 %v1331
    %v1488 = vunpack.c.l.b16 %v1332
    %v1489 = vunpack.c.h.b16 %v1332
    %v1490 = vunpack.c.l.b16 %v1333
    %v1491 = vunpack.c.h.b16 %v1333
    %v1492 = vunpack.c.l.b16 %v1334
    %v1493 = vunpack.c.h.b16 %v1334
    %v1494 = vunpack.c.l.b16 %v1335
    %v1495 = vunpack.c.h.b16 %v1335
    %v1496 = vunpack.c.l.b16 %v1336
    %v1497 = vunpack.c.h.b16 %v1336
    %v1498 = vunpack.c.l.b16 %v1337
    %v1499 = vunpack.c.h.b16 %v1337
    %v1500 = vunpack.c.l.b16 %v1338
    %v1501 = vunpack.c.h.b16 %v1338
    %v1502 = vunpack.c.l.b16 %v1339
    %v1503 = vunpack.c.h.b16 %v1339
    %v1504 = vunpack.c.l.b16 %v1340
    %v1505 = vunpack.c.h.b16 %v1340
    %v1506 = vunpack.c.l.b16 %v1341
    %v1507 = vunpack.c.h.b16 %v1341
    %v1508 = vunpack.c.l.b16 %v1342
    %v1509 = vunpack.c.h.b16 %v1342
    %v1510 = vunpack.c.l.b16 %v1343
    %v1511 = vunpack.c.h.b16 %v1343
    %v1512 = vpack.c.b16 %v1422, %v1416
    %v1513 = vpack.c.b16 %v1423, %v1417
    %v1514 = vpack.c.b16 %v1424, %v1418
    %v1515 = vpack.c.b16 %v1425, %v1419
    %v1516 = vpack.c.b16 %v1426, %v1420
    %v1517 = vpack.c.b16 %v1427, %v1421
    %v1518 = vpack.c.b16 %v1434, %v1428
    %v1519 = vpack.c.b16 %v1435, %v1429
    %v1520 = vpack.c.b16 %v1436, %v1430
    %v1521 = vpack.c.b16 %v1437, %v1431
    %v1522 = vpack.c.b16 %v1438, %v1432
    %v1523 = vpack.c.b16 %v1439, %v1433
    %v1524 = vpack.c.b16 %v1446, %v1440
    %v1525 = vpack.c.b16 %v1447, %v1441
    %v1526 = vpack.c.b16 %v1448, %v1442
    %v1527 = vpack.c.b16 %v1449, %v1443
    %v1528 = vpack.c.b16 %v1450, %v1444
    %v1529 = vpack.c.b16 %v1451, %v1445
    %v1530 = vpack.c.b16 %v1458, %v1452
    %v1531 = vpack.c.b16 %v1459, %v1453
    %v1532 = vpack.c.b16 %v1460, %v1454
    %v1533 = vpack.c.b16 %v1461, %v1455
    %v1534 = vpack.c.b16 %v1462, %v1456
    %v1535 = vpack.c.b16 %v1463, %v1457
    %v1536 = vpack.c.b16 %v1470, %v1464
    %v1537 = vpack.c.b16 %v1471, %v1465
    %v1538 = vpack.c.b16 %v1472, %v1466
    %v1539 = vpack.c.b16 %v1473, %v1467
    %v1540 = vpack.c.b16 %v1474, %v1468
    %v1541 = vpack.c.b16 %v1475, %v1469
    %v1542 = vpack.c.b16 %v1482, %v1476
    %v1543 = vpack.c.b16 %v1483, %v1477
    %v1544 = vpack.c.b16 %v1484, %v1478
    %v1545 = vpack.c.b16 %v1485, %v1479
    %v1546 = vpack.c.b16 %v1486, %v1480
    %v1547 = vpack.c.b16 %v1487, %v1481
    %v1548 = vpack.c.b16 %v1494, %v1488
    %v1549 = vpack.c.b16 %v1495, %v1489
    %v1550 = vpack.c.b16 %v1496, %v1490
    %v1551 = vpack.c.b16 %v1497, %v1491
    %v1552 = vpack.c.b16 %v1498, %v1492
    %v1553 = vpack.c.b16 %v1499, %v1493
    %v1554 = vpack.c.b16 %v1506, %v1500
    %v1555 = vpack.c.b16 %v1507, %v1501
    %v1556 = vpack.c.b16 %v1508, %v1502
    %v1557 = vpack.c.b16 %v1509, %v1503
    %v1558 = vpack.c.b16 %v1510, %v1504
    %v1559 = vpack.c.b16 %v1511, %v1505
    %1608 = vmatprep.subr.bf16.mxu0 %v1513
    %1609 = vmatpush1.bf16.msra.mxu0 %v1512
    %1610 = vmatprep.subr.bf16.mxu0 %v1519
    %1611 = vmatpush1.bf16.msra.mxu0 %v1518
    %1612 = vmatprep.subr.bf16.mxu0 %v1525
    %1613 = vmatpush1.bf16.msra.mxu0 %v1524
    %1614 = vmatprep.subr.bf16.mxu0 %v1531
    %1615 = vmatpush1.bf16.msra.mxu0 %v1530
    %1616 = vmatprep.subr.bf16.mxu0 %v1537
    %1617 = vmatpush1.bf16.msra.mxu0 %v1536
    %1618 = vmatprep.subr.bf16.mxu0 %v1543
    %1619 = vmatpush1.bf16.msra.mxu0 %v1542
    %1620 = vmatprep.subr.bf16.mxu0 %v1549
    %1621 = vmatpush1.bf16.msra.mxu0 %v1548
    %1622 = vmatprep.subr.bf16.mxu0 %v1555
    %1623 = vmatpush1.bf16.msra.mxu0 %v1554
    %1624 = vmatprep.subr.bf16.mxu0 0
    %1625 = vmatpush1.bf16.msra.mxu0 0
    %1626 = vmatprep.subr.bf16.mxu0 0
    %1627 = vmatpush1.bf16.msra.mxu0 0
    %1628 = vmatprep.subr.bf16.mxu0 0
    %1629 = vmatpush1.bf16.msra.mxu0 0
    %1630 = vmatprep.subr.bf16.mxu0 0
    %1631 = vmatpush1.bf16.msra.mxu0 0
    %1632 = vmatprep.subr.bf16.mxu0 0
    %1633 = vmatpush1.bf16.msra.mxu0 0
    %1634 = vmatprep.subr.bf16.mxu0 0
    %1635 = vmatpush1.bf16.msra.mxu0 0
    %1636 = vmatprep.subr.bf16.mxu0 0
    %1637 = vmatpush1.bf16.msra.mxu0 0
    %1638 = vmatprep.subr.bf16.mxu0 0
    %1639 = vmatpush1.bf16.msra.mxu0 0
    %1640 = vmatprep.mubr.bf16.mxu0 0
    %1641 = vmatmul.mubr.bf16.gmra.mrb[0].mxu0 %v1360
    %v1642 = vpop.f32.mrb[0].mxu0
    %v1643 = vadd.f32 0.0, %v1642
    %v1644 = vpop.f32.mrb[0].mxu0
    %v1645 = vadd.f32 0.0, %v1644
    %v1646 = vpop.f32.mrb[0].mxu0
    %v1647 = vadd.f32 0.0, %v1646
    %v1648 = vpop.f32.mrb[0].mxu0
    %v1649 = vadd.f32 0.0, %v1648
    %1650 = vmatprep.mubr.bf16.mxu0 0
    %1651 = vmatmul.mubr.bf16.gmra.mrb[0].mxu0 %v1361
    %v1652 = vpop.f32.mrb[0].mxu0
    %v1653 = vadd.f32 0.0, %v1652
    %v1654 = vpop.f32.mrb[0].mxu0
    %v1655 = vadd.f32 0.0, %v1654
    %v1656 = vpop.f32.mrb[0].mxu0
    %v1657 = vadd.f32 0.0, %v1656
    %v1658 = vpop.f32.mrb[0].mxu0
    %v1659 = vadd.f32 0.0, %v1658
    %1660 = vmatprep.mubr.bf16.mxu0 0
    %1661 = vmatmul.mubr.bf16.gmra.mrb[0].mxu0 %v1362
    %v1662 = vpop.f32.mrb[0].mxu0
    %v1663 = vadd.f32 0.0, %v1662
    %v1664 = vpop.f32.mrb[0].mxu0
    %v1665 = vadd.f32 0.0, %v1664
    %v1666 = vpop.f32.mrb[0].mxu0
    %v1667 = vadd.f32 0.0, %v1666
    %v1668 = vpop.f32.mrb[0].mxu0
    %v1669 = vadd.f32 0.0, %v1668
    %1670 = vmatprep.mubr.bf16.mxu0 0
    %1671 = vmatmul.mubr.bf16.gmra.mrb[0].mxu0 %v1363
    %v1672 = vpop.f32.mrb[0].mxu0
    %v1673 = vadd.f32 0.0, %v1672
    %v1674 = vpop.f32.mrb[0].mxu0
    %v1675 = vadd.f32 0.0, %v1674
    %v1676 = vpop.f32.mrb[0].mxu0
    %v1677 = vadd.f32 0.0, %v1676
    %v1678 = vpop.f32.mrb[0].mxu0
    %v1679 = vadd.f32 0.0, %v1678
    %1680 = vdwg.mxu0
    %1681 = vmatprep.subr.bf16.mxu0 %v1515
    %1682 = vmatpush1.bf16.msra.mxu0 %v1514
    %1683 = vmatprep.subr.bf16.mxu0 %v1521
    %1684 = vmatpush1.bf16.msra.mxu0 %v1520
    %1685 = vmatprep.subr.bf16.mxu0 %v1527
    %1686 = vmatpush1.bf16.msra.mxu0 %v1526
    %1687 = vmatprep.subr.bf16.mxu0 %v1533
    %1688 = vmatpush1.bf16.msra.mxu0 %v1532
    %1689 = vmatprep.subr.bf16.mxu0 %v1539
    %1690 = vmatpush1.bf16.msra.mxu0 %v1538
    %1691 = vmatprep.subr.bf16.mxu0 %v1545
    %1692 = vmatpush1.bf16.msra.mxu0 %v1544
    %1693 = vmatprep.subr.bf16.mxu0 %v1551
    %1694 = vmatpush1.bf16.msra.mxu0 %v1550
    %1695 = vmatprep.subr.bf16.mxu0 %v1557
    %1696 = vmatpush1.bf16.msra.mxu0 %v1556
    %1697 = vmatprep.subr.bf16.mxu0 0
    %1698 = vmatpush1.bf16.msra.mxu0 0
    %1699 = vmatprep.subr.bf16.mxu0 0
    %1700 = vmatpush1.bf16.msra.mxu0 0
    %1701 = vmatprep.subr.bf16.mxu0 0
    %1702 = vmatpush1.bf16.msra.mxu0 0
    %1703 = vmatprep.subr.bf16.mxu0 0
    %1704 = vmatpush1.bf16.msra.mxu0 0
    %1705 = vmatprep.subr.bf16.mxu0 0
    %1706 = vmatpush1.bf16.msra.mxu0 0
    %1707 = vmatprep.subr.bf16.mxu0 0
    %1708 = vmatpush1.bf16.msra.mxu0 0
    %1709 = vmatprep.subr.bf16.mxu0 0
    %1710 = vmatpush1.bf16.msra.mxu0 0
    %1711 = vmatprep.subr.bf16.mxu0 0
    %1712 = vmatpush1.bf16.msra.mxu0 0
    %1713 = vmatprep.mubr.bf16.mxu0 0
    %1714 = vmatmul.mubr.bf16.gmra.mrb[0].mxu0 %v1360
    %v1715 = vpop.f32.mrb[0].mxu0
    %v1716 = vadd.f32 0.0, %v1715
    %v1717 = vpop.f32.mrb[0].mxu0
    %v1718 = vadd.f32 0.0, %v1717
    %v1719 = vpop.f32.mrb[0].mxu0
    %v1720 = vadd.f32 0.0, %v1719
    %v1721 = vpop.f32.mrb[0].mxu0
    %v1722 = vadd.f32 0.0, %v1721
    %1723 = vmatprep.mubr.bf16.mxu0 0
    %1724 = vmatmul.mubr.bf16.gmra.mrb[0].mxu0 %v1361
    %v1725 = vpop.f32.mrb[0].mxu0
    %v1726 = vadd.f32 0.0, %v1725
    %v1727 = vpop.f32.mrb[0].mxu0
    %v1728 = vadd.f32 0.0, %v1727
    %v1729 = vpop.f32.mrb[0].mxu0
    %v1730 = vadd.f32 0.0, %v1729
    %v1731 = vpop.f32.mrb[0].mxu0
    %v1732 = vadd.f32 0.0, %v1731
    %1733 = vmatprep.mubr.bf16.mxu0 0
    %1734 = vmatmul.mubr.bf16.gmra.mrb[0].mxu0 %v1362
    %v1735 = vpop.f32.mrb[0].mxu0
    %v1736 = vadd.f32 0.0, %v1735
    %v1737 = vpop.f32.mrb[0].mxu0
    %v1738 = vadd.f32 0.0, %v1737
    %v1739 = vpop.f32.mrb[0].mxu0
    %v1740 = vadd.f32 0.0, %v1739
    %v1741 = vpop.f32.mrb[0].mxu0
    %v1742 = vadd.f32 0.0, %v1741
    %1743 = vmatprep.mubr.bf16.mxu0 0
    %1744 = vmatmul.mubr.bf16.gmra.mrb[0].mxu0 %v1363
    %v1745 = vpop.f32.mrb[0].mxu0
    %v1746 = vadd.f32 0.0, %v1745
    %v1747 = vpop.f32.mrb[0].mxu0
    %v1748 = vadd.f32 0.0, %v1747
    %v1749 = vpop.f32.mrb[0].mxu0
    %v1750 = vadd.f32 0.0, %v1749
    %v1751 = vpop.f32.mrb[0].mxu0
    %v1752 = vadd.f32 0.0, %v1751
    %1753 = vdwg.mxu0
    %1754 = vmatprep.subr.bf16.mxu0 %v1517
    %1755 = vmatpush1.bf16.msra.mxu0 %v1516
    %1756 = vmatprep.subr.bf16.mxu0 %v1523
    %1757 = vmatpush1.bf16.msra.mxu0 %v1522
    %1758 = vmatprep.subr.bf16.mxu0 %v1529
    %1759 = vmatpush1.bf16.msra.mxu0 %v1528
    %1760 = vmatprep.subr.bf16.mxu0 %v1535
    %1761 = vmatpush1.bf16.msra.mxu0 %v1534
    %1762 = vmatprep.subr.bf16.mxu0 %v1541
    %1763 = vmatpush1.bf16.msra.mxu0 %v1540
    %1764 = vmatprep.subr.bf16.mxu0 %v1547
    %1765 = vmatpush1.bf16.msra.mxu0 %v1546
    %1766 = vmatprep.subr.bf16.mxu0 %v1553
    %1767 = vmatpush1.bf16.msra.mxu0 %v1552
    %1768 = vmatprep.subr.bf16.mxu0 %v1559
    %1769 = vmatpush1.bf16.msra.mxu0 %v1558
    %1770 = vmatprep.subr.bf16.mxu0 0
    %1771 = vmatpush1.bf16.msra.mxu0 0
    %1772 = vmatprep.subr.bf16.mxu0 0
    %1773 = vmatpush1.bf16.msra.mxu0 0
    %1774 = vmatprep.subr.bf16.mxu0 0
    %1775 = vmatpush1.bf16.msra.mxu0 0
    %1776 = vmatprep.subr.bf16.mxu0 0
    %1777 = vmatpush1.bf16.msra.mxu0 0
    %1778 = vmatprep.subr.bf16.mxu0 0
    %1779 = vmatpush1.bf16.msra.mxu0 0
    %1780 = vmatprep.subr.bf16.mxu0 0
    %1781 = vmatpush1.bf16.msra.mxu0 0
    %1782 = vmatprep.subr.bf16.mxu0 0
    %1783 = vmatpush1.bf16.msra.mxu0 0
    %1784 = vmatprep.subr.bf16.mxu0 0
    %1785 = vmatpush1.bf16.msra.mxu0 0
    %1786 = vmatprep.mubr.bf16.mxu0 0
    %1787 = vmatmul.mubr.bf16.gmra.mrb[0].mxu0 %v1360
    %v1788 = vpop.f32.mrb[0].mxu0
    %v1789 = vadd.f32 0.0, %v1788
    %v1790 = vpop.f32.mrb[0].mxu0
    %v1791 = vadd.f32 0.0, %v1790
    %v1792 = vpop.f32.mrb[0].mxu0
    %v1793 = vadd.f32 0.0, %v1792
    %v1794 = vpop.f32.mrb[0].mxu0
    %v1795 = vadd.f32 0.0, %v1794
    %1796 = vmatprep.mubr.bf16.mxu0 0
    %1797 = vmatmul.mubr.bf16.gmra.mrb[0].mxu0 %v1361
    %v1798 = vpop.f32.mrb[0].mxu0
    %v1799 = vadd.f32 0.0, %v1798
    %v1800 = vpop.f32.mrb[0].mxu0
    %v1801 = vadd.f32 0.0, %v1800
    %v1802 = vpop.f32.mrb[0].mxu0
    %v1803 = vadd.f32 0.0, %v1802
    %v1804 = vpop.f32.mrb[0].mxu0
    %v1805 = vadd.f32 0.0, %v1804
    %1806 = vmatprep.mubr.bf16.mxu0 0
    %1807 = vmatmul.mubr.bf16.gmra.mrb[0].mxu0 %v1362
    %v1808 = vpop.f32.mrb[0].mxu0
    %v1809 = vadd.f32 0.0, %v1808
    %v1810 = vpop.f32.mrb[0].mxu0
    %v1811 = vadd.f32 0.0, %v1810
    %v1812 = vpop.f32.mrb[0].mxu0
    %v1813 = vadd.f32 0.0, %v1812
    %v1814 = vpop.f32.mrb[0].mxu0
    %v1815 = vadd.f32 0.0, %v1814
    %1816 = vmatprep.mubr.bf16.mxu0 0
    %1817 = vmatmul.mubr.bf16.gmra.mrb[0].mxu0 %v1363
    %v1818 = vpop.f32.mrb[0].mxu0
    %v1819 = vadd.f32 0.0, %v1818
    %v1820 = vpop.f32.mrb[0].mxu0
    %v1821 = vadd.f32 0.0, %v1820
    %v1822 = vpop.f32.mrb[0].mxu0
    %v1823 = vadd.f32 0.0, %v1822
    %v1824 = vpop.f32.mrb[0].mxu0
    %v1825 = vadd.f32 0.0, %v1824
    %1826 = vdwg.mxu0
    %v1827 = vadd.f32 %v1111, %v1643
    %v1828 = vadd.f32 %v1113, %v1645
    %v1829 = vadd.f32 %v1184, %v1716
    %v1830 = vadd.f32 %v1186, %v1718
    %v1831 = vadd.f32 %v1257, %v1789
    %v1832 = vadd.f32 %v1259, %v1791
    %v1833 = vadd.f32 %v1115, %v1647
    %v1834 = vadd.f32 %v1117, %v1649
    %v1835 = vadd.f32 %v1188, %v1720
    %v1836 = vadd.f32 %v1190, %v1722
    %v1837 = vadd.f32 %v1261, %v1793
    %v1838 = vadd.f32 %v1263, %v1795
    %v1839 = vadd.f32 %v1121, %v1653
    %v1840 = vadd.f32 %v1123, %v1655
    %v1841 = vadd.f32 %v1194, %v1726
    %v1842 = vadd.f32 %v1196, %v1728
    %v1843 = vadd.f32 %v1267, %v1799
    %v1844 = vadd.f32 %v1269, %v1801
    %v1845 = vadd.f32 %v1125, %v1657
    %v1846 = vadd.f32 %v1127, %v1659
    %v1847 = vadd.f32 %v1198, %v1730
    %v1848 = vadd.f32 %v1200, %v1732
    %v1849 = vadd.f32 %v1271, %v1803
    %v1850 = vadd.f32 %v1273, %v1805
    %v1851 = vadd.f32 %v1131, %v1663
    %v1852 = vadd.f32 %v1133, %v1665
    %v1853 = vadd.f32 %v1204, %v1736
    %v1854 = vadd.f32 %v1206, %v1738
    %v1855 = vadd.f32 %v1277, %v1809
    %v1856 = vadd.f32 %v1279, %v1811
    %v1857 = vadd.f32 %v1135, %v1667
    %v1858 = vadd.f32 %v1137, %v1669
    %v1859 = vadd.f32 %v1208, %v1740
    %v1860 = vadd.f32 %v1210, %v1742
    %v1861 = vadd.f32 %v1281, %v1813
    %v1862 = vadd.f32 %v1283, %v1815
    %v1863 = vadd.f32 %v1141, %v1673
    %v1864 = vadd.f32 %v1143, %v1675
    %v1865 = vadd.f32 %v1214, %v1746
    %v1866 = vadd.f32 %v1216, %v1748
    %v1867 = vadd.f32 %v1287, %v1819
    %v1868 = vadd.f32 %v1289, %v1821
    %v1869 = vadd.f32 %v1145, %v1677
    %v1870 = vadd.f32 %v1147, %v1679
    %v1871 = vadd.f32 %v1218, %v1750
    %v1872 = vadd.f32 %v1220, %v1752
    %v1873 = vadd.f32 %v1291, %v1823
    %v1874 = vadd.f32 %v1293, %v1825
    %v1876 = vlaneseq
    %v1877 = vshrl.u32 %v1876, 7
    %v1878 = vsub.s32 0, %v1877
    %v1879 = vrot.slane %v228, %v1878
    %v1880 = vlaneseq
    %v1881 = vshrl.u32 %v1880, 7
    %v1882 = vsub.s32 1, %v1881
    %v1883 = vrot.slane %v228, %v1882
    %v1884 = vlaneseq
    %v1885 = vshrl.u32 %v1884, 7
    %v1886 = vsub.s32 2, %v1885
    %v1887 = vrot.slane %v228, %v1886
    %v1888 = vlaneseq
    %v1889 = vshrl.u32 %v1888, 7
    %v1890 = vsub.s32 3, %v1889
    %v1891 = vrot.slane %v228, %v1890
    %v1892 = vlaneseq
    %v1893 = vshrl.u32 %v1892, 7
    %v1894 = vsub.s32 4, %v1893
    %v1895 = vrot.slane %v228, %v1894
    %v1896 = vlaneseq
    %v1897 = vshrl.u32 %v1896, 7
    %v1898 = vsub.s32 5, %v1897
    %v1899 = vrot.slane %v228, %v1898
    %v1906 = vmul.f32 %v1827, %v1879
    %v1907 = vmul.f32 %v1828, %v1883
    %v1908 = vmul.f32 %v1829, %v1887
    %v1909 = vmul.f32 %v1830, %v1891
    %v1910 = vmul.f32 %v1831, %v1895
    %v1911 = vmul.f32 %v1832, %v1899
    %v1912 = vmul.f32 %v1833, %v1879
    %v1913 = vmul.f32 %v1834, %v1883
    %v1914 = vmul.f32 %v1835, %v1887
    %v1915 = vmul.f32 %v1836, %v1891
    %v1916 = vmul.f32 %v1837, %v1895
    %v1917 = vmul.f32 %v1838, %v1899
    %v1918 = vmul.f32 %v1839, %v1879
    %v1919 = vmul.f32 %v1840, %v1883
    %v1920 = vmul.f32 %v1841, %v1887
    %v1921 = vmul.f32 %v1842, %v1891
    %v1922 = vmul.f32 %v1843, %v1895
    %v1923 = vmul.f32 %v1844, %v1899
    %v1924 = vmul.f32 %v1845, %v1879
    %v1925 = vmul.f32 %v1846, %v1883
    %v1926 = vmul.f32 %v1847, %v1887
    %v1927 = vmul.f32 %v1848, %v1891
    %v1928 = vmul.f32 %v1849, %v1895
    %v1929 = vmul.f32 %v1850, %v1899
    %v1930 = vmul.f32 %v1851, %v1879
    %v1931 = vmul.f32 %v1852, %v1883
    %v1932 = vmul.f32 %v1853, %v1887
    %v1933 = vmul.f32 %v1854, %v1891
    %v1934 = vmul.f32 %v1855, %v1895
    %v1935 = vmul.f32 %v1856, %v1899
    %v1936 = vmul.f32 %v1857, %v1879
    %v1937 = vmul.f32 %v1858, %v1883
    %v1938 = vmul.f32 %v1859, %v1887
    %v1939 = vmul.f32 %v1860, %v1891
    %v1940 = vmul.f32 %v1861, %v1895
    %v1941 = vmul.f32 %v1862, %v1899
    %v1942 = vmul.f32 %v1863, %v1879
    %v1943 = vmul.f32 %v1864, %v1883
    %v1944 = vmul.f32 %v1865, %v1887
    %v1945 = vmul.f32 %v1866, %v1891
    %v1946 = vmul.f32 %v1867, %v1895
    %v1947 = vmul.f32 %v1868, %v1899
    %v1948 = vmul.f32 %v1869, %v1879
    %v1949 = vmul.f32 %v1870, %v1883
    %v1950 = vmul.f32 %v1871, %v1887
    %v1951 = vmul.f32 %v1872, %v1891
    %v1952 = vmul.f32 %v1873, %v1895
    %v1953 = vmul.f32 %v1874, %v1899
    %v1955 = vlaneseq
    %v1956 = vshrl.u32 %v1955, 7
    %v1957 = vsub.s32 0, %v1956
    %v1958 = vrot.slane %v229, %v1957
    %v1959 = vlaneseq
    %v1960 = vshrl.u32 %v1959, 7
    %v1961 = vsub.s32 1, %v1960
    %v1962 = vrot.slane %v229, %v1961
    %v1963 = vlaneseq
    %v1964 = vshrl.u32 %v1963, 7
    %v1965 = vsub.s32 2, %v1964
    %v1966 = vrot.slane %v229, %v1965
    %v1967 = vlaneseq
    %v1968 = vshrl.u32 %v1967, 7
    %v1969 = vsub.s32 3, %v1968
    %v1970 = vrot.slane %v229, %v1969
    %v1971 = vlaneseq
    %v1972 = vshrl.u32 %v1971, 7
    %v1973 = vsub.s32 4, %v1972
    %v1974 = vrot.slane %v229, %v1973
    %v1975 = vlaneseq
    %v1976 = vshrl.u32 %v1975, 7
    %v1977 = vsub.s32 5, %v1976
    %v1978 = vrot.slane %v229, %v1977
    %v1985 = vadd.f32 %v1906, %v1958
    %v1986 = vadd.f32 %v1907, %v1962
    %v1987 = vadd.f32 %v1908, %v1966
    %v1988 = vadd.f32 %v1909, %v1970
    %v1989 = vadd.f32 %v1910, %v1974
    %v1990 = vadd.f32 %v1911, %v1978
    %v1991 = vadd.f32 %v1912, %v1958
    %v1992 = vadd.f32 %v1913, %v1962
    %v1993 = vadd.f32 %v1914, %v1966
    %v1994 = vadd.f32 %v1915, %v1970
    %v1995 = vadd.f32 %v1916, %v1974
    %v1996 = vadd.f32 %v1917, %v1978
    %v1997 = vadd.f32 %v1918, %v1958
    %v1998 = vadd.f32 %v1919, %v1962
    %v1999 = vadd.f32 %v1920, %v1966
    %v2000 = vadd.f32 %v1921, %v1970
    %v2001 = vadd.f32 %v1922, %v1974
    %v2002 = vadd.f32 %v1923, %v1978
    %v2003 = vadd.f32 %v1924, %v1958
    %v2004 = vadd.f32 %v1925, %v1962
    %v2005 = vadd.f32 %v1926, %v1966
    %v2006 = vadd.f32 %v1927, %v1970
    %v2007 = vadd.f32 %v1928, %v1974
    %v2008 = vadd.f32 %v1929, %v1978
    %v2009 = vadd.f32 %v1930, %v1958
    %v2010 = vadd.f32 %v1931, %v1962
    %v2011 = vadd.f32 %v1932, %v1966
    %v2012 = vadd.f32 %v1933, %v1970
    %v2013 = vadd.f32 %v1934, %v1974
    %v2014 = vadd.f32 %v1935, %v1978
    %v2015 = vadd.f32 %v1936, %v1958
    %v2016 = vadd.f32 %v1937, %v1962
    %v2017 = vadd.f32 %v1938, %v1966
    %v2018 = vadd.f32 %v1939, %v1970
    %v2019 = vadd.f32 %v1940, %v1974
    %v2020 = vadd.f32 %v1941, %v1978
    %v2021 = vadd.f32 %v1942, %v1958
    %v2022 = vadd.f32 %v1943, %v1962
    %v2023 = vadd.f32 %v1944, %v1966
    %v2024 = vadd.f32 %v1945, %v1970
    %v2025 = vadd.f32 %v1946, %v1974
    %v2026 = vadd.f32 %v1947, %v1978
    %v2027 = vadd.f32 %v1948, %v1958
    %v2028 = vadd.f32 %v1949, %v1962
    %v2029 = vadd.f32 %v1950, %v1966
    %v2030 = vadd.f32 %v1951, %v1970
    %v2031 = vadd.f32 %v1952, %v1974
    %v2032 = vadd.f32 %v1953, %v1978
    %v2033 = vmax.f32 %v1985, %v1988
    %v2034 = vmax.f32 %v1986, %v1989
    %v2035 = vmax.f32 %v1987, %v1990
    %v2036 = vmax.f32 %v1991, %v1994
    %v2037 = vmax.f32 %v1992, %v1995
    %v2038 = vmax.f32 %v1993, %v1996
    %v2039 = vmax.f32 %v1997, %v2000
    %v2040 = vmax.f32 %v1998, %v2001
    %v2041 = vmax.f32 %v1999, %v2002
    %v2042 = vmax.f32 %v2003, %v2006
    %v2043 = vmax.f32 %v2004, %v2007
    %v2044 = vmax.f32 %v2005, %v2008
    %v2045 = vmax.f32 %v2009, %v2012
    %v2046 = vmax.f32 %v2010, %v2013
    %v2047 = vmax.f32 %v2011, %v2014
    %v2048 = vmax.f32 %v2015, %v2018
    %v2049 = vmax.f32 %v2016, %v2019
    %v2050 = vmax.f32 %v2017, %v2020
    %v2051 = vmax.f32 %v2021, %v2024
    %v2052 = vmax.f32 %v2022, %v2025
    %v2053 = vmax.f32 %v2023, %v2026
    %v2054 = vmax.f32 %v2027, %v2030
    %v2055 = vmax.f32 %v2028, %v2031
    %v2056 = vmax.f32 %v2029, %v2032
    %2057 = vmatprep.subr.bf16.mxu0 %v498
    %2058 = vmatpush1.bf16.msra.mxu0 %v497
    %2059 = vmatprep.subr.bf16.mxu0 %v504
    %2060 = vmatpush1.bf16.msra.mxu0 %v503
    %2061 = vmatprep.subr.bf16.mxu0 %v510
    %2062 = vmatpush1.bf16.msra.mxu0 %v509
    %2063 = vmatprep.subr.bf16.mxu0 %v516
    %2064 = vmatpush1.bf16.msra.mxu0 %v515
    %2065 = vmatprep.subr.bf16.mxu0 %v522
    %2066 = vmatpush1.bf16.msra.mxu0 %v521
    %2067 = vmatprep.subr.bf16.mxu0 %v528
    %2068 = vmatpush1.bf16.msra.mxu0 %v527
    %2069 = vmatprep.subr.bf16.mxu0 %v534
    %2070 = vmatpush1.bf16.msra.mxu0 %v533
    %2071 = vmatprep.subr.bf16.mxu0 %v540
    %2072 = vmatpush1.bf16.msra.mxu0 %v539
    %2073 = vmatprep.subr.bf16.mxu0 0
    %2074 = vmatpush1.bf16.msra.mxu0 0
    %2075 = vmatprep.subr.bf16.mxu0 0
    %2076 = vmatpush1.bf16.msra.mxu0 0
    %2077 = vmatprep.subr.bf16.mxu0 0
    %2078 = vmatpush1.bf16.msra.mxu0 0
    %2079 = vmatprep.subr.bf16.mxu0 0
    %2080 = vmatpush1.bf16.msra.mxu0 0
    %2081 = vmatprep.subr.bf16.mxu0 0
    %2082 = vmatpush1.bf16.msra.mxu0 0
    %2083 = vmatprep.subr.bf16.mxu0 0
    %2084 = vmatpush1.bf16.msra.mxu0 0
    %2085 = vmatprep.subr.bf16.mxu0 0
    %2086 = vmatpush1.bf16.msra.mxu0 0
    %2087 = vmatprep.subr.bf16.mxu0 0
    %2088 = vmatpush1.bf16.msra.mxu0 0
    %2089 = vmatprep.mubr.bf16.mxu0 0
    %2090 = vmatmul.mubr.bf16.gmra.mrb[0].mxu0 %v1360
    %v2091 = vpop.f32.mrb[0].mxu0
    %v2092 = vadd.f32 0.0, %v2091
    %v2093 = vpop.f32.mrb[0].mxu0
    %v2094 = vadd.f32 0.0, %v2093
    %v2095 = vpop.f32.mrb[0].mxu0
    %v2096 = vadd.f32 0.0, %v2095
    %v2097 = vpop.f32.mrb[0].mxu0
    %v2098 = vadd.f32 0.0, %v2097
    %2099 = vmatprep.mubr.bf16.mxu0 0
    %2100 = vmatmul.mubr.bf16.gmra.mrb[0].mxu0 %v1361
    %v2101 = vpop.f32.mrb[0].mxu0
    %v2102 = vadd.f32 0.0, %v2101
    %v2103 = vpop.f32.mrb[0].mxu0
    %v2104 = vadd.f32 0.0, %v2103
    %v2105 = vpop.f32.mrb[0].mxu0
    %v2106 = vadd.f32 0.0, %v2105
    %v2107 = vpop.f32.mrb[0].mxu0
    %v2108 = vadd.f32 0.0, %v2107
    %2109 = vmatprep.mubr.bf16.mxu0 0
    %2110 = vmatmul.mubr.bf16.gmra.mrb[0].mxu0 %v1362
    %v2111 = vpop.f32.mrb[0].mxu0
    %v2112 = vadd.f32 0.0, %v2111
    %v2113 = vpop.f32.mrb[0].mxu0
    %v2114 = vadd.f32 0.0, %v2113
    %v2115 = vpop.f32.mrb[0].mxu0
    %v2116 = vadd.f32 0.0, %v2115
    %v2117 = vpop.f32.mrb[0].mxu0
    %v2118 = vadd.f32 0.0, %v2117
    %2119 = vmatprep.mubr.bf16.mxu0 0
    %2120 = vmatmul.mubr.bf16.gmra.mrb[0].mxu0 %v1363
    %v2121 = vpop.f32.mrb[0].mxu0
    %v2122 = vadd.f32 0.0, %v2121
    %v2123 = vpop.f32.mrb[0].mxu0
    %v2124 = vadd.f32 0.0, %v2123
    %v2125 = vpop.f32.mrb[0].mxu0
    %v2126 = vadd.f32 0.0, %v2125
    %v2127 = vpop.f32.mrb[0].mxu0
    %v2128 = vadd.f32 0.0, %v2127
    %2129 = vdwg.mxu0
    %2130 = vmatprep.subr.bf16.mxu0 %v500
    %2131 = vmatpush1.bf16.msra.mxu0 %v499
    %2132 = vmatprep.subr.bf16.mxu0 %v506
    %2133 = vmatpush1.bf16.msra.mxu0 %v505
    %2134 = vmatprep.subr.bf16.mxu0 %v512
    %2135 = vmatpush1.bf16.msra.mxu0 %v511
    %2136 = vmatprep.subr.bf16.mxu0 %v518
    %2137 = vmatpush1.bf16.msra.mxu0 %v517
    %2138 = vmatprep.subr.bf16.mxu0 %v524
    %2139 = vmatpush1.bf16.msra.mxu0 %v523
    %2140 = vmatprep.subr.bf16.mxu0 %v530
    %2141 = vmatpush1.bf16.msra.mxu0 %v529
    %2142 = vmatprep.subr.bf16.mxu0 %v536
    %2143 = vmatpush1.bf16.msra.mxu0 %v535
    %2144 = vmatprep.subr.bf16.mxu0 %v542
    %2145 = vmatpush1.bf16.msra.mxu0 %v541
    %2146 = vmatprep.subr.bf16.mxu0 0
    %2147 = vmatpush1.bf16.msra.mxu0 0
    %2148 = vmatprep.subr.bf16.mxu0 0
    %2149 = vmatpush1.bf16.msra.mxu0 0
    %2150 = vmatprep.subr.bf16.mxu0 0
    %2151 = vmatpush1.bf16.msra.mxu0 0
    %2152 = vmatprep.subr.bf16.mxu0 0
    %2153 = vmatpush1.bf16.msra.mxu0 0
    %2154 = vmatprep.subr.bf16.mxu0 0
    %2155 = vmatpush1.bf16.msra.mxu0 0
    %2156 = vmatprep.subr.bf16.mxu0 0
    %2157 = vmatpush1.bf16.msra.mxu0 0
    %2158 = vmatprep.subr.bf16.mxu0 0
    %2159 = vmatpush1.bf16.msra.mxu0 0
    %2160 = vmatprep.subr.bf16.mxu0 0
    %2161 = vmatpush1.bf16.msra.mxu0 0
    %2162 = vmatprep.mubr.bf16.mxu0 0
    %2163 = vmatmul.mubr.bf16.gmra.mrb[0].mxu0 %v1360
    %v2164 = vpop.f32.mrb[0].mxu0
    %v2165 = vadd.f32 0.0, %v2164
    %v2166 = vpop.f32.mrb[0].mxu0
    %v2167 = vadd.f32 0.0, %v2166
    %v2168 = vpop.f32.mrb[0].mxu0
    %v2169 = vadd.f32 0.0, %v2168
    %v2170 = vpop.f32.mrb[0].mxu0
    %v2171 = vadd.f32 0.0, %v2170
    %2172 = vmatprep.mubr.bf16.mxu0 0
    %2173 = vmatmul.mubr.bf16.gmra.mrb[0].mxu0 %v1361
    %v2174 = vpop.f32.mrb[0].mxu0
    %v2175 = vadd.f32 0.0, %v2174
    %v2176 = vpop.f32.mrb[0].mxu0
    %v2177 = vadd.f32 0.0, %v2176
    %v2178 = vpop.f32.mrb[0].mxu0
    %v2179 = vadd.f32 0.0, %v2178
    %v2180 = vpop.f32.mrb[0].mxu0
    %v2181 = vadd.f32 0.0, %v2180
    %2182 = vmatprep.mubr.bf16.mxu0 0
    %2183 = vmatmul.mubr.bf16.gmra.mrb[0].mxu0 %v1362
    %v2184 = vpop.f32.mrb[0].mxu0
    %v2185 = vadd.f32 0.0, %v2184
    %v2186 = vpop.f32.mrb[0].mxu0
    %v2187 = vadd.f32 0.0, %v2186
    %v2188 = vpop.f32.mrb[0].mxu0
    %v2189 = vadd.f32 0.0, %v2188
    %v2190 = vpop.f32.mrb[0].mxu0
    %v2191 = vadd.f32 0.0, %v2190
    %2192 = vmatprep.mubr.bf16.mxu0 0
    %2193 = vmatmul.mubr.bf16.gmra.mrb[0].mxu0 %v1363
    %v2194 = vpop.f32.mrb[0].mxu0
    %v2195 = vadd.f32 0.0, %v2194
    %v2196 = vpop.f32.mrb[0].mxu0
    %v2197 = vadd.f32 0.0, %v2196
    %v2198 = vpop.f32.mrb[0].mxu0
    %v2199 = vadd.f32 0.0, %v2198
    %v2200 = vpop.f32.mrb[0].mxu0
    %v2201 = vadd.f32 0.0, %v2200
    %2202 = vdwg.mxu0
    %2203 = vmatprep.subr.bf16.mxu0 %v502
    %2204 = vmatpush1.bf16.msra.mxu0 %v501
    %2205 = vmatprep.subr.bf16.mxu0 %v508
    %2206 = vmatpush1.bf16.msra.mxu0 %v507
    %2207 = vmatprep.subr.bf16.mxu0 %v514
    %2208 = vmatpush1.bf16.msra.mxu0 %v513
    %2209 = vmatprep.subr.bf16.mxu0 %v520
    %2210 = vmatpush1.bf16.msra.mxu0 %v519
    %2211 = vmatprep.subr.bf16.mxu0 %v526
    %2212 = vmatpush1.bf16.msra.mxu0 %v525
    %2213 = vmatprep.subr.bf16.mxu0 %v532
    %2214 = vmatpush1.bf16.msra.mxu0 %v531
    %2215 = vmatprep.subr.bf16.mxu0 %v538
    %2216 = vmatpush1.bf16.msra.mxu0 %v537
    %2217 = vmatprep.subr.bf16.mxu0 %v544
    %2218 = vmatpush1.bf16.msra.mxu0 %v543
    %2219 = vmatprep.subr.bf16.mxu0 0
    %2220 = vmatpush1.bf16.msra.mxu0 0
    %2221 = vmatprep.subr.bf16.mxu0 0
    %2222 = vmatpush1.bf16.msra.mxu0 0
    %2223 = vmatprep.subr.bf16.mxu0 0
    %2224 = vmatpush1.bf16.msra.mxu0 0
    %2225 = vmatprep.subr.bf16.mxu0 0
    %2226 = vmatpush1.bf16.msra.mxu0 0
    %2227 = vmatprep.subr.bf16.mxu0 0
    %2228 = vmatpush1.bf16.msra.mxu0 0
    %2229 = vmatprep.subr.bf16.mxu0 0
    %2230 = vmatpush1.bf16.msra.mxu0 0
    %2231 = vmatprep.subr.bf16.mxu0 0
    %2232 = vmatpush1.bf16.msra.mxu0 0
    %2233 = vmatprep.subr.bf16.mxu0 0
    %2234 = vmatpush1.bf16.msra.mxu0 0
    %2235 = vmatprep.mubr.bf16.mxu0 0
    %2236 = vmatmul.mubr.bf16.gmra.mrb[0].mxu0 %v1360
    %v2237 = vpop.f32.mrb[0].mxu0
    %v2238 = vadd.f32 0.0, %v2237
    %v2239 = vpop.f32.mrb[0].mxu0
    %v2240 = vadd.f32 0.0, %v2239
    %v2241 = vpop.f32.mrb[0].mxu0
    %v2242 = vadd.f32 0.0, %v2241
    %v2243 = vpop.f32.mrb[0].mxu0
    %v2244 = vadd.f32 0.0, %v2243
    %2245 = vmatprep.mubr.bf16.mxu0 0
    %2246 = vmatmul.mubr.bf16.gmra.mrb[0].mxu0 %v1361
    %v2247 = vpop.f32.mrb[0].mxu0
    %v2248 = vadd.f32 0.0, %v2247
    %v2249 = vpop.f32.mrb[0].mxu0
    %v2250 = vadd.f32 0.0, %v2249
    %v2251 = vpop.f32.mrb[0].mxu0
    %v2252 = vadd.f32 0.0, %v2251
    %v2253 = vpop.f32.mrb[0].mxu0
    %v2254 = vadd.f32 0.0, %v2253
    %2255 = vmatprep.mubr.bf16.mxu0 0
    %2256 = vmatmul.mubr.bf16.gmra.mrb[0].mxu0 %v1362
    %v2257 = vpop.f32.mrb[0].mxu0
    %v2258 = vadd.f32 0.0, %v2257
    %v2259 = vpop.f32.mrb[0].mxu0
    %v2260 = vadd.f32 0.0, %v2259
    %v2261 = vpop.f32.mrb[0].mxu0
    %v2262 = vadd.f32 0.0, %v2261
    %v2263 = vpop.f32.mrb[0].mxu0
    %v2264 = vadd.f32 0.0, %v2263
    %2265 = vmatprep.mubr.bf16.mxu0 0
    %2266 = vmatmul.mubr.bf16.gmra.mrb[0].mxu0 %v1363
    %v2267 = vpop.f32.mrb[0].mxu0
    %v2268 = vadd.f32 0.0, %v2267
    %v2269 = vpop.f32.mrb[0].mxu0
    %v2270 = vadd.f32 0.0, %v2269
    %v2271 = vpop.f32.mrb[0].mxu0
    %v2272 = vadd.f32 0.0, %v2271
    %v2273 = vpop.f32.mrb[0].mxu0
    %v2274 = vadd.f32 0.0, %v2273
    %2275 = vdwg.mxu0
    %2276 = vmatprep.subr.bf16.mxu0 %v981
    %2277 = vmatpush1.bf16.msra.mxu0 %v980
    %2278 = vmatprep.subr.bf16.mxu0 %v987
    %2279 = vmatpush1.bf16.msra.mxu0 %v986
    %2280 = vmatprep.subr.bf16.mxu0 %v993
    %2281 = vmatpush1.bf16.msra.mxu0 %v992
    %2282 = vmatprep.subr.bf16.mxu0 %v999
    %2283 = vmatpush1.bf16.msra.mxu0 %v998
    %2284 = vmatprep.subr.bf16.mxu0 %v1005
    %2285 = vmatpush1.bf16.msra.mxu0 %v1004
    %2286 = vmatprep.subr.bf16.mxu0 %v1011
    %2287 = vmatpush1.bf16.msra.mxu0 %v1010
    %2288 = vmatprep.subr.bf16.mxu0 %v1017
    %2289 = vmatpush1.bf16.msra.mxu0 %v1016
    %2290 = vmatprep.subr.bf16.mxu0 %v1023
    %2291 = vmatpush1.bf16.msra.mxu0 %v1022
    %2292 = vmatprep.subr.bf16.mxu0 0
    %2293 = vmatpush1.bf16.msra.mxu0 0
    %2294 = vmatprep.subr.bf16.mxu0 0
    %2295 = vmatpush1.bf16.msra.mxu0 0
    %2296 = vmatprep.subr.bf16.mxu0 0
    %2297 = vmatpush1.bf16.msra.mxu0 0
    %2298 = vmatprep.subr.bf16.mxu0 0
    %2299 = vmatpush1.bf16.msra.mxu0 0
    %2300 = vmatprep.subr.bf16.mxu0 0
    %2301 = vmatpush1.bf16.msra.mxu0 0
    %2302 = vmatprep.subr.bf16.mxu0 0
    %2303 = vmatpush1.bf16.msra.mxu0 0
    %2304 = vmatprep.subr.bf16.mxu0 0
    %2305 = vmatpush1.bf16.msra.mxu0 0
    %2306 = vmatprep.subr.bf16.mxu0 0
    %2307 = vmatpush1.bf16.msra.mxu0 0
    %2308 = vmatprep.mubr.bf16.mxu0 0
    %2309 = vmatmul.mubr.bf16.gmra.mrb[0].mxu0 %v345
    %v2310 = vpop.f32.mrb[0].mxu0
    %v2311 = vadd.f32 %v2092, %v2310
    %v2312 = vpop.f32.mrb[0].mxu0
    %v2313 = vadd.f32 %v2094, %v2312
    %v2314 = vpop.f32.mrb[0].mxu0
    %v2315 = vadd.f32 %v2096, %v2314
    %v2316 = vpop.f32.mrb[0].mxu0
    %v2317 = vadd.f32 %v2098, %v2316
    %2318 = vmatprep.mubr.bf16.mxu0 0
    %2319 = vmatmul.mubr.bf16.gmra.mrb[0].mxu0 %v346
    %v2320 = vpop.f32.mrb[0].mxu0
    %v2321 = vadd.f32 %v2102, %v2320
    %v2322 = vpop.f32.mrb[0].mxu0
    %v2323 = vadd.f32 %v2104, %v2322
    %v2324 = vpop.f32.mrb[0].mxu0
    %v2325 = vadd.f32 %v2106, %v2324
    %v2326 = vpop.f32.mrb[0].mxu0
    %v2327 = vadd.f32 %v2108, %v2326
    %2328 = vmatprep.mubr.bf16.mxu0 0
    %2329 = vmatmul.mubr.bf16.gmra.mrb[0].mxu0 %v347
    %v2330 = vpop.f32.mrb[0].mxu0
    %v2331 = vadd.f32 %v2112, %v2330
    %v2332 = vpop.f32.mrb[0].mxu0
    %v2333 = vadd.f32 %v2114, %v2332
    %v2334 = vpop.f32.mrb[0].mxu0
    %v2335 = vadd.f32 %v2116, %v2334
    %v2336 = vpop.f32.mrb[0].mxu0
    %v2337 = vadd.f32 %v2118, %v2336
    %2338 = vmatprep.mubr.bf16.mxu0 0
    %2339 = vmatmul.mubr.bf16.gmra.mrb[0].mxu0 %v348
    %v2340 = vpop.f32.mrb[0].mxu0
    %v2341 = vadd.f32 %v2122, %v2340
    %v2342 = vpop.f32.mrb[0].mxu0
    %v2343 = vadd.f32 %v2124, %v2342
    %v2344 = vpop.f32.mrb[0].mxu0
    %v2345 = vadd.f32 %v2126, %v2344
    %v2346 = vpop.f32.mrb[0].mxu0
    %v2347 = vadd.f32 %v2128, %v2346
    %2348 = vdwg.mxu0
    %2349 = vmatprep.subr.bf16.mxu0 %v983
    %2350 = vmatpush1.bf16.msra.mxu0 %v982
    %2351 = vmatprep.subr.bf16.mxu0 %v989
    %2352 = vmatpush1.bf16.msra.mxu0 %v988
    %2353 = vmatprep.subr.bf16.mxu0 %v995
    %2354 = vmatpush1.bf16.msra.mxu0 %v994
    %2355 = vmatprep.subr.bf16.mxu0 %v1001
    %2356 = vmatpush1.bf16.msra.mxu0 %v1000
    %2357 = vmatprep.subr.bf16.mxu0 %v1007
    %2358 = vmatpush1.bf16.msra.mxu0 %v1006
    %2359 = vmatprep.subr.bf16.mxu0 %v1013
    %2360 = vmatpush1.bf16.msra.mxu0 %v1012
    %2361 = vmatprep.subr.bf16.mxu0 %v1019
    %2362 = vmatpush1.bf16.msra.mxu0 %v1018
    %2363 = vmatprep.subr.bf16.mxu0 %v1025
    %2364 = vmatpush1.bf16.msra.mxu0 %v1024
    %2365 = vmatprep.subr.bf16.mxu0 0
    %2366 = vmatpush1.bf16.msra.mxu0 0
    %2367 = vmatprep.subr.bf16.mxu0 0
    %2368 = vmatpush1.bf16.msra.mxu0 0
    %2369 = vmatprep.subr.bf16.mxu0 0
    %2370 = vmatpush1.bf16.msra.mxu0 0
    %2371 = vmatprep.subr.bf16.mxu0 0
    %2372 = vmatpush1.bf16.msra.mxu0 0
    %2373 = vmatprep.subr.bf16.mxu0 0
    %2374 = vmatpush1.bf16.msra.mxu0 0
    %2375 = vmatprep.subr.bf16.mxu0 0
    %2376 = vmatpush1.bf16.msra.mxu0 0
    %2377 = vmatprep.subr.bf16.mxu0 0
    %2378 = vmatpush1.bf16.msra.mxu0 0
    %2379 = vmatprep.subr.bf16.mxu0 0
    %2380 = vmatpush1.bf16.msra.mxu0 0
    %2381 = vmatprep.mubr.bf16.mxu0 0
    %2382 = vmatmul.mubr.bf16.gmra.mrb[0].mxu0 %v345
    %v2383 = vpop.f32.mrb[0].mxu0
    %v2384 = vadd.f32 %v2165, %v2383
    %v2385 = vpop.f32.mrb[0].mxu0
    %v2386 = vadd.f32 %v2167, %v2385
    %v2387 = vpop.f32.mrb[0].mxu0
    %v2388 = vadd.f32 %v2169, %v2387
    %v2389 = vpop.f32.mrb[0].mxu0
    %v2390 = vadd.f32 %v2171, %v2389
    %2391 = vmatprep.mubr.bf16.mxu0 0
    %2392 = vmatmul.mubr.bf16.gmra.mrb[0].mxu0 %v346
    %v2393 = vpop.f32.mrb[0].mxu0
    %v2394 = vadd.f32 %v2175, %v2393
    %v2395 = vpop.f32.mrb[0].mxu0
    %v2396 = vadd.f32 %v2177, %v2395
    %v2397 = vpop.f32.mrb[0].mxu0
    %v2398 = vadd.f32 %v2179, %v2397
    %v2399 = vpop.f32.mrb[0].mxu0
    %v2400 = vadd.f32 %v2181, %v2399
    %2401 = vmatprep.mubr.bf16.mxu0 0
    %2402 = vmatmul.mubr.bf16.gmra.mrb[0].mxu0 %v347
    %v2403 = vpop.f32.mrb[0].mxu0
    %v2404 = vadd.f32 %v2185, %v2403
    %v2405 = vpop.f32.mrb[0].mxu0
    %v2406 = vadd.f32 %v2187, %v2405
    %v2407 = vpop.f32.mrb[0].mxu0
    %v2408 = vadd.f32 %v2189, %v2407
    %v2409 = vpop.f32.mrb[0].mxu0
    %v2410 = vadd.f32 %v2191, %v2409
    %2411 = vmatprep.mubr.bf16.mxu0 0
    %2412 = vmatmul.mubr.bf16.gmra.mrb[0].mxu0 %v348
    %v2413 = vpop.f32.mrb[0].mxu0
    %v2414 = vadd.f32 %v2195, %v2413
    %v2415 = vpop.f32.mrb[0].mxu0
    %v2416 = vadd.f32 %v2197, %v2415
    %v2417 = vpop.f32.mrb[0].mxu0
    %v2418 = vadd.f32 %v2199, %v2417
    %v2419 = vpop.f32.mrb[0].mxu0
    %v2420 = vadd.f32 %v2201, %v2419
    %2421 = vdwg.mxu0
    %2422 = vmatprep.subr.bf16.mxu0 %v985
    %2423 = vmatpush1.bf16.msra.mxu0 %v984
    %2424 = vmatprep.subr.bf16.mxu0 %v991
    %2425 = vmatpush1.bf16.msra.mxu0 %v990
    %2426 = vmatprep.subr.bf16.mxu0 %v997
    %2427 = vmatpush1.bf16.msra.mxu0 %v996
    %2428 = vmatprep.subr.bf16.mxu0 %v1003
    %2429 = vmatpush1.bf16.msra.mxu0 %v1002
    %2430 = vmatprep.subr.bf16.mxu0 %v1009
    %2431 = vmatpush1.bf16.msra.mxu0 %v1008
    %2432 = vmatprep.subr.bf16.mxu0 %v1015
    %2433 = vmatpush1.bf16.msra.mxu0 %v1014
    %2434 = vmatprep.subr.bf16.mxu0 %v1021
    %2435 = vmatpush1.bf16.msra.mxu0 %v1020
    %2436 = vmatprep.subr.bf16.mxu0 %v1027
    %2437 = vmatpush1.bf16.msra.mxu0 %v1026
    %2438 = vmatprep.subr.bf16.mxu0 0
    %2439 = vmatpush1.bf16.msra.mxu0 0
    %2440 = vmatprep.subr.bf16.mxu0 0
    %2441 = vmatpush1.bf16.msra.mxu0 0
    %2442 = vmatprep.subr.bf16.mxu0 0
    %2443 = vmatpush1.bf16.msra.mxu0 0
    %2444 = vmatprep.subr.bf16.mxu0 0
    %2445 = vmatpush1.bf16.msra.mxu0 0
    %2446 = vmatprep.subr.bf16.mxu0 0
    %2447 = vmatpush1.bf16.msra.mxu0 0
    %2448 = vmatprep.subr.bf16.mxu0 0
    %2449 = vmatpush1.bf16.msra.mxu0 0
    %2450 = vmatprep.subr.bf16.mxu0 0
    %2451 = vmatpush1.bf16.msra.mxu0 0
    %2452 = vmatprep.subr.bf16.mxu0 0
    %2453 = vmatpush1.bf16.msra.mxu0 0
    %2454 = vmatprep.mubr.bf16.mxu0 0
    %2455 = vmatmul.mubr.bf16.gmra.mrb[0].mxu0 %v345
    %v2456 = vpop.f32.mrb[0].mxu0
    %v2457 = vadd.f32 %v2238, %v2456
    %v2458 = vpop.f32.mrb[0].mxu0
    %v2459 = vadd.f32 %v2240, %v2458
    %v2460 = vpop.f32.mrb[0].mxu0
    %v2461 = vadd.f32 %v2242, %v2460
    %v2462 = vpop.f32.mrb[0].mxu0
    %v2463 = vadd.f32 %v2244, %v2462
    %2464 = vmatprep.mubr.bf16.mxu0 0
    %2465 = vmatmul.mubr.bf16.gmra.mrb[0].mxu0 %v346
    %v2466 = vpop.f32.mrb[0].mxu0
    %v2467 = vadd.f32 %v2248, %v2466
    %v2468 = vpop.f32.mrb[0].mxu0
    %v2469 = vadd.f32 %v2250, %v2468
    %v2470 = vpop.f32.mrb[0].mxu0
    %v2471 = vadd.f32 %v2252, %v2470
    %v2472 = vpop.f32.mrb[0].mxu0
    %v2473 = vadd.f32 %v2254, %v2472
    %2474 = vmatprep.mubr.bf16.mxu0 0
    %2475 = vmatmul.mubr.bf16.gmra.mrb[0].mxu0 %v347
    %v2476 = vpop.f32.mrb[0].mxu0
    %v2477 = vadd.f32 %v2258, %v2476
    %v2478 = vpop.f32.mrb[0].mxu0
    %v2479 = vadd.f32 %v2260, %v2478
    %v2480 = vpop.f32.mrb[0].mxu0
    %v2481 = vadd.f32 %v2262, %v2480
    %v2482 = vpop.f32.mrb[0].mxu0
    %v2483 = vadd.f32 %v2264, %v2482
    %2484 = vmatprep.mubr.bf16.mxu0 0
    %2485 = vmatmul.mubr.bf16.gmra.mrb[0].mxu0 %v348
    %v2486 = vpop.f32.mrb[0].mxu0
    %v2487 = vadd.f32 %v2268, %v2486
    %v2488 = vpop.f32.mrb[0].mxu0
    %v2489 = vadd.f32 %v2270, %v2488
    %v2490 = vpop.f32.mrb[0].mxu0
    %v2491 = vadd.f32 %v2272, %v2490
    %v2492 = vpop.f32.mrb[0].mxu0
    %v2493 = vadd.f32 %v2274, %v2492
    %2494 = vdwg.mxu0
    %v2503 = vunpack.c.l.b16 %v220
    %v2504 = vunpack.c.l.b16 %v221
    %v2505 = vunpack.c.l.b16 %v222
    %v2506 = vunpack.c.l.b16 %v223
    %v2507 = vunpack.c.l.b16 %v224
    %v2508 = vunpack.c.l.b16 %v225
    %v2509 = vunpack.c.l.b16 %v226
    %v2510 = vunpack.c.l.b16 %v227
    %v2511 = vpack.c.b16 %v2504, %v2503
    %v2512 = vpack.c.b16 %v2506, %v2505
    %v2513 = vpack.c.b16 %v2508, %v2507
    %v2514 = vpack.c.b16 %v2510, %v2509
    %2519 = vmatprep.subr.bf16.mxu0 %v1513
    %2520 = vmatpush1.bf16.msra.mxu0 %v1512
    %2521 = vmatprep.subr.bf16.mxu0 %v1519
    %2522 = vmatpush1.bf16.msra.mxu0 %v1518
    %2523 = vmatprep.subr.bf16.mxu0 %v1525
    %2524 = vmatpush1.bf16.msra.mxu0 %v1524
    %2525 = vmatprep.subr.bf16.mxu0 %v1531
    %2526 = vmatpush1.bf16.msra.mxu0 %v1530
    %2527 = vmatprep.subr.bf16.mxu0 %v1537
    %2528 = vmatpush1.bf16.msra.mxu0 %v1536
    %2529 = vmatprep.subr.bf16.mxu0 %v1543
    %2530 = vmatpush1.bf16.msra.mxu0 %v1542
    %2531 = vmatprep.subr.bf16.mxu0 %v1549
    %2532 = vmatpush1.bf16.msra.mxu0 %v1548
    %2533 = vmatprep.subr.bf16.mxu0 %v1555
    %2534 = vmatpush1.bf16.msra.mxu0 %v1554
    %2535 = vmatprep.subr.bf16.mxu0 0
    %2536 = vmatpush1.bf16.msra.mxu0 0
    %2537 = vmatprep.subr.bf16.mxu0 0
    %2538 = vmatpush1.bf16.msra.mxu0 0
    %2539 = vmatprep.subr.bf16.mxu0 0
    %2540 = vmatpush1.bf16.msra.mxu0 0
    %2541 = vmatprep.subr.bf16.mxu0 0
    %2542 = vmatpush1.bf16.msra.mxu0 0
    %2543 = vmatprep.subr.bf16.mxu0 0
    %2544 = vmatpush1.bf16.msra.mxu0 0
    %2545 = vmatprep.subr.bf16.mxu0 0
    %2546 = vmatpush1.bf16.msra.mxu0 0
    %2547 = vmatprep.subr.bf16.mxu0 0
    %2548 = vmatpush1.bf16.msra.mxu0 0
    %2549 = vmatprep.subr.bf16.mxu0 0
    %2550 = vmatpush1.bf16.msra.mxu0 0
    %2551 = vmatprep.mubr.bf16.mxu0 0
    %2552 = vmatmul.mubr.bf16.gmra.mrb[0].mxu0 %v2511
    %v2553 = vpop.f32.mrb[0].mxu0
    %v2554 = vadd.f32 0.0, %v2553
    %v2555 = vpop.f32.mrb[0].mxu0
    %v2556 = vadd.f32 0.0, %v2555
    %v2557 = vpop.f32.mrb[0].mxu0
    %v2558 = vadd.f32 0.0, %v2557
    %v2559 = vpop.f32.mrb[0].mxu0
    %v2560 = vadd.f32 0.0, %v2559
    %2561 = vmatprep.mubr.bf16.mxu0 0
    %2562 = vmatmul.mubr.bf16.gmra.mrb[0].mxu0 %v2512
    %v2563 = vpop.f32.mrb[0].mxu0
    %v2564 = vadd.f32 0.0, %v2563
    %v2565 = vpop.f32.mrb[0].mxu0
    %v2566 = vadd.f32 0.0, %v2565
    %v2567 = vpop.f32.mrb[0].mxu0
    %v2568 = vadd.f32 0.0, %v2567
    %v2569 = vpop.f32.mrb[0].mxu0
    %v2570 = vadd.f32 0.0, %v2569
    %2571 = vmatprep.mubr.bf16.mxu0 0
    %2572 = vmatmul.mubr.bf16.gmra.mrb[0].mxu0 %v2513
    %v2573 = vpop.f32.mrb[0].mxu0
    %v2574 = vadd.f32 0.0, %v2573
    %v2575 = vpop.f32.mrb[0].mxu0
    %v2576 = vadd.f32 0.0, %v2575
    %v2577 = vpop.f32.mrb[0].mxu0
    %v2578 = vadd.f32 0.0, %v2577
    %v2579 = vpop.f32.mrb[0].mxu0
    %v2580 = vadd.f32 0.0, %v2579
    %2581 = vmatprep.mubr.bf16.mxu0 0
    %2582 = vmatmul.mubr.bf16.gmra.mrb[0].mxu0 %v2514
    %v2583 = vpop.f32.mrb[0].mxu0
    %v2584 = vadd.f32 0.0, %v2583
    %v2585 = vpop.f32.mrb[0].mxu0
    %v2586 = vadd.f32 0.0, %v2585
    %v2587 = vpop.f32.mrb[0].mxu0
    %v2588 = vadd.f32 0.0, %v2587
    %v2589 = vpop.f32.mrb[0].mxu0
    %v2590 = vadd.f32 0.0, %v2589
    %2591 = vdwg.mxu0
    %2592 = vmatprep.subr.bf16.mxu0 %v1515
    %2593 = vmatpush1.bf16.msra.mxu0 %v1514
    %2594 = vmatprep.subr.bf16.mxu0 %v1521
    %2595 = vmatpush1.bf16.msra.mxu0 %v1520
    %2596 = vmatprep.subr.bf16.mxu0 %v1527
    %2597 = vmatpush1.bf16.msra.mxu0 %v1526
    %2598 = vmatprep.subr.bf16.mxu0 %v1533
    %2599 = vmatpush1.bf16.msra.mxu0 %v1532
    %2600 = vmatprep.subr.bf16.mxu0 %v1539
    %2601 = vmatpush1.bf16.msra.mxu0 %v1538
    %2602 = vmatprep.subr.bf16.mxu0 %v1545
    %2603 = vmatpush1.bf16.msra.mxu0 %v1544
    %2604 = vmatprep.subr.bf16.mxu0 %v1551
    %2605 = vmatpush1.bf16.msra.mxu0 %v1550
    %2606 = vmatprep.subr.bf16.mxu0 %v1557
    %2607 = vmatpush1.bf16.msra.mxu0 %v1556
    %2608 = vmatprep.subr.bf16.mxu0 0
    %2609 = vmatpush1.bf16.msra.mxu0 0
    %2610 = vmatprep.subr.bf16.mxu0 0
    %2611 = vmatpush1.bf16.msra.mxu0 0
    %2612 = vmatprep.subr.bf16.mxu0 0
    %2613 = vmatpush1.bf16.msra.mxu0 0
    %2614 = vmatprep.subr.bf16.mxu0 0
    %2615 = vmatpush1.bf16.msra.mxu0 0
    %2616 = vmatprep.subr.bf16.mxu0 0
    %2617 = vmatpush1.bf16.msra.mxu0 0
    %2618 = vmatprep.subr.bf16.mxu0 0
    %2619 = vmatpush1.bf16.msra.mxu0 0
    %2620 = vmatprep.subr.bf16.mxu0 0
    %2621 = vmatpush1.bf16.msra.mxu0 0
    %2622 = vmatprep.subr.bf16.mxu0 0
    %2623 = vmatpush1.bf16.msra.mxu0 0
    %2624 = vmatprep.mubr.bf16.mxu0 0
    %2625 = vmatmul.mubr.bf16.gmra.mrb[0].mxu0 %v2511
    %v2626 = vpop.f32.mrb[0].mxu0
    %v2627 = vadd.f32 0.0, %v2626
    %v2628 = vpop.f32.mrb[0].mxu0
    %v2629 = vadd.f32 0.0, %v2628
    %v2630 = vpop.f32.mrb[0].mxu0
    %v2631 = vadd.f32 0.0, %v2630
    %v2632 = vpop.f32.mrb[0].mxu0
    %v2633 = vadd.f32 0.0, %v2632
    %2634 = vmatprep.mubr.bf16.mxu0 0
    %2635 = vmatmul.mubr.bf16.gmra.mrb[0].mxu0 %v2512
    %v2636 = vpop.f32.mrb[0].mxu0
    %v2637 = vadd.f32 0.0, %v2636
    %v2638 = vpop.f32.mrb[0].mxu0
    %v2639 = vadd.f32 0.0, %v2638
    %v2640 = vpop.f32.mrb[0].mxu0
    %v2641 = vadd.f32 0.0, %v2640
    %v2642 = vpop.f32.mrb[0].mxu0
    %v2643 = vadd.f32 0.0, %v2642
    %2644 = vmatprep.mubr.bf16.mxu0 0
    %2645 = vmatmul.mubr.bf16.gmra.mrb[0].mxu0 %v2513
    %v2646 = vpop.f32.mrb[0].mxu0
    %v2647 = vadd.f32 0.0, %v2646
    %v2648 = vpop.f32.mrb[0].mxu0
    %v2649 = vadd.f32 0.0, %v2648
    %v2650 = vpop.f32.mrb[0].mxu0
    %v2651 = vadd.f32 0.0, %v2650
    %v2652 = vpop.f32.mrb[0].mxu0
    %v2653 = vadd.f32 0.0, %v2652
    %2654 = vmatprep.mubr.bf16.mxu0 0
    %2655 = vmatmul.mubr.bf16.gmra.mrb[0].mxu0 %v2514
    %v2656 = vpop.f32.mrb[0].mxu0
    %v2657 = vadd.f32 0.0, %v2656
    %v2658 = vpop.f32.mrb[0].mxu0
    %v2659 = vadd.f32 0.0, %v2658
    %v2660 = vpop.f32.mrb[0].mxu0
    %v2661 = vadd.f32 0.0, %v2660
    %v2662 = vpop.f32.mrb[0].mxu0
    %v2663 = vadd.f32 0.0, %v2662
    %2664 = vdwg.mxu0
    %2665 = vmatprep.subr.bf16.mxu0 %v1517
    %2666 = vmatpush1.bf16.msra.mxu0 %v1516
    %2667 = vmatprep.subr.bf16.mxu0 %v1523
    %2668 = vmatpush1.bf16.msra.mxu0 %v1522
    %2669 = vmatprep.subr.bf16.mxu0 %v1529
    %2670 = vmatpush1.bf16.msra.mxu0 %v1528
    %2671 = vmatprep.subr.bf16.mxu0 %v1535
    %2672 = vmatpush1.bf16.msra.mxu0 %v1534
    %2673 = vmatprep.subr.bf16.mxu0 %v1541
    %2674 = vmatpush1.bf16.msra.mxu0 %v1540
    %2675 = vmatprep.subr.bf16.mxu0 %v1547
    %2676 = vmatpush1.bf16.msra.mxu0 %v1546
    %2677 = vmatprep.subr.bf16.mxu0 %v1553
    %2678 = vmatpush1.bf16.msra.mxu0 %v1552
    %2679 = vmatprep.subr.bf16.mxu0 %v1559
    %2680 = vmatpush1.bf16.msra.mxu0 %v1558
    %2681 = vmatprep.subr.bf16.mxu0 0
    %2682 = vmatpush1.bf16.msra.mxu0 0
    %2683 = vmatprep.subr.bf16.mxu0 0
    %2684 = vmatpush1.bf16.msra.mxu0 0
    %2685 = vmatprep.subr.bf16.mxu0 0
    %2686 = vmatpush1.bf16.msra.mxu0 0
    %2687 = vmatprep.subr.bf16.mxu0 0
    %2688 = vmatpush1.bf16.msra.mxu0 0
    %2689 = vmatprep.subr.bf16.mxu0 0
    %2690 = vmatpush1.bf16.msra.mxu0 0
    %2691 = vmatprep.subr.bf16.mxu0 0
    %2692 = vmatpush1.bf16.msra.mxu0 0
    %2693 = vmatprep.subr.bf16.mxu0 0
    %2694 = vmatpush1.bf16.msra.mxu0 0
    %2695 = vmatprep.subr.bf16.mxu0 0
    %2696 = vmatpush1.bf16.msra.mxu0 0
    %2697 = vmatprep.mubr.bf16.mxu0 0
    %2698 = vmatmul.mubr.bf16.gmra.mrb[0].mxu0 %v2511
    %v2699 = vpop.f32.mrb[0].mxu0
    %v2700 = vadd.f32 0.0, %v2699
    %v2701 = vpop.f32.mrb[0].mxu0
    %v2702 = vadd.f32 0.0, %v2701
    %v2703 = vpop.f32.mrb[0].mxu0
    %v2704 = vadd.f32 0.0, %v2703
    %v2705 = vpop.f32.mrb[0].mxu0
    %v2706 = vadd.f32 0.0, %v2705
    %2707 = vmatprep.mubr.bf16.mxu0 0
    %2708 = vmatmul.mubr.bf16.gmra.mrb[0].mxu0 %v2512
    %v2709 = vpop.f32.mrb[0].mxu0
    %v2710 = vadd.f32 0.0, %v2709
    %v2711 = vpop.f32.mrb[0].mxu0
    %v2712 = vadd.f32 0.0, %v2711
    %v2713 = vpop.f32.mrb[0].mxu0
    %v2714 = vadd.f32 0.0, %v2713
    %v2715 = vpop.f32.mrb[0].mxu0
    %v2716 = vadd.f32 0.0, %v2715
    %2717 = vmatprep.mubr.bf16.mxu0 0
    %2718 = vmatmul.mubr.bf16.gmra.mrb[0].mxu0 %v2513
    %v2719 = vpop.f32.mrb[0].mxu0
    %v2720 = vadd.f32 0.0, %v2719
    %v2721 = vpop.f32.mrb[0].mxu0
    %v2722 = vadd.f32 0.0, %v2721
    %v2723 = vpop.f32.mrb[0].mxu0
    %v2724 = vadd.f32 0.0, %v2723
    %v2725 = vpop.f32.mrb[0].mxu0
    %v2726 = vadd.f32 0.0, %v2725
    %2727 = vmatprep.mubr.bf16.mxu0 0
    %2728 = vmatmul.mubr.bf16.gmra.mrb[0].mxu0 %v2514
    %v2729 = vpop.f32.mrb[0].mxu0
    %v2730 = vadd.f32 0.0, %v2729
    %v2731 = vpop.f32.mrb[0].mxu0
    %v2732 = vadd.f32 0.0, %v2731
    %v2733 = vpop.f32.mrb[0].mxu0
    %v2734 = vadd.f32 0.0, %v2733
    %v2735 = vpop.f32.mrb[0].mxu0
    %v2736 = vadd.f32 0.0, %v2735
    %2737 = vdwg.mxu0
    %v2738 = vadd.f32 %v2311, %v2554
    %v2739 = vadd.f32 %v2313, %v2556
    %v2740 = vadd.f32 %v2384, %v2627
    %v2741 = vadd.f32 %v2386, %v2629
    %v2742 = vadd.f32 %v2457, %v2700
    %v2743 = vadd.f32 %v2459, %v2702
    %v2744 = vadd.f32 %v2315, %v2558
    %v2745 = vadd.f32 %v2317, %v2560
    %v2746 = vadd.f32 %v2388, %v2631
    %v2747 = vadd.f32 %v2390, %v2633
    %v2748 = vadd.f32 %v2461, %v2704
    %v2749 = vadd.f32 %v2463, %v2706
    %v2750 = vadd.f32 %v2321, %v2564
    %v2751 = vadd.f32 %v2323, %v2566
    %v2752 = vadd.f32 %v2394, %v2637
    %v2753 = vadd.f32 %v2396, %v2639
    %v2754 = vadd.f32 %v2467, %v2710
    %v2755 = vadd.f32 %v2469, %v2712
    %v2756 = vadd.f32 %v2325, %v2568
    %v2757 = vadd.f32 %v2327, %v2570
    %v2758 = vadd.f32 %v2398, %v2641
    %v2759 = vadd.f32 %v2400, %v2643
    %v2760 = vadd.f32 %v2471, %v2714
    %v2761 = vadd.f32 %v2473, %v2716
    %v2762 = vadd.f32 %v2331, %v2574
    %v2763 = vadd.f32 %v2333, %v2576
    %v2764 = vadd.f32 %v2404, %v2647
    %v2765 = vadd.f32 %v2406, %v2649
    %v2766 = vadd.f32 %v2477, %v2720
    %v2767 = vadd.f32 %v2479, %v2722
    %v2768 = vadd.f32 %v2335, %v2578
    %v2769 = vadd.f32 %v2337, %v2580
    %v2770 = vadd.f32 %v2408, %v2651
    %v2771 = vadd.f32 %v2410, %v2653
    %v2772 = vadd.f32 %v2481, %v2724
    %v2773 = vadd.f32 %v2483, %v2726
    %v2774 = vadd.f32 %v2341, %v2584
    %v2775 = vadd.f32 %v2343, %v2586
    %v2776 = vadd.f32 %v2414, %v2657
    %v2777 = vadd.f32 %v2416, %v2659
    %v2778 = vadd.f32 %v2487, %v2730
    %v2779 = vadd.f32 %v2489, %v2732
    %v2780 = vadd.f32 %v2345, %v2588
    %v2781 = vadd.f32 %v2347, %v2590
    %v2782 = vadd.f32 %v2418, %v2661
    %v2783 = vadd.f32 %v2420, %v2663
    %v2784 = vadd.f32 %v2491, %v2734
    %v2785 = vadd.f32 %v2493, %v2736
    %v2786 = vmul.f32 %v2738, %v1879
    %v2787 = vmul.f32 %v2739, %v1883
    %v2788 = vmul.f32 %v2740, %v1887
    %v2789 = vmul.f32 %v2741, %v1891
    %v2790 = vmul.f32 %v2742, %v1895
    %v2791 = vmul.f32 %v2743, %v1899
    %v2792 = vmul.f32 %v2744, %v1879
    %v2793 = vmul.f32 %v2745, %v1883
    %v2794 = vmul.f32 %v2746, %v1887
    %v2795 = vmul.f32 %v2747, %v1891
    %v2796 = vmul.f32 %v2748, %v1895
    %v2797 = vmul.f32 %v2749, %v1899
    %v2798 = vmul.f32 %v2750, %v1879
    %v2799 = vmul.f32 %v2751, %v1883
    %v2800 = vmul.f32 %v2752, %v1887
    %v2801 = vmul.f32 %v2753, %v1891
    %v2802 = vmul.f32 %v2754, %v1895
    %v2803 = vmul.f32 %v2755, %v1899
    %v2804 = vmul.f32 %v2756, %v1879
    %v2805 = vmul.f32 %v2757, %v1883
    %v2806 = vmul.f32 %v2758, %v1887
    %v2807 = vmul.f32 %v2759, %v1891
    %v2808 = vmul.f32 %v2760, %v1895
    %v2809 = vmul.f32 %v2761, %v1899
    %v2810 = vmul.f32 %v2762, %v1879
    %v2811 = vmul.f32 %v2763, %v1883
    %v2812 = vmul.f32 %v2764, %v1887
    %v2813 = vmul.f32 %v2765, %v1891
    %v2814 = vmul.f32 %v2766, %v1895
    %v2815 = vmul.f32 %v2767, %v1899
    %v2816 = vmul.f32 %v2768, %v1879
    %v2817 = vmul.f32 %v2769, %v1883
    %v2818 = vmul.f32 %v2770, %v1887
    %v2819 = vmul.f32 %v2771, %v1891
    %v2820 = vmul.f32 %v2772, %v1895
    %v2821 = vmul.f32 %v2773, %v1899
    %v2822 = vmul.f32 %v2774, %v1879
    %v2823 = vmul.f32 %v2775, %v1883
    %v2824 = vmul.f32 %v2776, %v1887
    %v2825 = vmul.f32 %v2777, %v1891
    %v2826 = vmul.f32 %v2778, %v1895
    %v2827 = vmul.f32 %v2779, %v1899
    %v2828 = vmul.f32 %v2780, %v1879
    %v2829 = vmul.f32 %v2781, %v1883
    %v2830 = vmul.f32 %v2782, %v1887
    %v2831 = vmul.f32 %v2783, %v1891
    %v2832 = vmul.f32 %v2784, %v1895
    %v2833 = vmul.f32 %v2785, %v1899
    %v2834 = vadd.f32 %v2786, %v1958
    %v2835 = vadd.f32 %v2787, %v1962
    %v2836 = vadd.f32 %v2788, %v1966
    %v2837 = vadd.f32 %v2789, %v1970
    %v2838 = vadd.f32 %v2790, %v1974
    %v2839 = vadd.f32 %v2791, %v1978
    %v2840 = vadd.f32 %v2792, %v1958
    %v2841 = vadd.f32 %v2793, %v1962
    %v2842 = vadd.f32 %v2794, %v1966
    %v2843 = vadd.f32 %v2795, %v1970
    %v2844 = vadd.f32 %v2796, %v1974
    %v2845 = vadd.f32 %v2797, %v1978
    %v2846 = vadd.f32 %v2798, %v1958
    %v2847 = vadd.f32 %v2799, %v1962
    %v2848 = vadd.f32 %v2800, %v1966
    %v2849 = vadd.f32 %v2801, %v1970
    %v2850 = vadd.f32 %v2802, %v1974
    %v2851 = vadd.f32 %v2803, %v1978
    %v2852 = vadd.f32 %v2804, %v1958
    %v2853 = vadd.f32 %v2805, %v1962
    %v2854 = vadd.f32 %v2806, %v1966
    %v2855 = vadd.f32 %v2807, %v1970
    %v2856 = vadd.f32 %v2808, %v1974
    %v2857 = vadd.f32 %v2809, %v1978
    %v2858 = vadd.f32 %v2810, %v1958
    %v2859 = vadd.f32 %v2811, %v1962
    %v2860 = vadd.f32 %v2812, %v1966
    %v2861 = vadd.f32 %v2813, %v1970
    %v2862 = vadd.f32 %v2814, %v1974
    %v2863 = vadd.f32 %v2815, %v1978
    %v2864 = vadd.f32 %v2816, %v1958
    %v2865 = vadd.f32 %v2817, %v1962
    %v2866 = vadd.f32 %v2818, %v1966
    %v2867 = vadd.f32 %v2819, %v1970
    %v2868 = vadd.f32 %v2820, %v1974
    %v2869 = vadd.f32 %v2821, %v1978
    %v2870 = vadd.f32 %v2822, %v1958
    %v2871 = vadd.f32 %v2823, %v1962
    %v2872 = vadd.f32 %v2824, %v1966
    %v2873 = vadd.f32 %v2825, %v1970
    %v2874 = vadd.f32 %v2826, %v1974
    %v2875 = vadd.f32 %v2827, %v1978
    %v2876 = vadd.f32 %v2828, %v1958
    %v2877 = vadd.f32 %v2829, %v1962
    %v2878 = vadd.f32 %v2830, %v1966
    %v2879 = vadd.f32 %v2831, %v1970
    %v2880 = vadd.f32 %v2832, %v1974
    %v2881 = vadd.f32 %v2833, %v1978
    %v2882 = vmax.f32 %v2834, %v2837
    %v2883 = vmax.f32 %v2835, %v2838
    %v2884 = vmax.f32 %v2836, %v2839
    %v2885 = vmax.f32 %v2840, %v2843
    %v2886 = vmax.f32 %v2841, %v2844
    %v2887 = vmax.f32 %v2842, %v2845
    %v2888 = vmax.f32 %v2846, %v2849
    %v2889 = vmax.f32 %v2847, %v2850
    %v2890 = vmax.f32 %v2848, %v2851
    %v2891 = vmax.f32 %v2852, %v2855
    %v2892 = vmax.f32 %v2853, %v2856
    %v2893 = vmax.f32 %v2854, %v2857
    %v2894 = vmax.f32 %v2858, %v2861
    %v2895 = vmax.f32 %v2859, %v2862
    %v2896 = vmax.f32 %v2860, %v2863
    %v2897 = vmax.f32 %v2864, %v2867
    %v2898 = vmax.f32 %v2865, %v2868
    %v2899 = vmax.f32 %v2866, %v2869
    %v2900 = vmax.f32 %v2870, %v2873
    %v2901 = vmax.f32 %v2871, %v2874
    %v2902 = vmax.f32 %v2872, %v2875
    %v2903 = vmax.f32 %v2876, %v2879
    %v2904 = vmax.f32 %v2877, %v2880
    %v2905 = vmax.f32 %v2878, %v2881
    %v2906 = vmax.f32 %v2033, %v2882
    %v2907 = vmax.f32 %v2034, %v2883
    %v2908 = vmax.f32 %v2035, %v2884
    %v2909 = vmax.f32 %v2036, %v2885
    %v2910 = vmax.f32 %v2037, %v2886
    %v2911 = vmax.f32 %v2038, %v2887
    %v2912 = vmax.f32 %v2039, %v2888
    %v2913 = vmax.f32 %v2040, %v2889
    %v2914 = vmax.f32 %v2041, %v2890
    %v2915 = vmax.f32 %v2042, %v2891
    %v2916 = vmax.f32 %v2043, %v2892
    %v2917 = vmax.f32 %v2044, %v2893
    %v2918 = vmax.f32 %v2045, %v2894
    %v2919 = vmax.f32 %v2046, %v2895
    %v2920 = vmax.f32 %v2047, %v2896
    %v2921 = vmax.f32 %v2048, %v2897
    %v2922 = vmax.f32 %v2049, %v2898
    %v2923 = vmax.f32 %v2050, %v2899
    %v2924 = vmax.f32 %v2051, %v2900
    %v2925 = vmax.f32 %v2052, %v2901
    %v2926 = vmax.f32 %v2053, %v2902
    %v2927 = vmax.f32 %v2054, %v2903
    %v2928 = vmax.f32 %v2055, %v2904
    %v2929 = vmax.f32 %v2056, %v2905
    %v2930 = vmax.f32 %v2906, 0.0
    %v2931 = vmax.f32 %v2907, 0.0
    %v2932 = vmax.f32 %v2908, 0.0
    %v2933 = vmax.f32 %v2909, 0.0
    %v2934 = vmax.f32 %v2910, 0.0
    %v2935 = vmax.f32 %v2911, 0.0
    %v2936 = vmax.f32 %v2912, 0.0
    %v2937 = vmax.f32 %v2913, 0.0
    %v2938 = vmax.f32 %v2914, 0.0
    %v2939 = vmax.f32 %v2915, 0.0
    %v2940 = vmax.f32 %v2916, 0.0
    %v2941 = vmax.f32 %v2917, 0.0
    %v2942 = vmax.f32 %v2918, 0.0
    %v2943 = vmax.f32 %v2919, 0.0
    %v2944 = vmax.f32 %v2920, 0.0
    %v2945 = vmax.f32 %v2921, 0.0
    %v2946 = vmax.f32 %v2922, 0.0
    %v2947 = vmax.f32 %v2923, 0.0
    %v2948 = vmax.f32 %v2924, 0.0
    %v2949 = vmax.f32 %v2925, 0.0
    %v2950 = vmax.f32 %v2926, 0.0
    %v2951 = vmax.f32 %v2927, 0.0
    %v2952 = vmax.f32 %v2928, 0.0
    %v2953 = vmax.f32 %v2929, 0.0
    %v2954 = vpack.c.bf16 %v2933, %v2930
    %v2955 = vpack.c.bf16 %v2934, %v2931
    %v2956 = vpack.c.bf16 %v2935, %v2932
    %v2957 = vpack.c.bf16 %v2939, %v2936
    %v2958 = vpack.c.bf16 %v2940, %v2937
    %v2959 = vpack.c.bf16 %v2941, %v2938
    %v2960 = vpack.c.bf16 %v2945, %v2942
    %v2961 = vpack.c.bf16 %v2946, %v2943
    %v2962 = vpack.c.bf16 %v2947, %v2944
    %v2963 = vpack.c.bf16 %v2951, %v2948
    %v2964 = vpack.c.bf16 %v2952, %v2949
    %v2965 = vpack.c.bf16 %v2953, %v2950
    %v2966 = vpack.c.b16 %v2509, %v2509
    %2968 = vmatprep.subr.bf16.mxu0 %v498
    %2969 = vmatpush1.bf16.msra.mxu0 %v497
    %2970 = vmatprep.subr.bf16.mxu0 %v504
    %2971 = vmatpush1.bf16.msra.mxu0 %v503
    %2972 = vmatprep.subr.bf16.mxu0 %v510
    %2973 = vmatpush1.bf16.msra.mxu0 %v509
    %2974 = vmatprep.subr.bf16.mxu0 %v516
    %2975 = vmatpush1.bf16.msra.mxu0 %v515
    %2976 = vmatprep.subr.bf16.mxu0 %v522
    %2977 = vmatpush1.bf16.msra.mxu0 %v521
    %2978 = vmatprep.subr.bf16.mxu0 %v528
    %2979 = vmatpush1.bf16.msra.mxu0 %v527
    %2980 = vmatprep.subr.bf16.mxu0 %v534
    %2981 = vmatpush1.bf16.msra.mxu0 %v533
    %2982 = vmatprep.subr.bf16.mxu0 %v540
    %2983 = vmatpush1.bf16.msra.mxu0 %v539
    %2984 = vmatprep.subr.bf16.mxu0 0
    %2985 = vmatpush1.bf16.msra.mxu0 0
    %2986 = vmatprep.subr.bf16.mxu0 0
    %2987 = vmatpush1.bf16.msra.mxu0 0
    %2988 = vmatprep.subr.bf16.mxu0 0
    %2989 = vmatpush1.bf16.msra.mxu0 0
    %2990 = vmatprep.subr.bf16.mxu0 0
    %2991 = vmatpush1.bf16.msra.mxu0 0
    %2992 = vmatprep.subr.bf16.mxu0 0
    %2993 = vmatpush1.bf16.msra.mxu0 0
    %2994 = vmatprep.subr.bf16.mxu0 0
    %2995 = vmatpush1.bf16.msra.mxu0 0
    %2996 = vmatprep.subr.bf16.mxu0 0
    %2997 = vmatpush1.bf16.msra.mxu0 0
    %2998 = vmatprep.subr.bf16.mxu0 0
    %2999 = vmatpush1.bf16.msra.mxu0 0
    %3000 = vmatprep.mubr.bf16.mxu0 0
    %3001 = vmatmul.mubr.bf16.gmra.mrb[0].mxu0 %v2511
    %v3002 = vpop.f32.mrb[0].mxu0
    %v3003 = vadd.f32 0.0, %v3002
    %v3004 = vpop.f32.mrb[0].mxu0
    %v3005 = vadd.f32 0.0, %v3004
    %v3006 = vpop.f32.mrb[0].mxu0
    %v3007 = vadd.f32 0.0, %v3006
    %v3008 = vpop.f32.mrb[0].mxu0
    %v3009 = vadd.f32 0.0, %v3008
    %3010 = vmatprep.mubr.bf16.mxu0 0
    %3011 = vmatmul.mubr.bf16.gmra.mrb[0].mxu0 %v2512
    %v3012 = vpop.f32.mrb[0].mxu0
    %v3013 = vadd.f32 0.0, %v3012
    %v3014 = vpop.f32.mrb[0].mxu0
    %v3015 = vadd.f32 0.0, %v3014
    %v3016 = vpop.f32.mrb[0].mxu0
    %v3017 = vadd.f32 0.0, %v3016
    %v3018 = vpop.f32.mrb[0].mxu0
    %v3019 = vadd.f32 0.0, %v3018
    %3020 = vmatprep.mubr.bf16.mxu0 0
    %3021 = vmatmul.mubr.bf16.gmra.mrb[0].mxu0 %v2513
    %v3022 = vpop.f32.mrb[0].mxu0
    %v3023 = vadd.f32 0.0, %v3022
    %v3024 = vpop.f32.mrb[0].mxu0
    %v3025 = vadd.f32 0.0, %v3024
    %v3026 = vpop.f32.mrb[0].mxu0
    %v3027 = vadd.f32 0.0, %v3026
    %v3028 = vpop.f32.mrb[0].mxu0
    %v3029 = vadd.f32 0.0, %v3028
    %3030 = vmatprep.mubr.bf16.mxu0 0
    %3031 = vmatmul.mubr.bf16.gmra.mrb[0].mxu0 %v2966
    %v3032 = vpop.f32.mrb[0].mxu0
    %v3033 = vadd.f32 0.0, %v3032
    %v3034 = vpop.f32.mrb[0].mxu0
    %v3035 = vadd.f32 0.0, %v3034
    %v3036 = vpop.f32.mrb[0].mxu0
    %v3037 = vpop.f32.mrb[0].mxu0
    %3038 = vdwg.mxu0
    %3039 = vmatprep.subr.bf16.mxu0 %v500
    %3040 = vmatpush1.bf16.msra.mxu0 %v499
    %3041 = vmatprep.subr.bf16.mxu0 %v506
    %3042 = vmatpush1.bf16.msra.mxu0 %v505
    %3043 = vmatprep.subr.bf16.mxu0 %v512
    %3044 = vmatpush1.bf16.msra.mxu0 %v511
    %3045 = vmatprep.subr.bf16.mxu0 %v518
    %3046 = vmatpush1.bf16.msra.mxu0 %v517
    %3047 = vmatprep.subr.bf16.mxu0 %v524
    %3048 = vmatpush1.bf16.msra.mxu0 %v523
    %3049 = vmatprep.subr.bf16.mxu0 %v530
    %3050 = vmatpush1.bf16.msra.mxu0 %v529
    %3051 = vmatprep.subr.bf16.mxu0 %v536
    %3052 = vmatpush1.bf16.msra.mxu0 %v535
    %3053 = vmatprep.subr.bf16.mxu0 %v542
    %3054 = vmatpush1.bf16.msra.mxu0 %v541
    %3055 = vmatprep.subr.bf16.mxu0 0
    %3056 = vmatpush1.bf16.msra.mxu0 0
    %3057 = vmatprep.subr.bf16.mxu0 0
    %3058 = vmatpush1.bf16.msra.mxu0 0
    %3059 = vmatprep.subr.bf16.mxu0 0
    %3060 = vmatpush1.bf16.msra.mxu0 0
    %3061 = vmatprep.subr.bf16.mxu0 0
    %3062 = vmatpush1.bf16.msra.mxu0 0
    %3063 = vmatprep.subr.bf16.mxu0 0
    %3064 = vmatpush1.bf16.msra.mxu0 0
    %3065 = vmatprep.subr.bf16.mxu0 0
    %3066 = vmatpush1.bf16.msra.mxu0 0
    %3067 = vmatprep.subr.bf16.mxu0 0
    %3068 = vmatpush1.bf16.msra.mxu0 0
    %3069 = vmatprep.subr.bf16.mxu0 0
    %3070 = vmatpush1.bf16.msra.mxu0 0
    %3071 = vmatprep.mubr.bf16.mxu0 0
    %3072 = vmatmul.mubr.bf16.gmra.mrb[0].mxu0 %v2511
    %v3073 = vpop.f32.mrb[0].mxu0
    %v3074 = vadd.f32 0.0, %v3073
    %v3075 = vpop.f32.mrb[0].mxu0
    %v3076 = vadd.f32 0.0, %v3075
    %v3077 = vpop.f32.mrb[0].mxu0
    %v3078 = vadd.f32 0.0, %v3077
    %v3079 = vpop.f32.mrb[0].mxu0
    %v3080 = vadd.f32 0.0, %v3079
    %3081 = vmatprep.mubr.bf16.mxu0 0
    %3082 = vmatmul.mubr.bf16.gmra.mrb[0].mxu0 %v2512
    %v3083 = vpop.f32.mrb[0].mxu0
    %v3084 = vadd.f32 0.0, %v3083
    %v3085 = vpop.f32.mrb[0].mxu0
    %v3086 = vadd.f32 0.0, %v3085
    %v3087 = vpop.f32.mrb[0].mxu0
    %v3088 = vadd.f32 0.0, %v3087
    %v3089 = vpop.f32.mrb[0].mxu0
    %v3090 = vadd.f32 0.0, %v3089
    %3091 = vmatprep.mubr.bf16.mxu0 0
    %3092 = vmatmul.mubr.bf16.gmra.mrb[0].mxu0 %v2513
    %v3093 = vpop.f32.mrb[0].mxu0
    %v3094 = vadd.f32 0.0, %v3093
    %v3095 = vpop.f32.mrb[0].mxu0
    %v3096 = vadd.f32 0.0, %v3095
    %v3097 = vpop.f32.mrb[0].mxu0
    %v3098 = vadd.f32 0.0, %v3097
    %v3099 = vpop.f32.mrb[0].mxu0
    %v3100 = vadd.f32 0.0, %v3099
    %3101 = vmatprep.mubr.bf16.mxu0 0
    %3102 = vmatmul.mubr.bf16.gmra.mrb[0].mxu0 %v2966
    %v3103 = vpop.f32.mrb[0].mxu0
    %v3104 = vadd.f32 0.0, %v3103
    %v3105 = vpop.f32.mrb[0].mxu0
    %v3106 = vadd.f32 0.0, %v3105
    %v3107 = vpop.f32.mrb[0].mxu0
    %v3108 = vpop.f32.mrb[0].mxu0
    %3109 = vdwg.mxu0
    %3110 = vmatprep.subr.bf16.mxu0 %v502
    %3111 = vmatpush1.bf16.msra.mxu0 %v501
    %3112 = vmatprep.subr.bf16.mxu0 %v508
    %3113 = vmatpush1.bf16.msra.mxu0 %v507
    %3114 = vmatprep.subr.bf16.mxu0 %v514
    %3115 = vmatpush1.bf16.msra.mxu0 %v513
    %3116 = vmatprep.subr.bf16.mxu0 %v520
    %3117 = vmatpush1.bf16.msra.mxu0 %v519
    %3118 = vmatprep.subr.bf16.mxu0 %v526
    %3119 = vmatpush1.bf16.msra.mxu0 %v525
    %3120 = vmatprep.subr.bf16.mxu0 %v532
    %3121 = vmatpush1.bf16.msra.mxu0 %v531
    %3122 = vmatprep.subr.bf16.mxu0 %v538
    %3123 = vmatpush1.bf16.msra.mxu0 %v537
    %3124 = vmatprep.subr.bf16.mxu0 %v544
    %3125 = vmatpush1.bf16.msra.mxu0 %v543
    %3126 = vmatprep.subr.bf16.mxu0 0
    %3127 = vmatpush1.bf16.msra.mxu0 0
    %3128 = vmatprep.subr.bf16.mxu0 0
    %3129 = vmatpush1.bf16.msra.mxu0 0
    %3130 = vmatprep.subr.bf16.mxu0 0
    %3131 = vmatpush1.bf16.msra.mxu0 0
    %3132 = vmatprep.subr.bf16.mxu0 0
    %3133 = vmatpush1.bf16.msra.mxu0 0
    %3134 = vmatprep.subr.bf16.mxu0 0
    %3135 = vmatpush1.bf16.msra.mxu0 0
    %3136 = vmatprep.subr.bf16.mxu0 0
    %3137 = vmatpush1.bf16.msra.mxu0 0
    %3138 = vmatprep.subr.bf16.mxu0 0
    %3139 = vmatpush1.bf16.msra.mxu0 0
    %3140 = vmatprep.subr.bf16.mxu0 0
    %3141 = vmatpush1.bf16.msra.mxu0 0
    %3142 = vmatprep.mubr.bf16.mxu0 0
    %3143 = vmatmul.mubr.bf16.gmra.mrb[0].mxu0 %v2511
    %v3144 = vpop.f32.mrb[0].mxu0
    %v3145 = vadd.f32 0.0, %v3144
    %v3146 = vpop.f32.mrb[0].mxu0
    %v3147 = vadd.f32 0.0, %v3146
    %v3148 = vpop.f32.mrb[0].mxu0
    %v3149 = vadd.f32 0.0, %v3148
    %v3150 = vpop.f32.mrb[0].mxu0
    %v3151 = vadd.f32 0.0, %v3150
    %3152 = vmatprep.mubr.bf16.mxu0 0
    %3153 = vmatmul.mubr.bf16.gmra.mrb[0].mxu0 %v2512
    %v3154 = vpop.f32.mrb[0].mxu0
    %v3155 = vadd.f32 0.0, %v3154
    %v3156 = vpop.f32.mrb[0].mxu0
    %v3157 = vadd.f32 0.0, %v3156
    %v3158 = vpop.f32.mrb[0].mxu0
    %v3159 = vadd.f32 0.0, %v3158
    %v3160 = vpop.f32.mrb[0].mxu0
    %v3161 = vadd.f32 0.0, %v3160
    %3162 = vmatprep.mubr.bf16.mxu0 0
    %3163 = vmatmul.mubr.bf16.gmra.mrb[0].mxu0 %v2513
    %v3164 = vpop.f32.mrb[0].mxu0
    %v3165 = vadd.f32 0.0, %v3164
    %v3166 = vpop.f32.mrb[0].mxu0
    %v3167 = vadd.f32 0.0, %v3166
    %v3168 = vpop.f32.mrb[0].mxu0
    %v3169 = vadd.f32 0.0, %v3168
    %v3170 = vpop.f32.mrb[0].mxu0
    %v3171 = vadd.f32 0.0, %v3170
    %3172 = vmatprep.mubr.bf16.mxu0 0
    %3173 = vmatmul.mubr.bf16.gmra.mrb[0].mxu0 %v2966
    %v3174 = vpop.f32.mrb[0].mxu0
    %v3175 = vadd.f32 0.0, %v3174
    %v3176 = vpop.f32.mrb[0].mxu0
    %v3177 = vadd.f32 0.0, %v3176
    %v3178 = vpop.f32.mrb[0].mxu0
    %v3179 = vpop.f32.mrb[0].mxu0
    %3180 = vdwg.mxu0
    %v3181 = vpack.c.b16 %v1358, %v1358
    %3183 = vmatprep.subr.bf16.mxu0 %v981
    %3184 = vmatpush1.bf16.msra.mxu0 %v980
    %3185 = vmatprep.subr.bf16.mxu0 %v987
    %3186 = vmatpush1.bf16.msra.mxu0 %v986
    %3187 = vmatprep.subr.bf16.mxu0 %v993
    %3188 = vmatpush1.bf16.msra.mxu0 %v992
    %3189 = vmatprep.subr.bf16.mxu0 %v999
    %3190 = vmatpush1.bf16.msra.mxu0 %v998
    %3191 = vmatprep.subr.bf16.mxu0 %v1005
    %3192 = vmatpush1.bf16.msra.mxu0 %v1004
    %3193 = vmatprep.subr.bf16.mxu0 %v1011
    %3194 = vmatpush1.bf16.msra.mxu0 %v1010
    %3195 = vmatprep.subr.bf16.mxu0 %v1017
    %3196 = vmatpush1.bf16.msra.mxu0 %v1016
    %3197 = vmatprep.subr.bf16.mxu0 %v1023
    %3198 = vmatpush1.bf16.msra.mxu0 %v1022
    %3199 = vmatprep.subr.bf16.mxu0 0
    %3200 = vmatpush1.bf16.msra.mxu0 0
    %3201 = vmatprep.subr.bf16.mxu0 0
    %3202 = vmatpush1.bf16.msra.mxu0 0
    %3203 = vmatprep.subr.bf16.mxu0 0
    %3204 = vmatpush1.bf16.msra.mxu0 0
    %3205 = vmatprep.subr.bf16.mxu0 0
    %3206 = vmatpush1.bf16.msra.mxu0 0
    %3207 = vmatprep.subr.bf16.mxu0 0
    %3208 = vmatpush1.bf16.msra.mxu0 0
    %3209 = vmatprep.subr.bf16.mxu0 0
    %3210 = vmatpush1.bf16.msra.mxu0 0
    %3211 = vmatprep.subr.bf16.mxu0 0
    %3212 = vmatpush1.bf16.msra.mxu0 0
    %3213 = vmatprep.subr.bf16.mxu0 0
    %3214 = vmatpush1.bf16.msra.mxu0 0
    %3215 = vmatprep.mubr.bf16.mxu0 0
    %3216 = vmatmul.mubr.bf16.gmra.mrb[0].mxu0 %v1360
    %v3217 = vpop.f32.mrb[0].mxu0
    %v3218 = vadd.f32 %v3003, %v3217
    %v3219 = vpop.f32.mrb[0].mxu0
    %v3220 = vadd.f32 %v3005, %v3219
    %v3221 = vpop.f32.mrb[0].mxu0
    %v3222 = vadd.f32 %v3007, %v3221
    %v3223 = vpop.f32.mrb[0].mxu0
    %v3224 = vadd.f32 %v3009, %v3223
    %3225 = vmatprep.mubr.bf16.mxu0 0
    %3226 = vmatmul.mubr.bf16.gmra.mrb[0].mxu0 %v1361
    %v3227 = vpop.f32.mrb[0].mxu0
    %v3228 = vadd.f32 %v3013, %v3227
    %v3229 = vpop.f32.mrb[0].mxu0
    %v3230 = vadd.f32 %v3015, %v3229
    %v3231 = vpop.f32.mrb[0].mxu0
    %v3232 = vadd.f32 %v3017, %v3231
    %v3233 = vpop.f32.mrb[0].mxu0
    %v3234 = vadd.f32 %v3019, %v3233
    %3235 = vmatprep.mubr.bf16.mxu0 0
    %3236 = vmatmul.mubr.bf16.gmra.mrb[0].mxu0 %v1362
    %v3237 = vpop.f32.mrb[0].mxu0
    %v3238 = vadd.f32 %v3023, %v3237
    %v3239 = vpop.f32.mrb[0].mxu0
    %v3240 = vadd.f32 %v3025, %v3239
    %v3241 = vpop.f32.mrb[0].mxu0
    %v3242 = vadd.f32 %v3027, %v3241
    %v3243 = vpop.f32.mrb[0].mxu0
    %v3244 = vadd.f32 %v3029, %v3243
    %3245 = vmatprep.mubr.bf16.mxu0 0
    %3246 = vmatmul.mubr.bf16.gmra.mrb[0].mxu0 %v3181
    %v3247 = vpop.f32.mrb[0].mxu0
    %v3248 = vadd.f32 %v3033, %v3247
    %v3249 = vpop.f32.mrb[0].mxu0
    %v3250 = vadd.f32 %v3035, %v3249
    %v3251 = vpop.f32.mrb[0].mxu0
    %v3252 = vpop.f32.mrb[0].mxu0
    %3253 = vdwg.mxu0
    %3254 = vmatprep.subr.bf16.mxu0 %v983
    %3255 = vmatpush1.bf16.msra.mxu0 %v982
    %3256 = vmatprep.subr.bf16.mxu0 %v989
    %3257 = vmatpush1.bf16.msra.mxu0 %v988
    %3258 = vmatprep.subr.bf16.mxu0 %v995
    %3259 = vmatpush1.bf16.msra.mxu0 %v994
    %3260 = vmatprep.subr.bf16.mxu0 %v1001
    %3261 = vmatpush1.bf16.msra.mxu0 %v1000
    %3262 = vmatprep.subr.bf16.mxu0 %v1007
    %3263 = vmatpush1.bf16.msra.mxu0 %v1006
    %3264 = vmatprep.subr.bf16.mxu0 %v1013
    %3265 = vmatpush1.bf16.msra.mxu0 %v1012
    %3266 = vmatprep.subr.bf16.mxu0 %v1019
    %3267 = vmatpush1.bf16.msra.mxu0 %v1018
    %3268 = vmatprep.subr.bf16.mxu0 %v1025
    %3269 = vmatpush1.bf16.msra.mxu0 %v1024
    %3270 = vmatprep.subr.bf16.mxu0 0
    %3271 = vmatpush1.bf16.msra.mxu0 0
    %3272 = vmatprep.subr.bf16.mxu0 0
    %3273 = vmatpush1.bf16.msra.mxu0 0
    %3274 = vmatprep.subr.bf16.mxu0 0
    %3275 = vmatpush1.bf16.msra.mxu0 0
    %3276 = vmatprep.subr.bf16.mxu0 0
    %3277 = vmatpush1.bf16.msra.mxu0 0
    %3278 = vmatprep.subr.bf16.mxu0 0
    %3279 = vmatpush1.bf16.msra.mxu0 0
    %3280 = vmatprep.subr.bf16.mxu0 0
    %3281 = vmatpush1.bf16.msra.mxu0 0
    %3282 = vmatprep.subr.bf16.mxu0 0
    %3283 = vmatpush1.bf16.msra.mxu0 0
    %3284 = vmatprep.subr.bf16.mxu0 0
    %3285 = vmatpush1.bf16.msra.mxu0 0
    %3286 = vmatprep.mubr.bf16.mxu0 0
    %3287 = vmatmul.mubr.bf16.gmra.mrb[0].mxu0 %v1360
    %v3288 = vpop.f32.mrb[0].mxu0
    %v3289 = vadd.f32 %v3074, %v3288
    %v3290 = vpop.f32.mrb[0].mxu0
    %v3291 = vadd.f32 %v3076, %v3290
    %v3292 = vpop.f32.mrb[0].mxu0
    %v3293 = vadd.f32 %v3078, %v3292
    %v3294 = vpop.f32.mrb[0].mxu0
    %v3295 = vadd.f32 %v3080, %v3294
    %3296 = vmatprep.mubr.bf16.mxu0 0
    %3297 = vmatmul.mubr.bf16.gmra.mrb[0].mxu0 %v1361
    %v3298 = vpop.f32.mrb[0].mxu0
    %v3299 = vadd.f32 %v3084, %v3298
    %v3300 = vpop.f32.mrb[0].mxu0
    %v3301 = vadd.f32 %v3086, %v3300
    %v3302 = vpop.f32.mrb[0].mxu0
    %v3303 = vadd.f32 %v3088, %v3302
    %v3304 = vpop.f32.mrb[0].mxu0
    %v3305 = vadd.f32 %v3090, %v3304
    %3306 = vmatprep.mubr.bf16.mxu0 0
    %3307 = vmatmul.mubr.bf16.gmra.mrb[0].mxu0 %v1362
    %v3308 = vpop.f32.mrb[0].mxu0
    %v3309 = vadd.f32 %v3094, %v3308
    %v3310 = vpop.f32.mrb[0].mxu0
    %v3311 = vadd.f32 %v3096, %v3310
    %v3312 = vpop.f32.mrb[0].mxu0
    %v3313 = vadd.f32 %v3098, %v3312
    %v3314 = vpop.f32.mrb[0].mxu0
    %v3315 = vadd.f32 %v3100, %v3314
    %3316 = vmatprep.mubr.bf16.mxu0 0
    %3317 = vmatmul.mubr.bf16.gmra.mrb[0].mxu0 %v3181
    %v3318 = vpop.f32.mrb[0].mxu0
    %v3319 = vadd.f32 %v3104, %v3318
    %v3320 = vpop.f32.mrb[0].mxu0
    %v3321 = vadd.f32 %v3106, %v3320
    %v3322 = vpop.f32.mrb[0].mxu0
    %v3323 = vpop.f32.mrb[0].mxu0
    %3324 = vdwg.mxu0
    %3325 = vmatprep.subr.bf16.mxu0 %v985
    %3326 = vmatpush1.bf16.msra.mxu0 %v984
    %3327 = vmatprep.subr.bf16.mxu0 %v991
    %3328 = vmatpush1.bf16.msra.mxu0 %v990
    %3329 = vmatprep.subr.bf16.mxu0 %v997
    %3330 = vmatpush1.bf16.msra.mxu0 %v996
    %3331 = vmatprep.subr.bf16.mxu0 %v1003
    %3332 = vmatpush1.bf16.msra.mxu0 %v1002
    %3333 = vmatprep.subr.bf16.mxu0 %v1009
    %3334 = vmatpush1.bf16.msra.mxu0 %v1008
    %3335 = vmatprep.subr.bf16.mxu0 %v1015
    %3336 = vmatpush1.bf16.msra.mxu0 %v1014
    %3337 = vmatprep.subr.bf16.mxu0 %v1021
    %3338 = vmatpush1.bf16.msra.mxu0 %v1020
    %3339 = vmatprep.subr.bf16.mxu0 %v1027
    %3340 = vmatpush1.bf16.msra.mxu0 %v1026
    %3341 = vmatprep.subr.bf16.mxu0 0
    %3342 = vmatpush1.bf16.msra.mxu0 0
    %3343 = vmatprep.subr.bf16.mxu0 0
    %3344 = vmatpush1.bf16.msra.mxu0 0
    %3345 = vmatprep.subr.bf16.mxu0 0
    %3346 = vmatpush1.bf16.msra.mxu0 0
    %3347 = vmatprep.subr.bf16.mxu0 0
    %3348 = vmatpush1.bf16.msra.mxu0 0
    %3349 = vmatprep.subr.bf16.mxu0 0
    %3350 = vmatpush1.bf16.msra.mxu0 0
    %3351 = vmatprep.subr.bf16.mxu0 0
    %3352 = vmatpush1.bf16.msra.mxu0 0
    %3353 = vmatprep.subr.bf16.mxu0 0
    %3354 = vmatpush1.bf16.msra.mxu0 0
    %3355 = vmatprep.subr.bf16.mxu0 0
    %3356 = vmatpush1.bf16.msra.mxu0 0
    %3357 = vmatprep.mubr.bf16.mxu0 0
    %3358 = vmatmul.mubr.bf16.gmra.mrb[0].mxu0 %v1360
    %v3359 = vpop.f32.mrb[0].mxu0
    %v3360 = vadd.f32 %v3145, %v3359
    %v3361 = vpop.f32.mrb[0].mxu0
    %v3362 = vadd.f32 %v3147, %v3361
    %v3363 = vpop.f32.mrb[0].mxu0
    %v3364 = vadd.f32 %v3149, %v3363
    %v3365 = vpop.f32.mrb[0].mxu0
    %v3366 = vadd.f32 %v3151, %v3365
    %3367 = vmatprep.mubr.bf16.mxu0 0
    %3368 = vmatmul.mubr.bf16.gmra.mrb[0].mxu0 %v1361
    %v3369 = vpop.f32.mrb[0].mxu0
    %v3370 = vadd.f32 %v3155, %v3369
    %v3371 = vpop.f32.mrb[0].mxu0
    %v3372 = vadd.f32 %v3157, %v3371
    %v3373 = vpop.f32.mrb[0].mxu0
    %v3374 = vadd.f32 %v3159, %v3373
    %v3375 = vpop.f32.mrb[0].mxu0
    %v3376 = vadd.f32 %v3161, %v3375
    %3377 = vmatprep.mubr.bf16.mxu0 0
    %3378 = vmatmul.mubr.bf16.gmra.mrb[0].mxu0 %v1362
    %v3379 = vpop.f32.mrb[0].mxu0
    %v3380 = vadd.f32 %v3165, %v3379
    %v3381 = vpop.f32.mrb[0].mxu0
    %v3382 = vadd.f32 %v3167, %v3381
    %v3383 = vpop.f32.mrb[0].mxu0
    %v3384 = vadd.f32 %v3169, %v3383
    %v3385 = vpop.f32.mrb[0].mxu0
    %v3386 = vadd.f32 %v3171, %v3385
    %3387 = vmatprep.mubr.bf16.mxu0 0
    %3388 = vmatmul.mubr.bf16.gmra.mrb[0].mxu0 %v3181
    %v3389 = vpop.f32.mrb[0].mxu0
    %v3390 = vadd.f32 %v3175, %v3389
    %v3391 = vpop.f32.mrb[0].mxu0
    %v3392 = vadd.f32 %v3177, %v3391
    %v3393 = vpop.f32.mrb[0].mxu0
    %v3394 = vpop.f32.mrb[0].mxu0
    %3395 = vdwg.mxu0
    %v3396 = vpack.c.b16 %v822, %v821
    %v3397 = vpack.c.b16 %v824, %v823
    %v3398 = vpack.c.b16 %v826, %v825
    %v3399 = vpack.c.b16 %v827, %v827
    %3404 = vmatprep.subr.bf16.mxu0 %v1513
    %3405 = vmatpush1.bf16.msra.mxu0 %v1512
    %3406 = vmatprep.subr.bf16.mxu0 %v1519
    %3407 = vmatpush1.bf16.msra.mxu0 %v1518
    %3408 = vmatprep.subr.bf16.mxu0 %v1525
    %3409 = vmatpush1.bf16.msra.mxu0 %v1524
    %3410 = vmatprep.subr.bf16.mxu0 %v1531
    %3411 = vmatpush1.bf16.msra.mxu0 %v1530
    %3412 = vmatprep.subr.bf16.mxu0 %v1537
    %3413 = vmatpush1.bf16.msra.mxu0 %v1536
    %3414 = vmatprep.subr.bf16.mxu0 %v1543
    %3415 = vmatpush1.bf16.msra.mxu0 %v1542
    %3416 = vmatprep.subr.bf16.mxu0 %v1549
    %3417 = vmatpush1.bf16.msra.mxu0 %v1548
    %3418 = vmatprep.subr.bf16.mxu0 %v1555
    %3419 = vmatpush1.bf16.msra.mxu0 %v1554
    %3420 = vmatprep.subr.bf16.mxu0 0
    %3421 = vmatpush1.bf16.msra.mxu0 0
    %3422 = vmatprep.subr.bf16.mxu0 0
    %3423 = vmatpush1.bf16.msra.mxu0 0
    %3424 = vmatprep.subr.bf16.mxu0 0
    %3425 = vmatpush1.bf16.msra.mxu0 0
    %3426 = vmatprep.subr.bf16.mxu0 0
    %3427 = vmatpush1.bf16.msra.mxu0 0
    %3428 = vmatprep.subr.bf16.mxu0 0
    %3429 = vmatpush1.bf16.msra.mxu0 0
    %3430 = vmatprep.subr.bf16.mxu0 0
    %3431 = vmatpush1.bf16.msra.mxu0 0
    %3432 = vmatprep.subr.bf16.mxu0 0
    %3433 = vmatpush1.bf16.msra.mxu0 0
    %3434 = vmatprep.subr.bf16.mxu0 0
    %3435 = vmatpush1.bf16.msra.mxu0 0
    %3436 = vmatprep.mubr.bf16.mxu0 0
    %3437 = vmatmul.mubr.bf16.gmra.mrb[0].mxu0 %v3396
    %v3438 = vpop.f32.mrb[0].mxu0
    %v3439 = vadd.f32 0.0, %v3438
    %v3440 = vpop.f32.mrb[0].mxu0
    %v3441 = vadd.f32 0.0, %v3440
    %v3442 = vpop.f32.mrb[0].mxu0
    %v3443 = vadd.f32 0.0, %v3442
    %v3444 = vpop.f32.mrb[0].mxu0
    %v3445 = vadd.f32 0.0, %v3444
    %3446 = vmatprep.mubr.bf16.mxu0 0
    %3447 = vmatmul.mubr.bf16.gmra.mrb[0].mxu0 %v3397
    %v3448 = vpop.f32.mrb[0].mxu0
    %v3449 = vadd.f32 0.0, %v3448
    %v3450 = vpop.f32.mrb[0].mxu0
    %v3451 = vadd.f32 0.0, %v3450
    %v3452 = vpop.f32.mrb[0].mxu0
    %v3453 = vadd.f32 0.0, %v3452
    %v3454 = vpop.f32.mrb[0].mxu0
    %v3455 = vadd.f32 0.0, %v3454
    %3456 = vmatprep.mubr.bf16.mxu0 0
    %3457 = vmatmul.mubr.bf16.gmra.mrb[0].mxu0 %v3398
    %v3458 = vpop.f32.mrb[0].mxu0
    %v3459 = vadd.f32 0.0, %v3458
    %v3460 = vpop.f32.mrb[0].mxu0
    %v3461 = vadd.f32 0.0, %v3460
    %v3462 = vpop.f32.mrb[0].mxu0
    %v3463 = vadd.f32 0.0, %v3462
    %v3464 = vpop.f32.mrb[0].mxu0
    %v3465 = vadd.f32 0.0, %v3464
    %3466 = vmatprep.mubr.bf16.mxu0 0
    %3467 = vmatmul.mubr.bf16.gmra.mrb[0].mxu0 %v3399
    %v3468 = vpop.f32.mrb[0].mxu0
    %v3469 = vadd.f32 0.0, %v3468
    %v3470 = vpop.f32.mrb[0].mxu0
    %v3471 = vadd.f32 0.0, %v3470
    %v3472 = vpop.f32.mrb[0].mxu0
    %v3473 = vpop.f32.mrb[0].mxu0
    %3474 = vdwg.mxu0
    %3475 = vmatprep.subr.bf16.mxu0 %v1515
    %3476 = vmatpush1.bf16.msra.mxu0 %v1514
    %3477 = vmatprep.subr.bf16.mxu0 %v1521
    %3478 = vmatpush1.bf16.msra.mxu0 %v1520
    %3479 = vmatprep.subr.bf16.mxu0 %v1527
    %3480 = vmatpush1.bf16.msra.mxu0 %v1526
    %3481 = vmatprep.subr.bf16.mxu0 %v1533
    %3482 = vmatpush1.bf16.msra.mxu0 %v1532
    %3483 = vmatprep.subr.bf16.mxu0 %v1539
    %3484 = vmatpush1.bf16.msra.mxu0 %v1538
    %3485 = vmatprep.subr.bf16.mxu0 %v1545
    %3486 = vmatpush1.bf16.msra.mxu0 %v1544
    %3487 = vmatprep.subr.bf16.mxu0 %v1551
    %3488 = vmatpush1.bf16.msra.mxu0 %v1550
    %3489 = vmatprep.subr.bf16.mxu0 %v1557
    %3490 = vmatpush1.bf16.msra.mxu0 %v1556
    %3491 = vmatprep.subr.bf16.mxu0 0
    %3492 = vmatpush1.bf16.msra.mxu0 0
    %3493 = vmatprep.subr.bf16.mxu0 0
    %3494 = vmatpush1.bf16.msra.mxu0 0
    %3495 = vmatprep.subr.bf16.mxu0 0
    %3496 = vmatpush1.bf16.msra.mxu0 0
    %3497 = vmatprep.subr.bf16.mxu0 0
    %3498 = vmatpush1.bf16.msra.mxu0 0
    %3499 = vmatprep.subr.bf16.mxu0 0
    %3500 = vmatpush1.bf16.msra.mxu0 0
    %3501 = vmatprep.subr.bf16.mxu0 0
    %3502 = vmatpush1.bf16.msra.mxu0 0
    %3503 = vmatprep.subr.bf16.mxu0 0
    %3504 = vmatpush1.bf16.msra.mxu0 0
    %3505 = vmatprep.subr.bf16.mxu0 0
    %3506 = vmatpush1.bf16.msra.mxu0 0
    %3507 = vmatprep.mubr.bf16.mxu0 0
    %3508 = vmatmul.mubr.bf16.gmra.mrb[0].mxu0 %v3396
    %v3509 = vpop.f32.mrb[0].mxu0
    %v3510 = vadd.f32 0.0, %v3509
    %v3511 = vpop.f32.mrb[0].mxu0
    %v3512 = vadd.f32 0.0, %v3511
    %v3513 = vpop.f32.mrb[0].mxu0
    %v3514 = vadd.f32 0.0, %v3513
    %v3515 = vpop.f32.mrb[0].mxu0
    %v3516 = vadd.f32 0.0, %v3515
    %3517 = vmatprep.mubr.bf16.mxu0 0
    %3518 = vmatmul.mubr.bf16.gmra.mrb[0].mxu0 %v3397
    %v3519 = vpop.f32.mrb[0].mxu0
    %v3520 = vadd.f32 0.0, %v3519
    %v3521 = vpop.f32.mrb[0].mxu0
    %v3522 = vadd.f32 0.0, %v3521
    %v3523 = vpop.f32.mrb[0].mxu0
    %v3524 = vadd.f32 0.0, %v3523
    %v3525 = vpop.f32.mrb[0].mxu0
    %v3526 = vadd.f32 0.0, %v3525
    %3527 = vmatprep.mubr.bf16.mxu0 0
    %3528 = vmatmul.mubr.bf16.gmra.mrb[0].mxu0 %v3398
    %v3529 = vpop.f32.mrb[0].mxu0
    %v3530 = vadd.f32 0.0, %v3529
    %v3531 = vpop.f32.mrb[0].mxu0
    %v3532 = vadd.f32 0.0, %v3531
    %v3533 = vpop.f32.mrb[0].mxu0
    %v3534 = vadd.f32 0.0, %v3533
    %v3535 = vpop.f32.mrb[0].mxu0
    %v3536 = vadd.f32 0.0, %v3535
    %3537 = vmatprep.mubr.bf16.mxu0 0
    %3538 = vmatmul.mubr.bf16.gmra.mrb[0].mxu0 %v3399
    %v3539 = vpop.f32.mrb[0].mxu0
    %v3540 = vadd.f32 0.0, %v3539
    %v3541 = vpop.f32.mrb[0].mxu0
    %v3542 = vadd.f32 0.0, %v3541
    %v3543 = vpop.f32.mrb[0].mxu0
    %v3544 = vpop.f32.mrb[0].mxu0
    %3545 = vdwg.mxu0
    %3546 = vmatprep.subr.bf16.mxu0 %v1517
    %3547 = vmatpush1.bf16.msra.mxu0 %v1516
    %3548 = vmatprep.subr.bf16.mxu0 %v1523
    %3549 = vmatpush1.bf16.msra.mxu0 %v1522
    %3550 = vmatprep.subr.bf16.mxu0 %v1529
    %3551 = vmatpush1.bf16.msra.mxu0 %v1528
    %3552 = vmatprep.subr.bf16.mxu0 %v1535
    %3553 = vmatpush1.bf16.msra.mxu0 %v1534
    %3554 = vmatprep.subr.bf16.mxu0 %v1541
    %3555 = vmatpush1.bf16.msra.mxu0 %v1540
    %3556 = vmatprep.subr.bf16.mxu0 %v1547
    %3557 = vmatpush1.bf16.msra.mxu0 %v1546
    %3558 = vmatprep.subr.bf16.mxu0 %v1553
    %3559 = vmatpush1.bf16.msra.mxu0 %v1552
    %3560 = vmatprep.subr.bf16.mxu0 %v1559
    %3561 = vmatpush1.bf16.msra.mxu0 %v1558
    %3562 = vmatprep.subr.bf16.mxu0 0
    %3563 = vmatpush1.bf16.msra.mxu0 0
    %3564 = vmatprep.subr.bf16.mxu0 0
    %3565 = vmatpush1.bf16.msra.mxu0 0
    %3566 = vmatprep.subr.bf16.mxu0 0
    %3567 = vmatpush1.bf16.msra.mxu0 0
    %3568 = vmatprep.subr.bf16.mxu0 0
    %3569 = vmatpush1.bf16.msra.mxu0 0
    %3570 = vmatprep.subr.bf16.mxu0 0
    %3571 = vmatpush1.bf16.msra.mxu0 0
    %3572 = vmatprep.subr.bf16.mxu0 0
    %3573 = vmatpush1.bf16.msra.mxu0 0
    %3574 = vmatprep.subr.bf16.mxu0 0
    %3575 = vmatpush1.bf16.msra.mxu0 0
    %3576 = vmatprep.subr.bf16.mxu0 0
    %3577 = vmatpush1.bf16.msra.mxu0 0
    %3578 = vmatprep.mubr.bf16.mxu0 0
    %3579 = vmatmul.mubr.bf16.gmra.mrb[0].mxu0 %v3396
    %v3580 = vpop.f32.mrb[0].mxu0
    %v3581 = vadd.f32 0.0, %v3580
    %v3582 = vpop.f32.mrb[0].mxu0
    %v3583 = vadd.f32 0.0, %v3582
    %v3584 = vpop.f32.mrb[0].mxu0
    %v3585 = vadd.f32 0.0, %v3584
    %v3586 = vpop.f32.mrb[0].mxu0
    %v3587 = vadd.f32 0.0, %v3586
    %3588 = vmatprep.mubr.bf16.mxu0 0
    %3589 = vmatmul.mubr.bf16.gmra.mrb[0].mxu0 %v3397
    %v3590 = vpop.f32.mrb[0].mxu0
    %v3591 = vadd.f32 0.0, %v3590
    %v3592 = vpop.f32.mrb[0].mxu0
    %v3593 = vadd.f32 0.0, %v3592
    %v3594 = vpop.f32.mrb[0].mxu0
    %v3595 = vadd.f32 0.0, %v3594
    %v3596 = vpop.f32.mrb[0].mxu0
    %v3597 = vadd.f32 0.0, %v3596
    %3598 = vmatprep.mubr.bf16.mxu0 0
    %3599 = vmatmul.mubr.bf16.gmra.mrb[0].mxu0 %v3398
    %v3600 = vpop.f32.mrb[0].mxu0
    %v3601 = vadd.f32 0.0, %v3600
    %v3602 = vpop.f32.mrb[0].mxu0
    %v3603 = vadd.f32 0.0, %v3602
    %v3604 = vpop.f32.mrb[0].mxu0
    %v3605 = vadd.f32 0.0, %v3604
    %v3606 = vpop.f32.mrb[0].mxu0
    %v3607 = vadd.f32 0.0, %v3606
    %3608 = vmatprep.mubr.bf16.mxu0 0
    %3609 = vmatmul.mubr.bf16.gmra.mrb[0].mxu0 %v3399
    %v3610 = vpop.f32.mrb[0].mxu0
    %v3611 = vadd.f32 0.0, %v3610
    %v3612 = vpop.f32.mrb[0].mxu0
    %v3613 = vadd.f32 0.0, %v3612
    %v3614 = vpop.f32.mrb[0].mxu0
    %v3615 = vpop.f32.mrb[0].mxu0
    %3616 = vdwg.mxu0
    %v3617 = vadd.f32 %v3218, %v3439
    %v3618 = vadd.f32 %v3220, %v3441
    %v3619 = vadd.f32 %v3289, %v3510
    %v3620 = vadd.f32 %v3291, %v3512
    %v3621 = vadd.f32 %v3360, %v3581
    %v3622 = vadd.f32 %v3362, %v3583
    %v3623 = vadd.f32 %v3222, %v3443
    %v3624 = vadd.f32 %v3224, %v3445
    %v3625 = vadd.f32 %v3293, %v3514
    %v3626 = vadd.f32 %v3295, %v3516
    %v3627 = vadd.f32 %v3364, %v3585
    %v3628 = vadd.f32 %v3366, %v3587
    %v3629 = vadd.f32 %v3228, %v3449
    %v3630 = vadd.f32 %v3230, %v3451
    %v3631 = vadd.f32 %v3299, %v3520
    %v3632 = vadd.f32 %v3301, %v3522
    %v3633 = vadd.f32 %v3370, %v3591
    %v3634 = vadd.f32 %v3372, %v3593
    %v3635 = vadd.f32 %v3232, %v3453
    %v3636 = vadd.f32 %v3234, %v3455
    %v3637 = vadd.f32 %v3303, %v3524
    %v3638 = vadd.f32 %v3305, %v3526
    %v3639 = vadd.f32 %v3374, %v3595
    %v3640 = vadd.f32 %v3376, %v3597
    %v3641 = vadd.f32 %v3238, %v3459
    %v3642 = vadd.f32 %v3240, %v3461
    %v3643 = vadd.f32 %v3309, %v3530
    %v3644 = vadd.f32 %v3311, %v3532
    %v3645 = vadd.f32 %v3380, %v3601
    %v3646 = vadd.f32 %v3382, %v3603
    %v3647 = vadd.f32 %v3242, %v3463
    %v3648 = vadd.f32 %v3244, %v3465
    %v3649 = vadd.f32 %v3313, %v3534
    %v3650 = vadd.f32 %v3315, %v3536
    %v3651 = vadd.f32 %v3384, %v3605
    %v3652 = vadd.f32 %v3386, %v3607
    %v3653 = vadd.f32 %v3248, %v3469
    %v3654 = vadd.f32 %v3250, %v3471
    %v3655 = vadd.f32 %v3319, %v3540
    %v3656 = vadd.f32 %v3321, %v3542
    %v3657 = vadd.f32 %v3390, %v3611
    %v3658 = vadd.f32 %v3392, %v3613
    %v3659 = vmul.f32 %v3617, %v1879
    %v3660 = vmul.f32 %v3618, %v1883
    %v3661 = vmul.f32 %v3619, %v1887
    %v3662 = vmul.f32 %v3620, %v1891
    %v3663 = vmul.f32 %v3621, %v1895
    %v3664 = vmul.f32 %v3622, %v1899
    %v3665 = vmul.f32 %v3623, %v1879
    %v3666 = vmul.f32 %v3624, %v1883
    %v3667 = vmul.f32 %v3625, %v1887
    %v3668 = vmul.f32 %v3626, %v1891
    %v3669 = vmul.f32 %v3627, %v1895
    %v3670 = vmul.f32 %v3628, %v1899
    %v3671 = vmul.f32 %v3629, %v1879
    %v3672 = vmul.f32 %v3630, %v1883
    %v3673 = vmul.f32 %v3631, %v1887
    %v3674 = vmul.f32 %v3632, %v1891
    %v3675 = vmul.f32 %v3633, %v1895
    %v3676 = vmul.f32 %v3634, %v1899
    %v3677 = vmul.f32 %v3635, %v1879
    %v3678 = vmul.f32 %v3636, %v1883
    %v3679 = vmul.f32 %v3637, %v1887
    %v3680 = vmul.f32 %v3638, %v1891
    %v3681 = vmul.f32 %v3639, %v1895
    %v3682 = vmul.f32 %v3640, %v1899
    %v3683 = vmul.f32 %v3641, %v1879
    %v3684 = vmul.f32 %v3642, %v1883
    %v3685 = vmul.f32 %v3643, %v1887
    %v3686 = vmul.f32 %v3644, %v1891
    %v3687 = vmul.f32 %v3645, %v1895
    %v3688 = vmul.f32 %v3646, %v1899
    %v3689 = vmul.f32 %v3647, %v1879
    %v3690 = vmul.f32 %v3648, %v1883
    %v3691 = vmul.f32 %v3649, %v1887
    %v3692 = vmul.f32 %v3650, %v1891
    %v3693 = vmul.f32 %v3651, %v1895
    %v3694 = vmul.f32 %v3652, %v1899
    %v3695 = vmul.f32 %v3653, %v1879
    %v3696 = vmul.f32 %v3654, %v1883
    %v3697 = vmul.f32 %v3655, %v1887
    %v3698 = vmul.f32 %v3656, %v1891
    %v3699 = vmul.f32 %v3657, %v1895
    %v3700 = vmul.f32 %v3658, %v1899
    %v3701 = vadd.f32 %v3659, %v1958
    %v3702 = vadd.f32 %v3660, %v1962
    %v3703 = vadd.f32 %v3661, %v1966
    %v3704 = vadd.f32 %v3662, %v1970
    %v3705 = vadd.f32 %v3663, %v1974
    %v3706 = vadd.f32 %v3664, %v1978
    %v3707 = vadd.f32 %v3665, %v1958
    %v3708 = vadd.f32 %v3666, %v1962
    %v3709 = vadd.f32 %v3667, %v1966
    %v3710 = vadd.f32 %v3668, %v1970
    %v3711 = vadd.f32 %v3669, %v1974
    %v3712 = vadd.f32 %v3670, %v1978
    %v3713 = vadd.f32 %v3671, %v1958
    %v3714 = vadd.f32 %v3672, %v1962
    %v3715 = vadd.f32 %v3673, %v1966
    %v3716 = vadd.f32 %v3674, %v1970
    %v3717 = vadd.f32 %v3675, %v1974
    %v3718 = vadd.f32 %v3676, %v1978
    %v3719 = vadd.f32 %v3677, %v1958
    %v3720 = vadd.f32 %v3678, %v1962
    %v3721 = vadd.f32 %v3679, %v1966
    %v3722 = vadd.f32 %v3680, %v1970
    %v3723 = vadd.f32 %v3681, %v1974
    %v3724 = vadd.f32 %v3682, %v1978
    %v3725 = vadd.f32 %v3683, %v1958
    %v3726 = vadd.f32 %v3684, %v1962
    %v3727 = vadd.f32 %v3685, %v1966
    %v3728 = vadd.f32 %v3686, %v1970
    %v3729 = vadd.f32 %v3687, %v1974
    %v3730 = vadd.f32 %v3688, %v1978
    %v3731 = vadd.f32 %v3689, %v1958
    %v3732 = vadd.f32 %v3690, %v1962
    %v3733 = vadd.f32 %v3691, %v1966
    %v3734 = vadd.f32 %v3692, %v1970
    %v3735 = vadd.f32 %v3693, %v1974
    %v3736 = vadd.f32 %v3694, %v1978
    %v3737 = vadd.f32 %v3695, %v1958
    %v3738 = vadd.f32 %v3696, %v1962
    %v3739 = vadd.f32 %v3697, %v1966
    %v3740 = vadd.f32 %v3698, %v1970
    %v3741 = vadd.f32 %v3699, %v1974
    %v3742 = vadd.f32 %v3700, %v1978
    %v3743 = vmax.f32 %v3701, %v3704
    %v3744 = vmax.f32 %v3702, %v3705
    %v3745 = vmax.f32 %v3703, %v3706
    %v3746 = vmax.f32 %v3707, %v3710
    %v3747 = vmax.f32 %v3708, %v3711
    %v3748 = vmax.f32 %v3709, %v3712
    %v3749 = vmax.f32 %v3713, %v3716
    %v3750 = vmax.f32 %v3714, %v3717
    %v3751 = vmax.f32 %v3715, %v3718
    %v3752 = vmax.f32 %v3719, %v3722
    %v3753 = vmax.f32 %v3720, %v3723
    %v3754 = vmax.f32 %v3721, %v3724
    %v3755 = vmax.f32 %v3725, %v3728
    %v3756 = vmax.f32 %v3726, %v3729
    %v3757 = vmax.f32 %v3727, %v3730
    %v3758 = vmax.f32 %v3731, %v3734
    %v3759 = vmax.f32 %v3732, %v3735
    %v3760 = vmax.f32 %v3733, %v3736
    %v3761 = vmax.f32 %v3737, %v3740
    %v3762 = vmax.f32 %v3738, %v3741
    %v3763 = vmax.f32 %v3739, %v3742
    %3764 = vmatprep.subr.bf16.mxu0 %v498
    %3765 = vmatpush1.bf16.msra.mxu0 %v497
    %3766 = vmatprep.subr.bf16.mxu0 %v504
    %3767 = vmatpush1.bf16.msra.mxu0 %v503
    %3768 = vmatprep.subr.bf16.mxu0 %v510
    %3769 = vmatpush1.bf16.msra.mxu0 %v509
    %3770 = vmatprep.subr.bf16.mxu0 %v516
    %3771 = vmatpush1.bf16.msra.mxu0 %v515
    %3772 = vmatprep.subr.bf16.mxu0 %v522
    %3773 = vmatpush1.bf16.msra.mxu0 %v521
    %3774 = vmatprep.subr.bf16.mxu0 %v528
    %3775 = vmatpush1.bf16.msra.mxu0 %v527
    %3776 = vmatprep.subr.bf16.mxu0 %v534
    %3777 = vmatpush1.bf16.msra.mxu0 %v533
    %3778 = vmatprep.subr.bf16.mxu0 %v540
    %3779 = vmatpush1.bf16.msra.mxu0 %v539
    %3780 = vmatprep.subr.bf16.mxu0 0
    %3781 = vmatpush1.bf16.msra.mxu0 0
    %3782 = vmatprep.subr.bf16.mxu0 0
    %3783 = vmatpush1.bf16.msra.mxu0 0
    %3784 = vmatprep.subr.bf16.mxu0 0
    %3785 = vmatpush1.bf16.msra.mxu0 0
    %3786 = vmatprep.subr.bf16.mxu0 0
    %3787 = vmatpush1.bf16.msra.mxu0 0
    %3788 = vmatprep.subr.bf16.mxu0 0
    %3789 = vmatpush1.bf16.msra.mxu0 0
    %3790 = vmatprep.subr.bf16.mxu0 0
    %3791 = vmatpush1.bf16.msra.mxu0 0
    %3792 = vmatprep.subr.bf16.mxu0 0
    %3793 = vmatpush1.bf16.msra.mxu0 0
    %3794 = vmatprep.subr.bf16.mxu0 0
    %3795 = vmatpush1.bf16.msra.mxu0 0
    %3796 = vmatprep.mubr.bf16.mxu0 0
    %3797 = vmatmul.mubr.bf16.gmra.mrb[0].mxu0 %v3396
    %v3798 = vpop.f32.mrb[0].mxu0
    %v3799 = vadd.f32 0.0, %v3798
    %v3800 = vpop.f32.mrb[0].mxu0
    %v3801 = vadd.f32 0.0, %v3800
    %v3802 = vpop.f32.mrb[0].mxu0
    %v3803 = vadd.f32 0.0, %v3802
    %v3804 = vpop.f32.mrb[0].mxu0
    %v3805 = vadd.f32 0.0, %v3804
    %3806 = vmatprep.mubr.bf16.mxu0 0
    %3807 = vmatmul.mubr.bf16.gmra.mrb[0].mxu0 %v3397
    %v3808 = vpop.f32.mrb[0].mxu0
    %v3809 = vadd.f32 0.0, %v3808
    %v3810 = vpop.f32.mrb[0].mxu0
    %v3811 = vadd.f32 0.0, %v3810
    %v3812 = vpop.f32.mrb[0].mxu0
    %v3813 = vadd.f32 0.0, %v3812
    %v3814 = vpop.f32.mrb[0].mxu0
    %v3815 = vadd.f32 0.0, %v3814
    %3816 = vmatprep.mubr.bf16.mxu0 0
    %3817 = vmatmul.mubr.bf16.gmra.mrb[0].mxu0 %v3398
    %v3818 = vpop.f32.mrb[0].mxu0
    %v3819 = vadd.f32 0.0, %v3818
    %v3820 = vpop.f32.mrb[0].mxu0
    %v3821 = vadd.f32 0.0, %v3820
    %v3822 = vpop.f32.mrb[0].mxu0
    %v3823 = vadd.f32 0.0, %v3822
    %v3824 = vpop.f32.mrb[0].mxu0
    %v3825 = vadd.f32 0.0, %v3824
    %3826 = vmatprep.mubr.bf16.mxu0 0
    %3827 = vmatmul.mubr.bf16.gmra.mrb[0].mxu0 %v3399
    %v3828 = vpop.f32.mrb[0].mxu0
    %v3829 = vadd.f32 0.0, %v3828
    %v3830 = vpop.f32.mrb[0].mxu0
    %v3831 = vadd.f32 0.0, %v3830
    %v3832 = vpop.f32.mrb[0].mxu0
    %v3833 = vpop.f32.mrb[0].mxu0
    %3834 = vdwg.mxu0
    %3835 = vmatprep.subr.bf16.mxu0 %v500
    %3836 = vmatpush1.bf16.msra.mxu0 %v499
    %3837 = vmatprep.subr.bf16.mxu0 %v506
    %3838 = vmatpush1.bf16.msra.mxu0 %v505
    %3839 = vmatprep.subr.bf16.mxu0 %v512
    %3840 = vmatpush1.bf16.msra.mxu0 %v511
    %3841 = vmatprep.subr.bf16.mxu0 %v518
    %3842 = vmatpush1.bf16.msra.mxu0 %v517
    %3843 = vmatprep.subr.bf16.mxu0 %v524
    %3844 = vmatpush1.bf16.msra.mxu0 %v523
    %3845 = vmatprep.subr.bf16.mxu0 %v530
    %3846 = vmatpush1.bf16.msra.mxu0 %v529
    %3847 = vmatprep.subr.bf16.mxu0 %v536
    %3848 = vmatpush1.bf16.msra.mxu0 %v535
    %3849 = vmatprep.subr.bf16.mxu0 %v542
    %3850 = vmatpush1.bf16.msra.mxu0 %v541
    %3851 = vmatprep.subr.bf16.mxu0 0
    %3852 = vmatpush1.bf16.msra.mxu0 0
    %3853 = vmatprep.subr.bf16.mxu0 0
    %3854 = vmatpush1.bf16.msra.mxu0 0
    %3855 = vmatprep.subr.bf16.mxu0 0
    %3856 = vmatpush1.bf16.msra.mxu0 0
    %3857 = vmatprep.subr.bf16.mxu0 0
    %3858 = vmatpush1.bf16.msra.mxu0 0
    %3859 = vmatprep.subr.bf16.mxu0 0
    %3860 = vmatpush1.bf16.msra.mxu0 0
    %3861 = vmatprep.subr.bf16.mxu0 0
    %3862 = vmatpush1.bf16.msra.mxu0 0
    %3863 = vmatprep.subr.bf16.mxu0 0
    %3864 = vmatpush1.bf16.msra.mxu0 0
    %3865 = vmatprep.subr.bf16.mxu0 0
    %3866 = vmatpush1.bf16.msra.mxu0 0
    %3867 = vmatprep.mubr.bf16.mxu0 0
    %3868 = vmatmul.mubr.bf16.gmra.mrb[0].mxu0 %v3396
    %v3869 = vpop.f32.mrb[0].mxu0
    %v3870 = vadd.f32 0.0, %v3869
    %v3871 = vpop.f32.mrb[0].mxu0
    %v3872 = vadd.f32 0.0, %v3871
    %v3873 = vpop.f32.mrb[0].mxu0
    %v3874 = vadd.f32 0.0, %v3873
    %v3875 = vpop.f32.mrb[0].mxu0
    %v3876 = vadd.f32 0.0, %v3875
    %3877 = vmatprep.mubr.bf16.mxu0 0
    %3878 = vmatmul.mubr.bf16.gmra.mrb[0].mxu0 %v3397
    %v3879 = vpop.f32.mrb[0].mxu0
    %v3880 = vadd.f32 0.0, %v3879
    %v3881 = vpop.f32.mrb[0].mxu0
    %v3882 = vadd.f32 0.0, %v3881
    %v3883 = vpop.f32.mrb[0].mxu0
    %v3884 = vadd.f32 0.0, %v3883
    %v3885 = vpop.f32.mrb[0].mxu0
    %v3886 = vadd.f32 0.0, %v3885
    %3887 = vmatprep.mubr.bf16.mxu0 0
    %3888 = vmatmul.mubr.bf16.gmra.mrb[0].mxu0 %v3398
    %v3889 = vpop.f32.mrb[0].mxu0
    %v3890 = vadd.f32 0.0, %v3889
    %v3891 = vpop.f32.mrb[0].mxu0
    %v3892 = vadd.f32 0.0, %v3891
    %v3893 = vpop.f32.mrb[0].mxu0
    %v3894 = vadd.f32 0.0, %v3893
    %v3895 = vpop.f32.mrb[0].mxu0
    %v3896 = vadd.f32 0.0, %v3895
    %3897 = vmatprep.mubr.bf16.mxu0 0
    %3898 = vmatmul.mubr.bf16.gmra.mrb[0].mxu0 %v3399
    %v3899 = vpop.f32.mrb[0].mxu0
    %v3900 = vadd.f32 0.0, %v3899
    %v3901 = vpop.f32.mrb[0].mxu0
    %v3902 = vadd.f32 0.0, %v3901
    %v3903 = vpop.f32.mrb[0].mxu0
    %v3904 = vpop.f32.mrb[0].mxu0
    %3905 = vdwg.mxu0
    %3906 = vmatprep.subr.bf16.mxu0 %v502
    %3907 = vmatpush1.bf16.msra.mxu0 %v501
    %3908 = vmatprep.subr.bf16.mxu0 %v508
    %3909 = vmatpush1.bf16.msra.mxu0 %v507
    %3910 = vmatprep.subr.bf16.mxu0 %v514
    %3911 = vmatpush1.bf16.msra.mxu0 %v513
    %3912 = vmatprep.subr.bf16.mxu0 %v520
    %3913 = vmatpush1.bf16.msra.mxu0 %v519
    %3914 = vmatprep.subr.bf16.mxu0 %v526
    %3915 = vmatpush1.bf16.msra.mxu0 %v525
    %3916 = vmatprep.subr.bf16.mxu0 %v532
    %3917 = vmatpush1.bf16.msra.mxu0 %v531
    %3918 = vmatprep.subr.bf16.mxu0 %v538
    %3919 = vmatpush1.bf16.msra.mxu0 %v537
    %3920 = vmatprep.subr.bf16.mxu0 %v544
    %3921 = vmatpush1.bf16.msra.mxu0 %v543
    %3922 = vmatprep.subr.bf16.mxu0 0
    %3923 = vmatpush1.bf16.msra.mxu0 0
    %3924 = vmatprep.subr.bf16.mxu0 0
    %3925 = vmatpush1.bf16.msra.mxu0 0
    %3926 = vmatprep.subr.bf16.mxu0 0
    %3927 = vmatpush1.bf16.msra.mxu0 0
    %3928 = vmatprep.subr.bf16.mxu0 0
    %3929 = vmatpush1.bf16.msra.mxu0 0
    %3930 = vmatprep.subr.bf16.mxu0 0
    %3931 = vmatpush1.bf16.msra.mxu0 0
    %3932 = vmatprep.subr.bf16.mxu0 0
    %3933 = vmatpush1.bf16.msra.mxu0 0
    %3934 = vmatprep.subr.bf16.mxu0 0
    %3935 = vmatpush1.bf16.msra.mxu0 0
    %3936 = vmatprep.subr.bf16.mxu0 0
    %3937 = vmatpush1.bf16.msra.mxu0 0
    %3938 = vmatprep.mubr.bf16.mxu0 0
    %3939 = vmatmul.mubr.bf16.gmra.mrb[0].mxu0 %v3396
    %v3940 = vpop.f32.mrb[0].mxu0
    %v3941 = vadd.f32 0.0, %v3940
    %v3942 = vpop.f32.mrb[0].mxu0
    %v3943 = vadd.f32 0.0, %v3942
    %v3944 = vpop.f32.mrb[0].mxu0
    %v3945 = vadd.f32 0.0, %v3944
    %v3946 = vpop.f32.mrb[0].mxu0
    %v3947 = vadd.f32 0.0, %v3946
    %3948 = vmatprep.mubr.bf16.mxu0 0
    %3949 = vmatmul.mubr.bf16.gmra.mrb[0].mxu0 %v3397
    %v3950 = vpop.f32.mrb[0].mxu0
    %v3951 = vadd.f32 0.0, %v3950
    %v3952 = vpop.f32.mrb[0].mxu0
    %v3953 = vadd.f32 0.0, %v3952
    %v3954 = vpop.f32.mrb[0].mxu0
    %v3955 = vadd.f32 0.0, %v3954
    %v3956 = vpop.f32.mrb[0].mxu0
    %v3957 = vadd.f32 0.0, %v3956
    %3958 = vmatprep.mubr.bf16.mxu0 0
    %3959 = vmatmul.mubr.bf16.gmra.mrb[0].mxu0 %v3398
    %v3960 = vpop.f32.mrb[0].mxu0
    %v3961 = vadd.f32 0.0, %v3960
    %v3962 = vpop.f32.mrb[0].mxu0
    %v3963 = vadd.f32 0.0, %v3962
    %v3964 = vpop.f32.mrb[0].mxu0
    %v3965 = vadd.f32 0.0, %v3964
    %v3966 = vpop.f32.mrb[0].mxu0
    %v3967 = vadd.f32 0.0, %v3966
    %3968 = vmatprep.mubr.bf16.mxu0 0
    %3969 = vmatmul.mubr.bf16.gmra.mrb[0].mxu0 %v3399
    %v3970 = vpop.f32.mrb[0].mxu0
    %v3971 = vadd.f32 0.0, %v3970
    %v3972 = vpop.f32.mrb[0].mxu0
    %v3973 = vadd.f32 0.0, %v3972
    %v3974 = vpop.f32.mrb[0].mxu0
    %v3975 = vpop.f32.mrb[0].mxu0
    %3976 = vdwg.mxu0
    %3977 = vmatprep.subr.bf16.mxu0 %v981
    %3978 = vmatpush1.bf16.msra.mxu0 %v980
    %3979 = vmatprep.subr.bf16.mxu0 %v987
    %3980 = vmatpush1.bf16.msra.mxu0 %v986
    %3981 = vmatprep.subr.bf16.mxu0 %v993
    %3982 = vmatpush1.bf16.msra.mxu0 %v992
    %3983 = vmatprep.subr.bf16.mxu0 %v999
    %3984 = vmatpush1.bf16.msra.mxu0 %v998
    %3985 = vmatprep.subr.bf16.mxu0 %v1005
    %3986 = vmatpush1.bf16.msra.mxu0 %v1004
    %3987 = vmatprep.subr.bf16.mxu0 %v1011
    %3988 = vmatpush1.bf16.msra.mxu0 %v1010
    %3989 = vmatprep.subr.bf16.mxu0 %v1017
    %3990 = vmatpush1.bf16.msra.mxu0 %v1016
    %3991 = vmatprep.subr.bf16.mxu0 %v1023
    %3992 = vmatpush1.bf16.msra.mxu0 %v1022
    %3993 = vmatprep.subr.bf16.mxu0 0
    %3994 = vmatpush1.bf16.msra.mxu0 0
    %3995 = vmatprep.subr.bf16.mxu0 0
    %3996 = vmatpush1.bf16.msra.mxu0 0
    %3997 = vmatprep.subr.bf16.mxu0 0
    %3998 = vmatpush1.bf16.msra.mxu0 0
    %3999 = vmatprep.subr.bf16.mxu0 0
    %4000 = vmatpush1.bf16.msra.mxu0 0
    %4001 = vmatprep.subr.bf16.mxu0 0
    %4002 = vmatpush1.bf16.msra.mxu0 0
    %4003 = vmatprep.subr.bf16.mxu0 0
    %4004 = vmatpush1.bf16.msra.mxu0 0
    %4005 = vmatprep.subr.bf16.mxu0 0
    %4006 = vmatpush1.bf16.msra.mxu0 0
    %4007 = vmatprep.subr.bf16.mxu0 0
    %4008 = vmatpush1.bf16.msra.mxu0 0
    %4009 = vmatprep.mubr.bf16.mxu0 0
    %4010 = vmatmul.mubr.bf16.gmra.mrb[0].mxu0 %v2511
    %v4011 = vpop.f32.mrb[0].mxu0
    %v4012 = vadd.f32 %v3799, %v4011
    %v4013 = vpop.f32.mrb[0].mxu0
    %v4014 = vadd.f32 %v3801, %v4013
    %v4015 = vpop.f32.mrb[0].mxu0
    %v4016 = vadd.f32 %v3803, %v4015
    %v4017 = vpop.f32.mrb[0].mxu0
    %v4018 = vadd.f32 %v3805, %v4017
    %4019 = vmatprep.mubr.bf16.mxu0 0
    %4020 = vmatmul.mubr.bf16.gmra.mrb[0].mxu0 %v2512
    %v4021 = vpop.f32.mrb[0].mxu0
    %v4022 = vadd.f32 %v3809, %v4021
    %v4023 = vpop.f32.mrb[0].mxu0
    %v4024 = vadd.f32 %v3811, %v4023
    %v4025 = vpop.f32.mrb[0].mxu0
    %v4026 = vadd.f32 %v3813, %v4025
    %v4027 = vpop.f32.mrb[0].mxu0
    %v4028 = vadd.f32 %v3815, %v4027
    %4029 = vmatprep.mubr.bf16.mxu0 0
    %4030 = vmatmul.mubr.bf16.gmra.mrb[0].mxu0 %v2513
    %v4031 = vpop.f32.mrb[0].mxu0
    %v4032 = vadd.f32 %v3819, %v4031
    %v4033 = vpop.f32.mrb[0].mxu0
    %v4034 = vadd.f32 %v3821, %v4033
    %v4035 = vpop.f32.mrb[0].mxu0
    %v4036 = vadd.f32 %v3823, %v4035
    %v4037 = vpop.f32.mrb[0].mxu0
    %v4038 = vadd.f32 %v3825, %v4037
    %4039 = vmatprep.mubr.bf16.mxu0 0
    %4040 = vmatmul.mubr.bf16.gmra.mrb[0].mxu0 %v2966
    %v4041 = vpop.f32.mrb[0].mxu0
    %v4042 = vadd.f32 %v3829, %v4041
    %v4043 = vpop.f32.mrb[0].mxu0
    %v4044 = vadd.f32 %v3831, %v4043
    %v4045 = vpop.f32.mrb[0].mxu0
    %v4046 = vpop.f32.mrb[0].mxu0
    %4047 = vdwg.mxu0
    %4048 = vmatprep.subr.bf16.mxu0 %v983
    %4049 = vmatpush1.bf16.msra.mxu0 %v982
    %4050 = vmatprep.subr.bf16.mxu0 %v989
    %4051 = vmatpush1.bf16.msra.mxu0 %v988
    %4052 = vmatprep.subr.bf16.mxu0 %v995
    %4053 = vmatpush1.bf16.msra.mxu0 %v994
    %4054 = vmatprep.subr.bf16.mxu0 %v1001
    %4055 = vmatpush1.bf16.msra.mxu0 %v1000
    %4056 = vmatprep.subr.bf16.mxu0 %v1007
    %4057 = vmatpush1.bf16.msra.mxu0 %v1006
    %4058 = vmatprep.subr.bf16.mxu0 %v1013
    %4059 = vmatpush1.bf16.msra.mxu0 %v1012
    %4060 = vmatprep.subr.bf16.mxu0 %v1019
    %4061 = vmatpush1.bf16.msra.mxu0 %v1018
    %4062 = vmatprep.subr.bf16.mxu0 %v1025
    %4063 = vmatpush1.bf16.msra.mxu0 %v1024
    %4064 = vmatprep.subr.bf16.mxu0 0
    %4065 = vmatpush1.bf16.msra.mxu0 0
    %4066 = vmatprep.subr.bf16.mxu0 0
    %4067 = vmatpush1.bf16.msra.mxu0 0
    %4068 = vmatprep.subr.bf16.mxu0 0
    %4069 = vmatpush1.bf16.msra.mxu0 0
    %4070 = vmatprep.subr.bf16.mxu0 0
    %4071 = vmatpush1.bf16.msra.mxu0 0
    %4072 = vmatprep.subr.bf16.mxu0 0
    %4073 = vmatpush1.bf16.msra.mxu0 0
    %4074 = vmatprep.subr.bf16.mxu0 0
    %4075 = vmatpush1.bf16.msra.mxu0 0
    %4076 = vmatprep.subr.bf16.mxu0 0
    %4077 = vmatpush1.bf16.msra.mxu0 0
    %4078 = vmatprep.subr.bf16.mxu0 0
    %4079 = vmatpush1.bf16.msra.mxu0 0
    %4080 = vmatprep.mubr.bf16.mxu0 0
    %4081 = vmatmul.mubr.bf16.gmra.mrb[0].mxu0 %v2511
    %v4082 = vpop.f32.mrb[0].mxu0
    %v4083 = vadd.f32 %v3870, %v4082
    %v4084 = vpop.f32.mrb[0].mxu0
    %v4085 = vadd.f32 %v3872, %v4084
    %v4086 = vpop.f32.mrb[0].mxu0
    %v4087 = vadd.f32 %v3874, %v4086
    %v4088 = vpop.f32.mrb[0].mxu0
    %v4089 = vadd.f32 %v3876, %v4088
    %4090 = vmatprep.mubr.bf16.mxu0 0
    %4091 = vmatmul.mubr.bf16.gmra.mrb[0].mxu0 %v2512
    %v4092 = vpop.f32.mrb[0].mxu0
    %v4093 = vadd.f32 %v3880, %v4092
    %v4094 = vpop.f32.mrb[0].mxu0
    %v4095 = vadd.f32 %v3882, %v4094
    %v4096 = vpop.f32.mrb[0].mxu0
    %v4097 = vadd.f32 %v3884, %v4096
    %v4098 = vpop.f32.mrb[0].mxu0
    %v4099 = vadd.f32 %v3886, %v4098
    %4100 = vmatprep.mubr.bf16.mxu0 0
    %4101 = vmatmul.mubr.bf16.gmra.mrb[0].mxu0 %v2513
    %v4102 = vpop.f32.mrb[0].mxu0
    %v4103 = vadd.f32 %v3890, %v4102
    %v4104 = vpop.f32.mrb[0].mxu0
    %v4105 = vadd.f32 %v3892, %v4104
    %v4106 = vpop.f32.mrb[0].mxu0
    %v4107 = vadd.f32 %v3894, %v4106
    %v4108 = vpop.f32.mrb[0].mxu0
    %v4109 = vadd.f32 %v3896, %v4108
    %4110 = vmatprep.mubr.bf16.mxu0 0
    %4111 = vmatmul.mubr.bf16.gmra.mrb[0].mxu0 %v2966
    %v4112 = vpop.f32.mrb[0].mxu0
    %v4113 = vadd.f32 %v3900, %v4112
    %v4114 = vpop.f32.mrb[0].mxu0
    %v4115 = vadd.f32 %v3902, %v4114
    %v4116 = vpop.f32.mrb[0].mxu0
    %v4117 = vpop.f32.mrb[0].mxu0
    %4118 = vdwg.mxu0
    %4119 = vmatprep.subr.bf16.mxu0 %v985
    %4120 = vmatpush1.bf16.msra.mxu0 %v984
    %4121 = vmatprep.subr.bf16.mxu0 %v991
    %4122 = vmatpush1.bf16.msra.mxu0 %v990
    %4123 = vmatprep.subr.bf16.mxu0 %v997
    %4124 = vmatpush1.bf16.msra.mxu0 %v996
    %4125 = vmatprep.subr.bf16.mxu0 %v1003
    %4126 = vmatpush1.bf16.msra.mxu0 %v1002
    %4127 = vmatprep.subr.bf16.mxu0 %v1009
    %4128 = vmatpush1.bf16.msra.mxu0 %v1008
    %4129 = vmatprep.subr.bf16.mxu0 %v1015
    %4130 = vmatpush1.bf16.msra.mxu0 %v1014
    %4131 = vmatprep.subr.bf16.mxu0 %v1021
    %4132 = vmatpush1.bf16.msra.mxu0 %v1020
    %4133 = vmatprep.subr.bf16.mxu0 %v1027
    %4134 = vmatpush1.bf16.msra.mxu0 %v1026
    %4135 = vmatprep.subr.bf16.mxu0 0
    %4136 = vmatpush1.bf16.msra.mxu0 0
    %4137 = vmatprep.subr.bf16.mxu0 0
    %4138 = vmatpush1.bf16.msra.mxu0 0
    %4139 = vmatprep.subr.bf16.mxu0 0
    %4140 = vmatpush1.bf16.msra.mxu0 0
    %4141 = vmatprep.subr.bf16.mxu0 0
    %4142 = vmatpush1.bf16.msra.mxu0 0
    %4143 = vmatprep.subr.bf16.mxu0 0
    %4144 = vmatpush1.bf16.msra.mxu0 0
    %4145 = vmatprep.subr.bf16.mxu0 0
    %4146 = vmatpush1.bf16.msra.mxu0 0
    %4147 = vmatprep.subr.bf16.mxu0 0
    %4148 = vmatpush1.bf16.msra.mxu0 0
    %4149 = vmatprep.subr.bf16.mxu0 0
    %4150 = vmatpush1.bf16.msra.mxu0 0
    %4151 = vmatprep.mubr.bf16.mxu0 0
    %4152 = vmatmul.mubr.bf16.gmra.mrb[0].mxu0 %v2511
    %v4153 = vpop.f32.mrb[0].mxu0
    %v4154 = vadd.f32 %v3941, %v4153
    %v4155 = vpop.f32.mrb[0].mxu0
    %v4156 = vadd.f32 %v3943, %v4155
    %v4157 = vpop.f32.mrb[0].mxu0
    %v4158 = vadd.f32 %v3945, %v4157
    %v4159 = vpop.f32.mrb[0].mxu0
    %v4160 = vadd.f32 %v3947, %v4159
    %4161 = vmatprep.mubr.bf16.mxu0 0
    %4162 = vmatmul.mubr.bf16.gmra.mrb[0].mxu0 %v2512
    %v4163 = vpop.f32.mrb[0].mxu0
    %v4164 = vadd.f32 %v3951, %v4163
    %v4165 = vpop.f32.mrb[0].mxu0
    %v4166 = vadd.f32 %v3953, %v4165
    %v4167 = vpop.f32.mrb[0].mxu0
    %v4168 = vadd.f32 %v3955, %v4167
    %v4169 = vpop.f32.mrb[0].mxu0
    %v4170 = vadd.f32 %v3957, %v4169
    %4171 = vmatprep.mubr.bf16.mxu0 0
    %4172 = vmatmul.mubr.bf16.gmra.mrb[0].mxu0 %v2513
    %v4173 = vpop.f32.mrb[0].mxu0
    %v4174 = vadd.f32 %v3961, %v4173
    %v4175 = vpop.f32.mrb[0].mxu0
    %v4176 = vadd.f32 %v3963, %v4175
    %v4177 = vpop.f32.mrb[0].mxu0
    %v4178 = vadd.f32 %v3965, %v4177
    %v4179 = vpop.f32.mrb[0].mxu0
    %v4180 = vadd.f32 %v3967, %v4179
    %4181 = vmatprep.mubr.bf16.mxu0 0
    %4182 = vmatmul.mubr.bf16.gmra.mrb[0].mxu0 %v2966
    %v4183 = vpop.f32.mrb[0].mxu0
    %v4184 = vadd.f32 %v3971, %v4183
    %v4185 = vpop.f32.mrb[0].mxu0
    %v4186 = vadd.f32 %v3973, %v4185
    %v4187 = vpop.f32.mrb[0].mxu0
    %v4188 = vpop.f32.mrb[0].mxu0
    %4189 = vdwg.mxu0
    %v4190 = vpack.c.b16 %v339, %v338
    %v4191 = vpack.c.b16 %v341, %v340
    %v4192 = vpack.c.b16 %v343, %v342
    %v4193 = vpack.c.b16 %v344, %v344
    %4198 = vmatprep.subr.bf16.mxu0 %v1513
    %4199 = vmatpush1.bf16.msra.mxu0 %v1512
    %4200 = vmatprep.subr.bf16.mxu0 %v1519
    %4201 = vmatpush1.bf16.msra.mxu0 %v1518
    %4202 = vmatprep.subr.bf16.mxu0 %v1525
    %4203 = vmatpush1.bf16.msra.mxu0 %v1524
    %4204 = vmatprep.subr.bf16.mxu0 %v1531
    %4205 = vmatpush1.bf16.msra.mxu0 %v1530
    %4206 = vmatprep.subr.bf16.mxu0 %v1537
    %4207 = vmatpush1.bf16.msra.mxu0 %v1536
    %4208 = vmatprep.subr.bf16.mxu0 %v1543
    %4209 = vmatpush1.bf16.msra.mxu0 %v1542
    %4210 = vmatprep.subr.bf16.mxu0 %v1549
    %4211 = vmatpush1.bf16.msra.mxu0 %v1548
    %4212 = vmatprep.subr.bf16.mxu0 %v1555
    %4213 = vmatpush1.bf16.msra.mxu0 %v1554
    %4214 = vmatprep.subr.bf16.mxu0 0
    %4215 = vmatpush1.bf16.msra.mxu0 0
    %4216 = vmatprep.subr.bf16.mxu0 0
    %4217 = vmatpush1.bf16.msra.mxu0 0
    %4218 = vmatprep.subr.bf16.mxu0 0
    %4219 = vmatpush1.bf16.msra.mxu0 0
    %4220 = vmatprep.subr.bf16.mxu0 0
    %4221 = vmatpush1.bf16.msra.mxu0 0
    %4222 = vmatprep.subr.bf16.mxu0 0
    %4223 = vmatpush1.bf16.msra.mxu0 0
    %4224 = vmatprep.subr.bf16.mxu0 0
    %4225 = vmatpush1.bf16.msra.mxu0 0
    %4226 = vmatprep.subr.bf16.mxu0 0
    %4227 = vmatpush1.bf16.msra.mxu0 0
    %4228 = vmatprep.subr.bf16.mxu0 0
    %4229 = vmatpush1.bf16.msra.mxu0 0
    %4230 = vmatprep.mubr.bf16.mxu0 0
    %4231 = vmatmul.mubr.bf16.gmra.mrb[0].mxu0 %v4190
    %v4232 = vpop.f32.mrb[0].mxu0
    %v4233 = vadd.f32 0.0, %v4232
    %v4234 = vpop.f32.mrb[0].mxu0
    %v4235 = vadd.f32 0.0, %v4234
    %v4236 = vpop.f32.mrb[0].mxu0
    %v4237 = vadd.f32 0.0, %v4236
    %v4238 = vpop.f32.mrb[0].mxu0
    %v4239 = vadd.f32 0.0, %v4238
    %4240 = vmatprep.mubr.bf16.mxu0 0
    %4241 = vmatmul.mubr.bf16.gmra.mrb[0].mxu0 %v4191
    %v4242 = vpop.f32.mrb[0].mxu0
    %v4243 = vadd.f32 0.0, %v4242
    %v4244 = vpop.f32.mrb[0].mxu0
    %v4245 = vadd.f32 0.0, %v4244
    %v4246 = vpop.f32.mrb[0].mxu0
    %v4247 = vadd.f32 0.0, %v4246
    %v4248 = vpop.f32.mrb[0].mxu0
    %v4249 = vadd.f32 0.0, %v4248
    %4250 = vmatprep.mubr.bf16.mxu0 0
    %4251 = vmatmul.mubr.bf16.gmra.mrb[0].mxu0 %v4192
    %v4252 = vpop.f32.mrb[0].mxu0
    %v4253 = vadd.f32 0.0, %v4252
    %v4254 = vpop.f32.mrb[0].mxu0
    %v4255 = vadd.f32 0.0, %v4254
    %v4256 = vpop.f32.mrb[0].mxu0
    %v4257 = vadd.f32 0.0, %v4256
    %v4258 = vpop.f32.mrb[0].mxu0
    %v4259 = vadd.f32 0.0, %v4258
    %4260 = vmatprep.mubr.bf16.mxu0 0
    %4261 = vmatmul.mubr.bf16.gmra.mrb[0].mxu0 %v4193
    %v4262 = vpop.f32.mrb[0].mxu0
    %v4263 = vadd.f32 0.0, %v4262
    %v4264 = vpop.f32.mrb[0].mxu0
    %v4265 = vadd.f32 0.0, %v4264
    %v4266 = vpop.f32.mrb[0].mxu0
    %v4267 = vpop.f32.mrb[0].mxu0
    %4268 = vdwg.mxu0
    %4269 = vmatprep.subr.bf16.mxu0 %v1515
    %4270 = vmatpush1.bf16.msra.mxu0 %v1514
    %4271 = vmatprep.subr.bf16.mxu0 %v1521
    %4272 = vmatpush1.bf16.msra.mxu0 %v1520
    %4273 = vmatprep.subr.bf16.mxu0 %v1527
    %4274 = vmatpush1.bf16.msra.mxu0 %v1526
    %4275 = vmatprep.subr.bf16.mxu0 %v1533
    %4276 = vmatpush1.bf16.msra.mxu0 %v1532
    %4277 = vmatprep.subr.bf16.mxu0 %v1539
    %4278 = vmatpush1.bf16.msra.mxu0 %v1538
    %4279 = vmatprep.subr.bf16.mxu0 %v1545
    %4280 = vmatpush1.bf16.msra.mxu0 %v1544
    %4281 = vmatprep.subr.bf16.mxu0 %v1551
    %4282 = vmatpush1.bf16.msra.mxu0 %v1550
    %4283 = vmatprep.subr.bf16.mxu0 %v1557
    %4284 = vmatpush1.bf16.msra.mxu0 %v1556
    %4285 = vmatprep.subr.bf16.mxu0 0
    %4286 = vmatpush1.bf16.msra.mxu0 0
    %4287 = vmatprep.subr.bf16.mxu0 0
    %4288 = vmatpush1.bf16.msra.mxu0 0
    %4289 = vmatprep.subr.bf16.mxu0 0
    %4290 = vmatpush1.bf16.msra.mxu0 0
    %4291 = vmatprep.subr.bf16.mxu0 0
    %4292 = vmatpush1.bf16.msra.mxu0 0
    %4293 = vmatprep.subr.bf16.mxu0 0
    %4294 = vmatpush1.bf16.msra.mxu0 0
    %4295 = vmatprep.subr.bf16.mxu0 0
    %4296 = vmatpush1.bf16.msra.mxu0 0
    %4297 = vmatprep.subr.bf16.mxu0 0
    %4298 = vmatpush1.bf16.msra.mxu0 0
    %4299 = vmatprep.subr.bf16.mxu0 0
    %4300 = vmatpush1.bf16.msra.mxu0 0
    %4301 = vmatprep.mubr.bf16.mxu0 0
    %4302 = vmatmul.mubr.bf16.gmra.mrb[0].mxu0 %v4190
    %v4303 = vpop.f32.mrb[0].mxu0
    %v4304 = vadd.f32 0.0, %v4303
    %v4305 = vpop.f32.mrb[0].mxu0
    %v4306 = vadd.f32 0.0, %v4305
    %v4307 = vpop.f32.mrb[0].mxu0
    %v4308 = vadd.f32 0.0, %v4307
    %v4309 = vpop.f32.mrb[0].mxu0
    %v4310 = vadd.f32 0.0, %v4309
    %4311 = vmatprep.mubr.bf16.mxu0 0
    %4312 = vmatmul.mubr.bf16.gmra.mrb[0].mxu0 %v4191
    %v4313 = vpop.f32.mrb[0].mxu0
    %v4314 = vadd.f32 0.0, %v4313
    %v4315 = vpop.f32.mrb[0].mxu0
    %v4316 = vadd.f32 0.0, %v4315
    %v4317 = vpop.f32.mrb[0].mxu0
    %v4318 = vadd.f32 0.0, %v4317
    %v4319 = vpop.f32.mrb[0].mxu0
    %v4320 = vadd.f32 0.0, %v4319
    %4321 = vmatprep.mubr.bf16.mxu0 0
    %4322 = vmatmul.mubr.bf16.gmra.mrb[0].mxu0 %v4192
    %v4323 = vpop.f32.mrb[0].mxu0
    %v4324 = vadd.f32 0.0, %v4323
    %v4325 = vpop.f32.mrb[0].mxu0
    %v4326 = vadd.f32 0.0, %v4325
    %v4327 = vpop.f32.mrb[0].mxu0
    %v4328 = vadd.f32 0.0, %v4327
    %v4329 = vpop.f32.mrb[0].mxu0
    %v4330 = vadd.f32 0.0, %v4329
    %4331 = vmatprep.mubr.bf16.mxu0 0
    %4332 = vmatmul.mubr.bf16.gmra.mrb[0].mxu0 %v4193
    %v4333 = vpop.f32.mrb[0].mxu0
    %v4334 = vadd.f32 0.0, %v4333
    %v4335 = vpop.f32.mrb[0].mxu0
    %v4336 = vadd.f32 0.0, %v4335
    %v4337 = vpop.f32.mrb[0].mxu0
    %v4338 = vpop.f32.mrb[0].mxu0
    %4339 = vdwg.mxu0
    %4340 = vmatprep.subr.bf16.mxu0 %v1517
    %4341 = vmatpush1.bf16.msra.mxu0 %v1516
    %4342 = vmatprep.subr.bf16.mxu0 %v1523
    %4343 = vmatpush1.bf16.msra.mxu0 %v1522
    %4344 = vmatprep.subr.bf16.mxu0 %v1529
    %4345 = vmatpush1.bf16.msra.mxu0 %v1528
    %4346 = vmatprep.subr.bf16.mxu0 %v1535
    %4347 = vmatpush1.bf16.msra.mxu0 %v1534
    %4348 = vmatprep.subr.bf16.mxu0 %v1541
    %4349 = vmatpush1.bf16.msra.mxu0 %v1540
    %4350 = vmatprep.subr.bf16.mxu0 %v1547
    %4351 = vmatpush1.bf16.msra.mxu0 %v1546
    %4352 = vmatprep.subr.bf16.mxu0 %v1553
    %4353 = vmatpush1.bf16.msra.mxu0 %v1552
    %4354 = vmatprep.subr.bf16.mxu0 %v1559
    %4355 = vmatpush1.bf16.msra.mxu0 %v1558
    %4356 = vmatprep.subr.bf16.mxu0 0
    %4357 = vmatpush1.bf16.msra.mxu0 0
    %4358 = vmatprep.subr.bf16.mxu0 0
    %4359 = vmatpush1.bf16.msra.mxu0 0
    %4360 = vmatprep.subr.bf16.mxu0 0
    %4361 = vmatpush1.bf16.msra.mxu0 0
    %4362 = vmatprep.subr.bf16.mxu0 0
    %4363 = vmatpush1.bf16.msra.mxu0 0
    %4364 = vmatprep.subr.bf16.mxu0 0
    %4365 = vmatpush1.bf16.msra.mxu0 0
    %4366 = vmatprep.subr.bf16.mxu0 0
    %4367 = vmatpush1.bf16.msra.mxu0 0
    %4368 = vmatprep.subr.bf16.mxu0 0
    %4369 = vmatpush1.bf16.msra.mxu0 0
    %4370 = vmatprep.subr.bf16.mxu0 0
    %4371 = vmatpush1.bf16.msra.mxu0 0
    %4372 = vmatprep.mubr.bf16.mxu0 0
    %4373 = vmatmul.mubr.bf16.gmra.mrb[0].mxu0 %v4190
    %v4374 = vpop.f32.mrb[0].mxu0
    %v4375 = vadd.f32 0.0, %v4374
    %v4376 = vpop.f32.mrb[0].mxu0
    %v4377 = vadd.f32 0.0, %v4376
    %v4378 = vpop.f32.mrb[0].mxu0
    %v4379 = vadd.f32 0.0, %v4378
    %v4380 = vpop.f32.mrb[0].mxu0
    %v4381 = vadd.f32 0.0, %v4380
    %4382 = vmatprep.mubr.bf16.mxu0 0
    %4383 = vmatmul.mubr.bf16.gmra.mrb[0].mxu0 %v4191
    %v4384 = vpop.f32.mrb[0].mxu0
    %v4385 = vadd.f32 0.0, %v4384
    %v4386 = vpop.f32.mrb[0].mxu0
    %v4387 = vadd.f32 0.0, %v4386
    %v4388 = vpop.f32.mrb[0].mxu0
    %v4389 = vadd.f32 0.0, %v4388
    %v4390 = vpop.f32.mrb[0].mxu0
    %v4391 = vadd.f32 0.0, %v4390
    %4392 = vmatprep.mubr.bf16.mxu0 0
    %4393 = vmatmul.mubr.bf16.gmra.mrb[0].mxu0 %v4192
    %v4394 = vpop.f32.mrb[0].mxu0
    %v4395 = vadd.f32 0.0, %v4394
    %v4396 = vpop.f32.mrb[0].mxu0
    %v4397 = vadd.f32 0.0, %v4396
    %v4398 = vpop.f32.mrb[0].mxu0
    %v4399 = vadd.f32 0.0, %v4398
    %v4400 = vpop.f32.mrb[0].mxu0
    %v4401 = vadd.f32 0.0, %v4400
    %4402 = vmatprep.mubr.bf16.mxu0 0
    %4403 = vmatmul.mubr.bf16.gmra.mrb[0].mxu0 %v4193
    %v4404 = vpop.f32.mrb[0].mxu0
    %v4405 = vadd.f32 0.0, %v4404
    %v4406 = vpop.f32.mrb[0].mxu0
    %v4407 = vadd.f32 0.0, %v4406
    %v4408 = vpop.f32.mrb[0].mxu0
    %v4409 = vpop.f32.mrb[0].mxu0
    %4410 = vdwg.mxu0
    %v4411 = vadd.f32 %v4012, %v4233
    %v4412 = vadd.f32 %v4014, %v4235
    %v4413 = vadd.f32 %v4083, %v4304
    %v4414 = vadd.f32 %v4085, %v4306
    %v4415 = vadd.f32 %v4154, %v4375
    %v4416 = vadd.f32 %v4156, %v4377
    %v4417 = vadd.f32 %v4016, %v4237
    %v4418 = vadd.f32 %v4018, %v4239
    %v4419 = vadd.f32 %v4087, %v4308
    %v4420 = vadd.f32 %v4089, %v4310
    %v4421 = vadd.f32 %v4158, %v4379
    %v4422 = vadd.f32 %v4160, %v4381
    %v4423 = vadd.f32 %v4022, %v4243
    %v4424 = vadd.f32 %v4024, %v4245
    %v4425 = vadd.f32 %v4093, %v4314
    %v4426 = vadd.f32 %v4095, %v4316
    %v4427 = vadd.f32 %v4164, %v4385
    %v4428 = vadd.f32 %v4166, %v4387
    %v4429 = vadd.f32 %v4026, %v4247
    %v4430 = vadd.f32 %v4028, %v4249
    %v4431 = vadd.f32 %v4097, %v4318
    %v4432 = vadd.f32 %v4099, %v4320
    %v4433 = vadd.f32 %v4168, %v4389
    %v4434 = vadd.f32 %v4170, %v4391
    %v4435 = vadd.f32 %v4032, %v4253
    %v4436 = vadd.f32 %v4034, %v4255
    %v4437 = vadd.f32 %v4103, %v4324
    %v4438 = vadd.f32 %v4105, %v4326
    %v4439 = vadd.f32 %v4174, %v4395
    %v4440 = vadd.f32 %v4176, %v4397
    %v4441 = vadd.f32 %v4036, %v4257
    %v4442 = vadd.f32 %v4038, %v4259
    %v4443 = vadd.f32 %v4107, %v4328
    %v4444 = vadd.f32 %v4109, %v4330
    %v4445 = vadd.f32 %v4178, %v4399
    %v4446 = vadd.f32 %v4180, %v4401
    %v4447 = vadd.f32 %v4042, %v4263
    %v4448 = vadd.f32 %v4044, %v4265
    %v4449 = vadd.f32 %v4113, %v4334
    %v4450 = vadd.f32 %v4115, %v4336
    %v4451 = vadd.f32 %v4184, %v4405
    %v4452 = vadd.f32 %v4186, %v4407
    %v4453 = vmul.f32 %v4411, %v1879
    %v4454 = vmul.f32 %v4412, %v1883
    %v4455 = vmul.f32 %v4413, %v1887
    %v4456 = vmul.f32 %v4414, %v1891
    %v4457 = vmul.f32 %v4415, %v1895
    %v4458 = vmul.f32 %v4416, %v1899
    %v4459 = vmul.f32 %v4417, %v1879
    %v4460 = vmul.f32 %v4418, %v1883
    %v4461 = vmul.f32 %v4419, %v1887
    %v4462 = vmul.f32 %v4420, %v1891
    %v4463 = vmul.f32 %v4421, %v1895
    %v4464 = vmul.f32 %v4422, %v1899
    %v4465 = vmul.f32 %v4423, %v1879
    %v4466 = vmul.f32 %v4424, %v1883
    %v4467 = vmul.f32 %v4425, %v1887
    %v4468 = vmul.f32 %v4426, %v1891
    %v4469 = vmul.f32 %v4427, %v1895
    %v4470 = vmul.f32 %v4428, %v1899
    %v4471 = vmul.f32 %v4429, %v1879
    %v4472 = vmul.f32 %v4430, %v1883
    %v4473 = vmul.f32 %v4431, %v1887
    %v4474 = vmul.f32 %v4432, %v1891
    %v4475 = vmul.f32 %v4433, %v1895
    %v4476 = vmul.f32 %v4434, %v1899
    %v4477 = vmul.f32 %v4435, %v1879
    %v4478 = vmul.f32 %v4436, %v1883
    %v4479 = vmul.f32 %v4437, %v1887
    %v4480 = vmul.f32 %v4438, %v1891
    %v4481 = vmul.f32 %v4439, %v1895
    %v4482 = vmul.f32 %v4440, %v1899
    %v4483 = vmul.f32 %v4441, %v1879
    %v4484 = vmul.f32 %v4442, %v1883
    %v4485 = vmul.f32 %v4443, %v1887
    %v4486 = vmul.f32 %v4444, %v1891
    %v4487 = vmul.f32 %v4445, %v1895
    %v4488 = vmul.f32 %v4446, %v1899
    %v4489 = vmul.f32 %v4447, %v1879
    %v4490 = vmul.f32 %v4448, %v1883
    %v4491 = vmul.f32 %v4449, %v1887
    %v4492 = vmul.f32 %v4450, %v1891
    %v4493 = vmul.f32 %v4451, %v1895
    %v4494 = vmul.f32 %v4452, %v1899
    %v4495 = vadd.f32 %v4453, %v1958
    %v4496 = vadd.f32 %v4454, %v1962
    %v4497 = vadd.f32 %v4455, %v1966
    %v4498 = vadd.f32 %v4456, %v1970
    %v4499 = vadd.f32 %v4457, %v1974
    %v4500 = vadd.f32 %v4458, %v1978
    %v4501 = vadd.f32 %v4459, %v1958
    %v4502 = vadd.f32 %v4460, %v1962
    %v4503 = vadd.f32 %v4461, %v1966
    %v4504 = vadd.f32 %v4462, %v1970
    %v4505 = vadd.f32 %v4463, %v1974
    %v4506 = vadd.f32 %v4464, %v1978
    %v4507 = vadd.f32 %v4465, %v1958
    %v4508 = vadd.f32 %v4466, %v1962
    %v4509 = vadd.f32 %v4467, %v1966
    %v4510 = vadd.f32 %v4468, %v1970
    %v4511 = vadd.f32 %v4469, %v1974
    %v4512 = vadd.f32 %v4470, %v1978
    %v4513 = vadd.f32 %v4471, %v1958
    %v4514 = vadd.f32 %v4472, %v1962
    %v4515 = vadd.f32 %v4473, %v1966
    %v4516 = vadd.f32 %v4474, %v1970
    %v4517 = vadd.f32 %v4475, %v1974
    %v4518 = vadd.f32 %v4476, %v1978
    %v4519 = vadd.f32 %v4477, %v1958
    %v4520 = vadd.f32 %v4478, %v1962
    %v4521 = vadd.f32 %v4479, %v1966
    %v4522 = vadd.f32 %v4480, %v1970
    %v4523 = vadd.f32 %v4481, %v1974
    %v4524 = vadd.f32 %v4482, %v1978
    %v4525 = vadd.f32 %v4483, %v1958
    %v4526 = vadd.f32 %v4484, %v1962
    %v4527 = vadd.f32 %v4485, %v1966
    %v4528 = vadd.f32 %v4486, %v1970
    %v4529 = vadd.f32 %v4487, %v1974
    %v4530 = vadd.f32 %v4488, %v1978
    %v4531 = vadd.f32 %v4489, %v1958
    %v4532 = vadd.f32 %v4490, %v1962
    %v4533 = vadd.f32 %v4491, %v1966
    %v4534 = vadd.f32 %v4492, %v1970
    %v4535 = vadd.f32 %v4493, %v1974
    %v4536 = vadd.f32 %v4494, %v1978
    %v4537 = vmax.f32 %v4495, %v4498
    %v4538 = vmax.f32 %v4496, %v4499
    %v4539 = vmax.f32 %v4497, %v4500
    %v4540 = vmax.f32 %v4501, %v4504
    %v4541 = vmax.f32 %v4502, %v4505
    %v4542 = vmax.f32 %v4503, %v4506
    %v4543 = vmax.f32 %v4507, %v4510
    %v4544 = vmax.f32 %v4508, %v4511
    %v4545 = vmax.f32 %v4509, %v4512
    %v4546 = vmax.f32 %v4513, %v4516
    %v4547 = vmax.f32 %v4514, %v4517
    %v4548 = vmax.f32 %v4515, %v4518
    %v4549 = vmax.f32 %v4519, %v4522
    %v4550 = vmax.f32 %v4520, %v4523
    %v4551 = vmax.f32 %v4521, %v4524
    %v4552 = vmax.f32 %v4525, %v4528
    %v4553 = vmax.f32 %v4526, %v4529
    %v4554 = vmax.f32 %v4527, %v4530
    %v4555 = vmax.f32 %v4531, %v4534
    %v4556 = vmax.f32 %v4532, %v4535
    %v4557 = vmax.f32 %v4533, %v4536
    %v4558 = vmax.f32 %v3743, %v4537
    %v4559 = vmax.f32 %v3744, %v4538
    %v4560 = vmax.f32 %v3745, %v4539
    %v4561 = vmax.f32 %v3746, %v4540
    %v4562 = vmax.f32 %v3747, %v4541
    %v4563 = vmax.f32 %v3748, %v4542
    %v4564 = vmax.f32 %v3749, %v4543
    %v4565 = vmax.f32 %v3750, %v4544
    %v4566 = vmax.f32 %v3751, %v4545
    %v4567 = vmax.f32 %v3752, %v4546
    %v4568 = vmax.f32 %v3753, %v4547
    %v4569 = vmax.f32 %v3754, %v4548
    %v4570 = vmax.f32 %v3755, %v4549
    %v4571 = vmax.f32 %v3756, %v4550
    %v4572 = vmax.f32 %v3757, %v4551
    %v4573 = vmax.f32 %v3758, %v4552
    %v4574 = vmax.f32 %v3759, %v4553
    %v4575 = vmax.f32 %v3760, %v4554
    %v4576 = vmax.f32 %v3761, %v4555
    %v4577 = vmax.f32 %v3762, %v4556
    %v4578 = vmax.f32 %v3763, %v4557
    %v4579 = vmax.f32 %v4558, 0.0
    %v4580 = vmax.f32 %v4559, 0.0
    %v4581 = vmax.f32 %v4560, 0.0
    %v4582 = vmax.f32 %v4561, 0.0
    %v4583 = vmax.f32 %v4562, 0.0
    %v4584 = vmax.f32 %v4563, 0.0
    %v4585 = vmax.f32 %v4564, 0.0
    %v4586 = vmax.f32 %v4565, 0.0
    %v4587 = vmax.f32 %v4566, 0.0
    %v4588 = vmax.f32 %v4567, 0.0
    %v4589 = vmax.f32 %v4568, 0.0
    %v4590 = vmax.f32 %v4569, 0.0
    %v4591 = vmax.f32 %v4570, 0.0
    %v4592 = vmax.f32 %v4571, 0.0
    %v4593 = vmax.f32 %v4572, 0.0
    %v4594 = vmax.f32 %v4573, 0.0
    %v4595 = vmax.f32 %v4574, 0.0
    %v4596 = vmax.f32 %v4575, 0.0
    %v4597 = vmax.f32 %v4576, 0.0
    %v4598 = vmax.f32 %v4577, 0.0
    %v4599 = vmax.f32 %v4578, 0.0
    %v4600 = vpack.c.bf16 %v4582, %v4579
    %v4601 = vpack.c.bf16 %v4583, %v4580
    %v4602 = vpack.c.bf16 %v4584, %v4581
    %v4603 = vpack.c.bf16 %v4588, %v4585
    %v4604 = vpack.c.bf16 %v4589, %v4586
    %v4605 = vpack.c.bf16 %v4590, %v4587
    %v4606 = vpack.c.bf16 %v4594, %v4591
    %v4607 = vpack.c.bf16 %v4595, %v4592
    %v4608 = vpack.c.bf16 %v4596, %v4593
    %v4609 = vpack.c.bf16 %v4597, %v4597
    %v4610 = vpack.c.bf16 %v4598, %v4598
    %v4611 = vpack.c.bf16 %v4599, %v4599
    %v4612 = vld [vmem:[#allocation6] sm:$0xff]
    %v4613 = vld [vmem:[#allocation6 + $0x8] sm:$0xff]
    %v4614 = vld [vmem:[#allocation6 + $0x10] sm:$0xff]
    %v4615 = vld [vmem:[#allocation6 + $0x18] sm:$0xff]
    %v4616 = vld [vmem:[#allocation6 + $0x20] sm:$0xff]
    %v4617 = vld [vmem:[#allocation6 + $0x28] sm:$0xff]
    %v4618 = vld [vmem:[#allocation6 + $0x30] sm:$0xff]
    %v4619 = vld [vmem:[#allocation6 + $0x38] sm:$0xff]
    %v4620 = vld [vmem:[#allocation6 + $0x40] sm:$0xff]
    %v4621 = vld [vmem:[#allocation6 + $0x48] sm:$0xff]
    %v4622 = vld [vmem:[#allocation6 + $0x50] sm:$0xff]
    %v4623 = vld [vmem:[#allocation6 + $0x58] sm:$0xff]
    %v4624 = vld [vmem:[#allocation6 + $0x60] sm:$0xff]
    %v4625 = vld [vmem:[#allocation6 + $0x68] sm:$0xff]
    %v4626 = vld [vmem:[#allocation6 + $0x70] sm:$0xff]
    %v4627 = vld [vmem:[#allocation6 + $0x78] sm:$0xff]
    %v4628 = vld [vmem:[#allocation6 + $0x80] sm:$0xff]
    %v4629 = vld [vmem:[#allocation6 + $0x88] sm:$0xff]
    %v4630 = vld [vmem:[#allocation6 + $0x90] sm:$0xff]
    %v4631 = vld [vmem:[#allocation6 + $0x98] sm:$0xff]
    %v4632 = vld [vmem:[#allocation6 + $0xa0] sm:$0xff]
    %v4633 = vld [vmem:[#allocation6 + $0xa8] sm:$0xff]
    %v4634 = vld [vmem:[#allocation6 + $0xb0] sm:$0xff]
    %v4635 = vld [vmem:[#allocation6 + $0xb8] sm:$0xff]
    %v4636 = vld [vmem:[#allocation6 + $0xc0] sm:$0xff]
    %v4637 = vld [vmem:[#allocation6 + $0xc8] sm:$0xff]
    %v4638 = vld [vmem:[#allocation6 + $0xd0] sm:$0xff]
    %v4639 = vld [vmem:[#allocation6 + $0xd8] sm:$0xff]
    %v4640 = vld [vmem:[#allocation6 + $0xe0] sm:$0xff]
    %v4641 = vld [vmem:[#allocation6 + $0xe8] sm:$0xff]
    %v4642 = vld [vmem:[#allocation6 + $0xf0] sm:$0xff]
    %v4643 = vld [vmem:[#allocation6 + $0xf8] sm:$0xff]
    %v4644 = vld [vmem:[#allocation6 + $0x100] sm:$0xff]
    %v4645 = vld [vmem:[#allocation6 + $0x108] sm:$0xff]
    %v4646 = vld [vmem:[#allocation6 + $0x110] sm:$0xff]
    %v4647 = vld [vmem:[#allocation6 + $0x118] sm:$0xff]
    %v4648 = vld [vmem:[#allocation6 + $0x120] sm:$0xff]
    %v4649 = vld [vmem:[#allocation6 + $0x128] sm:$0xff]
    %v4650 = vld [vmem:[#allocation6 + $0x130] sm:$0xff]
    %v4651 = vld [vmem:[#allocation6 + $0x138] sm:$0xff]
    %v4652 = vld [vmem:[#allocation6 + $0x140] sm:$0xff]
    %v4653 = vld [vmem:[#allocation6 + $0x148] sm:$0xff]
    %v4654 = vld [vmem:[#allocation6 + $0x150] sm:$0xff]
    %v4655 = vld [vmem:[#allocation6 + $0x158] sm:$0xff]
    %v4656 = vld [vmem:[#allocation6 + $0x160] sm:$0xff]
    %v4657 = vld [vmem:[#allocation6 + $0x168] sm:$0xff]
    %v4658 = vld [vmem:[#allocation6 + $0x170] sm:$0xff]
    %v4659 = vld [vmem:[#allocation6 + $0x178] sm:$0xff]
    %v4660 = vld [vmem:[#allocation6 + $0x180] sm:$0xff]
    %v4661 = vld [vmem:[#allocation6 + $0x188] sm:$0xff]
    %v4662 = vld [vmem:[#allocation6 + $0x190] sm:$0xff]
    %v4663 = vld [vmem:[#allocation6 + $0x198] sm:$0xff]
    %v4664 = vld [vmem:[#allocation6 + $0x1a0] sm:$0xff]
    %v4665 = vld [vmem:[#allocation6 + $0x1a8] sm:$0xff]
    %v4666 = vld [vmem:[#allocation6 + $0x1b0] sm:$0xff]
    %v4667 = vld [vmem:[#allocation6 + $0x1b8] sm:$0xff]
    %v4668 = vld [vmem:[#allocation6 + $0x1c0] sm:$0xff]
    %v4669 = vld [vmem:[#allocation6 + $0x1c8] sm:$0xff]
    %v4670 = vld [vmem:[#allocation6 + $0x1d0] sm:$0xff]
    %v4671 = vld [vmem:[#allocation6 + $0x1d8] sm:$0xff]
    %v4672 = vld [vmem:[#allocation6 + $0x1e0] sm:$0xff]
    %v4673 = vld [vmem:[#allocation6 + $0x1e8] sm:$0xff]
    %v4674 = vld [vmem:[#allocation6 + $0x1f0] sm:$0xff]
    %v4675 = vld [vmem:[#allocation6 + $0x1f8] sm:$0xff]
    %v4676 = vld [vmem:[#allocation6 + $0x200] sm:$0xff]
    %v4677 = vld [vmem:[#allocation6 + $0x208] sm:$0xff]
    %v4678 = vld [vmem:[#allocation6 + $0x210] sm:$0xff]
    %v4679 = vld [vmem:[#allocation6 + $0x218] sm:$0xff]
    %v4680 = vld [vmem:[#allocation6 + $0x220] sm:$0xff]
    %v4681 = vld [vmem:[#allocation6 + $0x228] sm:$0xff]
    %v4682 = vld [vmem:[#allocation6 + $0x230] sm:$0xff]
    %v4683 = vld [vmem:[#allocation6 + $0x238] sm:$0xff]
    %v4684 = vld [vmem:[#allocation6 + $0x240] sm:$0xff]
    %v4685 = vld [vmem:[#allocation6 + $0x248] sm:$0xff]
    %v4686 = vld [vmem:[#allocation6 + $0x250] sm:$0xff]
    %v4687 = vld [vmem:[#allocation6 + $0x258] sm:$0xff]
    %v4688 = vld [vmem:[#allocation6 + $0x260] sm:$0xff]
    %v4689 = vld [vmem:[#allocation6 + $0x268] sm:$0xff]
    %v4690 = vld [vmem:[#allocation6 + $0x270] sm:$0xff]
    %v4691 = vld [vmem:[#allocation6 + $0x278] sm:$0xff]
    %v4692 = vld [vmem:[#allocation6 + $0x280] sm:$0xff]
    %v4693 = vld [vmem:[#allocation6 + $0x288] sm:$0xff]
    %v4694 = vld [vmem:[#allocation6 + $0x290] sm:$0xff]
    %v4695 = vld [vmem:[#allocation6 + $0x298] sm:$0xff]
    %v4696 = vld [vmem:[#allocation6 + $0x2a0] sm:$0xff]
    %v4697 = vld [vmem:[#allocation6 + $0x2a8] sm:$0xff]
    %v4698 = vld [vmem:[#allocation6 + $0x2b0] sm:$0xff]
    %v4699 = vld [vmem:[#allocation6 + $0x2b8] sm:$0xff]
    %v4700 = vld [vmem:[#allocation6 + $0x2c0] sm:$0xff]
    %v4701 = vld [vmem:[#allocation6 + $0x2c8] sm:$0xff]
    %v4702 = vld [vmem:[#allocation6 + $0x2d0] sm:$0xff]
    %v4703 = vld [vmem:[#allocation6 + $0x2d8] sm:$0xff]
    %v4704 = vld [vmem:[#allocation6 + $0x2e0] sm:$0xff]
    %v4705 = vld [vmem:[#allocation6 + $0x2e8] sm:$0xff]
    %v4706 = vld [vmem:[#allocation6 + $0x2f0] sm:$0xff]
    %v4707 = vld [vmem:[#allocation6 + $0x2f8] sm:$0xff]
    %s4708 = scalar_lea.vmem [#allocation6], 768
    %v4709 = vld [vmem:[%s4708] sm:$0xff]
    %v4710 = vld [vmem:[%s4708 + $0x8] sm:$0xff]
    %v4711 = vld [vmem:[%s4708 + $0x10] sm:$0xff]
    %v4712 = vld [vmem:[%s4708 + $0x18] sm:$0xff]
    %v4713 = vld [vmem:[%s4708 + $0x20] sm:$0xff]
    %v4714 = vld [vmem:[%s4708 + $0x28] sm:$0xff]
    %v4715 = vld [vmem:[%s4708 + $0x30] sm:$0xff]
    %v4716 = vld [vmem:[%s4708 + $0x38] sm:$0xff]
    %v4717 = vld [vmem:[%s4708 + $0x40] sm:$0xff]
    %v4718 = vld [vmem:[%s4708 + $0x48] sm:$0xff]
    %v4719 = vld [vmem:[%s4708 + $0x50] sm:$0xff]
    %v4720 = vld [vmem:[%s4708 + $0x58] sm:$0xff]
    %v4721 = vld [vmem:[%s4708 + $0x60] sm:$0xff]
    %v4722 = vld [vmem:[%s4708 + $0x68] sm:$0xff]
    %v4723 = vld [vmem:[%s4708 + $0x70] sm:$0xff]
    %v4724 = vld [vmem:[%s4708 + $0x78] sm:$0xff]
    %v4725 = vld [vmem:[%s4708 + $0x80] sm:$0xff]
    %v4726 = vld [vmem:[%s4708 + $0x88] sm:$0xff]
    %v4727 = vld [vmem:[%s4708 + $0x90] sm:$0xff]
    %v4728 = vld [vmem:[%s4708 + $0x98] sm:$0xff]
    %v4729 = vld [vmem:[%s4708 + $0xa0] sm:$0xff]
    %v4730 = vld [vmem:[%s4708 + $0xa8] sm:$0xff]
    %v4731 = vld [vmem:[%s4708 + $0xb0] sm:$0xff]
    %v4732 = vld [vmem:[%s4708 + $0xb8] sm:$0xff]
    %v4733 = vld [vmem:[%s4708 + $0xc0] sm:$0xff]
    %v4734 = vld [vmem:[%s4708 + $0xc8] sm:$0xff]
    %v4735 = vld [vmem:[%s4708 + $0xd0] sm:$0xff]
    %v4736 = vld [vmem:[%s4708 + $0xd8] sm:$0xff]
    %v4737 = vld [vmem:[%s4708 + $0xe0] sm:$0xff]
    %v4738 = vld [vmem:[%s4708 + $0xe8] sm:$0xff]
    %v4739 = vld [vmem:[%s4708 + $0xf0] sm:$0xff]
    %v4740 = vld [vmem:[%s4708 + $0xf8] sm:$0xff]
    %v4741 = vld [vmem:[%s4708 + $0x100] sm:$0xff]
    %v4742 = vld [vmem:[%s4708 + $0x108] sm:$0xff]
    %v4743 = vld [vmem:[%s4708 + $0x110] sm:$0xff]
    %v4744 = vld [vmem:[%s4708 + $0x118] sm:$0xff]
    %v4745 = vld [vmem:[%s4708 + $0x120] sm:$0xff]
    %v4746 = vld [vmem:[%s4708 + $0x128] sm:$0xff]
    %v4747 = vld [vmem:[%s4708 + $0x130] sm:$0xff]
    %v4748 = vld [vmem:[%s4708 + $0x138] sm:$0xff]
    %v4749 = vld [vmem:[%s4708 + $0x140] sm:$0xff]
    %v4750 = vld [vmem:[%s4708 + $0x148] sm:$0xff]
    %v4751 = vld [vmem:[%s4708 + $0x150] sm:$0xff]
    %v4752 = vld [vmem:[%s4708 + $0x158] sm:$0xff]
    %v4753 = vld [vmem:[%s4708 + $0x160] sm:$0xff]
    %v4754 = vld [vmem:[%s4708 + $0x168] sm:$0xff]
    %v4755 = vld [vmem:[%s4708 + $0x170] sm:$0xff]
    %v4756 = vld [vmem:[%s4708 + $0x178] sm:$0xff]
    %v4757 = vld [vmem:[%s4708 + $0x180] sm:$0xff]
    %v4758 = vld [vmem:[%s4708 + $0x188] sm:$0xff]
    %v4759 = vld [vmem:[%s4708 + $0x190] sm:$0xff]
    %v4760 = vld [vmem:[%s4708 + $0x198] sm:$0xff]
    %v4761 = vld [vmem:[%s4708 + $0x1a0] sm:$0xff]
    %v4762 = vld [vmem:[%s4708 + $0x1a8] sm:$0xff]
    %v4763 = vld [vmem:[%s4708 + $0x1b0] sm:$0xff]
    %v4764 = vld [vmem:[%s4708 + $0x1b8] sm:$0xff]
    %v4765 = vld [vmem:[%s4708 + $0x1c0] sm:$0xff]
    %v4766 = vld [vmem:[%s4708 + $0x1c8] sm:$0xff]
    %v4767 = vld [vmem:[%s4708 + $0x1d0] sm:$0xff]
    %v4768 = vld [vmem:[%s4708 + $0x1d8] sm:$0xff]
    %v4769 = vld [vmem:[%s4708 + $0x1e0] sm:$0xff]
    %v4770 = vld [vmem:[%s4708 + $0x1e8] sm:$0xff]
    %v4771 = vld [vmem:[%s4708 + $0x1f0] sm:$0xff]
    %v4772 = vld [vmem:[%s4708 + $0x1f8] sm:$0xff]
    %v4773 = vld [vmem:[%s4708 + $0x200] sm:$0xff]
    %v4774 = vld [vmem:[%s4708 + $0x208] sm:$0xff]
    %v4775 = vld [vmem:[%s4708 + $0x210] sm:$0xff]
    %v4776 = vld [vmem:[%s4708 + $0x218] sm:$0xff]
    %v4777 = vld [vmem:[%s4708 + $0x220] sm:$0xff]
    %v4778 = vld [vmem:[%s4708 + $0x228] sm:$0xff]
    %v4779 = vld [vmem:[%s4708 + $0x230] sm:$0xff]
    %v4780 = vld [vmem:[%s4708 + $0x238] sm:$0xff]
    %v4781 = vld [vmem:[%s4708 + $0x240] sm:$0xff]
    %v4782 = vld [vmem:[%s4708 + $0x248] sm:$0xff]
    %v4783 = vld [vmem:[%s4708 + $0x250] sm:$0xff]
    %v4784 = vld [vmem:[%s4708 + $0x258] sm:$0xff]
    %v4785 = vld [vmem:[%s4708 + $0x260] sm:$0xff]
    %v4786 = vld [vmem:[%s4708 + $0x268] sm:$0xff]
    %v4787 = vld [vmem:[%s4708 + $0x270] sm:$0xff]
    %v4788 = vld [vmem:[%s4708 + $0x278] sm:$0xff]
    %v4789 = vld [vmem:[%s4708 + $0x280] sm:$0xff]
    %v4790 = vld [vmem:[%s4708 + $0x288] sm:$0xff]
    %v4791 = vld [vmem:[%s4708 + $0x290] sm:$0xff]
    %v4792 = vld [vmem:[%s4708 + $0x298] sm:$0xff]
    %v4793 = vld [vmem:[%s4708 + $0x2a0] sm:$0xff]
    %v4794 = vld [vmem:[%s4708 + $0x2a8] sm:$0xff]
    %v4795 = vld [vmem:[%s4708 + $0x2b0] sm:$0xff]
    %v4796 = vld [vmem:[%s4708 + $0x2b8] sm:$0xff]
    %v4797 = vld [vmem:[%s4708 + $0x2c0] sm:$0xff]
    %v4798 = vld [vmem:[%s4708 + $0x2c8] sm:$0xff]
    %v4799 = vld [vmem:[%s4708 + $0x2d0] sm:$0xff]
    %v4800 = vld [vmem:[%s4708 + $0x2d8] sm:$0xff]
    %v4801 = vld [vmem:[%s4708 + $0x2e0] sm:$0xff]
    %v4802 = vld [vmem:[%s4708 + $0x2e8] sm:$0xff]
    %v4803 = vld [vmem:[%s4708 + $0x2f0] sm:$0xff]
    %v4804 = vld [vmem:[%s4708 + $0x2f8] sm:$0xff]
    %v4901 = vunpack.c.l.b16 %v4709
    %v4902 = vunpack.c.h.b16 %v4709
    %v4903 = vunpack.c.l.b16 %v4710
    %v4904 = vunpack.c.h.b16 %v4710
    %v4905 = vunpack.c.l.b16 %v4711
    %v4906 = vunpack.c.h.b16 %v4711
    %v4907 = vunpack.c.l.b16 %v4712
    %v4908 = vunpack.c.h.b16 %v4712
    %v4909 = vunpack.c.l.b16 %v4713
    %v4910 = vunpack.c.h.b16 %v4713
    %v4911 = vunpack.c.l.b16 %v4714
    %v4912 = vunpack.c.h.b16 %v4714
    %v4913 = vunpack.c.l.b16 %v4715
    %v4914 = vunpack.c.h.b16 %v4715
    %v4915 = vunpack.c.l.b16 %v4716
    %v4916 = vunpack.c.h.b16 %v4716
    %v4917 = vunpack.c.l.b16 %v4717
    %v4918 = vunpack.c.h.b16 %v4717
    %v4919 = vunpack.c.l.b16 %v4718
    %v4920 = vunpack.c.h.b16 %v4718
    %v4921 = vunpack.c.l.b16 %v4719
    %v4922 = vunpack.c.h.b16 %v4719
    %v4923 = vunpack.c.l.b16 %v4720
    %v4924 = vunpack.c.h.b16 %v4720
    %v4925 = vunpack.c.l.b16 %v4721
    %v4926 = vunpack.c.h.b16 %v4721
    %v4927 = vunpack.c.l.b16 %v4722
    %v4928 = vunpack.c.h.b16 %v4722
    %v4929 = vunpack.c.l.b16 %v4723
    %v4930 = vunpack.c.h.b16 %v4723
    %v4931 = vunpack.c.l.b16 %v4724
    %v4932 = vunpack.c.h.b16 %v4724
    %v4933 = vunpack.c.l.b16 %v4725
    %v4934 = vunpack.c.h.b16 %v4725
    %v4935 = vunpack.c.l.b16 %v4726
    %v4936 = vunpack.c.h.b16 %v4726
    %v4937 = vunpack.c.l.b16 %v4727
    %v4938 = vunpack.c.h.b16 %v4727
    %v4939 = vunpack.c.l.b16 %v4728
    %v4940 = vunpack.c.h.b16 %v4728
    %v4941 = vunpack.c.l.b16 %v4729
    %v4942 = vunpack.c.h.b16 %v4729
    %v4943 = vunpack.c.l.b16 %v4730
    %v4944 = vunpack.c.h.b16 %v4730
    %v4945 = vunpack.c.l.b16 %v4731
    %v4946 = vunpack.c.h.b16 %v4731
    %v4947 = vunpack.c.l.b16 %v4732
    %v4948 = vunpack.c.h.b16 %v4732
    %v4949 = vunpack.c.l.b16 %v4733
    %v4950 = vunpack.c.h.b16 %v4733
    %v4951 = vunpack.c.l.b16 %v4734
    %v4952 = vunpack.c.h.b16 %v4734
    %v4953 = vunpack.c.l.b16 %v4735
    %v4954 = vunpack.c.h.b16 %v4735
    %v4955 = vunpack.c.l.b16 %v4736
    %v4956 = vunpack.c.h.b16 %v4736
    %v4957 = vunpack.c.l.b16 %v4737
    %v4958 = vunpack.c.h.b16 %v4737
    %v4959 = vunpack.c.l.b16 %v4738
    %v4960 = vunpack.c.h.b16 %v4738
    %v4961 = vunpack.c.l.b16 %v4739
    %v4962 = vunpack.c.h.b16 %v4739
    %v4963 = vunpack.c.l.b16 %v4740
    %v4964 = vunpack.c.h.b16 %v4740
    %v4965 = vunpack.c.l.b16 %v4741
    %v4966 = vunpack.c.h.b16 %v4741
    %v4967 = vunpack.c.l.b16 %v4742
    %v4968 = vunpack.c.h.b16 %v4742
    %v4969 = vunpack.c.l.b16 %v4743
    %v4970 = vunpack.c.h.b16 %v4743
    %v4971 = vunpack.c.l.b16 %v4744
    %v4972 = vunpack.c.h.b16 %v4744
    %v4973 = vunpack.c.l.b16 %v4745
    %v4974 = vunpack.c.h.b16 %v4745
    %v4975 = vunpack.c.l.b16 %v4746
    %v4976 = vunpack.c.h.b16 %v4746
    %v4977 = vunpack.c.l.b16 %v4747
    %v4978 = vunpack.c.h.b16 %v4747
    %v4979 = vunpack.c.l.b16 %v4748
    %v4980 = vunpack.c.h.b16 %v4748
    %v4981 = vunpack.c.l.b16 %v4749
    %v4982 = vunpack.c.h.b16 %v4749
    %v4983 = vunpack.c.l.b16 %v4750
    %v4984 = vunpack.c.h.b16 %v4750
    %v4985 = vunpack.c.l.b16 %v4751
    %v4986 = vunpack.c.h.b16 %v4751
    %v4987 = vunpack.c.l.b16 %v4752
    %v4988 = vunpack.c.h.b16 %v4752
    %v4989 = vunpack.c.l.b16 %v4753
    %v4990 = vunpack.c.h.b16 %v4753
    %v4991 = vunpack.c.l.b16 %v4754
    %v4992 = vunpack.c.h.b16 %v4754
    %v4993 = vunpack.c.l.b16 %v4755
    %v4994 = vunpack.c.h.b16 %v4755
    %v4995 = vunpack.c.l.b16 %v4756
    %v4996 = vunpack.c.h.b16 %v4756
    %v4997 = vunpack.c.l.b16 %v4757
    %v4998 = vunpack.c.h.b16 %v4757
    %v4999 = vunpack.c.l.b16 %v4758
    %v5000 = vunpack.c.h.b16 %v4758
    %v5001 = vunpack.c.l.b16 %v4759
    %v5002 = vunpack.c.h.b16 %v4759
    %v5003 = vunpack.c.l.b16 %v4760
    %v5004 = vunpack.c.h.b16 %v4760
    %v5005 = vunpack.c.l.b16 %v4761
    %v5006 = vunpack.c.h.b16 %v4761
    %v5007 = vunpack.c.l.b16 %v4762
    %v5008 = vunpack.c.h.b16 %v4762
    %v5009 = vunpack.c.l.b16 %v4763
    %v5010 = vunpack.c.h.b16 %v4763
    %v5011 = vunpack.c.l.b16 %v4764
    %v5012 = vunpack.c.h.b16 %v4764
    %v5013 = vunpack.c.l.b16 %v4765
    %v5014 = vunpack.c.h.b16 %v4765
    %v5015 = vunpack.c.l.b16 %v4766
    %v5016 = vunpack.c.h.b16 %v4766
    %v5017 = vunpack.c.l.b16 %v4767
    %v5018 = vunpack.c.h.b16 %v4767
    %v5019 = vunpack.c.l.b16 %v4768
    %v5020 = vunpack.c.h.b16 %v4768
    %v5021 = vunpack.c.l.b16 %v4769
    %v5022 = vunpack.c.h.b16 %v4769
    %v5023 = vunpack.c.l.b16 %v4770
    %v5024 = vunpack.c.h.b16 %v4770
    %v5025 = vunpack.c.l.b16 %v4771
    %v5026 = vunpack.c.h.b16 %v4771
    %v5027 = vunpack.c.l.b16 %v4772
    %v5028 = vunpack.c.h.b16 %v4772
    %v5029 = vunpack.c.l.b16 %v4773
    %v5030 = vunpack.c.h.b16 %v4773
    %v5031 = vunpack.c.l.b16 %v4774
    %v5032 = vunpack.c.h.b16 %v4774
    %v5033 = vunpack.c.l.b16 %v4775
    %v5034 = vunpack.c.h.b16 %v4775
    %v5035 = vunpack.c.l.b16 %v4776
    %v5036 = vunpack.c.h.b16 %v4776
    %v5037 = vunpack.c.l.b16 %v4777
    %v5038 = vunpack.c.h.b16 %v4777
    %v5039 = vunpack.c.l.b16 %v4778
    %v5040 = vunpack.c.h.b16 %v4778
    %v5041 = vunpack.c.l.b16 %v4779
    %v5042 = vunpack.c.h.b16 %v4779
    %v5043 = vunpack.c.l.b16 %v4780
    %v5044 = vunpack.c.h.b16 %v4780
    %v5045 = vunpack.c.l.b16 %v4781
    %v5046 = vunpack.c.h.b16 %v4781
    %v5047 = vunpack.c.l.b16 %v4782
    %v5048 = vunpack.c.h.b16 %v4782
    %v5049 = vunpack.c.l.b16 %v4783
    %v5050 = vunpack.c.h.b16 %v4783
    %v5051 = vunpack.c.l.b16 %v4784
    %v5052 = vunpack.c.h.b16 %v4784
    %v5053 = vunpack.c.l.b16 %v4785
    %v5054 = vunpack.c.h.b16 %v4785
    %v5055 = vunpack.c.l.b16 %v4786
    %v5056 = vunpack.c.h.b16 %v4786
    %v5057 = vunpack.c.l.b16 %v4787
    %v5058 = vunpack.c.h.b16 %v4787
    %v5059 = vunpack.c.l.b16 %v4788
    %v5060 = vunpack.c.h.b16 %v4788
    %v5061 = vunpack.c.l.b16 %v4789
    %v5062 = vunpack.c.h.b16 %v4789
    %v5063 = vunpack.c.l.b16 %v4790
    %v5064 = vunpack.c.h.b16 %v4790
    %v5065 = vunpack.c.l.b16 %v4791
    %v5066 = vunpack.c.h.b16 %v4791
    %v5067 = vunpack.c.l.b16 %v4792
    %v5068 = vunpack.c.h.b16 %v4792
    %v5069 = vunpack.c.l.b16 %v4793
    %v5070 = vunpack.c.h.b16 %v4793
    %v5071 = vunpack.c.l.b16 %v4794
    %v5072 = vunpack.c.h.b16 %v4794
    %v5073 = vunpack.c.l.b16 %v4795
    %v5074 = vunpack.c.h.b16 %v4795
    %v5075 = vunpack.c.l.b16 %v4796
    %v5076 = vunpack.c.h.b16 %v4796
    %v5077 = vunpack.c.l.b16 %v4797
    %v5078 = vunpack.c.h.b16 %v4797
    %v5079 = vunpack.c.l.b16 %v4798
    %v5080 = vunpack.c.h.b16 %v4798
    %v5081 = vunpack.c.l.b16 %v4799
    %v5082 = vunpack.c.h.b16 %v4799
    %v5083 = vunpack.c.l.b16 %v4800
    %v5084 = vunpack.c.h.b16 %v4800
    %v5085 = vunpack.c.l.b16 %v4801
    %v5086 = vunpack.c.h.b16 %v4801
    %v5087 = vunpack.c.l.b16 %v4802
    %v5088 = vunpack.c.h.b16 %v4802
    %v5089 = vunpack.c.l.b16 %v4803
    %v5090 = vunpack.c.h.b16 %v4803
    %v5091 = vunpack.c.l.b16 %v4804
    %v5092 = vunpack.c.h.b16 %v4804
    %v5093 = vpack.c.b16 %v4905, %v4901
    %v5094 = vpack.c.b16 %v4906, %v4902
    %v5095 = vpack.c.b16 %v4907, %v4903
    %v5096 = vpack.c.b16 %v4908, %v4904
    %v5097 = vpack.c.b16 %v4913, %v4909
    %v5098 = vpack.c.b16 %v4914, %v4910
    %v5099 = vpack.c.b16 %v4915, %v4911
    %v5100 = vpack.c.b16 %v4916, %v4912
    %v5101 = vpack.c.b16 %v4921, %v4917
    %v5102 = vpack.c.b16 %v4922, %v4918
    %v5103 = vpack.c.b16 %v4923, %v4919
    %v5104 = vpack.c.b16 %v4924, %v4920
    %v5105 = vpack.c.b16 %v4929, %v4925
    %v5106 = vpack.c.b16 %v4930, %v4926
    %v5107 = vpack.c.b16 %v4931, %v4927
    %v5108 = vpack.c.b16 %v4932, %v4928
    %v5109 = vpack.c.b16 %v4937, %v4933
    %v5110 = vpack.c.b16 %v4938, %v4934
    %v5111 = vpack.c.b16 %v4939, %v4935
    %v5112 = vpack.c.b16 %v4940, %v4936
    %v5113 = vpack.c.b16 %v4945, %v4941
    %v5114 = vpack.c.b16 %v4946, %v4942
    %v5115 = vpack.c.b16 %v4947, %v4943
    %v5116 = vpack.c.b16 %v4948, %v4944
    %v5117 = vpack.c.b16 %v4953, %v4949
    %v5118 = vpack.c.b16 %v4954, %v4950
    %v5119 = vpack.c.b16 %v4955, %v4951
    %v5120 = vpack.c.b16 %v4956, %v4952
    %v5121 = vpack.c.b16 %v4961, %v4957
    %v5122 = vpack.c.b16 %v4962, %v4958
    %v5123 = vpack.c.b16 %v4963, %v4959
    %v5124 = vpack.c.b16 %v4964, %v4960
    %v5125 = vpack.c.b16 %v4969, %v4965
    %v5126 = vpack.c.b16 %v4970, %v4966
    %v5127 = vpack.c.b16 %v4971, %v4967
    %v5128 = vpack.c.b16 %v4972, %v4968
    %v5129 = vpack.c.b16 %v4977, %v4973
    %v5130 = vpack.c.b16 %v4978, %v4974
    %v5131 = vpack.c.b16 %v4979, %v4975
    %v5132 = vpack.c.b16 %v4980, %v4976
    %v5133 = vpack.c.b16 %v4985, %v4981
    %v5134 = vpack.c.b16 %v4986, %v4982
    %v5135 = vpack.c.b16 %v4987, %v4983
    %v5136 = vpack.c.b16 %v4988, %v4984
    %v5137 = vpack.c.b16 %v4993, %v4989
    %v5138 = vpack.c.b16 %v4994, %v4990
    %v5139 = vpack.c.b16 %v4995, %v4991
    %v5140 = vpack.c.b16 %v4996, %v4992
    %v5141 = vpack.c.b16 %v5001, %v4997
    %v5142 = vpack.c.b16 %v5002, %v4998
    %v5143 = vpack.c.b16 %v5003, %v4999
    %v5144 = vpack.c.b16 %v5004, %v5000
    %v5145 = vpack.c.b16 %v5009, %v5005
    %v5146 = vpack.c.b16 %v5010, %v5006
    %v5147 = vpack.c.b16 %v5011, %v5007
    %v5148 = vpack.c.b16 %v5012, %v5008
    %v5149 = vpack.c.b16 %v5017, %v5013
    %v5150 = vpack.c.b16 %v5018, %v5014
    %v5151 = vpack.c.b16 %v5019, %v5015
    %v5152 = vpack.c.b16 %v5020, %v5016
    %v5153 = vpack.c.b16 %v5025, %v5021
    %v5154 = vpack.c.b16 %v5026, %v5022
    %v5155 = vpack.c.b16 %v5027, %v5023
    %v5156 = vpack.c.b16 %v5028, %v5024
    %v5157 = vpack.c.b16 %v5033, %v5029
    %v5158 = vpack.c.b16 %v5034, %v5030
    %v5159 = vpack.c.b16 %v5035, %v5031
    %v5160 = vpack.c.b16 %v5036, %v5032
    %v5161 = vpack.c.b16 %v5041, %v5037
    %v5162 = vpack.c.b16 %v5042, %v5038
    %v5163 = vpack.c.b16 %v5043, %v5039
    %v5164 = vpack.c.b16 %v5044, %v5040
    %v5165 = vpack.c.b16 %v5049, %v5045
    %v5166 = vpack.c.b16 %v5050, %v5046
    %v5167 = vpack.c.b16 %v5051, %v5047
    %v5168 = vpack.c.b16 %v5052, %v5048
    %v5169 = vpack.c.b16 %v5057, %v5053
    %v5170 = vpack.c.b16 %v5058, %v5054
    %v5171 = vpack.c.b16 %v5059, %v5055
    %v5172 = vpack.c.b16 %v5060, %v5056
    %v5173 = vpack.c.b16 %v5065, %v5061
    %v5174 = vpack.c.b16 %v5066, %v5062
    %v5175 = vpack.c.b16 %v5067, %v5063
    %v5176 = vpack.c.b16 %v5068, %v5064
    %v5177 = vpack.c.b16 %v5073, %v5069
    %v5178 = vpack.c.b16 %v5074, %v5070
    %v5179 = vpack.c.b16 %v5075, %v5071
    %v5180 = vpack.c.b16 %v5076, %v5072
    %v5181 = vpack.c.b16 %v5081, %v5077
    %v5182 = vpack.c.b16 %v5082, %v5078
    %v5183 = vpack.c.b16 %v5083, %v5079
    %v5184 = vpack.c.b16 %v5084, %v5080
    %v5185 = vpack.c.b16 %v5089, %v5085
    %v5186 = vpack.c.b16 %v5090, %v5086
    %v5187 = vpack.c.b16 %v5091, %v5087
    %v5188 = vpack.c.b16 %v5092, %v5088
    %5285 = vmatprep.subr.bf16.mxu0 %v5094
    %5286 = vmatpush1.bf16.msra.mxu0 %v5093
    %5287 = vmatprep.subr.bf16.mxu0 %v5098
    %5288 = vmatpush1.bf16.msra.mxu0 %v5097
    %5289 = vmatprep.subr.bf16.mxu0 %v5102
    %5290 = vmatpush1.bf16.msra.mxu0 %v5101
    %5291 = vmatprep.subr.bf16.mxu0 %v5106
    %5292 = vmatpush1.bf16.msra.mxu0 %v5105
    %5293 = vmatprep.subr.bf16.mxu0 %v5110
    %5294 = vmatpush1.bf16.msra.mxu0 %v5109
    %5295 = vmatprep.subr.bf16.mxu0 %v5114
    %5296 = vmatpush1.bf16.msra.mxu0 %v5113
    %5297 = vmatprep.subr.bf16.mxu0 %v5118
    %5298 = vmatpush1.bf16.msra.mxu0 %v5117
    %5299 = vmatprep.subr.bf16.mxu0 %v5122
    %5300 = vmatpush1.bf16.msra.mxu0 %v5121
    %5301 = vmatprep.subr.bf16.mxu0 %v5126
    %5302 = vmatpush1.bf16.msra.mxu0 %v5125
    %5303 = vmatprep.subr.bf16.mxu0 %v5130
    %5304 = vmatpush1.bf16.msra.mxu0 %v5129
    %5305 = vmatprep.subr.bf16.mxu0 %v5134
    %5306 = vmatpush1.bf16.msra.mxu0 %v5133
    %5307 = vmatprep.subr.bf16.mxu0 %v5138
    %5308 = vmatpush1.bf16.msra.mxu0 %v5137
    %5309 = vmatprep.subr.bf16.mxu0 %v5142
    %5310 = vmatpush1.bf16.msra.mxu0 %v5141
    %5311 = vmatprep.subr.bf16.mxu0 %v5146
    %5312 = vmatpush1.bf16.msra.mxu0 %v5145
    %5313 = vmatprep.subr.bf16.mxu0 %v5150
    %5314 = vmatpush1.bf16.msra.mxu0 %v5149
    %5315 = vmatprep.subr.bf16.mxu0 %v5154
    %5316 = vmatpush1.bf16.msra.mxu0 %v5153
    %5317 = vmatprep.mubr.bf16.mxu0 %v4601
    %5318 = vmatmul.mubr.bf16.gmra.mrb[0].mxu0 %v4600
    %v5319 = vpop.f32.mrb[0].mxu0
    %v5320 = vadd.f32 0.0, %v5319
    %v5321 = vpop.f32.mrb[0].mxu0
    %v5322 = vadd.f32 0.0, %v5321
    %v5323 = vpop.f32.mrb[0].mxu0
    %v5324 = vadd.f32 0.0, %v5323
    %v5325 = vpop.f32.mrb[0].mxu0
    %v5326 = vadd.f32 0.0, %v5325
    %5327 = vmatprep.mubr.bf16.mxu0 %v4604
    %5328 = vmatmul.mubr.bf16.gmra.mrb[0].mxu0 %v4603
    %v5329 = vpop.f32.mrb[0].mxu0
    %v5330 = vadd.f32 0.0, %v5329
    %v5331 = vpop.f32.mrb[0].mxu0
    %v5332 = vadd.f32 0.0, %v5331
    %v5333 = vpop.f32.mrb[0].mxu0
    %v5334 = vadd.f32 0.0, %v5333
    %v5335 = vpop.f32.mrb[0].mxu0
    %v5336 = vadd.f32 0.0, %v5335
    %5337 = vmatprep.mubr.bf16.mxu0 %v4607
    %5338 = vmatmul.mubr.bf16.gmra.mrb[0].mxu0 %v4606
    %v5339 = vpop.f32.mrb[0].mxu0
    %v5340 = vadd.f32 0.0, %v5339
    %v5341 = vpop.f32.mrb[0].mxu0
    %v5342 = vadd.f32 0.0, %v5341
    %v5343 = vpop.f32.mrb[0].mxu0
    %v5344 = vadd.f32 0.0, %v5343
    %v5345 = vpop.f32.mrb[0].mxu0
    %v5346 = vadd.f32 0.0, %v5345
    %5347 = vdwg.mxu0
    %5348 = vmatprep.subr.bf16.mxu0 %v5158
    %5349 = vmatpush1.bf16.msra.mxu0 %v5157
    %5350 = vmatprep.subr.bf16.mxu0 %v5162
    %5351 = vmatpush1.bf16.msra.mxu0 %v5161
    %5352 = vmatprep.subr.bf16.mxu0 %v5166
    %5353 = vmatpush1.bf16.msra.mxu0 %v5165
    %5354 = vmatprep.subr.bf16.mxu0 %v5170
    %5355 = vmatpush1.bf16.msra.mxu0 %v5169
    %5356 = vmatprep.subr.bf16.mxu0 %v5174
    %5357 = vmatpush1.bf16.msra.mxu0 %v5173
    %5358 = vmatprep.subr.bf16.mxu0 %v5178
    %5359 = vmatpush1.bf16.msra.mxu0 %v5177
    %5360 = vmatprep.subr.bf16.mxu0 %v5182
    %5361 = vmatpush1.bf16.msra.mxu0 %v5181
    %5362 = vmatprep.subr.bf16.mxu0 %v5186
    %5363 = vmatpush1.bf16.msra.mxu0 %v5185
    %5364 = vmatprep.subr.bf16.mxu0 0
    %5365 = vmatpush1.bf16.msra.mxu0 0
    %5366 = vmatprep.subr.bf16.mxu0 0
    %5367 = vmatpush1.bf16.msra.mxu0 0
    %5368 = vmatprep.subr.bf16.mxu0 0
    %5369 = vmatpush1.bf16.msra.mxu0 0
    %5370 = vmatprep.subr.bf16.mxu0 0
    %5371 = vmatpush1.bf16.msra.mxu0 0
    %5372 = vmatprep.subr.bf16.mxu0 0
    %5373 = vmatpush1.bf16.msra.mxu0 0
    %5374 = vmatprep.subr.bf16.mxu0 0
    %5375 = vmatpush1.bf16.msra.mxu0 0
    %5376 = vmatprep.subr.bf16.mxu0 0
    %5377 = vmatpush1.bf16.msra.mxu0 0
    %5378 = vmatprep.subr.bf16.mxu0 0
    %5379 = vmatpush1.bf16.msra.mxu0 0
    %5380 = vmatprep.mubr.bf16.mxu0 0
    %5381 = vmatmul.mubr.bf16.gmra.mrb[0].mxu0 %v4602
    %v5382 = vpop.f32.mrb[0].mxu0
    %v5383 = vadd.f32 %v5320, %v5382
    %v5384 = vpop.f32.mrb[0].mxu0
    %v5385 = vadd.f32 %v5322, %v5384
    %v5386 = vpop.f32.mrb[0].mxu0
    %v5387 = vadd.f32 %v5324, %v5386
    %v5388 = vpop.f32.mrb[0].mxu0
    %v5389 = vadd.f32 %v5326, %v5388
    %5390 = vmatprep.mubr.bf16.mxu0 0
    %5391 = vmatmul.mubr.bf16.gmra.mrb[0].mxu0 %v4605
    %v5392 = vpop.f32.mrb[0].mxu0
    %v5393 = vadd.f32 %v5330, %v5392
    %v5394 = vpop.f32.mrb[0].mxu0
    %v5395 = vadd.f32 %v5332, %v5394
    %v5396 = vpop.f32.mrb[0].mxu0
    %v5397 = vadd.f32 %v5334, %v5396
    %v5398 = vpop.f32.mrb[0].mxu0
    %v5399 = vadd.f32 %v5336, %v5398
    %5400 = vmatprep.mubr.bf16.mxu0 0
    %5401 = vmatmul.mubr.bf16.gmra.mrb[0].mxu0 %v4608
    %v5402 = vpop.f32.mrb[0].mxu0
    %v5403 = vadd.f32 %v5340, %v5402
    %v5404 = vpop.f32.mrb[0].mxu0
    %v5405 = vadd.f32 %v5342, %v5404
    %v5406 = vpop.f32.mrb[0].mxu0
    %v5407 = vadd.f32 %v5344, %v5406
    %v5408 = vpop.f32.mrb[0].mxu0
    %v5409 = vadd.f32 %v5346, %v5408
    %5410 = vdwg.mxu0
    %5411 = vmatprep.subr.bf16.mxu0 %v5096
    %5412 = vmatpush1.bf16.msra.mxu0 %v5095
    %5413 = vmatprep.subr.bf16.mxu0 %v5100
    %5414 = vmatpush1.bf16.msra.mxu0 %v5099
    %5415 = vmatprep.subr.bf16.mxu0 %v5104
    %5416 = vmatpush1.bf16.msra.mxu0 %v5103
    %5417 = vmatprep.subr.bf16.mxu0 %v5108
    %5418 = vmatpush1.bf16.msra.mxu0 %v5107
    %5419 = vmatprep.subr.bf16.mxu0 %v5112
    %5420 = vmatpush1.bf16.msra.mxu0 %v5111
    %5421 = vmatprep.subr.bf16.mxu0 %v5116
    %5422 = vmatpush1.bf16.msra.mxu0 %v5115
    %5423 = vmatprep.subr.bf16.mxu0 %v5120
    %5424 = vmatpush1.bf16.msra.mxu0 %v5119
    %5425 = vmatprep.subr.bf16.mxu0 %v5124
    %5426 = vmatpush1.bf16.msra.mxu0 %v5123
    %5427 = vmatprep.subr.bf16.mxu0 %v5128
    %5428 = vmatpush1.bf16.msra.mxu0 %v5127
    %5429 = vmatprep.subr.bf16.mxu0 %v5132
    %5430 = vmatpush1.bf16.msra.mxu0 %v5131
    %5431 = vmatprep.subr.bf16.mxu0 %v5136
    %5432 = vmatpush1.bf16.msra.mxu0 %v5135
    %5433 = vmatprep.subr.bf16.mxu0 %v5140
    %5434 = vmatpush1.bf16.msra.mxu0 %v5139
    %5435 = vmatprep.subr.bf16.mxu0 %v5144
    %5436 = vmatpush1.bf16.msra.mxu0 %v5143
    %5437 = vmatprep.subr.bf16.mxu0 %v5148
    %5438 = vmatpush1.bf16.msra.mxu0 %v5147
    %5439 = vmatprep.subr.bf16.mxu0 %v5152
    %5440 = vmatpush1.bf16.msra.mxu0 %v5151
    %5441 = vmatprep.subr.bf16.mxu0 %v5156
    %5442 = vmatpush1.bf16.msra.mxu0 %v5155
    %5443 = vmatprep.mubr.bf16.mxu0 %v4601
    %5444 = vmatmul.mubr.bf16.gmra.mrb[0].mxu0 %v4600
    %v5445 = vpop.f32.mrb[0].mxu0
    %v5446 = vadd.f32 0.0, %v5445
    %v5447 = vpop.f32.mrb[0].mxu0
    %v5448 = vadd.f32 0.0, %v5447
    %v5449 = vpop.f32.mrb[0].mxu0
    %v5450 = vadd.f32 0.0, %v5449
    %v5451 = vpop.f32.mrb[0].mxu0
    %v5452 = vadd.f32 0.0, %v5451
    %5453 = vmatprep.mubr.bf16.mxu0 %v4604
    %5454 = vmatmul.mubr.bf16.gmra.mrb[0].mxu0 %v4603
    %v5455 = vpop.f32.mrb[0].mxu0
    %v5456 = vadd.f32 0.0, %v5455
    %v5457 = vpop.f32.mrb[0].mxu0
    %v5458 = vadd.f32 0.0, %v5457
    %v5459 = vpop.f32.mrb[0].mxu0
    %v5460 = vadd.f32 0.0, %v5459
    %v5461 = vpop.f32.mrb[0].mxu0
    %v5462 = vadd.f32 0.0, %v5461
    %5463 = vmatprep.mubr.bf16.mxu0 %v4607
    %5464 = vmatmul.mubr.bf16.gmra.mrb[0].mxu0 %v4606
    %v5465 = vpop.f32.mrb[0].mxu0
    %v5466 = vadd.f32 0.0, %v5465
    %v5467 = vpop.f32.mrb[0].mxu0
    %v5468 = vadd.f32 0.0, %v5467
    %v5469 = vpop.f32.mrb[0].mxu0
    %v5470 = vadd.f32 0.0, %v5469
    %v5471 = vpop.f32.mrb[0].mxu0
    %v5472 = vadd.f32 0.0, %v5471
    %5473 = vdwg.mxu0
    %5474 = vmatprep.subr.bf16.mxu0 %v5160
    %5475 = vmatpush1.bf16.msra.mxu0 %v5159
    %5476 = vmatprep.subr.bf16.mxu0 %v5164
    %5477 = vmatpush1.bf16.msra.mxu0 %v5163
    %5478 = vmatprep.subr.bf16.mxu0 %v5168
    %5479 = vmatpush1.bf16.msra.mxu0 %v5167
    %5480 = vmatprep.subr.bf16.mxu0 %v5172
    %5481 = vmatpush1.bf16.msra.mxu0 %v5171
    %5482 = vmatprep.subr.bf16.mxu0 %v5176
    %5483 = vmatpush1.bf16.msra.mxu0 %v5175
    %5484 = vmatprep.subr.bf16.mxu0 %v5180
    %5485 = vmatpush1.bf16.msra.mxu0 %v5179
    %5486 = vmatprep.subr.bf16.mxu0 %v5184
    %5487 = vmatpush1.bf16.msra.mxu0 %v5183
    %5488 = vmatprep.subr.bf16.mxu0 %v5188
    %5489 = vmatpush1.bf16.msra.mxu0 %v5187
    %5490 = vmatprep.subr.bf16.mxu0 0
    %5491 = vmatpush1.bf16.msra.mxu0 0
    %5492 = vmatprep.subr.bf16.mxu0 0
    %5493 = vmatpush1.bf16.msra.mxu0 0
    %5494 = vmatprep.subr.bf16.mxu0 0
    %5495 = vmatpush1.bf16.msra.mxu0 0
    %5496 = vmatprep.subr.bf16.mxu0 0
    %5497 = vmatpush1.bf16.msra.mxu0 0
    %5498 = vmatprep.subr.bf16.mxu0 0
    %5499 = vmatpush1.bf16.msra.mxu0 0
    %5500 = vmatprep.subr.bf16.mxu0 0
    %5501 = vmatpush1.bf16.msra.mxu0 0
    %5502 = vmatprep.subr.bf16.mxu0 0
    %5503 = vmatpush1.bf16.msra.mxu0 0
    %5504 = vmatprep.subr.bf16.mxu0 0
    %5505 = vmatpush1.bf16.msra.mxu0 0
    %5506 = vmatprep.mubr.bf16.mxu0 0
    %5507 = vmatmul.mubr.bf16.gmra.mrb[0].mxu0 %v4602
    %v5508 = vpop.f32.mrb[0].mxu0
    %v5509 = vadd.f32 %v5446, %v5508
    %v5510 = vpop.f32.mrb[0].mxu0
    %v5511 = vadd.f32 %v5448, %v5510
    %v5512 = vpop.f32.mrb[0].mxu0
    %v5513 = vadd.f32 %v5450, %v5512
    %v5514 = vpop.f32.mrb[0].mxu0
    %v5515 = vadd.f32 %v5452, %v5514
    %5516 = vmatprep.mubr.bf16.mxu0 0
    %5517 = vmatmul.mubr.bf16.gmra.mrb[0].mxu0 %v4605
    %v5518 = vpop.f32.mrb[0].mxu0
    %v5519 = vadd.f32 %v5456, %v5518
    %v5520 = vpop.f32.mrb[0].mxu0
    %v5521 = vadd.f32 %v5458, %v5520
    %v5522 = vpop.f32.mrb[0].mxu0
    %v5523 = vadd.f32 %v5460, %v5522
    %v5524 = vpop.f32.mrb[0].mxu0
    %v5525 = vadd.f32 %v5462, %v5524
    %5526 = vmatprep.mubr.bf16.mxu0 0
    %5527 = vmatmul.mubr.bf16.gmra.mrb[0].mxu0 %v4608
    %v5528 = vpop.f32.mrb[0].mxu0
    %v5529 = vadd.f32 %v5466, %v5528
    %v5530 = vpop.f32.mrb[0].mxu0
    %v5531 = vadd.f32 %v5468, %v5530
    %v5532 = vpop.f32.mrb[0].mxu0
    %v5533 = vadd.f32 %v5470, %v5532
    %v5534 = vpop.f32.mrb[0].mxu0
    %v5535 = vadd.f32 %v5472, %v5534
    %5536 = vdwg.mxu0
    %v5633 = vunpack.c.l.b16 %v4612
    %v5634 = vunpack.c.h.b16 %v4612
    %v5635 = vunpack.c.l.b16 %v4613
    %v5636 = vunpack.c.h.b16 %v4613
    %v5637 = vunpack.c.l.b16 %v4614
    %v5638 = vunpack.c.h.b16 %v4614
    %v5639 = vunpack.c.l.b16 %v4615
    %v5640 = vunpack.c.h.b16 %v4615
    %v5641 = vunpack.c.l.b16 %v4616
    %v5642 = vunpack.c.h.b16 %v4616
    %v5643 = vunpack.c.l.b16 %v4617
    %v5644 = vunpack.c.h.b16 %v4617
    %v5645 = vunpack.c.l.b16 %v4618
    %v5646 = vunpack.c.h.b16 %v4618
    %v5647 = vunpack.c.l.b16 %v4619
    %v5648 = vunpack.c.h.b16 %v4619
    %v5649 = vunpack.c.l.b16 %v4620
    %v5650 = vunpack.c.h.b16 %v4620
    %v5651 = vunpack.c.l.b16 %v4621
    %v5652 = vunpack.c.h.b16 %v4621
    %v5653 = vunpack.c.l.b16 %v4622
    %v5654 = vunpack.c.h.b16 %v4622
    %v5655 = vunpack.c.l.b16 %v4623
    %v5656 = vunpack.c.h.b16 %v4623
    %v5657 = vunpack.c.l.b16 %v4624
    %v5658 = vunpack.c.h.b16 %v4624
    %v5659 = vunpack.c.l.b16 %v4625
    %v5660 = vunpack.c.h.b16 %v4625
    %v5661 = vunpack.c.l.b16 %v4626
    %v5662 = vunpack.c.h.b16 %v4626
    %v5663 = vunpack.c.l.b16 %v4627
    %v5664 = vunpack.c.h.b16 %v4627
    %v5665 = vunpack.c.l.b16 %v4628
    %v5666 = vunpack.c.h.b16 %v4628
    %v5667 = vunpack.c.l.b16 %v4629
    %v5668 = vunpack.c.h.b16 %v4629
    %v5669 = vunpack.c.l.b16 %v4630
    %v5670 = vunpack.c.h.b16 %v4630
    %v5671 = vunpack.c.l.b16 %v4631
    %v5672 = vunpack.c.h.b16 %v4631
    %v5673 = vunpack.c.l.b16 %v4632
    %v5674 = vunpack.c.h.b16 %v4632
    %v5675 = vunpack.c.l.b16 %v4633
    %v5676 = vunpack.c.h.b16 %v4633
    %v5677 = vunpack.c.l.b16 %v4634
    %v5678 = vunpack.c.h.b16 %v4634
    %v5679 = vunpack.c.l.b16 %v4635
    %v5680 = vunpack.c.h.b16 %v4635
    %v5681 = vunpack.c.l.b16 %v4636
    %v5682 = vunpack.c.h.b16 %v4636
    %v5683 = vunpack.c.l.b16 %v4637
    %v5684 = vunpack.c.h.b16 %v4637
    %v5685 = vunpack.c.l.b16 %v4638
    %v5686 = vunpack.c.h.b16 %v4638
    %v5687 = vunpack.c.l.b16 %v4639
    %v5688 = vunpack.c.h.b16 %v4639
    %v5689 = vunpack.c.l.b16 %v4640
    %v5690 = vunpack.c.h.b16 %v4640
    %v5691 = vunpack.c.l.b16 %v4641
    %v5692 = vunpack.c.h.b16 %v4641
    %v5693 = vunpack.c.l.b16 %v4642
    %v5694 = vunpack.c.h.b16 %v4642
    %v5695 = vunpack.c.l.b16 %v4643
    %v5696 = vunpack.c.h.b16 %v4643
    %v5697 = vunpack.c.l.b16 %v4644
    %v5698 = vunpack.c.h.b16 %v4644
    %v5699 = vunpack.c.l.b16 %v4645
    %v5700 = vunpack.c.h.b16 %v4645
    %v5701 = vunpack.c.l.b16 %v4646
    %v5702 = vunpack.c.h.b16 %v4646
    %v5703 = vunpack.c.l.b16 %v4647
    %v5704 = vunpack.c.h.b16 %v4647
    %v5705 = vunpack.c.l.b16 %v4648
    %v5706 = vunpack.c.h.b16 %v4648
    %v5707 = vunpack.c.l.b16 %v4649
    %v5708 = vunpack.c.h.b16 %v4649
    %v5709 = vunpack.c.l.b16 %v4650
    %v5710 = vunpack.c.h.b16 %v4650
    %v5711 = vunpack.c.l.b16 %v4651
    %v5712 = vunpack.c.h.b16 %v4651
    %v5713 = vunpack.c.l.b16 %v4652
    %v5714 = vunpack.c.h.b16 %v4652
    %v5715 = vunpack.c.l.b16 %v4653
    %v5716 = vunpack.c.h.b16 %v4653
    %v5717 = vunpack.c.l.b16 %v4654
    %v5718 = vunpack.c.h.b16 %v4654
    %v5719 = vunpack.c.l.b16 %v4655
    %v5720 = vunpack.c.h.b16 %v4655
    %v5721 = vunpack.c.l.b16 %v4656
    %v5722 = vunpack.c.h.b16 %v4656
    %v5723 = vunpack.c.l.b16 %v4657
    %v5724 = vunpack.c.h.b16 %v4657
    %v5725 = vunpack.c.l.b16 %v4658
    %v5726 = vunpack.c.h.b16 %v4658
    %v5727 = vunpack.c.l.b16 %v4659
    %v5728 = vunpack.c.h.b16 %v4659
    %v5729 = vunpack.c.l.b16 %v4660
    %v5730 = vunpack.c.h.b16 %v4660
    %v5731 = vunpack.c.l.b16 %v4661
    %v5732 = vunpack.c.h.b16 %v4661
    %v5733 = vunpack.c.l.b16 %v4662
    %v5734 = vunpack.c.h.b16 %v4662
    %v5735 = vunpack.c.l.b16 %v4663
    %v5736 = vunpack.c.h.b16 %v4663
    %v5737 = vunpack.c.l.b16 %v4664
    %v5738 = vunpack.c.h.b16 %v4664
    %v5739 = vunpack.c.l.b16 %v4665
    %v5740 = vunpack.c.h.b16 %v4665
    %v5741 = vunpack.c.l.b16 %v4666
    %v5742 = vunpack.c.h.b16 %v4666
    %v5743 = vunpack.c.l.b16 %v4667
    %v5744 = vunpack.c.h.b16 %v4667
    %v5745 = vunpack.c.l.b16 %v4668
    %v5746 = vunpack.c.h.b16 %v4668
    %v5747 = vunpack.c.l.b16 %v4669
    %v5748 = vunpack.c.h.b16 %v4669
    %v5749 = vunpack.c.l.b16 %v4670
    %v5750 = vunpack.c.h.b16 %v4670
    %v5751 = vunpack.c.l.b16 %v4671
    %v5752 = vunpack.c.h.b16 %v4671
    %v5753 = vunpack.c.l.b16 %v4672
    %v5754 = vunpack.c.h.b16 %v4672
    %v5755 = vunpack.c.l.b16 %v4673
    %v5756 = vunpack.c.h.b16 %v4673
    %v5757 = vunpack.c.l.b16 %v4674
    %v5758 = vunpack.c.h.b16 %v4674
    %v5759 = vunpack.c.l.b16 %v4675
    %v5760 = vunpack.c.h.b16 %v4675
    %v5761 = vunpack.c.l.b16 %v4676
    %v5762 = vunpack.c.h.b16 %v4676
    %v5763 = vunpack.c.l.b16 %v4677
    %v5764 = vunpack.c.h.b16 %v4677
    %v5765 = vunpack.c.l.b16 %v4678
    %v5766 = vunpack.c.h.b16 %v4678
    %v5767 = vunpack.c.l.b16 %v4679
    %v5768 = vunpack.c.h.b16 %v4679
    %v5769 = vunpack.c.l.b16 %v4680
    %v5770 = vunpack.c.h.b16 %v4680
    %v5771 = vunpack.c.l.b16 %v4681
    %v5772 = vunpack.c.h.b16 %v4681
    %v5773 = vunpack.c.l.b16 %v4682
    %v5774 = vunpack.c.h.b16 %v4682
    %v5775 = vunpack.c.l.b16 %v4683
    %v5776 = vunpack.c.h.b16 %v4683
    %v5777 = vunpack.c.l.b16 %v4684
    %v5778 = vunpack.c.h.b16 %v4684
    %v5779 = vunpack.c.l.b16 %v4685
    %v5780 = vunpack.c.h.b16 %v4685
    %v5781 = vunpack.c.l.b16 %v4686
    %v5782 = vunpack.c.h.b16 %v4686
    %v5783 = vunpack.c.l.b16 %v4687
    %v5784 = vunpack.c.h.b16 %v4687
    %v5785 = vunpack.c.l.b16 %v4688
    %v5786 = vunpack.c.h.b16 %v4688
    %v5787 = vunpack.c.l.b16 %v4689
    %v5788 = vunpack.c.h.b16 %v4689
    %v5789 = vunpack.c.l.b16 %v4690
    %v5790 = vunpack.c.h.b16 %v4690
    %v5791 = vunpack.c.l.b16 %v4691
    %v5792 = vunpack.c.h.b16 %v4691
    %v5793 = vunpack.c.l.b16 %v4692
    %v5794 = vunpack.c.h.b16 %v4692
    %v5795 = vunpack.c.l.b16 %v4693
    %v5796 = vunpack.c.h.b16 %v4693
    %v5797 = vunpack.c.l.b16 %v4694
    %v5798 = vunpack.c.h.b16 %v4694
    %v5799 = vunpack.c.l.b16 %v4695
    %v5800 = vunpack.c.h.b16 %v4695
    %v5801 = vunpack.c.l.b16 %v4696
    %v5802 = vunpack.c.h.b16 %v4696
    %v5803 = vunpack.c.l.b16 %v4697
    %v5804 = vunpack.c.h.b16 %v4697
    %v5805 = vunpack.c.l.b16 %v4698
    %v5806 = vunpack.c.h.b16 %v4698
    %v5807 = vunpack.c.l.b16 %v4699
    %v5808 = vunpack.c.h.b16 %v4699
    %v5809 = vunpack.c.l.b16 %v4700
    %v5810 = vunpack.c.h.b16 %v4700
    %v5811 = vunpack.c.l.b16 %v4701
    %v5812 = vunpack.c.h.b16 %v4701
    %v5813 = vunpack.c.l.b16 %v4702
    %v5814 = vunpack.c.h.b16 %v4702
    %v5815 = vunpack.c.l.b16 %v4703
    %v5816 = vunpack.c.h.b16 %v4703
    %v5817 = vunpack.c.l.b16 %v4704
    %v5818 = vunpack.c.h.b16 %v4704
    %v5819 = vunpack.c.l.b16 %v4705
    %v5820 = vunpack.c.h.b16 %v4705
    %v5821 = vunpack.c.l.b16 %v4706
    %v5822 = vunpack.c.h.b16 %v4706
    %v5823 = vunpack.c.l.b16 %v4707
    %v5824 = vunpack.c.h.b16 %v4707
    %v5825 = vpack.c.b16 %v5637, %v5633
    %v5826 = vpack.c.b16 %v5638, %v5634
    %v5827 = vpack.c.b16 %v5639, %v5635
    %v5828 = vpack.c.b16 %v5640, %v5636
    %v5829 = vpack.c.b16 %v5645, %v5641
    %v5830 = vpack.c.b16 %v5646, %v5642
    %v5831 = vpack.c.b16 %v5647, %v5643
    %v5832 = vpack.c.b16 %v5648, %v5644
    %v5833 = vpack.c.b16 %v5653, %v5649
    %v5834 = vpack.c.b16 %v5654, %v5650
    %v5835 = vpack.c.b16 %v5655, %v5651
    %v5836 = vpack.c.b16 %v5656, %v5652
    %v5837 = vpack.c.b16 %v5661, %v5657
    %v5838 = vpack.c.b16 %v5662, %v5658
    %v5839 = vpack.c.b16 %v5663, %v5659
    %v5840 = vpack.c.b16 %v5664, %v5660
    %v5841 = vpack.c.b16 %v5669, %v5665
    %v5842 = vpack.c.b16 %v5670, %v5666
    %v5843 = vpack.c.b16 %v5671, %v5667
    %v5844 = vpack.c.b16 %v5672, %v5668
    %v5845 = vpack.c.b16 %v5677, %v5673
    %v5846 = vpack.c.b16 %v5678, %v5674
    %v5847 = vpack.c.b16 %v5679, %v5675
    %v5848 = vpack.c.b16 %v5680, %v5676
    %v5849 = vpack.c.b16 %v5685, %v5681
    %v5850 = vpack.c.b16 %v5686, %v5682
    %v5851 = vpack.c.b16 %v5687, %v5683
    %v5852 = vpack.c.b16 %v5688, %v5684
    %v5853 = vpack.c.b16 %v5693, %v5689
    %v5854 = vpack.c.b16 %v5694, %v5690
    %v5855 = vpack.c.b16 %v5695, %v5691
    %v5856 = vpack.c.b16 %v5696, %v5692
    %v5857 = vpack.c.b16 %v5701, %v5697
    %v5858 = vpack.c.b16 %v5702, %v5698
    %v5859 = vpack.c.b16 %v5703, %v5699
    %v5860 = vpack.c.b16 %v5704, %v5700
    %v5861 = vpack.c.b16 %v5709, %v5705
    %v5862 = vpack.c.b16 %v5710, %v5706
    %v5863 = vpack.c.b16 %v5711, %v5707
    %v5864 = vpack.c.b16 %v5712, %v5708
    %v5865 = vpack.c.b16 %v5717, %v5713
    %v5866 = vpack.c.b16 %v5718, %v5714
    %v5867 = vpack.c.b16 %v5719, %v5715
    %v5868 = vpack.c.b16 %v5720, %v5716
    %v5869 = vpack.c.b16 %v5725, %v5721
    %v5870 = vpack.c.b16 %v5726, %v5722
    %v5871 = vpack.c.b16 %v5727, %v5723
    %v5872 = vpack.c.b16 %v5728, %v5724
    %v5873 = vpack.c.b16 %v5733, %v5729
    %v5874 = vpack.c.b16 %v5734, %v5730
    %v5875 = vpack.c.b16 %v5735, %v5731
    %v5876 = vpack.c.b16 %v5736, %v5732
    %v5877 = vpack.c.b16 %v5741, %v5737
    %v5878 = vpack.c.b16 %v5742, %v5738
    %v5879 = vpack.c.b16 %v5743, %v5739
    %v5880 = vpack.c.b16 %v5744, %v5740
    %v5881 = vpack.c.b16 %v5749, %v5745
    %v5882 = vpack.c.b16 %v5750, %v5746
    %v5883 = vpack.c.b16 %v5751, %v5747
    %v5884 = vpack.c.b16 %v5752, %v5748
    %v5885 = vpack.c.b16 %v5757, %v5753
    %v5886 = vpack.c.b16 %v5758, %v5754
    %v5887 = vpack.c.b16 %v5759, %v5755
    %v5888 = vpack.c.b16 %v5760, %v5756
    %v5889 = vpack.c.b16 %v5765, %v5761
    %v5890 = vpack.c.b16 %v5766, %v5762
    %v5891 = vpack.c.b16 %v5767, %v5763
    %v5892 = vpack.c.b16 %v5768, %v5764
    %v5893 = vpack.c.b16 %v5773, %v5769
    %v5894 = vpack.c.b16 %v5774, %v5770
    %v5895 = vpack.c.b16 %v5775, %v5771
    %v5896 = vpack.c.b16 %v5776, %v5772
    %v5897 = vpack.c.b16 %v5781, %v5777
    %v5898 = vpack.c.b16 %v5782, %v5778
    %v5899 = vpack.c.b16 %v5783, %v5779
    %v5900 = vpack.c.b16 %v5784, %v5780
    %v5901 = vpack.c.b16 %v5789, %v5785
    %v5902 = vpack.c.b16 %v5790, %v5786
    %v5903 = vpack.c.b16 %v5791, %v5787
    %v5904 = vpack.c.b16 %v5792, %v5788
    %v5905 = vpack.c.b16 %v5797, %v5793
    %v5906 = vpack.c.b16 %v5798, %v5794
    %v5907 = vpack.c.b16 %v5799, %v5795
    %v5908 = vpack.c.b16 %v5800, %v5796
    %v5909 = vpack.c.b16 %v5805, %v5801
    %v5910 = vpack.c.b16 %v5806, %v5802
    %v5911 = vpack.c.b16 %v5807, %v5803
    %v5912 = vpack.c.b16 %v5808, %v5804
    %v5913 = vpack.c.b16 %v5813, %v5809
    %v5914 = vpack.c.b16 %v5814, %v5810
    %v5915 = vpack.c.b16 %v5815, %v5811
    %v5916 = vpack.c.b16 %v5816, %v5812
    %v5917 = vpack.c.b16 %v5821, %v5817
    %v5918 = vpack.c.b16 %v5822, %v5818
    %v5919 = vpack.c.b16 %v5823, %v5819
    %v5920 = vpack.c.b16 %v5824, %v5820
    %6017 = vmatprep.subr.bf16.mxu0 %v5826
    %6018 = vmatpush1.bf16.msra.mxu0 %v5825
    %6019 = vmatprep.subr.bf16.mxu0 %v5830
    %6020 = vmatpush1.bf16.msra.mxu0 %v5829
    %6021 = vmatprep.subr.bf16.mxu0 %v5834
    %6022 = vmatpush1.bf16.msra.mxu0 %v5833
    %6023 = vmatprep.subr.bf16.mxu0 %v5838
    %6024 = vmatpush1.bf16.msra.mxu0 %v5837
    %6025 = vmatprep.subr.bf16.mxu0 %v5842
    %6026 = vmatpush1.bf16.msra.mxu0 %v5841
    %6027 = vmatprep.subr.bf16.mxu0 %v5846
    %6028 = vmatpush1.bf16.msra.mxu0 %v5845
    %6029 = vmatprep.subr.bf16.mxu0 %v5850
    %6030 = vmatpush1.bf16.msra.mxu0 %v5849
    %6031 = vmatprep.subr.bf16.mxu0 %v5854
    %6032 = vmatpush1.bf16.msra.mxu0 %v5853
    %6033 = vmatprep.subr.bf16.mxu0 %v5858
    %6034 = vmatpush1.bf16.msra.mxu0 %v5857
    %6035 = vmatprep.subr.bf16.mxu0 %v5862
    %6036 = vmatpush1.bf16.msra.mxu0 %v5861
    %6037 = vmatprep.subr.bf16.mxu0 %v5866
    %6038 = vmatpush1.bf16.msra.mxu0 %v5865
    %6039 = vmatprep.subr.bf16.mxu0 %v5870
    %6040 = vmatpush1.bf16.msra.mxu0 %v5869
    %6041 = vmatprep.subr.bf16.mxu0 %v5874
    %6042 = vmatpush1.bf16.msra.mxu0 %v5873
    %6043 = vmatprep.subr.bf16.mxu0 %v5878
    %6044 = vmatpush1.bf16.msra.mxu0 %v5877
    %6045 = vmatprep.subr.bf16.mxu0 %v5882
    %6046 = vmatpush1.bf16.msra.mxu0 %v5881
    %6047 = vmatprep.subr.bf16.mxu0 %v5886
    %6048 = vmatpush1.bf16.msra.mxu0 %v5885
    %6049 = vmatprep.mubr.bf16.mxu0 %v2955
    %6050 = vmatmul.mubr.bf16.gmra.mrb[0].mxu0 %v2954
    %v6051 = vpop.f32.mrb[0].mxu0
    %v6052 = vadd.f32 %v5383, %v6051
    %v6053 = vpop.f32.mrb[0].mxu0
    %v6054 = vadd.f32 %v5385, %v6053
    %v6055 = vpop.f32.mrb[0].mxu0
    %v6056 = vadd.f32 %v5387, %v6055
    %v6057 = vpop.f32.mrb[0].mxu0
    %v6058 = vadd.f32 %v5389, %v6057
    %6059 = vmatprep.mubr.bf16.mxu0 %v2958
    %6060 = vmatmul.mubr.bf16.gmra.mrb[0].mxu0 %v2957
    %v6061 = vpop.f32.mrb[0].mxu0
    %v6062 = vadd.f32 %v5393, %v6061
    %v6063 = vpop.f32.mrb[0].mxu0
    %v6064 = vadd.f32 %v5395, %v6063
    %v6065 = vpop.f32.mrb[0].mxu0
    %v6066 = vadd.f32 %v5397, %v6065
    %v6067 = vpop.f32.mrb[0].mxu0
    %v6068 = vadd.f32 %v5399, %v6067
    %6069 = vmatprep.mubr.bf16.mxu0 %v2961
    %6070 = vmatmul.mubr.bf16.gmra.mrb[0].mxu0 %v2960
    %v6071 = vpop.f32.mrb[0].mxu0
    %v6072 = vadd.f32 %v5403, %v6071
    %v6073 = vpop.f32.mrb[0].mxu0
    %v6074 = vadd.f32 %v5405, %v6073
    %v6075 = vpop.f32.mrb[0].mxu0
    %v6076 = vadd.f32 %v5407, %v6075
    %v6077 = vpop.f32.mrb[0].mxu0
    %v6078 = vadd.f32 %v5409, %v6077
    %6079 = vdwg.mxu0
    %6080 = vmatprep.subr.bf16.mxu0 %v5890
    %6081 = vmatpush1.bf16.msra.mxu0 %v5889
    %6082 = vmatprep.subr.bf16.mxu0 %v5894
    %6083 = vmatpush1.bf16.msra.mxu0 %v5893
    %6084 = vmatprep.subr.bf16.mxu0 %v5898
    %6085 = vmatpush1.bf16.msra.mxu0 %v5897
    %6086 = vmatprep.subr.bf16.mxu0 %v5902
    %6087 = vmatpush1.bf16.msra.mxu0 %v5901
    %6088 = vmatprep.subr.bf16.mxu0 %v5906
    %6089 = vmatpush1.bf16.msra.mxu0 %v5905
    %6090 = vmatprep.subr.bf16.mxu0 %v5910
    %6091 = vmatpush1.bf16.msra.mxu0 %v5909
    %6092 = vmatprep.subr.bf16.mxu0 %v5914
    %6093 = vmatpush1.bf16.msra.mxu0 %v5913
    %6094 = vmatprep.subr.bf16.mxu0 %v5918
    %6095 = vmatpush1.bf16.msra.mxu0 %v5917
    %6096 = vmatprep.subr.bf16.mxu0 0
    %6097 = vmatpush1.bf16.msra.mxu0 0
    %6098 = vmatprep.subr.bf16.mxu0 0
    %6099 = vmatpush1.bf16.msra.mxu0 0
    %6100 = vmatprep.subr.bf16.mxu0 0
    %6101 = vmatpush1.bf16.msra.mxu0 0
    %6102 = vmatprep.subr.bf16.mxu0 0
    %6103 = vmatpush1.bf16.msra.mxu0 0
    %6104 = vmatprep.subr.bf16.mxu0 0
    %6105 = vmatpush1.bf16.msra.mxu0 0
    %6106 = vmatprep.subr.bf16.mxu0 0
    %6107 = vmatpush1.bf16.msra.mxu0 0
    %6108 = vmatprep.subr.bf16.mxu0 0
    %6109 = vmatpush1.bf16.msra.mxu0 0
    %6110 = vmatprep.subr.bf16.mxu0 0
    %6111 = vmatpush1.bf16.msra.mxu0 0
    %6112 = vmatprep.mubr.bf16.mxu0 0
    %6113 = vmatmul.mubr.bf16.gmra.mrb[0].mxu0 %v2956
    %v6114 = vpop.f32.mrb[0].mxu0
    %v6115 = vadd.f32 %v6052, %v6114
    %v6116 = vpop.f32.mrb[0].mxu0
    %v6117 = vadd.f32 %v6054, %v6116
    %v6118 = vpop.f32.mrb[0].mxu0
    %v6119 = vadd.f32 %v6056, %v6118
    %v6120 = vpop.f32.mrb[0].mxu0
    %v6121 = vadd.f32 %v6058, %v6120
    %6122 = vmatprep.mubr.bf16.mxu0 0
    %6123 = vmatmul.mubr.bf16.gmra.mrb[0].mxu0 %v2959
    %v6124 = vpop.f32.mrb[0].mxu0
    %v6125 = vadd.f32 %v6062, %v6124
    %v6126 = vpop.f32.mrb[0].mxu0
    %v6127 = vadd.f32 %v6064, %v6126
    %v6128 = vpop.f32.mrb[0].mxu0
    %v6129 = vadd.f32 %v6066, %v6128
    %v6130 = vpop.f32.mrb[0].mxu0
    %v6131 = vadd.f32 %v6068, %v6130
    %6132 = vmatprep.mubr.bf16.mxu0 0
    %6133 = vmatmul.mubr.bf16.gmra.mrb[0].mxu0 %v2962
    %v6134 = vpop.f32.mrb[0].mxu0
    %v6135 = vadd.f32 %v6072, %v6134
    %v6136 = vpop.f32.mrb[0].mxu0
    %v6137 = vadd.f32 %v6074, %v6136
    %v6138 = vpop.f32.mrb[0].mxu0
    %v6139 = vadd.f32 %v6076, %v6138
    %v6140 = vpop.f32.mrb[0].mxu0
    %v6141 = vadd.f32 %v6078, %v6140
    %6142 = vdwg.mxu0
    %6143 = vmatprep.subr.bf16.mxu0 %v5828
    %6144 = vmatpush1.bf16.msra.mxu0 %v5827
    %6145 = vmatprep.subr.bf16.mxu0 %v5832
    %6146 = vmatpush1.bf16.msra.mxu0 %v5831
    %6147 = vmatprep.subr.bf16.mxu0 %v5836
    %6148 = vmatpush1.bf16.msra.mxu0 %v5835
    %6149 = vmatprep.subr.bf16.mxu0 %v5840
    %6150 = vmatpush1.bf16.msra.mxu0 %v5839
    %6151 = vmatprep.subr.bf16.mxu0 %v5844
    %6152 = vmatpush1.bf16.msra.mxu0 %v5843
    %6153 = vmatprep.subr.bf16.mxu0 %v5848
    %6154 = vmatpush1.bf16.msra.mxu0 %v5847
    %6155 = vmatprep.subr.bf16.mxu0 %v5852
    %6156 = vmatpush1.bf16.msra.mxu0 %v5851
    %6157 = vmatprep.subr.bf16.mxu0 %v5856
    %6158 = vmatpush1.bf16.msra.mxu0 %v5855
    %6159 = vmatprep.subr.bf16.mxu0 %v5860
    %6160 = vmatpush1.bf16.msra.mxu0 %v5859
    %6161 = vmatprep.subr.bf16.mxu0 %v5864
    %6162 = vmatpush1.bf16.msra.mxu0 %v5863
    %6163 = vmatprep.subr.bf16.mxu0 %v5868
    %6164 = vmatpush1.bf16.msra.mxu0 %v5867
    %6165 = vmatprep.subr.bf16.mxu0 %v5872
    %6166 = vmatpush1.bf16.msra.mxu0 %v5871
    %6167 = vmatprep.subr.bf16.mxu0 %v5876
    %6168 = vmatpush1.bf16.msra.mxu0 %v5875
    %6169 = vmatprep.subr.bf16.mxu0 %v5880
    %6170 = vmatpush1.bf16.msra.mxu0 %v5879
    %6171 = vmatprep.subr.bf16.mxu0 %v5884
    %6172 = vmatpush1.bf16.msra.mxu0 %v5883
    %6173 = vmatprep.subr.bf16.mxu0 %v5888
    %6174 = vmatpush1.bf16.msra.mxu0 %v5887
    %6175 = vmatprep.mubr.bf16.mxu0 %v2955
    %6176 = vmatmul.mubr.bf16.gmra.mrb[0].mxu0 %v2954
    %v6177 = vpop.f32.mrb[0].mxu0
    %v6178 = vadd.f32 %v5509, %v6177
    %v6179 = vpop.f32.mrb[0].mxu0
    %v6180 = vadd.f32 %v5511, %v6179
    %v6181 = vpop.f32.mrb[0].mxu0
    %v6182 = vadd.f32 %v5513, %v6181
    %v6183 = vpop.f32.mrb[0].mxu0
    %v6184 = vadd.f32 %v5515, %v6183
    %6185 = vmatprep.mubr.bf16.mxu0 %v2958
    %6186 = vmatmul.mubr.bf16.gmra.mrb[0].mxu0 %v2957
    %v6187 = vpop.f32.mrb[0].mxu0
    %v6188 = vadd.f32 %v5519, %v6187
    %v6189 = vpop.f32.mrb[0].mxu0
    %v6190 = vadd.f32 %v5521, %v6189
    %v6191 = vpop.f32.mrb[0].mxu0
    %v6192 = vadd.f32 %v5523, %v6191
    %v6193 = vpop.f32.mrb[0].mxu0
    %v6194 = vadd.f32 %v5525, %v6193
    %6195 = vmatprep.mubr.bf16.mxu0 %v2961
    %6196 = vmatmul.mubr.bf16.gmra.mrb[0].mxu0 %v2960
    %v6197 = vpop.f32.mrb[0].mxu0
    %v6198 = vadd.f32 %v5529, %v6197
    %v6199 = vpop.f32.mrb[0].mxu0
    %v6200 = vadd.f32 %v5531, %v6199
    %v6201 = vpop.f32.mrb[0].mxu0
    %v6202 = vadd.f32 %v5533, %v6201
    %v6203 = vpop.f32.mrb[0].mxu0
    %v6204 = vadd.f32 %v5535, %v6203
    %6205 = vdwg.mxu0
    %6206 = vmatprep.subr.bf16.mxu0 %v5892
    %6207 = vmatpush1.bf16.msra.mxu0 %v5891
    %6208 = vmatprep.subr.bf16.mxu0 %v5896
    %6209 = vmatpush1.bf16.msra.mxu0 %v5895
    %6210 = vmatprep.subr.bf16.mxu0 %v5900
    %6211 = vmatpush1.bf16.msra.mxu0 %v5899
    %6212 = vmatprep.subr.bf16.mxu0 %v5904
    %6213 = vmatpush1.bf16.msra.mxu0 %v5903
    %6214 = vmatprep.subr.bf16.mxu0 %v5908
    %6215 = vmatpush1.bf16.msra.mxu0 %v5907
    %6216 = vmatprep.subr.bf16.mxu0 %v5912
    %6217 = vmatpush1.bf16.msra.mxu0 %v5911
    %6218 = vmatprep.subr.bf16.mxu0 %v5916
    %6219 = vmatpush1.bf16.msra.mxu0 %v5915
    %6220 = vmatprep.subr.bf16.mxu0 %v5920
    %6221 = vmatpush1.bf16.msra.mxu0 %v5919
    %6222 = vmatprep.subr.bf16.mxu0 0
    %6223 = vmatpush1.bf16.msra.mxu0 0
    %6224 = vmatprep.subr.bf16.mxu0 0
    %6225 = vmatpush1.bf16.msra.mxu0 0
    %6226 = vmatprep.subr.bf16.mxu0 0
    %6227 = vmatpush1.bf16.msra.mxu0 0
    %6228 = vmatprep.subr.bf16.mxu0 0
    %6229 = vmatpush1.bf16.msra.mxu0 0
    %6230 = vmatprep.subr.bf16.mxu0 0
    %6231 = vmatpush1.bf16.msra.mxu0 0
    %6232 = vmatprep.subr.bf16.mxu0 0
    %6233 = vmatpush1.bf16.msra.mxu0 0
    %6234 = vmatprep.subr.bf16.mxu0 0
    %6235 = vmatpush1.bf16.msra.mxu0 0
    %6236 = vmatprep.subr.bf16.mxu0 0
    %6237 = vmatpush1.bf16.msra.mxu0 0
    %6238 = vmatprep.mubr.bf16.mxu0 0
    %6239 = vmatmul.mubr.bf16.gmra.mrb[0].mxu0 %v2956
    %v6240 = vpop.f32.mrb[0].mxu0
    %v6241 = vadd.f32 %v6178, %v6240
    %v6242 = vpop.f32.mrb[0].mxu0
    %v6243 = vadd.f32 %v6180, %v6242
    %v6244 = vpop.f32.mrb[0].mxu0
    %v6245 = vadd.f32 %v6182, %v6244
    %v6246 = vpop.f32.mrb[0].mxu0
    %v6247 = vadd.f32 %v6184, %v6246
    %6248 = vmatprep.mubr.bf16.mxu0 0
    %6249 = vmatmul.mubr.bf16.gmra.mrb[0].mxu0 %v2959
    %v6250 = vpop.f32.mrb[0].mxu0
    %v6251 = vadd.f32 %v6188, %v6250
    %v6252 = vpop.f32.mrb[0].mxu0
    %v6253 = vadd.f32 %v6190, %v6252
    %v6254 = vpop.f32.mrb[0].mxu0
    %v6255 = vadd.f32 %v6192, %v6254
    %v6256 = vpop.f32.mrb[0].mxu0
    %v6257 = vadd.f32 %v6194, %v6256
    %6258 = vmatprep.mubr.bf16.mxu0 0
    %6259 = vmatmul.mubr.bf16.gmra.mrb[0].mxu0 %v2962
    %v6260 = vpop.f32.mrb[0].mxu0
    %v6261 = vadd.f32 %v6198, %v6260
    %v6262 = vpop.f32.mrb[0].mxu0
    %v6263 = vadd.f32 %v6200, %v6262
    %v6264 = vpop.f32.mrb[0].mxu0
    %v6265 = vadd.f32 %v6202, %v6264
    %v6266 = vpop.f32.mrb[0].mxu0
    %v6267 = vadd.f32 %v6204, %v6266
    %6268 = vdwg.mxu0
    %s6269 = scalar_lea.vmem [#allocation6], 1536
    %v6270 = vld [vmem:[%s6269] sm:$0xff]
    %v6271 = vld [vmem:[%s6269 + $0x8] sm:$0xff]
    %v6272 = vld [vmem:[%s6269 + $0x10] sm:$0xff]
    %v6273 = vld [vmem:[%s6269 + $0x18] sm:$0xff]
    %v6274 = vld [vmem:[%s6269 + $0x20] sm:$0xff]
    %v6275 = vld [vmem:[%s6269 + $0x28] sm:$0xff]
    %v6276 = vld [vmem:[%s6269 + $0x30] sm:$0xff]
    %v6277 = vld [vmem:[%s6269 + $0x38] sm:$0xff]
    %v6278 = vld [vmem:[%s6269 + $0x40] sm:$0xff]
    %v6279 = vld [vmem:[%s6269 + $0x48] sm:$0xff]
    %v6280 = vld [vmem:[%s6269 + $0x50] sm:$0xff]
    %v6281 = vld [vmem:[%s6269 + $0x58] sm:$0xff]
    %v6282 = vld [vmem:[%s6269 + $0x60] sm:$0xff]
    %v6283 = vld [vmem:[%s6269 + $0x68] sm:$0xff]
    %v6284 = vld [vmem:[%s6269 + $0x70] sm:$0xff]
    %v6285 = vld [vmem:[%s6269 + $0x78] sm:$0xff]
    %v6286 = vld [vmem:[%s6269 + $0x80] sm:$0xff]
    %v6287 = vld [vmem:[%s6269 + $0x88] sm:$0xff]
    %v6288 = vld [vmem:[%s6269 + $0x90] sm:$0xff]
    %v6289 = vld [vmem:[%s6269 + $0x98] sm:$0xff]
    %v6290 = vld [vmem:[%s6269 + $0xa0] sm:$0xff]
    %v6291 = vld [vmem:[%s6269 + $0xa8] sm:$0xff]
    %v6292 = vld [vmem:[%s6269 + $0xb0] sm:$0xff]
    %v6293 = vld [vmem:[%s6269 + $0xb8] sm:$0xff]
    %v6294 = vld [vmem:[%s6269 + $0xc0] sm:$0xff]
    %v6295 = vld [vmem:[%s6269 + $0xc8] sm:$0xff]
    %v6296 = vld [vmem:[%s6269 + $0xd0] sm:$0xff]
    %v6297 = vld [vmem:[%s6269 + $0xd8] sm:$0xff]
    %v6298 = vld [vmem:[%s6269 + $0xe0] sm:$0xff]
    %v6299 = vld [vmem:[%s6269 + $0xe8] sm:$0xff]
    %v6300 = vld [vmem:[%s6269 + $0xf0] sm:$0xff]
    %v6301 = vld [vmem:[%s6269 + $0xf8] sm:$0xff]
    %v6302 = vld [vmem:[%s6269 + $0x100] sm:$0xff]
    %v6303 = vld [vmem:[%s6269 + $0x108] sm:$0xff]
    %v6304 = vld [vmem:[%s6269 + $0x110] sm:$0xff]
    %v6305 = vld [vmem:[%s6269 + $0x118] sm:$0xff]
    %v6306 = vld [vmem:[%s6269 + $0x120] sm:$0xff]
    %v6307 = vld [vmem:[%s6269 + $0x128] sm:$0xff]
    %v6308 = vld [vmem:[%s6269 + $0x130] sm:$0xff]
    %v6309 = vld [vmem:[%s6269 + $0x138] sm:$0xff]
    %v6310 = vld [vmem:[%s6269 + $0x140] sm:$0xff]
    %v6311 = vld [vmem:[%s6269 + $0x148] sm:$0xff]
    %v6312 = vld [vmem:[%s6269 + $0x150] sm:$0xff]
    %v6313 = vld [vmem:[%s6269 + $0x158] sm:$0xff]
    %v6314 = vld [vmem:[%s6269 + $0x160] sm:$0xff]
    %v6315 = vld [vmem:[%s6269 + $0x168] sm:$0xff]
    %v6316 = vld [vmem:[%s6269 + $0x170] sm:$0xff]
    %v6317 = vld [vmem:[%s6269 + $0x178] sm:$0xff]
    %v6318 = vld [vmem:[%s6269 + $0x180] sm:$0xff]
    %v6319 = vld [vmem:[%s6269 + $0x188] sm:$0xff]
    %v6320 = vld [vmem:[%s6269 + $0x190] sm:$0xff]
    %v6321 = vld [vmem:[%s6269 + $0x198] sm:$0xff]
    %v6322 = vld [vmem:[%s6269 + $0x1a0] sm:$0xff]
    %v6323 = vld [vmem:[%s6269 + $0x1a8] sm:$0xff]
    %v6324 = vld [vmem:[%s6269 + $0x1b0] sm:$0xff]
    %v6325 = vld [vmem:[%s6269 + $0x1b8] sm:$0xff]
    %v6326 = vld [vmem:[%s6269 + $0x1c0] sm:$0xff]
    %v6327 = vld [vmem:[%s6269 + $0x1c8] sm:$0xff]
    %v6328 = vld [vmem:[%s6269 + $0x1d0] sm:$0xff]
    %v6329 = vld [vmem:[%s6269 + $0x1d8] sm:$0xff]
    %v6330 = vld [vmem:[%s6269 + $0x1e0] sm:$0xff]
    %v6331 = vld [vmem:[%s6269 + $0x1e8] sm:$0xff]
    %v6332 = vld [vmem:[%s6269 + $0x1f0] sm:$0xff]
    %v6333 = vld [vmem:[%s6269 + $0x1f8] sm:$0xff]
    %v6334 = vld [vmem:[%s6269 + $0x200] sm:$0xff]
    %v6335 = vld [vmem:[%s6269 + $0x208] sm:$0xff]
    %v6336 = vld [vmem:[%s6269 + $0x210] sm:$0xff]
    %v6337 = vld [vmem:[%s6269 + $0x218] sm:$0xff]
    %v6338 = vld [vmem:[%s6269 + $0x220] sm:$0xff]
    %v6339 = vld [vmem:[%s6269 + $0x228] sm:$0xff]
    %v6340 = vld [vmem:[%s6269 + $0x230] sm:$0xff]
    %v6341 = vld [vmem:[%s6269 + $0x238] sm:$0xff]
    %v6342 = vld [vmem:[%s6269 + $0x240] sm:$0xff]
    %v6343 = vld [vmem:[%s6269 + $0x248] sm:$0xff]
    %v6344 = vld [vmem:[%s6269 + $0x250] sm:$0xff]
    %v6345 = vld [vmem:[%s6269 + $0x258] sm:$0xff]
    %v6346 = vld [vmem:[%s6269 + $0x260] sm:$0xff]
    %v6347 = vld [vmem:[%s6269 + $0x268] sm:$0xff]
    %v6348 = vld [vmem:[%s6269 + $0x270] sm:$0xff]
    %v6349 = vld [vmem:[%s6269 + $0x278] sm:$0xff]
    %v6350 = vld [vmem:[%s6269 + $0x280] sm:$0xff]
    %v6351 = vld [vmem:[%s6269 + $0x288] sm:$0xff]
    %v6352 = vld [vmem:[%s6269 + $0x290] sm:$0xff]
    %v6353 = vld [vmem:[%s6269 + $0x298] sm:$0xff]
    %v6354 = vld [vmem:[%s6269 + $0x2a0] sm:$0xff]
    %v6355 = vld [vmem:[%s6269 + $0x2a8] sm:$0xff]
    %v6356 = vld [vmem:[%s6269 + $0x2b0] sm:$0xff]
    %v6357 = vld [vmem:[%s6269 + $0x2b8] sm:$0xff]
    %v6358 = vld [vmem:[%s6269 + $0x2c0] sm:$0xff]
    %v6359 = vld [vmem:[%s6269 + $0x2c8] sm:$0xff]
    %v6360 = vld [vmem:[%s6269 + $0x2d0] sm:$0xff]
    %v6361 = vld [vmem:[%s6269 + $0x2d8] sm:$0xff]
    %v6362 = vld [vmem:[%s6269 + $0x2e0] sm:$0xff]
    %v6363 = vld [vmem:[%s6269 + $0x2e8] sm:$0xff]
    %v6364 = vld [vmem:[%s6269 + $0x2f0] sm:$0xff]
    %v6365 = vld [vmem:[%s6269 + $0x2f8] sm:$0xff]
    %vm6378 = vcmask 1043456
    %v6379 = vrot.slane %v2954, 4
    %v6380 = vrot.slane %v2957, 4
    %v6381 = vsel %vm6378, %v6379, %v6380
    %v6382 = vrot.slane %v2955, 4
    %v6383 = vrot.slane %v2958, 4
    %v6384 = vsel %vm6378, %v6382, %v6383
    %v6385 = vrot.slane %v2956, 4
    %v6386 = vrot.slane %v2959, 4
    %v6387 = vsel %vm6378, %v6385, %v6386
    %v6388 = vrot.slane %v2960, 4
    %v6389 = vsel %vm6378, %v6380, %v6388
    %v6390 = vrot.slane %v2961, 4
    %v6391 = vsel %vm6378, %v6383, %v6390
    %v6392 = vrot.slane %v2962, 4
    %v6393 = vsel %vm6378, %v6386, %v6392
    %v6394 = vrot.slane %v2963, 4
    %v6395 = vsel %vm6378, %v6388, %v6394
    %v6396 = vrot.slane %v2964, 4
    %v6397 = vsel %vm6378, %v6390, %v6396
    %v6398 = vrot.slane %v2965, 4
    %v6399 = vsel %vm6378, %v6392, %v6398
    %v6505 = vunpack.c.l.b16 %v6270
    %v6506 = vunpack.c.h.b16 %v6270
    %v6507 = vunpack.c.l.b16 %v6271
    %v6508 = vunpack.c.h.b16 %v6271
    %v6509 = vunpack.c.l.b16 %v6272
    %v6510 = vunpack.c.h.b16 %v6272
    %v6511 = vunpack.c.l.b16 %v6273
    %v6512 = vunpack.c.h.b16 %v6273
    %v6513 = vunpack.c.l.b16 %v6274
    %v6514 = vunpack.c.h.b16 %v6274
    %v6515 = vunpack.c.l.b16 %v6275
    %v6516 = vunpack.c.h.b16 %v6275
    %v6517 = vunpack.c.l.b16 %v6276
    %v6518 = vunpack.c.h.b16 %v6276
    %v6519 = vunpack.c.l.b16 %v6277
    %v6520 = vunpack.c.h.b16 %v6277
    %v6521 = vunpack.c.l.b16 %v6278
    %v6522 = vunpack.c.h.b16 %v6278
    %v6523 = vunpack.c.l.b16 %v6279
    %v6524 = vunpack.c.h.b16 %v6279
    %v6525 = vunpack.c.l.b16 %v6280
    %v6526 = vunpack.c.h.b16 %v6280
    %v6527 = vunpack.c.l.b16 %v6281
    %v6528 = vunpack.c.h.b16 %v6281
    %v6529 = vunpack.c.l.b16 %v6282
    %v6530 = vunpack.c.h.b16 %v6282
    %v6531 = vunpack.c.l.b16 %v6283
    %v6532 = vunpack.c.h.b16 %v6283
    %v6533 = vunpack.c.l.b16 %v6284
    %v6534 = vunpack.c.h.b16 %v6284
    %v6535 = vunpack.c.l.b16 %v6285
    %v6536 = vunpack.c.h.b16 %v6285
    %v6537 = vunpack.c.l.b16 %v6286
    %v6538 = vunpack.c.h.b16 %v6286
    %v6539 = vunpack.c.l.b16 %v6287
    %v6540 = vunpack.c.h.b16 %v6287
    %v6541 = vunpack.c.l.b16 %v6288
    %v6542 = vunpack.c.h.b16 %v6288
    %v6543 = vunpack.c.l.b16 %v6289
    %v6544 = vunpack.c.h.b16 %v6289
    %v6545 = vunpack.c.l.b16 %v6290
    %v6546 = vunpack.c.h.b16 %v6290
    %v6547 = vunpack.c.l.b16 %v6291
    %v6548 = vunpack.c.h.b16 %v6291
    %v6549 = vunpack.c.l.b16 %v6292
    %v6550 = vunpack.c.h.b16 %v6292
    %v6551 = vunpack.c.l.b16 %v6293
    %v6552 = vunpack.c.h.b16 %v6293
    %v6553 = vunpack.c.l.b16 %v6294
    %v6554 = vunpack.c.h.b16 %v6294
    %v6555 = vunpack.c.l.b16 %v6295
    %v6556 = vunpack.c.h.b16 %v6295
    %v6557 = vunpack.c.l.b16 %v6296
    %v6558 = vunpack.c.h.b16 %v6296
    %v6559 = vunpack.c.l.b16 %v6297
    %v6560 = vunpack.c.h.b16 %v6297
    %v6561 = vunpack.c.l.b16 %v6298
    %v6562 = vunpack.c.h.b16 %v6298
    %v6563 = vunpack.c.l.b16 %v6299
    %v6564 = vunpack.c.h.b16 %v6299
    %v6565 = vunpack.c.l.b16 %v6300
    %v6566 = vunpack.c.h.b16 %v6300
    %v6567 = vunpack.c.l.b16 %v6301
    %v6568 = vunpack.c.h.b16 %v6301
    %v6569 = vunpack.c.l.b16 %v6302
    %v6570 = vunpack.c.h.b16 %v6302
    %v6571 = vunpack.c.l.b16 %v6303
    %v6572 = vunpack.c.h.b16 %v6303
    %v6573 = vunpack.c.l.b16 %v6304
    %v6574 = vunpack.c.h.b16 %v6304
    %v6575 = vunpack.c.l.b16 %v6305
    %v6576 = vunpack.c.h.b16 %v6305
    %v6577 = vunpack.c.l.b16 %v6306
    %v6578 = vunpack.c.h.b16 %v6306
    %v6579 = vunpack.c.l.b16 %v6307
    %v6580 = vunpack.c.h.b16 %v6307
    %v6581 = vunpack.c.l.b16 %v6308
    %v6582 = vunpack.c.h.b16 %v6308
    %v6583 = vunpack.c.l.b16 %v6309
    %v6584 = vunpack.c.h.b16 %v6309
    %v6585 = vunpack.c.l.b16 %v6310
    %v6586 = vunpack.c.h.b16 %v6310
    %v6587 = vunpack.c.l.b16 %v6311
    %v6588 = vunpack.c.h.b16 %v6311
    %v6589 = vunpack.c.l.b16 %v6312
    %v6590 = vunpack.c.h.b16 %v6312
    %v6591 = vunpack.c.l.b16 %v6313
    %v6592 = vunpack.c.h.b16 %v6313
    %v6593 = vunpack.c.l.b16 %v6314
    %v6594 = vunpack.c.h.b16 %v6314
    %v6595 = vunpack.c.l.b16 %v6315
    %v6596 = vunpack.c.h.b16 %v6315
    %v6597 = vunpack.c.l.b16 %v6316
    %v6598 = vunpack.c.h.b16 %v6316
    %v6599 = vunpack.c.l.b16 %v6317
    %v6600 = vunpack.c.h.b16 %v6317
    %v6601 = vunpack.c.l.b16 %v6318
    %v6602 = vunpack.c.h.b16 %v6318
    %v6603 = vunpack.c.l.b16 %v6319
    %v6604 = vunpack.c.h.b16 %v6319
    %v6605 = vunpack.c.l.b16 %v6320
    %v6606 = vunpack.c.h.b16 %v6320
    %v6607 = vunpack.c.l.b16 %v6321
    %v6608 = vunpack.c.h.b16 %v6321
    %v6609 = vunpack.c.l.b16 %v6322
    %v6610 = vunpack.c.h.b16 %v6322
    %v6611 = vunpack.c.l.b16 %v6323
    %v6612 = vunpack.c.h.b16 %v6323
    %v6613 = vunpack.c.l.b16 %v6324
    %v6614 = vunpack.c.h.b16 %v6324
    %v6615 = vunpack.c.l.b16 %v6325
    %v6616 = vunpack.c.h.b16 %v6325
    %v6617 = vunpack.c.l.b16 %v6326
    %v6618 = vunpack.c.h.b16 %v6326
    %v6619 = vunpack.c.l.b16 %v6327
    %v6620 = vunpack.c.h.b16 %v6327
    %v6621 = vunpack.c.l.b16 %v6328
    %v6622 = vunpack.c.h.b16 %v6328
    %v6623 = vunpack.c.l.b16 %v6329
    %v6624 = vunpack.c.h.b16 %v6329
    %v6625 = vunpack.c.l.b16 %v6330
    %v6626 = vunpack.c.h.b16 %v6330
    %v6627 = vunpack.c.l.b16 %v6331
    %v6628 = vunpack.c.h.b16 %v6331
    %v6629 = vunpack.c.l.b16 %v6332
    %v6630 = vunpack.c.h.b16 %v6332
    %v6631 = vunpack.c.l.b16 %v6333
    %v6632 = vunpack.c.h.b16 %v6333
    %v6633 = vunpack.c.l.b16 %v6334
    %v6634 = vunpack.c.h.b16 %v6334
    %v6635 = vunpack.c.l.b16 %v6335
    %v6636 = vunpack.c.h.b16 %v6335
    %v6637 = vunpack.c.l.b16 %v6336
    %v6638 = vunpack.c.h.b16 %v6336
    %v6639 = vunpack.c.l.b16 %v6337
    %v6640 = vunpack.c.h.b16 %v6337
    %v6641 = vunpack.c.l.b16 %v6338
    %v6642 = vunpack.c.h.b16 %v6338
    %v6643 = vunpack.c.l.b16 %v6339
    %v6644 = vunpack.c.h.b16 %v6339
    %v6645 = vunpack.c.l.b16 %v6340
    %v6646 = vunpack.c.h.b16 %v6340
    %v6647 = vunpack.c.l.b16 %v6341
    %v6648 = vunpack.c.h.b16 %v6341
    %v6649 = vunpack.c.l.b16 %v6342
    %v6650 = vunpack.c.h.b16 %v6342
    %v6651 = vunpack.c.l.b16 %v6343
    %v6652 = vunpack.c.h.b16 %v6343
    %v6653 = vunpack.c.l.b16 %v6344
    %v6654 = vunpack.c.h.b16 %v6344
    %v6655 = vunpack.c.l.b16 %v6345
    %v6656 = vunpack.c.h.b16 %v6345
    %v6657 = vunpack.c.l.b16 %v6346
    %v6658 = vunpack.c.h.b16 %v6346
    %v6659 = vunpack.c.l.b16 %v6347
    %v6660 = vunpack.c.h.b16 %v6347
    %v6661 = vunpack.c.l.b16 %v6348
    %v6662 = vunpack.c.h.b16 %v6348
    %v6663 = vunpack.c.l.b16 %v6349
    %v6664 = vunpack.c.h.b16 %v6349
    %v6665 = vunpack.c.l.b16 %v6350
    %v6666 = vunpack.c.h.b16 %v6350
    %v6667 = vunpack.c.l.b16 %v6351
    %v6668 = vunpack.c.h.b16 %v6351
    %v6669 = vunpack.c.l.b16 %v6352
    %v6670 = vunpack.c.h.b16 %v6352
    %v6671 = vunpack.c.l.b16 %v6353
    %v6672 = vunpack.c.h.b16 %v6353
    %v6673 = vunpack.c.l.b16 %v6354
    %v6674 = vunpack.c.h.b16 %v6354
    %v6675 = vunpack.c.l.b16 %v6355
    %v6676 = vunpack.c.h.b16 %v6355
    %v6677 = vunpack.c.l.b16 %v6356
    %v6678 = vunpack.c.h.b16 %v6356
    %v6679 = vunpack.c.l.b16 %v6357
    %v6680 = vunpack.c.h.b16 %v6357
    %v6681 = vunpack.c.l.b16 %v6358
    %v6682 = vunpack.c.h.b16 %v6358
    %v6683 = vunpack.c.l.b16 %v6359
    %v6684 = vunpack.c.h.b16 %v6359
    %v6685 = vunpack.c.l.b16 %v6360
    %v6686 = vunpack.c.h.b16 %v6360
    %v6687 = vunpack.c.l.b16 %v6361
    %v6688 = vunpack.c.h.b16 %v6361
    %v6689 = vunpack.c.l.b16 %v6362
    %v6690 = vunpack.c.h.b16 %v6362
    %v6691 = vunpack.c.l.b16 %v6363
    %v6692 = vunpack.c.h.b16 %v6363
    %v6693 = vunpack.c.l.b16 %v6364
    %v6694 = vunpack.c.h.b16 %v6364
    %v6695 = vunpack.c.l.b16 %v6365
    %v6696 = vunpack.c.h.b16 %v6365
    %v6697 = vpack.c.b16 %v6509, %v6505
    %v6698 = vpack.c.b16 %v6510, %v6506
    %v6699 = vpack.c.b16 %v6511, %v6507
    %v6700 = vpack.c.b16 %v6512, %v6508
    %v6701 = vpack.c.b16 %v6517, %v6513
    %v6702 = vpack.c.b16 %v6518, %v6514
    %v6703 = vpack.c.b16 %v6519, %v6515
    %v6704 = vpack.c.b16 %v6520, %v6516
    %v6705 = vpack.c.b16 %v6525, %v6521
    %v6706 = vpack.c.b16 %v6526, %v6522
    %v6707 = vpack.c.b16 %v6527, %v6523
    %v6708 = vpack.c.b16 %v6528, %v6524
    %v6709 = vpack.c.b16 %v6533, %v6529
    %v6710 = vpack.c.b16 %v6534, %v6530
    %v6711 = vpack.c.b16 %v6535, %v6531
    %v6712 = vpack.c.b16 %v6536, %v6532
    %v6713 = vpack.c.b16 %v6541, %v6537
    %v6714 = vpack.c.b16 %v6542, %v6538
    %v6715 = vpack.c.b16 %v6543, %v6539
    %v6716 = vpack.c.b16 %v6544, %v6540
    %v6717 = vpack.c.b16 %v6549, %v6545
    %v6718 = vpack.c.b16 %v6550, %v6546
    %v6719 = vpack.c.b16 %v6551, %v6547
    %v6720 = vpack.c.b16 %v6552, %v6548
    %v6721 = vpack.c.b16 %v6557, %v6553
    %v6722 = vpack.c.b16 %v6558, %v6554
    %v6723 = vpack.c.b16 %v6559, %v6555
    %v6724 = vpack.c.b16 %v6560, %v6556
    %v6725 = vpack.c.b16 %v6565, %v6561
    %v6726 = vpack.c.b16 %v6566, %v6562
    %v6727 = vpack.c.b16 %v6567, %v6563
    %v6728 = vpack.c.b16 %v6568, %v6564
    %v6729 = vpack.c.b16 %v6573, %v6569
    %v6730 = vpack.c.b16 %v6574, %v6570
    %v6731 = vpack.c.b16 %v6575, %v6571
    %v6732 = vpack.c.b16 %v6576, %v6572
    %v6733 = vpack.c.b16 %v6581, %v6577
    %v6734 = vpack.c.b16 %v6582, %v6578
    %v6735 = vpack.c.b16 %v6583, %v6579
    %v6736 = vpack.c.b16 %v6584, %v6580
    %v6737 = vpack.c.b16 %v6589, %v6585
    %v6738 = vpack.c.b16 %v6590, %v6586
    %v6739 = vpack.c.b16 %v6591, %v6587
    %v6740 = vpack.c.b16 %v6592, %v6588
    %v6741 = vpack.c.b16 %v6597, %v6593
    %v6742 = vpack.c.b16 %v6598, %v6594
    %v6743 = vpack.c.b16 %v6599, %v6595
    %v6744 = vpack.c.b16 %v6600, %v6596
    %v6745 = vpack.c.b16 %v6605, %v6601
    %v6746 = vpack.c.b16 %v6606, %v6602
    %v6747 = vpack.c.b16 %v6607, %v6603
    %v6748 = vpack.c.b16 %v6608, %v6604
    %v6749 = vpack.c.b16 %v6613, %v6609
    %v6750 = vpack.c.b16 %v6614, %v6610
    %v6751 = vpack.c.b16 %v6615, %v6611
    %v6752 = vpack.c.b16 %v6616, %v6612
    %v6753 = vpack.c.b16 %v6621, %v6617
    %v6754 = vpack.c.b16 %v6622, %v6618
    %v6755 = vpack.c.b16 %v6623, %v6619
    %v6756 = vpack.c.b16 %v6624, %v6620
    %v6757 = vpack.c.b16 %v6629, %v6625
    %v6758 = vpack.c.b16 %v6630, %v6626
    %v6759 = vpack.c.b16 %v6631, %v6627
    %v6760 = vpack.c.b16 %v6632, %v6628
    %v6761 = vpack.c.b16 %v6637, %v6633
    %v6762 = vpack.c.b16 %v6638, %v6634
    %v6763 = vpack.c.b16 %v6639, %v6635
    %v6764 = vpack.c.b16 %v6640, %v6636
    %v6765 = vpack.c.b16 %v6645, %v6641
    %v6766 = vpack.c.b16 %v6646, %v6642
    %v6767 = vpack.c.b16 %v6647, %v6643
    %v6768 = vpack.c.b16 %v6648, %v6644
    %v6769 = vpack.c.b16 %v6653, %v6649
    %v6770 = vpack.c.b16 %v6654, %v6650
    %v6771 = vpack.c.b16 %v6655, %v6651
    %v6772 = vpack.c.b16 %v6656, %v6652
    %v6773 = vpack.c.b16 %v6661, %v6657
    %v6774 = vpack.c.b16 %v6662, %v6658
    %v6775 = vpack.c.b16 %v6663, %v6659
    %v6776 = vpack.c.b16 %v6664, %v6660
    %v6777 = vpack.c.b16 %v6669, %v6665
    %v6778 = vpack.c.b16 %v6670, %v6666
    %v6779 = vpack.c.b16 %v6671, %v6667
    %v6780 = vpack.c.b16 %v6672, %v6668
    %v6781 = vpack.c.b16 %v6677, %v6673
    %v6782 = vpack.c.b16 %v6678, %v6674
    %v6783 = vpack.c.b16 %v6679, %v6675
    %v6784 = vpack.c.b16 %v6680, %v6676
    %v6785 = vpack.c.b16 %v6685, %v6681
    %v6786 = vpack.c.b16 %v6686, %v6682
    %v6787 = vpack.c.b16 %v6687, %v6683
    %v6788 = vpack.c.b16 %v6688, %v6684
    %v6789 = vpack.c.b16 %v6693, %v6689
    %v6790 = vpack.c.b16 %v6694, %v6690
    %v6791 = vpack.c.b16 %v6695, %v6691
    %v6792 = vpack.c.b16 %v6696, %v6692
    %6889 = vmatprep.subr.bf16.mxu0 %v6698
    %6890 = vmatpush1.bf16.msra.mxu0 %v6697
    %6891 = vmatprep.subr.bf16.mxu0 %v6702
    %6892 = vmatpush1.bf16.msra.mxu0 %v6701
    %6893 = vmatprep.subr.bf16.mxu0 %v6706
    %6894 = vmatpush1.bf16.msra.mxu0 %v6705
    %6895 = vmatprep.subr.bf16.mxu0 %v6710
    %6896 = vmatpush1.bf16.msra.mxu0 %v6709
    %6897 = vmatprep.subr.bf16.mxu0 %v6714
    %6898 = vmatpush1.bf16.msra.mxu0 %v6713
    %6899 = vmatprep.subr.bf16.mxu0 %v6718
    %6900 = vmatpush1.bf16.msra.mxu0 %v6717
    %6901 = vmatprep.subr.bf16.mxu0 %v6722
    %6902 = vmatpush1.bf16.msra.mxu0 %v6721
    %6903 = vmatprep.subr.bf16.mxu0 %v6726
    %6904 = vmatpush1.bf16.msra.mxu0 %v6725
    %6905 = vmatprep.subr.bf16.mxu0 %v6730
    %6906 = vmatpush1.bf16.msra.mxu0 %v6729
    %6907 = vmatprep.subr.bf16.mxu0 %v6734
    %6908 = vmatpush1.bf16.msra.mxu0 %v6733
    %6909 = vmatprep.subr.bf16.mxu0 %v6738
    %6910 = vmatpush1.bf16.msra.mxu0 %v6737
    %6911 = vmatprep.subr.bf16.mxu0 %v6742
    %6912 = vmatpush1.bf16.msra.mxu0 %v6741
    %6913 = vmatprep.subr.bf16.mxu0 %v6746
    %6914 = vmatpush1.bf16.msra.mxu0 %v6745
    %6915 = vmatprep.subr.bf16.mxu0 %v6750
    %6916 = vmatpush1.bf16.msra.mxu0 %v6749
    %6917 = vmatprep.subr.bf16.mxu0 %v6754
    %6918 = vmatpush1.bf16.msra.mxu0 %v6753
    %6919 = vmatprep.subr.bf16.mxu0 %v6758
    %6920 = vmatpush1.bf16.msra.mxu0 %v6757
    %6921 = vmatprep.mubr.bf16.mxu0 %v6384
    %6922 = vmatmul.mubr.bf16.gmra.mrb[0].mxu0 %v6381
    %v6923 = vpop.f32.mrb[0].mxu0
    %v6924 = vadd.f32 0.0, %v6923
    %v6925 = vpop.f32.mrb[0].mxu0
    %v6926 = vadd.f32 0.0, %v6925
    %v6927 = vpop.f32.mrb[0].mxu0
    %v6928 = vadd.f32 0.0, %v6927
    %v6929 = vpop.f32.mrb[0].mxu0
    %v6930 = vadd.f32 0.0, %v6929
    %6931 = vmatprep.mubr.bf16.mxu0 %v6391
    %6932 = vmatmul.mubr.bf16.gmra.mrb[0].mxu0 %v6389
    %v6933 = vpop.f32.mrb[0].mxu0
    %v6934 = vadd.f32 0.0, %v6933
    %v6935 = vpop.f32.mrb[0].mxu0
    %v6936 = vadd.f32 0.0, %v6935
    %v6937 = vpop.f32.mrb[0].mxu0
    %v6938 = vadd.f32 0.0, %v6937
    %v6939 = vpop.f32.mrb[0].mxu0
    %v6940 = vadd.f32 0.0, %v6939
    %6941 = vmatprep.mubr.bf16.mxu0 %v6397
    %6942 = vmatmul.mubr.bf16.gmra.mrb[0].mxu0 %v6395
    %v6943 = vpop.f32.mrb[0].mxu0
    %v6944 = vadd.f32 0.0, %v6943
    %v6945 = vpop.f32.mrb[0].mxu0
    %v6946 = vadd.f32 0.0, %v6945
    %v6947 = vpop.f32.mrb[0].mxu0
    %v6948 = vadd.f32 0.0, %v6947
    %v6949 = vpop.f32.mrb[0].mxu0
    %v6950 = vadd.f32 0.0, %v6949
    %6951 = vdwg.mxu0
    %6952 = vmatprep.subr.bf16.mxu0 %v6762
    %6953 = vmatpush1.bf16.msra.mxu0 %v6761
    %6954 = vmatprep.subr.bf16.mxu0 %v6766
    %6955 = vmatpush1.bf16.msra.mxu0 %v6765
    %6956 = vmatprep.subr.bf16.mxu0 %v6770
    %6957 = vmatpush1.bf16.msra.mxu0 %v6769
    %6958 = vmatprep.subr.bf16.mxu0 %v6774
    %6959 = vmatpush1.bf16.msra.mxu0 %v6773
    %6960 = vmatprep.subr.bf16.mxu0 %v6778
    %6961 = vmatpush1.bf16.msra.mxu0 %v6777
    %6962 = vmatprep.subr.bf16.mxu0 %v6782
    %6963 = vmatpush1.bf16.msra.mxu0 %v6781
    %6964 = vmatprep.subr.bf16.mxu0 %v6786
    %6965 = vmatpush1.bf16.msra.mxu0 %v6785
    %6966 = vmatprep.subr.bf16.mxu0 %v6790
    %6967 = vmatpush1.bf16.msra.mxu0 %v6789
    %6968 = vmatprep.subr.bf16.mxu0 0
    %6969 = vmatpush1.bf16.msra.mxu0 0
    %6970 = vmatprep.subr.bf16.mxu0 0
    %6971 = vmatpush1.bf16.msra.mxu0 0
    %6972 = vmatprep.subr.bf16.mxu0 0
    %6973 = vmatpush1.bf16.msra.mxu0 0
    %6974 = vmatprep.subr.bf16.mxu0 0
    %6975 = vmatpush1.bf16.msra.mxu0 0
    %6976 = vmatprep.subr.bf16.mxu0 0
    %6977 = vmatpush1.bf16.msra.mxu0 0
    %6978 = vmatprep.subr.bf16.mxu0 0
    %6979 = vmatpush1.bf16.msra.mxu0 0
    %6980 = vmatprep.subr.bf16.mxu0 0
    %6981 = vmatpush1.bf16.msra.mxu0 0
    %6982 = vmatprep.subr.bf16.mxu0 0
    %6983 = vmatpush1.bf16.msra.mxu0 0
    %6984 = vmatprep.mubr.bf16.mxu0 0
    %6985 = vmatmul.mubr.bf16.gmra.mrb[0].mxu0 %v6387
    %v6986 = vpop.f32.mrb[0].mxu0
    %v6987 = vadd.f32 %v6924, %v6986
    %v6988 = vpop.f32.mrb[0].mxu0
    %v6989 = vadd.f32 %v6926, %v6988
    %v6990 = vpop.f32.mrb[0].mxu0
    %v6991 = vadd.f32 %v6928, %v6990
    %v6992 = vpop.f32.mrb[0].mxu0
    %v6993 = vadd.f32 %v6930, %v6992
    %6994 = vmatprep.mubr.bf16.mxu0 0
    %6995 = vmatmul.mubr.bf16.gmra.mrb[0].mxu0 %v6393
    %v6996 = vpop.f32.mrb[0].mxu0
    %v6997 = vadd.f32 %v6934, %v6996
    %v6998 = vpop.f32.mrb[0].mxu0
    %v6999 = vadd.f32 %v6936, %v6998
    %v7000 = vpop.f32.mrb[0].mxu0
    %v7001 = vadd.f32 %v6938, %v7000
    %v7002 = vpop.f32.mrb[0].mxu0
    %v7003 = vadd.f32 %v6940, %v7002
    %7004 = vmatprep.mubr.bf16.mxu0 0
    %7005 = vmatmul.mubr.bf16.gmra.mrb[0].mxu0 %v6399
    %v7006 = vpop.f32.mrb[0].mxu0
    %v7007 = vadd.f32 %v6944, %v7006
    %v7008 = vpop.f32.mrb[0].mxu0
    %v7009 = vadd.f32 %v6946, %v7008
    %v7010 = vpop.f32.mrb[0].mxu0
    %v7011 = vadd.f32 %v6948, %v7010
    %v7012 = vpop.f32.mrb[0].mxu0
    %v7013 = vadd.f32 %v6950, %v7012
    %7014 = vdwg.mxu0
    %7015 = vmatprep.subr.bf16.mxu0 %v6700
    %7016 = vmatpush1.bf16.msra.mxu0 %v6699
    %7017 = vmatprep.subr.bf16.mxu0 %v6704
    %7018 = vmatpush1.bf16.msra.mxu0 %v6703
    %7019 = vmatprep.subr.bf16.mxu0 %v6708
    %7020 = vmatpush1.bf16.msra.mxu0 %v6707
    %7021 = vmatprep.subr.bf16.mxu0 %v6712
    %7022 = vmatpush1.bf16.msra.mxu0 %v6711
    %7023 = vmatprep.subr.bf16.mxu0 %v6716
    %7024 = vmatpush1.bf16.msra.mxu0 %v6715
    %7025 = vmatprep.subr.bf16.mxu0 %v6720
    %7026 = vmatpush1.bf16.msra.mxu0 %v6719
    %7027 = vmatprep.subr.bf16.mxu0 %v6724
    %7028 = vmatpush1.bf16.msra.mxu0 %v6723
    %7029 = vmatprep.subr.bf16.mxu0 %v6728
    %7030 = vmatpush1.bf16.msra.mxu0 %v6727
    %7031 = vmatprep.subr.bf16.mxu0 %v6732
    %7032 = vmatpush1.bf16.msra.mxu0 %v6731
    %7033 = vmatprep.subr.bf16.mxu0 %v6736
    %7034 = vmatpush1.bf16.msra.mxu0 %v6735
    %7035 = vmatprep.subr.bf16.mxu0 %v6740
    %7036 = vmatpush1.bf16.msra.mxu0 %v6739
    %7037 = vmatprep.subr.bf16.mxu0 %v6744
    %7038 = vmatpush1.bf16.msra.mxu0 %v6743
    %7039 = vmatprep.subr.bf16.mxu0 %v6748
    %7040 = vmatpush1.bf16.msra.mxu0 %v6747
    %7041 = vmatprep.subr.bf16.mxu0 %v6752
    %7042 = vmatpush1.bf16.msra.mxu0 %v6751
    %7043 = vmatprep.subr.bf16.mxu0 %v6756
    %7044 = vmatpush1.bf16.msra.mxu0 %v6755
    %7045 = vmatprep.subr.bf16.mxu0 %v6760
    %7046 = vmatpush1.bf16.msra.mxu0 %v6759
    %7047 = vmatprep.mubr.bf16.mxu0 %v6384
    %7048 = vmatmul.mubr.bf16.gmra.mrb[0].mxu0 %v6381
    %v7049 = vpop.f32.mrb[0].mxu0
    %v7050 = vadd.f32 0.0, %v7049
    %v7051 = vpop.f32.mrb[0].mxu0
    %v7052 = vadd.f32 0.0, %v7051
    %v7053 = vpop.f32.mrb[0].mxu0
    %v7054 = vadd.f32 0.0, %v7053
    %v7055 = vpop.f32.mrb[0].mxu0
    %v7056 = vadd.f32 0.0, %v7055
    %7057 = vmatprep.mubr.bf16.mxu0 %v6391
    %7058 = vmatmul.mubr.bf16.gmra.mrb[0].mxu0 %v6389
    %v7059 = vpop.f32.mrb[0].mxu0
    %v7060 = vadd.f32 0.0, %v7059
    %v7061 = vpop.f32.mrb[0].mxu0
    %v7062 = vadd.f32 0.0, %v7061
    %v7063 = vpop.f32.mrb[0].mxu0
    %v7064 = vadd.f32 0.0, %v7063
    %v7065 = vpop.f32.mrb[0].mxu0
    %v7066 = vadd.f32 0.0, %v7065
    %7067 = vmatprep.mubr.bf16.mxu0 %v6397
    %7068 = vmatmul.mubr.bf16.gmra.mrb[0].mxu0 %v6395
    %v7069 = vpop.f32.mrb[0].mxu0
    %v7070 = vadd.f32 0.0, %v7069
    %v7071 = vpop.f32.mrb[0].mxu0
    %v7072 = vadd.f32 0.0, %v7071
    %v7073 = vpop.f32.mrb[0].mxu0
    %v7074 = vadd.f32 0.0, %v7073
    %v7075 = vpop.f32.mrb[0].mxu0
    %v7076 = vadd.f32 0.0, %v7075
    %7077 = vdwg.mxu0
    %7078 = vmatprep.subr.bf16.mxu0 %v6764
    %7079 = vmatpush1.bf16.msra.mxu0 %v6763
    %7080 = vmatprep.subr.bf16.mxu0 %v6768
    %7081 = vmatpush1.bf16.msra.mxu0 %v6767
    %7082 = vmatprep.subr.bf16.mxu0 %v6772
    %7083 = vmatpush1.bf16.msra.mxu0 %v6771
    %7084 = vmatprep.subr.bf16.mxu0 %v6776
    %7085 = vmatpush1.bf16.msra.mxu0 %v6775
    %7086 = vmatprep.subr.bf16.mxu0 %v6780
    %7087 = vmatpush1.bf16.msra.mxu0 %v6779
    %7088 = vmatprep.subr.bf16.mxu0 %v6784
    %7089 = vmatpush1.bf16.msra.mxu0 %v6783
    %7090 = vmatprep.subr.bf16.mxu0 %v6788
    %7091 = vmatpush1.bf16.msra.mxu0 %v6787
    %7092 = vmatprep.subr.bf16.mxu0 %v6792
    %7093 = vmatpush1.bf16.msra.mxu0 %v6791
    %7094 = vmatprep.subr.bf16.mxu0 0
    %7095 = vmatpush1.bf16.msra.mxu0 0
    %7096 = vmatprep.subr.bf16.mxu0 0
    %7097 = vmatpush1.bf16.msra.mxu0 0
    %7098 = vmatprep.subr.bf16.mxu0 0
    %7099 = vmatpush1.bf16.msra.mxu0 0
    %7100 = vmatprep.subr.bf16.mxu0 0
    %7101 = vmatpush1.bf16.msra.mxu0 0
    %7102 = vmatprep.subr.bf16.mxu0 0
    %7103 = vmatpush1.bf16.msra.mxu0 0
    %7104 = vmatprep.subr.bf16.mxu0 0
    %7105 = vmatpush1.bf16.msra.mxu0 0
    %7106 = vmatprep.subr.bf16.mxu0 0
    %7107 = vmatpush1.bf16.msra.mxu0 0
    %7108 = vmatprep.subr.bf16.mxu0 0
    %7109 = vmatpush1.bf16.msra.mxu0 0
    %7110 = vmatprep.mubr.bf16.mxu0 0
    %7111 = vmatmul.mubr.bf16.gmra.mrb[0].mxu0 %v6387
    %v7112 = vpop.f32.mrb[0].mxu0
    %v7113 = vadd.f32 %v7050, %v7112
    %v7114 = vpop.f32.mrb[0].mxu0
    %v7115 = vadd.f32 %v7052, %v7114
    %v7116 = vpop.f32.mrb[0].mxu0
    %v7117 = vadd.f32 %v7054, %v7116
    %v7118 = vpop.f32.mrb[0].mxu0
    %v7119 = vadd.f32 %v7056, %v7118
    %7120 = vmatprep.mubr.bf16.mxu0 0
    %7121 = vmatmul.mubr.bf16.gmra.mrb[0].mxu0 %v6393
    %v7122 = vpop.f32.mrb[0].mxu0
    %v7123 = vadd.f32 %v7060, %v7122
    %v7124 = vpop.f32.mrb[0].mxu0
    %v7125 = vadd.f32 %v7062, %v7124
    %v7126 = vpop.f32.mrb[0].mxu0
    %v7127 = vadd.f32 %v7064, %v7126
    %v7128 = vpop.f32.mrb[0].mxu0
    %v7129 = vadd.f32 %v7066, %v7128
    %7130 = vmatprep.mubr.bf16.mxu0 0
    %7131 = vmatmul.mubr.bf16.gmra.mrb[0].mxu0 %v6399
    %v7132 = vpop.f32.mrb[0].mxu0
    %v7133 = vadd.f32 %v7070, %v7132
    %v7134 = vpop.f32.mrb[0].mxu0
    %v7135 = vadd.f32 %v7072, %v7134
    %v7136 = vpop.f32.mrb[0].mxu0
    %v7137 = vadd.f32 %v7074, %v7136
    %v7138 = vpop.f32.mrb[0].mxu0
    %v7139 = vadd.f32 %v7076, %v7138
    %7140 = vdwg.mxu0
    %v7141 = vadd.f32 %v6115, %v6987
    %v7142 = vadd.f32 %v6117, %v6989
    %v7143 = vadd.f32 %v6241, %v7113
    %v7144 = vadd.f32 %v6243, %v7115
    %v7145 = vadd.f32 %v6119, %v6991
    %v7146 = vadd.f32 %v6121, %v6993
    %v7147 = vadd.f32 %v6245, %v7117
    %v7148 = vadd.f32 %v6247, %v7119
    %v7149 = vadd.f32 %v6125, %v6997
    %v7150 = vadd.f32 %v6127, %v6999
    %v7151 = vadd.f32 %v6251, %v7123
    %v7152 = vadd.f32 %v6253, %v7125
    %v7153 = vadd.f32 %v6129, %v7001
    %v7154 = vadd.f32 %v6131, %v7003
    %v7155 = vadd.f32 %v6255, %v7127
    %v7156 = vadd.f32 %v6257, %v7129
    %v7157 = vadd.f32 %v6135, %v7007
    %v7158 = vadd.f32 %v6137, %v7009
    %v7159 = vadd.f32 %v6261, %v7133
    %v7160 = vadd.f32 %v6263, %v7135
    %v7161 = vadd.f32 %v6139, %v7011
    %v7162 = vadd.f32 %v6141, %v7013
    %v7163 = vadd.f32 %v6265, %v7137
    %v7164 = vadd.f32 %v6267, %v7139
    %s7165 = scalar_lea.vmem [#allocation6], 2304
    %v7166 = vld [vmem:[%s7165] sm:$0xff]
    %v7167 = vld [vmem:[%s7165 + $0x8] sm:$0xff]
    %v7168 = vld [vmem:[%s7165 + $0x10] sm:$0xff]
    %v7169 = vld [vmem:[%s7165 + $0x18] sm:$0xff]
    %v7170 = vld [vmem:[%s7165 + $0x20] sm:$0xff]
    %v7171 = vld [vmem:[%s7165 + $0x28] sm:$0xff]
    %v7172 = vld [vmem:[%s7165 + $0x30] sm:$0xff]
    %v7173 = vld [vmem:[%s7165 + $0x38] sm:$0xff]
    %v7174 = vld [vmem:[%s7165 + $0x40] sm:$0xff]
    %v7175 = vld [vmem:[%s7165 + $0x48] sm:$0xff]
    %v7176 = vld [vmem:[%s7165 + $0x50] sm:$0xff]
    %v7177 = vld [vmem:[%s7165 + $0x58] sm:$0xff]
    %v7178 = vld [vmem:[%s7165 + $0x60] sm:$0xff]
    %v7179 = vld [vmem:[%s7165 + $0x68] sm:$0xff]
    %v7180 = vld [vmem:[%s7165 + $0x70] sm:$0xff]
    %v7181 = vld [vmem:[%s7165 + $0x78] sm:$0xff]
    %v7182 = vld [vmem:[%s7165 + $0x80] sm:$0xff]
    %v7183 = vld [vmem:[%s7165 + $0x88] sm:$0xff]
    %v7184 = vld [vmem:[%s7165 + $0x90] sm:$0xff]
    %v7185 = vld [vmem:[%s7165 + $0x98] sm:$0xff]
    %v7186 = vld [vmem:[%s7165 + $0xa0] sm:$0xff]
    %v7187 = vld [vmem:[%s7165 + $0xa8] sm:$0xff]
    %v7188 = vld [vmem:[%s7165 + $0xb0] sm:$0xff]
    %v7189 = vld [vmem:[%s7165 + $0xb8] sm:$0xff]
    %v7190 = vld [vmem:[%s7165 + $0xc0] sm:$0xff]
    %v7191 = vld [vmem:[%s7165 + $0xc8] sm:$0xff]
    %v7192 = vld [vmem:[%s7165 + $0xd0] sm:$0xff]
    %v7193 = vld [vmem:[%s7165 + $0xd8] sm:$0xff]
    %v7194 = vld [vmem:[%s7165 + $0xe0] sm:$0xff]
    %v7195 = vld [vmem:[%s7165 + $0xe8] sm:$0xff]
    %v7196 = vld [vmem:[%s7165 + $0xf0] sm:$0xff]
    %v7197 = vld [vmem:[%s7165 + $0xf8] sm:$0xff]
    %v7198 = vld [vmem:[%s7165 + $0x100] sm:$0xff]
    %v7199 = vld [vmem:[%s7165 + $0x108] sm:$0xff]
    %v7200 = vld [vmem:[%s7165 + $0x110] sm:$0xff]
    %v7201 = vld [vmem:[%s7165 + $0x118] sm:$0xff]
    %v7202 = vld [vmem:[%s7165 + $0x120] sm:$0xff]
    %v7203 = vld [vmem:[%s7165 + $0x128] sm:$0xff]
    %v7204 = vld [vmem:[%s7165 + $0x130] sm:$0xff]
    %v7205 = vld [vmem:[%s7165 + $0x138] sm:$0xff]
    %v7206 = vld [vmem:[%s7165 + $0x140] sm:$0xff]
    %v7207 = vld [vmem:[%s7165 + $0x148] sm:$0xff]
    %v7208 = vld [vmem:[%s7165 + $0x150] sm:$0xff]
    %v7209 = vld [vmem:[%s7165 + $0x158] sm:$0xff]
    %v7210 = vld [vmem:[%s7165 + $0x160] sm:$0xff]
    %v7211 = vld [vmem:[%s7165 + $0x168] sm:$0xff]
    %v7212 = vld [vmem:[%s7165 + $0x170] sm:$0xff]
    %v7213 = vld [vmem:[%s7165 + $0x178] sm:$0xff]
    %v7214 = vld [vmem:[%s7165 + $0x180] sm:$0xff]
    %v7215 = vld [vmem:[%s7165 + $0x188] sm:$0xff]
    %v7216 = vld [vmem:[%s7165 + $0x190] sm:$0xff]
    %v7217 = vld [vmem:[%s7165 + $0x198] sm:$0xff]
    %v7218 = vld [vmem:[%s7165 + $0x1a0] sm:$0xff]
    %v7219 = vld [vmem:[%s7165 + $0x1a8] sm:$0xff]
    %v7220 = vld [vmem:[%s7165 + $0x1b0] sm:$0xff]
    %v7221 = vld [vmem:[%s7165 + $0x1b8] sm:$0xff]
    %v7222 = vld [vmem:[%s7165 + $0x1c0] sm:$0xff]
    %v7223 = vld [vmem:[%s7165 + $0x1c8] sm:$0xff]
    %v7224 = vld [vmem:[%s7165 + $0x1d0] sm:$0xff]
    %v7225 = vld [vmem:[%s7165 + $0x1d8] sm:$0xff]
    %v7226 = vld [vmem:[%s7165 + $0x1e0] sm:$0xff]
    %v7227 = vld [vmem:[%s7165 + $0x1e8] sm:$0xff]
    %v7228 = vld [vmem:[%s7165 + $0x1f0] sm:$0xff]
    %v7229 = vld [vmem:[%s7165 + $0x1f8] sm:$0xff]
    %v7230 = vld [vmem:[%s7165 + $0x200] sm:$0xff]
    %v7231 = vld [vmem:[%s7165 + $0x208] sm:$0xff]
    %v7232 = vld [vmem:[%s7165 + $0x210] sm:$0xff]
    %v7233 = vld [vmem:[%s7165 + $0x218] sm:$0xff]
    %v7234 = vld [vmem:[%s7165 + $0x220] sm:$0xff]
    %v7235 = vld [vmem:[%s7165 + $0x228] sm:$0xff]
    %v7236 = vld [vmem:[%s7165 + $0x230] sm:$0xff]
    %v7237 = vld [vmem:[%s7165 + $0x238] sm:$0xff]
    %v7238 = vld [vmem:[%s7165 + $0x240] sm:$0xff]
    %v7239 = vld [vmem:[%s7165 + $0x248] sm:$0xff]
    %v7240 = vld [vmem:[%s7165 + $0x250] sm:$0xff]
    %v7241 = vld [vmem:[%s7165 + $0x258] sm:$0xff]
    %v7242 = vld [vmem:[%s7165 + $0x260] sm:$0xff]
    %v7243 = vld [vmem:[%s7165 + $0x268] sm:$0xff]
    %v7244 = vld [vmem:[%s7165 + $0x270] sm:$0xff]
    %v7245 = vld [vmem:[%s7165 + $0x278] sm:$0xff]
    %v7246 = vld [vmem:[%s7165 + $0x280] sm:$0xff]
    %v7247 = vld [vmem:[%s7165 + $0x288] sm:$0xff]
    %v7248 = vld [vmem:[%s7165 + $0x290] sm:$0xff]
    %v7249 = vld [vmem:[%s7165 + $0x298] sm:$0xff]
    %v7250 = vld [vmem:[%s7165 + $0x2a0] sm:$0xff]
    %v7251 = vld [vmem:[%s7165 + $0x2a8] sm:$0xff]
    %v7252 = vld [vmem:[%s7165 + $0x2b0] sm:$0xff]
    %v7253 = vld [vmem:[%s7165 + $0x2b8] sm:$0xff]
    %v7254 = vld [vmem:[%s7165 + $0x2c0] sm:$0xff]
    %v7255 = vld [vmem:[%s7165 + $0x2c8] sm:$0xff]
    %v7256 = vld [vmem:[%s7165 + $0x2d0] sm:$0xff]
    %v7257 = vld [vmem:[%s7165 + $0x2d8] sm:$0xff]
    %v7258 = vld [vmem:[%s7165 + $0x2e0] sm:$0xff]
    %v7259 = vld [vmem:[%s7165 + $0x2e8] sm:$0xff]
    %v7260 = vld [vmem:[%s7165 + $0x2f0] sm:$0xff]
    %v7261 = vld [vmem:[%s7165 + $0x2f8] sm:$0xff]
    %v7274 = vrot.slane %v4600, 4
    %v7275 = vrot.slane %v4603, 4
    %v7276 = vsel %vm6378, %v7274, %v7275
    %v7277 = vrot.slane %v4601, 4
    %v7278 = vrot.slane %v4604, 4
    %v7279 = vsel %vm6378, %v7277, %v7278
    %v7280 = vrot.slane %v4602, 4
    %v7281 = vrot.slane %v4605, 4
    %v7282 = vsel %vm6378, %v7280, %v7281
    %v7283 = vrot.slane %v4606, 4
    %v7284 = vsel %vm6378, %v7275, %v7283
    %v7285 = vrot.slane %v4607, 4
    %v7286 = vsel %vm6378, %v7278, %v7285
    %v7287 = vrot.slane %v4608, 4
    %v7288 = vsel %vm6378, %v7281, %v7287
    %v7289 = vrot.slane %v4609, 4
    %v7290 = vsel %vm6378, %v7283, %v7289
    %v7291 = vrot.slane %v4610, 4
    %v7292 = vsel %vm6378, %v7285, %v7291
    %v7293 = vrot.slane %v4611, 4
    %v7294 = vsel %vm6378, %v7287, %v7293
    %v7400 = vunpack.c.l.b16 %v7166
    %v7401 = vunpack.c.h.b16 %v7166
    %v7402 = vunpack.c.l.b16 %v7167
    %v7403 = vunpack.c.h.b16 %v7167
    %v7404 = vunpack.c.l.b16 %v7168
    %v7405 = vunpack.c.h.b16 %v7168
    %v7406 = vunpack.c.l.b16 %v7169
    %v7407 = vunpack.c.h.b16 %v7169
    %v7408 = vunpack.c.l.b16 %v7170
    %v7409 = vunpack.c.h.b16 %v7170
    %v7410 = vunpack.c.l.b16 %v7171
    %v7411 = vunpack.c.h.b16 %v7171
    %v7412 = vunpack.c.l.b16 %v7172
    %v7413 = vunpack.c.h.b16 %v7172
    %v7414 = vunpack.c.l.b16 %v7173
    %v7415 = vunpack.c.h.b16 %v7173
    %v7416 = vunpack.c.l.b16 %v7174
    %v7417 = vunpack.c.h.b16 %v7174
    %v7418 = vunpack.c.l.b16 %v7175
    %v7419 = vunpack.c.h.b16 %v7175
    %v7420 = vunpack.c.l.b16 %v7176
    %v7421 = vunpack.c.h.b16 %v7176
    %v7422 = vunpack.c.l.b16 %v7177
    %v7423 = vunpack.c.h.b16 %v7177
    %v7424 = vunpack.c.l.b16 %v7178
    %v7425 = vunpack.c.h.b16 %v7178
    %v7426 = vunpack.c.l.b16 %v7179
    %v7427 = vunpack.c.h.b16 %v7179
    %v7428 = vunpack.c.l.b16 %v7180
    %v7429 = vunpack.c.h.b16 %v7180
    %v7430 = vunpack.c.l.b16 %v7181
    %v7431 = vunpack.c.h.b16 %v7181
    %v7432 = vunpack.c.l.b16 %v7182
    %v7433 = vunpack.c.h.b16 %v7182
    %v7434 = vunpack.c.l.b16 %v7183
    %v7435 = vunpack.c.h.b16 %v7183
    %v7436 = vunpack.c.l.b16 %v7184
    %v7437 = vunpack.c.h.b16 %v7184
    %v7438 = vunpack.c.l.b16 %v7185
    %v7439 = vunpack.c.h.b16 %v7185
    %v7440 = vunpack.c.l.b16 %v7186
    %v7441 = vunpack.c.h.b16 %v7186
    %v7442 = vunpack.c.l.b16 %v7187
    %v7443 = vunpack.c.h.b16 %v7187
    %v7444 = vunpack.c.l.b16 %v7188
    %v7445 = vunpack.c.h.b16 %v7188
    %v7446 = vunpack.c.l.b16 %v7189
    %v7447 = vunpack.c.h.b16 %v7189
    %v7448 = vunpack.c.l.b16 %v7190
    %v7449 = vunpack.c.h.b16 %v7190
    %v7450 = vunpack.c.l.b16 %v7191
    %v7451 = vunpack.c.h.b16 %v7191
    %v7452 = vunpack.c.l.b16 %v7192
    %v7453 = vunpack.c.h.b16 %v7192
    %v7454 = vunpack.c.l.b16 %v7193
    %v7455 = vunpack.c.h.b16 %v7193
    %v7456 = vunpack.c.l.b16 %v7194
    %v7457 = vunpack.c.h.b16 %v7194
    %v7458 = vunpack.c.l.b16 %v7195
    %v7459 = vunpack.c.h.b16 %v7195
    %v7460 = vunpack.c.l.b16 %v7196
    %v7461 = vunpack.c.h.b16 %v7196
    %v7462 = vunpack.c.l.b16 %v7197
    %v7463 = vunpack.c.h.b16 %v7197
    %v7464 = vunpack.c.l.b16 %v7198
    %v7465 = vunpack.c.h.b16 %v7198
    %v7466 = vunpack.c.l.b16 %v7199
    %v7467 = vunpack.c.h.b16 %v7199
    %v7468 = vunpack.c.l.b16 %v7200
    %v7469 = vunpack.c.h.b16 %v7200
    %v7470 = vunpack.c.l.b16 %v7201
    %v7471 = vunpack.c.h.b16 %v7201
    %v7472 = vunpack.c.l.b16 %v7202
    %v7473 = vunpack.c.h.b16 %v7202
    %v7474 = vunpack.c.l.b16 %v7203
    %v7475 = vunpack.c.h.b16 %v7203
    %v7476 = vunpack.c.l.b16 %v7204
    %v7477 = vunpack.c.h.b16 %v7204
    %v7478 = vunpack.c.l.b16 %v7205
    %v7479 = vunpack.c.h.b16 %v7205
    %v7480 = vunpack.c.l.b16 %v7206
    %v7481 = vunpack.c.h.b16 %v7206
    %v7482 = vunpack.c.l.b16 %v7207
    %v7483 = vunpack.c.h.b16 %v7207
    %v7484 = vunpack.c.l.b16 %v7208
    %v7485 = vunpack.c.h.b16 %v7208
    %v7486 = vunpack.c.l.b16 %v7209
    %v7487 = vunpack.c.h.b16 %v7209
    %v7488 = vunpack.c.l.b16 %v7210
    %v7489 = vunpack.c.h.b16 %v7210
    %v7490 = vunpack.c.l.b16 %v7211
    %v7491 = vunpack.c.h.b16 %v7211
    %v7492 = vunpack.c.l.b16 %v7212
    %v7493 = vunpack.c.h.b16 %v7212
    %v7494 = vunpack.c.l.b16 %v7213
    %v7495 = vunpack.c.h.b16 %v7213
    %v7496 = vunpack.c.l.b16 %v7214
    %v7497 = vunpack.c.h.b16 %v7214
    %v7498 = vunpack.c.l.b16 %v7215
    %v7499 = vunpack.c.h.b16 %v7215
    %v7500 = vunpack.c.l.b16 %v7216
    %v7501 = vunpack.c.h.b16 %v7216
    %v7502 = vunpack.c.l.b16 %v7217
    %v7503 = vunpack.c.h.b16 %v7217
    %v7504 = vunpack.c.l.b16 %v7218
    %v7505 = vunpack.c.h.b16 %v7218
    %v7506 = vunpack.c.l.b16 %v7219
    %v7507 = vunpack.c.h.b16 %v7219
    %v7508 = vunpack.c.l.b16 %v7220
    %v7509 = vunpack.c.h.b16 %v7220
    %v7510 = vunpack.c.l.b16 %v7221
    %v7511 = vunpack.c.h.b16 %v7221
    %v7512 = vunpack.c.l.b16 %v7222
    %v7513 = vunpack.c.h.b16 %v7222
    %v7514 = vunpack.c.l.b16 %v7223
    %v7515 = vunpack.c.h.b16 %v7223
    %v7516 = vunpack.c.l.b16 %v7224
    %v7517 = vunpack.c.h.b16 %v7224
    %v7518 = vunpack.c.l.b16 %v7225
    %v7519 = vunpack.c.h.b16 %v7225
    %v7520 = vunpack.c.l.b16 %v7226
    %v7521 = vunpack.c.h.b16 %v7226
    %v7522 = vunpack.c.l.b16 %v7227
    %v7523 = vunpack.c.h.b16 %v7227
    %v7524 = vunpack.c.l.b16 %v7228
    %v7525 = vunpack.c.h.b16 %v7228
    %v7526 = vunpack.c.l.b16 %v7229
    %v7527 = vunpack.c.h.b16 %v7229
    %v7528 = vunpack.c.l.b16 %v7230
    %v7529 = vunpack.c.h.b16 %v7230
    %v7530 = vunpack.c.l.b16 %v7231
    %v7531 = vunpack.c.h.b16 %v7231
    %v7532 = vunpack.c.l.b16 %v7232
    %v7533 = vunpack.c.h.b16 %v7232
    %v7534 = vunpack.c.l.b16 %v7233
    %v7535 = vunpack.c.h.b16 %v7233
    %v7536 = vunpack.c.l.b16 %v7234
    %v7537 = vunpack.c.h.b16 %v7234
    %v7538 = vunpack.c.l.b16 %v7235
    %v7539 = vunpack.c.h.b16 %v7235
    %v7540 = vunpack.c.l.b16 %v7236
    %v7541 = vunpack.c.h.b16 %v7236
    %v7542 = vunpack.c.l.b16 %v7237
    %v7543 = vunpack.c.h.b16 %v7237
    %v7544 = vunpack.c.l.b16 %v7238
    %v7545 = vunpack.c.h.b16 %v7238
    %v7546 = vunpack.c.l.b16 %v7239
    %v7547 = vunpack.c.h.b16 %v7239
    %v7548 = vunpack.c.l.b16 %v7240
    %v7549 = vunpack.c.h.b16 %v7240
    %v7550 = vunpack.c.l.b16 %v7241
    %v7551 = vunpack.c.h.b16 %v7241
    %v7552 = vunpack.c.l.b16 %v7242
    %v7553 = vunpack.c.h.b16 %v7242
    %v7554 = vunpack.c.l.b16 %v7243
    %v7555 = vunpack.c.h.b16 %v7243
    %v7556 = vunpack.c.l.b16 %v7244
    %v7557 = vunpack.c.h.b16 %v7244
    %v7558 = vunpack.c.l.b16 %v7245
    %v7559 = vunpack.c.h.b16 %v7245
    %v7560 = vunpack.c.l.b16 %v7246
    %v7561 = vunpack.c.h.b16 %v7246
    %v7562 = vunpack.c.l.b16 %v7247
    %v7563 = vunpack.c.h.b16 %v7247
    %v7564 = vunpack.c.l.b16 %v7248
    %v7565 = vunpack.c.h.b16 %v7248
    %v7566 = vunpack.c.l.b16 %v7249
    %v7567 = vunpack.c.h.b16 %v7249
    %v7568 = vunpack.c.l.b16 %v7250
    %v7569 = vunpack.c.h.b16 %v7250
    %v7570 = vunpack.c.l.b16 %v7251
    %v7571 = vunpack.c.h.b16 %v7251
    %v7572 = vunpack.c.l.b16 %v7252
    %v7573 = vunpack.c.h.b16 %v7252
    %v7574 = vunpack.c.l.b16 %v7253
    %v7575 = vunpack.c.h.b16 %v7253
    %v7576 = vunpack.c.l.b16 %v7254
    %v7577 = vunpack.c.h.b16 %v7254
    %v7578 = vunpack.c.l.b16 %v7255
    %v7579 = vunpack.c.h.b16 %v7255
    %v7580 = vunpack.c.l.b16 %v7256
    %v7581 = vunpack.c.h.b16 %v7256
    %v7582 = vunpack.c.l.b16 %v7257
    %v7583 = vunpack.c.h.b16 %v7257
    %v7584 = vunpack.c.l.b16 %v7258
    %v7585 = vunpack.c.h.b16 %v7258
    %v7586 = vunpack.c.l.b16 %v7259
    %v7587 = vunpack.c.h.b16 %v7259
    %v7588 = vunpack.c.l.b16 %v7260
    %v7589 = vunpack.c.h.b16 %v7260
    %v7590 = vunpack.c.l.b16 %v7261
    %v7591 = vunpack.c.h.b16 %v7261
    %v7592 = vpack.c.b16 %v7404, %v7400
    %v7593 = vpack.c.b16 %v7405, %v7401
    %v7594 = vpack.c.b16 %v7406, %v7402
    %v7595 = vpack.c.b16 %v7407, %v7403
    %v7596 = vpack.c.b16 %v7412, %v7408
    %v7597 = vpack.c.b16 %v7413, %v7409
    %v7598 = vpack.c.b16 %v7414, %v7410
    %v7599 = vpack.c.b16 %v7415, %v7411
    %v7600 = vpack.c.b16 %v7420, %v7416
    %v7601 = vpack.c.b16 %v7421, %v7417
    %v7602 = vpack.c.b16 %v7422, %v7418
    %v7603 = vpack.c.b16 %v7423, %v7419
    %v7604 = vpack.c.b16 %v7428, %v7424
    %v7605 = vpack.c.b16 %v7429, %v7425
    %v7606 = vpack.c.b16 %v7430, %v7426
    %v7607 = vpack.c.b16 %v7431, %v7427
    %v7608 = vpack.c.b16 %v7436, %v7432
    %v7609 = vpack.c.b16 %v7437, %v7433
    %v7610 = vpack.c.b16 %v7438, %v7434
    %v7611 = vpack.c.b16 %v7439, %v7435
    %v7612 = vpack.c.b16 %v7444, %v7440
    %v7613 = vpack.c.b16 %v7445, %v7441
    %v7614 = vpack.c.b16 %v7446, %v7442
    %v7615 = vpack.c.b16 %v7447, %v7443
    %v7616 = vpack.c.b16 %v7452, %v7448
    %v7617 = vpack.c.b16 %v7453, %v7449
    %v7618 = vpack.c.b16 %v7454, %v7450
    %v7619 = vpack.c.b16 %v7455, %v7451
    %v7620 = vpack.c.b16 %v7460, %v7456
    %v7621 = vpack.c.b16 %v7461, %v7457
    %v7622 = vpack.c.b16 %v7462, %v7458
    %v7623 = vpack.c.b16 %v7463, %v7459
    %v7624 = vpack.c.b16 %v7468, %v7464
    %v7625 = vpack.c.b16 %v7469, %v7465
    %v7626 = vpack.c.b16 %v7470, %v7466
    %v7627 = vpack.c.b16 %v7471, %v7467
    %v7628 = vpack.c.b16 %v7476, %v7472
    %v7629 = vpack.c.b16 %v7477, %v7473
    %v7630 = vpack.c.b16 %v7478, %v7474
    %v7631 = vpack.c.b16 %v7479, %v7475
    %v7632 = vpack.c.b16 %v7484, %v7480
    %v7633 = vpack.c.b16 %v7485, %v7481
    %v7634 = vpack.c.b16 %v7486, %v7482
    %v7635 = vpack.c.b16 %v7487, %v7483
    %v7636 = vpack.c.b16 %v7492, %v7488
    %v7637 = vpack.c.b16 %v7493, %v7489
    %v7638 = vpack.c.b16 %v7494, %v7490
    %v7639 = vpack.c.b16 %v7495, %v7491
    %v7640 = vpack.c.b16 %v7500, %v7496
    %v7641 = vpack.c.b16 %v7501, %v7497
    %v7642 = vpack.c.b16 %v7502, %v7498
    %v7643 = vpack.c.b16 %v7503, %v7499
    %v7644 = vpack.c.b16 %v7508, %v7504
    %v7645 = vpack.c.b16 %v7509, %v7505
    %v7646 = vpack.c.b16 %v7510, %v7506
    %v7647 = vpack.c.b16 %v7511, %v7507
    %v7648 = vpack.c.b16 %v7516, %v7512
    %v7649 = vpack.c.b16 %v7517, %v7513
    %v7650 = vpack.c.b16 %v7518, %v7514
    %v7651 = vpack.c.b16 %v7519, %v7515
    %v7652 = vpack.c.b16 %v7524, %v7520
    %v7653 = vpack.c.b16 %v7525, %v7521
    %v7654 = vpack.c.b16 %v7526, %v7522
    %v7655 = vpack.c.b16 %v7527, %v7523
    %v7656 = vpack.c.b16 %v7532, %v7528
    %v7657 = vpack.c.b16 %v7533, %v7529
    %v7658 = vpack.c.b16 %v7534, %v7530
    %v7659 = vpack.c.b16 %v7535, %v7531
    %v7660 = vpack.c.b16 %v7540, %v7536
    %v7661 = vpack.c.b16 %v7541, %v7537
    %v7662 = vpack.c.b16 %v7542, %v7538
    %v7663 = vpack.c.b16 %v7543, %v7539
    %v7664 = vpack.c.b16 %v7548, %v7544
    %v7665 = vpack.c.b16 %v7549, %v7545
    %v7666 = vpack.c.b16 %v7550, %v7546
    %v7667 = vpack.c.b16 %v7551, %v7547
    %v7668 = vpack.c.b16 %v7556, %v7552
    %v7669 = vpack.c.b16 %v7557, %v7553
    %v7670 = vpack.c.b16 %v7558, %v7554
    %v7671 = vpack.c.b16 %v7559, %v7555
    %v7672 = vpack.c.b16 %v7564, %v7560
    %v7673 = vpack.c.b16 %v7565, %v7561
    %v7674 = vpack.c.b16 %v7566, %v7562
    %v7675 = vpack.c.b16 %v7567, %v7563
    %v7676 = vpack.c.b16 %v7572, %v7568
    %v7677 = vpack.c.b16 %v7573, %v7569
    %v7678 = vpack.c.b16 %v7574, %v7570
    %v7679 = vpack.c.b16 %v7575, %v7571
    %v7680 = vpack.c.b16 %v7580, %v7576
    %v7681 = vpack.c.b16 %v7581, %v7577
    %v7682 = vpack.c.b16 %v7582, %v7578
    %v7683 = vpack.c.b16 %v7583, %v7579
    %v7684 = vpack.c.b16 %v7588, %v7584
    %v7685 = vpack.c.b16 %v7589, %v7585
    %v7686 = vpack.c.b16 %v7590, %v7586
    %v7687 = vpack.c.b16 %v7591, %v7587
    %7784 = vmatprep.subr.bf16.mxu0 %v7593
    %7785 = vmatpush1.bf16.msra.mxu0 %v7592
    %7786 = vmatprep.subr.bf16.mxu0 %v7597
    %7787 = vmatpush1.bf16.msra.mxu0 %v7596
    %7788 = vmatprep.subr.bf16.mxu0 %v7601
    %7789 = vmatpush1.bf16.msra.mxu0 %v7600
    %7790 = vmatprep.subr.bf16.mxu0 %v7605
    %7791 = vmatpush1.bf16.msra.mxu0 %v7604
    %7792 = vmatprep.subr.bf16.mxu0 %v7609
    %7793 = vmatpush1.bf16.msra.mxu0 %v7608
    %7794 = vmatprep.subr.bf16.mxu0 %v7613
    %7795 = vmatpush1.bf16.msra.mxu0 %v7612
    %7796 = vmatprep.subr.bf16.mxu0 %v7617
    %7797 = vmatpush1.bf16.msra.mxu0 %v7616
    %7798 = vmatprep.subr.bf16.mxu0 %v7621
    %7799 = vmatpush1.bf16.msra.mxu0 %v7620
    %7800 = vmatprep.subr.bf16.mxu0 %v7625
    %7801 = vmatpush1.bf16.msra.mxu0 %v7624
    %7802 = vmatprep.subr.bf16.mxu0 %v7629
    %7803 = vmatpush1.bf16.msra.mxu0 %v7628
    %7804 = vmatprep.subr.bf16.mxu0 %v7633
    %7805 = vmatpush1.bf16.msra.mxu0 %v7632
    %7806 = vmatprep.subr.bf16.mxu0 %v7637
    %7807 = vmatpush1.bf16.msra.mxu0 %v7636
    %7808 = vmatprep.subr.bf16.mxu0 %v7641
    %7809 = vmatpush1.bf16.msra.mxu0 %v7640
    %7810 = vmatprep.subr.bf16.mxu0 %v7645
    %7811 = vmatpush1.bf16.msra.mxu0 %v7644
    %7812 = vmatprep.subr.bf16.mxu0 %v7649
    %7813 = vmatpush1.bf16.msra.mxu0 %v7648
    %7814 = vmatprep.subr.bf16.mxu0 %v7653
    %7815 = vmatpush1.bf16.msra.mxu0 %v7652
    %7816 = vmatprep.mubr.bf16.mxu0 %v7279
    %7817 = vmatmul.mubr.bf16.gmra.mrb[0].mxu0 %v7276
    %v7818 = vpop.f32.mrb[0].mxu0
    %v7819 = vadd.f32 0.0, %v7818
    %v7820 = vpop.f32.mrb[0].mxu0
    %v7821 = vadd.f32 0.0, %v7820
    %v7822 = vpop.f32.mrb[0].mxu0
    %v7823 = vadd.f32 0.0, %v7822
    %v7824 = vpop.f32.mrb[0].mxu0
    %v7825 = vadd.f32 0.0, %v7824
    %7826 = vmatprep.mubr.bf16.mxu0 %v7286
    %7827 = vmatmul.mubr.bf16.gmra.mrb[0].mxu0 %v7284
    %v7828 = vpop.f32.mrb[0].mxu0
    %v7829 = vadd.f32 0.0, %v7828
    %v7830 = vpop.f32.mrb[0].mxu0
    %v7831 = vadd.f32 0.0, %v7830
    %v7832 = vpop.f32.mrb[0].mxu0
    %v7833 = vadd.f32 0.0, %v7832
    %v7834 = vpop.f32.mrb[0].mxu0
    %v7835 = vadd.f32 0.0, %v7834
    %7836 = vmatprep.mubr.bf16.mxu0 %v7292
    %7837 = vmatmul.mubr.bf16.gmra.mrb[0].mxu0 %v7290
    %v7838 = vpop.f32.mrb[0].mxu0
    %v7839 = vadd.f32 0.0, %v7838
    %v7840 = vpop.f32.mrb[0].mxu0
    %v7841 = vadd.f32 0.0, %v7840
    %v7842 = vpop.f32.mrb[0].mxu0
    %v7843 = vadd.f32 0.0, %v7842
    %v7844 = vpop.f32.mrb[0].mxu0
    %v7845 = vadd.f32 0.0, %v7844
    %7846 = vdwg.mxu0
    %7847 = vmatprep.subr.bf16.mxu0 %v7657
    %7848 = vmatpush1.bf16.msra.mxu0 %v7656
    %7849 = vmatprep.subr.bf16.mxu0 %v7661
    %7850 = vmatpush1.bf16.msra.mxu0 %v7660
    %7851 = vmatprep.subr.bf16.mxu0 %v7665
    %7852 = vmatpush1.bf16.msra.mxu0 %v7664
    %7853 = vmatprep.subr.bf16.mxu0 %v7669
    %7854 = vmatpush1.bf16.msra.mxu0 %v7668
    %7855 = vmatprep.subr.bf16.mxu0 %v7673
    %7856 = vmatpush1.bf16.msra.mxu0 %v7672
    %7857 = vmatprep.subr.bf16.mxu0 %v7677
    %7858 = vmatpush1.bf16.msra.mxu0 %v7676
    %7859 = vmatprep.subr.bf16.mxu0 %v7681
    %7860 = vmatpush1.bf16.msra.mxu0 %v7680
    %7861 = vmatprep.subr.bf16.mxu0 %v7685
    %7862 = vmatpush1.bf16.msra.mxu0 %v7684
    %7863 = vmatprep.subr.bf16.mxu0 0
    %7864 = vmatpush1.bf16.msra.mxu0 0
    %7865 = vmatprep.subr.bf16.mxu0 0
    %7866 = vmatpush1.bf16.msra.mxu0 0
    %7867 = vmatprep.subr.bf16.mxu0 0
    %7868 = vmatpush1.bf16.msra.mxu0 0
    %7869 = vmatprep.subr.bf16.mxu0 0
    %7870 = vmatpush1.bf16.msra.mxu0 0
    %7871 = vmatprep.subr.bf16.mxu0 0
    %7872 = vmatpush1.bf16.msra.mxu0 0
    %7873 = vmatprep.subr.bf16.mxu0 0
    %7874 = vmatpush1.bf16.msra.mxu0 0
    %7875 = vmatprep.subr.bf16.mxu0 0
    %7876 = vmatpush1.bf16.msra.mxu0 0
    %7877 = vmatprep.subr.bf16.mxu0 0
    %7878 = vmatpush1.bf16.msra.mxu0 0
    %7879 = vmatprep.mubr.bf16.mxu0 0
    %7880 = vmatmul.mubr.bf16.gmra.mrb[0].mxu0 %v7282
    %v7881 = vpop.f32.mrb[0].mxu0
    %v7882 = vadd.f32 %v7819, %v7881
    %v7883 = vpop.f32.mrb[0].mxu0
    %v7884 = vadd.f32 %v7821, %v7883
    %v7885 = vpop.f32.mrb[0].mxu0
    %v7886 = vadd.f32 %v7823, %v7885
    %v7887 = vpop.f32.mrb[0].mxu0
    %v7888 = vadd.f32 %v7825, %v7887
    %7889 = vmatprep.mubr.bf16.mxu0 0
    %7890 = vmatmul.mubr.bf16.gmra.mrb[0].mxu0 %v7288
    %v7891 = vpop.f32.mrb[0].mxu0
    %v7892 = vadd.f32 %v7829, %v7891
    %v7893 = vpop.f32.mrb[0].mxu0
    %v7894 = vadd.f32 %v7831, %v7893
    %v7895 = vpop.f32.mrb[0].mxu0
    %v7896 = vadd.f32 %v7833, %v7895
    %v7897 = vpop.f32.mrb[0].mxu0
    %v7898 = vadd.f32 %v7835, %v7897
    %7899 = vmatprep.mubr.bf16.mxu0 0
    %7900 = vmatmul.mubr.bf16.gmra.mrb[0].mxu0 %v7294
    %v7901 = vpop.f32.mrb[0].mxu0
    %v7902 = vadd.f32 %v7839, %v7901
    %v7903 = vpop.f32.mrb[0].mxu0
    %v7904 = vadd.f32 %v7841, %v7903
    %v7905 = vpop.f32.mrb[0].mxu0
    %v7906 = vadd.f32 %v7843, %v7905
    %v7907 = vpop.f32.mrb[0].mxu0
    %v7908 = vadd.f32 %v7845, %v7907
    %7909 = vdwg.mxu0
    %7910 = vmatprep.subr.bf16.mxu0 %v7595
    %7911 = vmatpush1.bf16.msra.mxu0 %v7594
    %7912 = vmatprep.subr.bf16.mxu0 %v7599
    %7913 = vmatpush1.bf16.msra.mxu0 %v7598
    %7914 = vmatprep.subr.bf16.mxu0 %v7603
    %7915 = vmatpush1.bf16.msra.mxu0 %v7602
    %7916 = vmatprep.subr.bf16.mxu0 %v7607
    %7917 = vmatpush1.bf16.msra.mxu0 %v7606
    %7918 = vmatprep.subr.bf16.mxu0 %v7611
    %7919 = vmatpush1.bf16.msra.mxu0 %v7610
    %7920 = vmatprep.subr.bf16.mxu0 %v7615
    %7921 = vmatpush1.bf16.msra.mxu0 %v7614
    %7922 = vmatprep.subr.bf16.mxu0 %v7619
    %7923 = vmatpush1.bf16.msra.mxu0 %v7618
    %7924 = vmatprep.subr.bf16.mxu0 %v7623
    %7925 = vmatpush1.bf16.msra.mxu0 %v7622
    %7926 = vmatprep.subr.bf16.mxu0 %v7627
    %7927 = vmatpush1.bf16.msra.mxu0 %v7626
    %7928 = vmatprep.subr.bf16.mxu0 %v7631
    %7929 = vmatpush1.bf16.msra.mxu0 %v7630
    %7930 = vmatprep.subr.bf16.mxu0 %v7635
    %7931 = vmatpush1.bf16.msra.mxu0 %v7634
    %7932 = vmatprep.subr.bf16.mxu0 %v7639
    %7933 = vmatpush1.bf16.msra.mxu0 %v7638
    %7934 = vmatprep.subr.bf16.mxu0 %v7643
    %7935 = vmatpush1.bf16.msra.mxu0 %v7642
    %7936 = vmatprep.subr.bf16.mxu0 %v7647
    %7937 = vmatpush1.bf16.msra.mxu0 %v7646
    %7938 = vmatprep.subr.bf16.mxu0 %v7651
    %7939 = vmatpush1.bf16.msra.mxu0 %v7650
    %7940 = vmatprep.subr.bf16.mxu0 %v7655
    %7941 = vmatpush1.bf16.msra.mxu0 %v7654
    %7942 = vmatprep.mubr.bf16.mxu0 %v7279
    %7943 = vmatmul.mubr.bf16.gmra.mrb[0].mxu0 %v7276
    %v7944 = vpop.f32.mrb[0].mxu0
    %v7945 = vadd.f32 0.0, %v7944
    %v7946 = vpop.f32.mrb[0].mxu0
    %v7947 = vadd.f32 0.0, %v7946
    %v7948 = vpop.f32.mrb[0].mxu0
    %v7949 = vadd.f32 0.0, %v7948
    %v7950 = vpop.f32.mrb[0].mxu0
    %v7951 = vadd.f32 0.0, %v7950
    %7952 = vmatprep.mubr.bf16.mxu0 %v7286
    %7953 = vmatmul.mubr.bf16.gmra.mrb[0].mxu0 %v7284
    %v7954 = vpop.f32.mrb[0].mxu0
    %v7955 = vadd.f32 0.0, %v7954
    %v7956 = vpop.f32.mrb[0].mxu0
    %v7957 = vadd.f32 0.0, %v7956
    %v7958 = vpop.f32.mrb[0].mxu0
    %v7959 = vadd.f32 0.0, %v7958
    %v7960 = vpop.f32.mrb[0].mxu0
    %v7961 = vadd.f32 0.0, %v7960
    %7962 = vmatprep.mubr.bf16.mxu0 %v7292
    %7963 = vmatmul.mubr.bf16.gmra.mrb[0].mxu0 %v7290
    %v7964 = vpop.f32.mrb[0].mxu0
    %v7965 = vadd.f32 0.0, %v7964
    %v7966 = vpop.f32.mrb[0].mxu0
    %v7967 = vadd.f32 0.0, %v7966
    %v7968 = vpop.f32.mrb[0].mxu0
    %v7969 = vadd.f32 0.0, %v7968
    %v7970 = vpop.f32.mrb[0].mxu0
    %v7971 = vadd.f32 0.0, %v7970
    %7972 = vdwg.mxu0
    %7973 = vmatprep.subr.bf16.mxu0 %v7659
    %7974 = vmatpush1.bf16.msra.mxu0 %v7658
    %7975 = vmatprep.subr.bf16.mxu0 %v7663
    %7976 = vmatpush1.bf16.msra.mxu0 %v7662
    %7977 = vmatprep.subr.bf16.mxu0 %v7667
    %7978 = vmatpush1.bf16.msra.mxu0 %v7666
    %7979 = vmatprep.subr.bf16.mxu0 %v7671
    %7980 = vmatpush1.bf16.msra.mxu0 %v7670
    %7981 = vmatprep.subr.bf16.mxu0 %v7675
    %7982 = vmatpush1.bf16.msra.mxu0 %v7674
    %7983 = vmatprep.subr.bf16.mxu0 %v7679
    %7984 = vmatpush1.bf16.msra.mxu0 %v7678
    %7985 = vmatprep.subr.bf16.mxu0 %v7683
    %7986 = vmatpush1.bf16.msra.mxu0 %v7682
    %7987 = vmatprep.subr.bf16.mxu0 %v7687
    %7988 = vmatpush1.bf16.msra.mxu0 %v7686
    %7989 = vmatprep.subr.bf16.mxu0 0
    %7990 = vmatpush1.bf16.msra.mxu0 0
    %7991 = vmatprep.subr.bf16.mxu0 0
    %7992 = vmatpush1.bf16.msra.mxu0 0
    %7993 = vmatprep.subr.bf16.mxu0 0
    %7994 = vmatpush1.bf16.msra.mxu0 0
    %7995 = vmatprep.subr.bf16.mxu0 0
    %7996 = vmatpush1.bf16.msra.mxu0 0
    %7997 = vmatprep.subr.bf16.mxu0 0
    %7998 = vmatpush1.bf16.msra.mxu0 0
    %7999 = vmatprep.subr.bf16.mxu0 0
    %8000 = vmatpush1.bf16.msra.mxu0 0
    %8001 = vmatprep.subr.bf16.mxu0 0
    %8002 = vmatpush1.bf16.msra.mxu0 0
    %8003 = vmatprep.subr.bf16.mxu0 0
    %8004 = vmatpush1.bf16.msra.mxu0 0
    %8005 = vmatprep.mubr.bf16.mxu0 0
    %8006 = vmatmul.mubr.bf16.gmra.mrb[0].mxu0 %v7282
    %v8007 = vpop.f32.mrb[0].mxu0
    %v8008 = vadd.f32 %v7945, %v8007
    %v8009 = vpop.f32.mrb[0].mxu0
    %v8010 = vadd.f32 %v7947, %v8009
    %v8011 = vpop.f32.mrb[0].mxu0
    %v8012 = vadd.f32 %v7949, %v8011
    %v8013 = vpop.f32.mrb[0].mxu0
    %v8014 = vadd.f32 %v7951, %v8013
    %8015 = vmatprep.mubr.bf16.mxu0 0
    %8016 = vmatmul.mubr.bf16.gmra.mrb[0].mxu0 %v7288
    %v8017 = vpop.f32.mrb[0].mxu0
    %v8018 = vadd.f32 %v7955, %v8017
    %v8019 = vpop.f32.mrb[0].mxu0
    %v8020 = vadd.f32 %v7957, %v8019
    %v8021 = vpop.f32.mrb[0].mxu0
    %v8022 = vadd.f32 %v7959, %v8021
    %v8023 = vpop.f32.mrb[0].mxu0
    %v8024 = vadd.f32 %v7961, %v8023
    %8025 = vmatprep.mubr.bf16.mxu0 0
    %8026 = vmatmul.mubr.bf16.gmra.mrb[0].mxu0 %v7294
    %v8027 = vpop.f32.mrb[0].mxu0
    %v8028 = vadd.f32 %v7965, %v8027
    %v8029 = vpop.f32.mrb[0].mxu0
    %v8030 = vadd.f32 %v7967, %v8029
    %v8031 = vpop.f32.mrb[0].mxu0
    %v8032 = vadd.f32 %v7969, %v8031
    %v8033 = vpop.f32.mrb[0].mxu0
    %v8034 = vadd.f32 %v7971, %v8033
    %8035 = vdwg.mxu0
    %v8036 = vadd.f32 %v7141, %v7882
    %v8037 = vadd.f32 %v7142, %v7884
    %v8038 = vadd.f32 %v7143, %v8008
    %v8039 = vadd.f32 %v7144, %v8010
    %v8040 = vadd.f32 %v7145, %v7886
    %v8041 = vadd.f32 %v7146, %v7888
    %v8042 = vadd.f32 %v7147, %v8012
    %v8043 = vadd.f32 %v7148, %v8014
    %v8044 = vadd.f32 %v7149, %v7892
    %v8045 = vadd.f32 %v7150, %v7894
    %v8046 = vadd.f32 %v7151, %v8018
    %v8047 = vadd.f32 %v7152, %v8020
    %v8048 = vadd.f32 %v7153, %v7896
    %v8049 = vadd.f32 %v7154, %v7898
    %v8050 = vadd.f32 %v7155, %v8022
    %v8051 = vadd.f32 %v7156, %v8024
    %v8052 = vadd.f32 %v7157, %v7902
    %v8053 = vadd.f32 %v7158, %v7904
    %v8054 = vadd.f32 %v7159, %v8028
    %v8055 = vadd.f32 %v7160, %v8030
    %v8056 = vadd.f32 %v7161, %v7906
    %v8057 = vadd.f32 %v7162, %v7908
    %v8058 = vadd.f32 %v7163, %v8032
    %v8059 = vadd.f32 %v7164, %v8034
    %v8061 = vlaneseq
    %v8062 = vshrl.u32 %v8061, 7
    %v8063 = vsub.s32 0, %v8062
    %v8064 = vrot.slane %v230, %v8063
    %v8065 = vlaneseq
    %v8066 = vshrl.u32 %v8065, 7
    %v8067 = vsub.s32 1, %v8066
    %v8068 = vrot.slane %v230, %v8067
    %v8069 = vlaneseq
    %v8070 = vshrl.u32 %v8069, 7
    %v8071 = vsub.s32 2, %v8070
    %v8072 = vrot.slane %v230, %v8071
    %v8073 = vlaneseq
    %v8074 = vshrl.u32 %v8073, 7
    %v8075 = vsub.s32 3, %v8074
    %v8076 = vrot.slane %v230, %v8075
    %v8081 = vmul.f32 %v8036, %v8064
    %v8082 = vmul.f32 %v8037, %v8068
    %v8083 = vmul.f32 %v8038, %v8072
    %v8084 = vmul.f32 %v8039, %v8076
    %v8085 = vmul.f32 %v8040, %v8064
    %v8086 = vmul.f32 %v8041, %v8068
    %v8087 = vmul.f32 %v8042, %v8072
    %v8088 = vmul.f32 %v8043, %v8076
    %v8089 = vmul.f32 %v8044, %v8064
    %v8090 = vmul.f32 %v8045, %v8068
    %v8091 = vmul.f32 %v8046, %v8072
    %v8092 = vmul.f32 %v8047, %v8076
    %v8093 = vmul.f32 %v8048, %v8064
    %v8094 = vmul.f32 %v8049, %v8068
    %v8095 = vmul.f32 %v8050, %v8072
    %v8096 = vmul.f32 %v8051, %v8076
    %v8097 = vmul.f32 %v8052, %v8064
    %v8098 = vmul.f32 %v8053, %v8068
    %v8099 = vmul.f32 %v8054, %v8072
    %v8100 = vmul.f32 %v8055, %v8076
    %v8101 = vmul.f32 %v8056, %v8064
    %v8102 = vmul.f32 %v8057, %v8068
    %v8103 = vmul.f32 %v8058, %v8072
    %v8104 = vmul.f32 %v8059, %v8076
    %v8106 = vlaneseq
    %v8107 = vshrl.u32 %v8106, 7
    %v8108 = vsub.s32 0, %v8107
    %v8109 = vrot.slane %v231, %v8108
    %v8110 = vlaneseq
    %v8111 = vshrl.u32 %v8110, 7
    %v8112 = vsub.s32 1, %v8111
    %v8113 = vrot.slane %v231, %v8112
    %v8114 = vlaneseq
    %v8115 = vshrl.u32 %v8114, 7
    %v8116 = vsub.s32 2, %v8115
    %v8117 = vrot.slane %v231, %v8116
    %v8118 = vlaneseq
    %v8119 = vshrl.u32 %v8118, 7
    %v8120 = vsub.s32 3, %v8119
    %v8121 = vrot.slane %v231, %v8120
    %v8126 = vadd.f32 %v8081, %v8109
    %v8127 = vadd.f32 %v8082, %v8113
    %v8128 = vadd.f32 %v8083, %v8117
    %v8129 = vadd.f32 %v8084, %v8121
    %v8130 = vadd.f32 %v8085, %v8109
    %v8131 = vadd.f32 %v8086, %v8113
    %v8132 = vadd.f32 %v8087, %v8117
    %v8133 = vadd.f32 %v8088, %v8121
    %v8134 = vadd.f32 %v8089, %v8109
    %v8135 = vadd.f32 %v8090, %v8113
    %v8136 = vadd.f32 %v8091, %v8117
    %v8137 = vadd.f32 %v8092, %v8121
    %v8138 = vadd.f32 %v8093, %v8109
    %v8139 = vadd.f32 %v8094, %v8113
    %v8140 = vadd.f32 %v8095, %v8117
    %v8141 = vadd.f32 %v8096, %v8121
    %v8142 = vadd.f32 %v8097, %v8109
    %v8143 = vadd.f32 %v8098, %v8113
    %v8144 = vadd.f32 %v8099, %v8117
    %v8145 = vadd.f32 %v8100, %v8121
    %v8146 = vadd.f32 %v8101, %v8109
    %v8147 = vadd.f32 %v8102, %v8113
    %v8148 = vadd.f32 %v8103, %v8117
    %v8149 = vadd.f32 %v8104, %v8121
    %v8150 = vmax.f32 %v8126, %v8128
    %v8151 = vmax.f32 %v8127, %v8129
    %v8152 = vmax.f32 %v8130, %v8132
    %v8153 = vmax.f32 %v8131, %v8133
    %v8154 = vmax.f32 %v8134, %v8136
    %v8155 = vmax.f32 %v8135, %v8137
    %v8156 = vmax.f32 %v8138, %v8140
    %v8157 = vmax.f32 %v8139, %v8141
    %v8158 = vmax.f32 %v8142, %v8144
    %v8159 = vmax.f32 %v8143, %v8145
    %v8160 = vmax.f32 %v8146, %v8148
    %v8161 = vmax.f32 %v8147, %v8149
    %8162 = vmatprep.subr.bf16.mxu0 %v5094
    %8163 = vmatpush1.bf16.msra.mxu0 %v5093
    %8164 = vmatprep.subr.bf16.mxu0 %v5098
    %8165 = vmatpush1.bf16.msra.mxu0 %v5097
    %8166 = vmatprep.subr.bf16.mxu0 %v5102
    %8167 = vmatpush1.bf16.msra.mxu0 %v5101
    %8168 = vmatprep.subr.bf16.mxu0 %v5106
    %8169 = vmatpush1.bf16.msra.mxu0 %v5105
    %8170 = vmatprep.subr.bf16.mxu0 %v5110
    %8171 = vmatpush1.bf16.msra.mxu0 %v5109
    %8172 = vmatprep.subr.bf16.mxu0 %v5114
    %8173 = vmatpush1.bf16.msra.mxu0 %v5113
    %8174 = vmatprep.subr.bf16.mxu0 %v5118
    %8175 = vmatpush1.bf16.msra.mxu0 %v5117
    %8176 = vmatprep.subr.bf16.mxu0 %v5122
    %8177 = vmatpush1.bf16.msra.mxu0 %v5121
    %8178 = vmatprep.subr.bf16.mxu0 %v5126
    %8179 = vmatpush1.bf16.msra.mxu0 %v5125
    %8180 = vmatprep.subr.bf16.mxu0 %v5130
    %8181 = vmatpush1.bf16.msra.mxu0 %v5129
    %8182 = vmatprep.subr.bf16.mxu0 %v5134
    %8183 = vmatpush1.bf16.msra.mxu0 %v5133
    %8184 = vmatprep.subr.bf16.mxu0 %v5138
    %8185 = vmatpush1.bf16.msra.mxu0 %v5137
    %8186 = vmatprep.subr.bf16.mxu0 %v5142
    %8187 = vmatpush1.bf16.msra.mxu0 %v5141
    %8188 = vmatprep.subr.bf16.mxu0 %v5146
    %8189 = vmatpush1.bf16.msra.mxu0 %v5145
    %8190 = vmatprep.subr.bf16.mxu0 %v5150
    %8191 = vmatpush1.bf16.msra.mxu0 %v5149
    %8192 = vmatprep.subr.bf16.mxu0 %v5154
    %8193 = vmatpush1.bf16.msra.mxu0 %v5153
    %8194 = vmatprep.mubr.bf16.mxu0 %v6384
    %8195 = vmatmul.mubr.bf16.gmra.mrb[0].mxu0 %v6381
    %v8196 = vpop.f32.mrb[0].mxu0
    %v8197 = vadd.f32 0.0, %v8196
    %v8198 = vpop.f32.mrb[0].mxu0
    %v8199 = vadd.f32 0.0, %v8198
    %v8200 = vpop.f32.mrb[0].mxu0
    %v8201 = vadd.f32 0.0, %v8200
    %v8202 = vpop.f32.mrb[0].mxu0
    %v8203 = vadd.f32 0.0, %v8202
    %8204 = vmatprep.mubr.bf16.mxu0 %v6391
    %8205 = vmatmul.mubr.bf16.gmra.mrb[0].mxu0 %v6389
    %v8206 = vpop.f32.mrb[0].mxu0
    %v8207 = vadd.f32 0.0, %v8206
    %v8208 = vpop.f32.mrb[0].mxu0
    %v8209 = vadd.f32 0.0, %v8208
    %v8210 = vpop.f32.mrb[0].mxu0
    %v8211 = vadd.f32 0.0, %v8210
    %v8212 = vpop.f32.mrb[0].mxu0
    %v8213 = vadd.f32 0.0, %v8212
    %8214 = vmatprep.mubr.bf16.mxu0 %v6397
    %8215 = vmatmul.mubr.bf16.gmra.mrb[0].mxu0 %v6395
    %v8216 = vpop.f32.mrb[0].mxu0
    %v8217 = vadd.f32 0.0, %v8216
    %v8218 = vpop.f32.mrb[0].mxu0
    %v8219 = vadd.f32 0.0, %v8218
    %v8220 = vpop.f32.mrb[0].mxu0
    %v8221 = vadd.f32 0.0, %v8220
    %v8222 = vpop.f32.mrb[0].mxu0
    %v8223 = vadd.f32 0.0, %v8222
    %8224 = vdwg.mxu0
    %8225 = vmatprep.subr.bf16.mxu0 %v5158
    %8226 = vmatpush1.bf16.msra.mxu0 %v5157
    %8227 = vmatprep.subr.bf16.mxu0 %v5162
    %8228 = vmatpush1.bf16.msra.mxu0 %v5161
    %8229 = vmatprep.subr.bf16.mxu0 %v5166
    %8230 = vmatpush1.bf16.msra.mxu0 %v5165
    %8231 = vmatprep.subr.bf16.mxu0 %v5170
    %8232 = vmatpush1.bf16.msra.mxu0 %v5169
    %8233 = vmatprep.subr.bf16.mxu0 %v5174
    %8234 = vmatpush1.bf16.msra.mxu0 %v5173
    %8235 = vmatprep.subr.bf16.mxu0 %v5178
    %8236 = vmatpush1.bf16.msra.mxu0 %v5177
    %8237 = vmatprep.subr.bf16.mxu0 %v5182
    %8238 = vmatpush1.bf16.msra.mxu0 %v5181
    %8239 = vmatprep.subr.bf16.mxu0 %v5186
    %8240 = vmatpush1.bf16.msra.mxu0 %v5185
    %8241 = vmatprep.subr.bf16.mxu0 0
    %8242 = vmatpush1.bf16.msra.mxu0 0
    %8243 = vmatprep.subr.bf16.mxu0 0
    %8244 = vmatpush1.bf16.msra.mxu0 0
    %8245 = vmatprep.subr.bf16.mxu0 0
    %8246 = vmatpush1.bf16.msra.mxu0 0
    %8247 = vmatprep.subr.bf16.mxu0 0
    %8248 = vmatpush1.bf16.msra.mxu0 0
    %8249 = vmatprep.subr.bf16.mxu0 0
    %8250 = vmatpush1.bf16.msra.mxu0 0
    %8251 = vmatprep.subr.bf16.mxu0 0
    %8252 = vmatpush1.bf16.msra.mxu0 0
    %8253 = vmatprep.subr.bf16.mxu0 0
    %8254 = vmatpush1.bf16.msra.mxu0 0
    %8255 = vmatprep.subr.bf16.mxu0 0
    %8256 = vmatpush1.bf16.msra.mxu0 0
    %8257 = vmatprep.mubr.bf16.mxu0 0
    %8258 = vmatmul.mubr.bf16.gmra.mrb[0].mxu0 %v6387
    %v8259 = vpop.f32.mrb[0].mxu0
    %v8260 = vadd.f32 %v8197, %v8259
    %v8261 = vpop.f32.mrb[0].mxu0
    %v8262 = vadd.f32 %v8199, %v8261
    %v8263 = vpop.f32.mrb[0].mxu0
    %v8264 = vadd.f32 %v8201, %v8263
    %v8265 = vpop.f32.mrb[0].mxu0
    %v8266 = vadd.f32 %v8203, %v8265
    %8267 = vmatprep.mubr.bf16.mxu0 0
    %8268 = vmatmul.mubr.bf16.gmra.mrb[0].mxu0 %v6393
    %v8269 = vpop.f32.mrb[0].mxu0
    %v8270 = vadd.f32 %v8207, %v8269
    %v8271 = vpop.f32.mrb[0].mxu0
    %v8272 = vadd.f32 %v8209, %v8271
    %v8273 = vpop.f32.mrb[0].mxu0
    %v8274 = vadd.f32 %v8211, %v8273
    %v8275 = vpop.f32.mrb[0].mxu0
    %v8276 = vadd.f32 %v8213, %v8275
    %8277 = vmatprep.mubr.bf16.mxu0 0
    %8278 = vmatmul.mubr.bf16.gmra.mrb[0].mxu0 %v6399
    %v8279 = vpop.f32.mrb[0].mxu0
    %v8280 = vadd.f32 %v8217, %v8279
    %v8281 = vpop.f32.mrb[0].mxu0
    %v8282 = vadd.f32 %v8219, %v8281
    %v8283 = vpop.f32.mrb[0].mxu0
    %v8284 = vadd.f32 %v8221, %v8283
    %v8285 = vpop.f32.mrb[0].mxu0
    %v8286 = vadd.f32 %v8223, %v8285
    %8287 = vdwg.mxu0
    %8288 = vmatprep.subr.bf16.mxu0 %v5096
    %8289 = vmatpush1.bf16.msra.mxu0 %v5095
    %8290 = vmatprep.subr.bf16.mxu0 %v5100
    %8291 = vmatpush1.bf16.msra.mxu0 %v5099
    %8292 = vmatprep.subr.bf16.mxu0 %v5104
    %8293 = vmatpush1.bf16.msra.mxu0 %v5103
    %8294 = vmatprep.subr.bf16.mxu0 %v5108
    %8295 = vmatpush1.bf16.msra.mxu0 %v5107
    %8296 = vmatprep.subr.bf16.mxu0 %v5112
    %8297 = vmatpush1.bf16.msra.mxu0 %v5111
    %8298 = vmatprep.subr.bf16.mxu0 %v5116
    %8299 = vmatpush1.bf16.msra.mxu0 %v5115
    %8300 = vmatprep.subr.bf16.mxu0 %v5120
    %8301 = vmatpush1.bf16.msra.mxu0 %v5119
    %8302 = vmatprep.subr.bf16.mxu0 %v5124
    %8303 = vmatpush1.bf16.msra.mxu0 %v5123
    %8304 = vmatprep.subr.bf16.mxu0 %v5128
    %8305 = vmatpush1.bf16.msra.mxu0 %v5127
    %8306 = vmatprep.subr.bf16.mxu0 %v5132
    %8307 = vmatpush1.bf16.msra.mxu0 %v5131
    %8308 = vmatprep.subr.bf16.mxu0 %v5136
    %8309 = vmatpush1.bf16.msra.mxu0 %v5135
    %8310 = vmatprep.subr.bf16.mxu0 %v5140
    %8311 = vmatpush1.bf16.msra.mxu0 %v5139
    %8312 = vmatprep.subr.bf16.mxu0 %v5144
    %8313 = vmatpush1.bf16.msra.mxu0 %v5143
    %8314 = vmatprep.subr.bf16.mxu0 %v5148
    %8315 = vmatpush1.bf16.msra.mxu0 %v5147
    %8316 = vmatprep.subr.bf16.mxu0 %v5152
    %8317 = vmatpush1.bf16.msra.mxu0 %v5151
    %8318 = vmatprep.subr.bf16.mxu0 %v5156
    %8319 = vmatpush1.bf16.msra.mxu0 %v5155
    %8320 = vmatprep.mubr.bf16.mxu0 %v6384
    %8321 = vmatmul.mubr.bf16.gmra.mrb[0].mxu0 %v6381
    %v8322 = vpop.f32.mrb[0].mxu0
    %v8323 = vadd.f32 0.0, %v8322
    %v8324 = vpop.f32.mrb[0].mxu0
    %v8325 = vadd.f32 0.0, %v8324
    %v8326 = vpop.f32.mrb[0].mxu0
    %v8327 = vadd.f32 0.0, %v8326
    %v8328 = vpop.f32.mrb[0].mxu0
    %v8329 = vadd.f32 0.0, %v8328
    %8330 = vmatprep.mubr.bf16.mxu0 %v6391
    %8331 = vmatmul.mubr.bf16.gmra.mrb[0].mxu0 %v6389
    %v8332 = vpop.f32.mrb[0].mxu0
    %v8333 = vadd.f32 0.0, %v8332
    %v8334 = vpop.f32.mrb[0].mxu0
    %v8335 = vadd.f32 0.0, %v8334
    %v8336 = vpop.f32.mrb[0].mxu0
    %v8337 = vadd.f32 0.0, %v8336
    %v8338 = vpop.f32.mrb[0].mxu0
    %v8339 = vadd.f32 0.0, %v8338
    %8340 = vmatprep.mubr.bf16.mxu0 %v6397
    %8341 = vmatmul.mubr.bf16.gmra.mrb[0].mxu0 %v6395
    %v8342 = vpop.f32.mrb[0].mxu0
    %v8343 = vadd.f32 0.0, %v8342
    %v8344 = vpop.f32.mrb[0].mxu0
    %v8345 = vadd.f32 0.0, %v8344
    %v8346 = vpop.f32.mrb[0].mxu0
    %v8347 = vadd.f32 0.0, %v8346
    %v8348 = vpop.f32.mrb[0].mxu0
    %v8349 = vadd.f32 0.0, %v8348
    %8350 = vdwg.mxu0
    %8351 = vmatprep.subr.bf16.mxu0 %v5160
    %8352 = vmatpush1.bf16.msra.mxu0 %v5159
    %8353 = vmatprep.subr.bf16.mxu0 %v5164
    %8354 = vmatpush1.bf16.msra.mxu0 %v5163
    %8355 = vmatprep.subr.bf16.mxu0 %v5168
    %8356 = vmatpush1.bf16.msra.mxu0 %v5167
    %8357 = vmatprep.subr.bf16.mxu0 %v5172
    %8358 = vmatpush1.bf16.msra.mxu0 %v5171
    %8359 = vmatprep.subr.bf16.mxu0 %v5176
    %8360 = vmatpush1.bf16.msra.mxu0 %v5175
    %8361 = vmatprep.subr.bf16.mxu0 %v5180
    %8362 = vmatpush1.bf16.msra.mxu0 %v5179
    %8363 = vmatprep.subr.bf16.mxu0 %v5184
    %8364 = vmatpush1.bf16.msra.mxu0 %v5183
    %8365 = vmatprep.subr.bf16.mxu0 %v5188
    %8366 = vmatpush1.bf16.msra.mxu0 %v5187
    %8367 = vmatprep.subr.bf16.mxu0 0
    %8368 = vmatpush1.bf16.msra.mxu0 0
    %8369 = vmatprep.subr.bf16.mxu0 0
    %8370 = vmatpush1.bf16.msra.mxu0 0
    %8371 = vmatprep.subr.bf16.mxu0 0
    %8372 = vmatpush1.bf16.msra.mxu0 0
    %8373 = vmatprep.subr.bf16.mxu0 0
    %8374 = vmatpush1.bf16.msra.mxu0 0
    %8375 = vmatprep.subr.bf16.mxu0 0
    %8376 = vmatpush1.bf16.msra.mxu0 0
    %8377 = vmatprep.subr.bf16.mxu0 0
    %8378 = vmatpush1.bf16.msra.mxu0 0
    %8379 = vmatprep.subr.bf16.mxu0 0
    %8380 = vmatpush1.bf16.msra.mxu0 0
    %8381 = vmatprep.subr.bf16.mxu0 0
    %8382 = vmatpush1.bf16.msra.mxu0 0
    %8383 = vmatprep.mubr.bf16.mxu0 0
    %8384 = vmatmul.mubr.bf16.gmra.mrb[0].mxu0 %v6387
    %v8385 = vpop.f32.mrb[0].mxu0
    %v8386 = vadd.f32 %v8323, %v8385
    %v8387 = vpop.f32.mrb[0].mxu0
    %v8388 = vadd.f32 %v8325, %v8387
    %v8389 = vpop.f32.mrb[0].mxu0
    %v8390 = vadd.f32 %v8327, %v8389
    %v8391 = vpop.f32.mrb[0].mxu0
    %v8392 = vadd.f32 %v8329, %v8391
    %8393 = vmatprep.mubr.bf16.mxu0 0
    %8394 = vmatmul.mubr.bf16.gmra.mrb[0].mxu0 %v6393
    %v8395 = vpop.f32.mrb[0].mxu0
    %v8396 = vadd.f32 %v8333, %v8395
    %v8397 = vpop.f32.mrb[0].mxu0
    %v8398 = vadd.f32 %v8335, %v8397
    %v8399 = vpop.f32.mrb[0].mxu0
    %v8400 = vadd.f32 %v8337, %v8399
    %v8401 = vpop.f32.mrb[0].mxu0
    %v8402 = vadd.f32 %v8339, %v8401
    %8403 = vmatprep.mubr.bf16.mxu0 0
    %8404 = vmatmul.mubr.bf16.gmra.mrb[0].mxu0 %v6399
    %v8405 = vpop.f32.mrb[0].mxu0
    %v8406 = vadd.f32 %v8343, %v8405
    %v8407 = vpop.f32.mrb[0].mxu0
    %v8408 = vadd.f32 %v8345, %v8407
    %v8409 = vpop.f32.mrb[0].mxu0
    %v8410 = vadd.f32 %v8347, %v8409
    %v8411 = vpop.f32.mrb[0].mxu0
    %v8412 = vadd.f32 %v8349, %v8411
    %8413 = vdwg.mxu0
    %8414 = vmatprep.subr.bf16.mxu0 %v5826
    %8415 = vmatpush1.bf16.msra.mxu0 %v5825
    %8416 = vmatprep.subr.bf16.mxu0 %v5830
    %8417 = vmatpush1.bf16.msra.mxu0 %v5829
    %8418 = vmatprep.subr.bf16.mxu0 %v5834
    %8419 = vmatpush1.bf16.msra.mxu0 %v5833
    %8420 = vmatprep.subr.bf16.mxu0 %v5838
    %8421 = vmatpush1.bf16.msra.mxu0 %v5837
    %8422 = vmatprep.subr.bf16.mxu0 %v5842
    %8423 = vmatpush1.bf16.msra.mxu0 %v5841
    %8424 = vmatprep.subr.bf16.mxu0 %v5846
    %8425 = vmatpush1.bf16.msra.mxu0 %v5845
    %8426 = vmatprep.subr.bf16.mxu0 %v5850
    %8427 = vmatpush1.bf16.msra.mxu0 %v5849
    %8428 = vmatprep.subr.bf16.mxu0 %v5854
    %8429 = vmatpush1.bf16.msra.mxu0 %v5853
    %8430 = vmatprep.subr.bf16.mxu0 %v5858
    %8431 = vmatpush1.bf16.msra.mxu0 %v5857
    %8432 = vmatprep.subr.bf16.mxu0 %v5862
    %8433 = vmatpush1.bf16.msra.mxu0 %v5861
    %8434 = vmatprep.subr.bf16.mxu0 %v5866
    %8435 = vmatpush1.bf16.msra.mxu0 %v5865
    %8436 = vmatprep.subr.bf16.mxu0 %v5870
    %8437 = vmatpush1.bf16.msra.mxu0 %v5869
    %8438 = vmatprep.subr.bf16.mxu0 %v5874
    %8439 = vmatpush1.bf16.msra.mxu0 %v5873
    %8440 = vmatprep.subr.bf16.mxu0 %v5878
    %8441 = vmatpush1.bf16.msra.mxu0 %v5877
    %8442 = vmatprep.subr.bf16.mxu0 %v5882
    %8443 = vmatpush1.bf16.msra.mxu0 %v5881
    %8444 = vmatprep.subr.bf16.mxu0 %v5886
    %8445 = vmatpush1.bf16.msra.mxu0 %v5885
    %8446 = vmatprep.mubr.bf16.mxu0 %v4601
    %8447 = vmatmul.mubr.bf16.gmra.mrb[0].mxu0 %v4600
    %v8448 = vpop.f32.mrb[0].mxu0
    %v8449 = vadd.f32 %v8260, %v8448
    %v8450 = vpop.f32.mrb[0].mxu0
    %v8451 = vadd.f32 %v8262, %v8450
    %v8452 = vpop.f32.mrb[0].mxu0
    %v8453 = vadd.f32 %v8264, %v8452
    %v8454 = vpop.f32.mrb[0].mxu0
    %v8455 = vadd.f32 %v8266, %v8454
    %8456 = vmatprep.mubr.bf16.mxu0 %v4604
    %8457 = vmatmul.mubr.bf16.gmra.mrb[0].mxu0 %v4603
    %v8458 = vpop.f32.mrb[0].mxu0
    %v8459 = vadd.f32 %v8270, %v8458
    %v8460 = vpop.f32.mrb[0].mxu0
    %v8461 = vadd.f32 %v8272, %v8460
    %v8462 = vpop.f32.mrb[0].mxu0
    %v8463 = vadd.f32 %v8274, %v8462
    %v8464 = vpop.f32.mrb[0].mxu0
    %v8465 = vadd.f32 %v8276, %v8464
    %8466 = vmatprep.mubr.bf16.mxu0 %v4607
    %8467 = vmatmul.mubr.bf16.gmra.mrb[0].mxu0 %v4606
    %v8468 = vpop.f32.mrb[0].mxu0
    %v8469 = vadd.f32 %v8280, %v8468
    %v8470 = vpop.f32.mrb[0].mxu0
    %v8471 = vadd.f32 %v8282, %v8470
    %v8472 = vpop.f32.mrb[0].mxu0
    %v8473 = vadd.f32 %v8284, %v8472
    %v8474 = vpop.f32.mrb[0].mxu0
    %v8475 = vadd.f32 %v8286, %v8474
    %8476 = vdwg.mxu0
    %8477 = vmatprep.subr.bf16.mxu0 %v5890
    %8478 = vmatpush1.bf16.msra.mxu0 %v5889
    %8479 = vmatprep.subr.bf16.mxu0 %v5894
    %8480 = vmatpush1.bf16.msra.mxu0 %v5893
    %8481 = vmatprep.subr.bf16.mxu0 %v5898
    %8482 = vmatpush1.bf16.msra.mxu0 %v5897
    %8483 = vmatprep.subr.bf16.mxu0 %v5902
    %8484 = vmatpush1.bf16.msra.mxu0 %v5901
    %8485 = vmatprep.subr.bf16.mxu0 %v5906
    %8486 = vmatpush1.bf16.msra.mxu0 %v5905
    %8487 = vmatprep.subr.bf16.mxu0 %v5910
    %8488 = vmatpush1.bf16.msra.mxu0 %v5909
    %8489 = vmatprep.subr.bf16.mxu0 %v5914
    %8490 = vmatpush1.bf16.msra.mxu0 %v5913
    %8491 = vmatprep.subr.bf16.mxu0 %v5918
    %8492 = vmatpush1.bf16.msra.mxu0 %v5917
    %8493 = vmatprep.subr.bf16.mxu0 0
    %8494 = vmatpush1.bf16.msra.mxu0 0
    %8495 = vmatprep.subr.bf16.mxu0 0
    %8496 = vmatpush1.bf16.msra.mxu0 0
    %8497 = vmatprep.subr.bf16.mxu0 0
    %8498 = vmatpush1.bf16.msra.mxu0 0
    %8499 = vmatprep.subr.bf16.mxu0 0
    %8500 = vmatpush1.bf16.msra.mxu0 0
    %8501 = vmatprep.subr.bf16.mxu0 0
    %8502 = vmatpush1.bf16.msra.mxu0 0
    %8503 = vmatprep.subr.bf16.mxu0 0
    %8504 = vmatpush1.bf16.msra.mxu0 0
    %8505 = vmatprep.subr.bf16.mxu0 0
    %8506 = vmatpush1.bf16.msra.mxu0 0
    %8507 = vmatprep.subr.bf16.mxu0 0
    %8508 = vmatpush1.bf16.msra.mxu0 0
    %8509 = vmatprep.mubr.bf16.mxu0 0
    %8510 = vmatmul.mubr.bf16.gmra.mrb[0].mxu0 %v4602
    %v8511 = vpop.f32.mrb[0].mxu0
    %v8512 = vadd.f32 %v8449, %v8511
    %v8513 = vpop.f32.mrb[0].mxu0
    %v8514 = vadd.f32 %v8451, %v8513
    %v8515 = vpop.f32.mrb[0].mxu0
    %v8516 = vadd.f32 %v8453, %v8515
    %v8517 = vpop.f32.mrb[0].mxu0
    %v8518 = vadd.f32 %v8455, %v8517
    %8519 = vmatprep.mubr.bf16.mxu0 0
    %8520 = vmatmul.mubr.bf16.gmra.mrb[0].mxu0 %v4605
    %v8521 = vpop.f32.mrb[0].mxu0
    %v8522 = vadd.f32 %v8459, %v8521
    %v8523 = vpop.f32.mrb[0].mxu0
    %v8524 = vadd.f32 %v8461, %v8523
    %v8525 = vpop.f32.mrb[0].mxu0
    %v8526 = vadd.f32 %v8463, %v8525
    %v8527 = vpop.f32.mrb[0].mxu0
    %v8528 = vadd.f32 %v8465, %v8527
    %8529 = vmatprep.mubr.bf16.mxu0 0
    %8530 = vmatmul.mubr.bf16.gmra.mrb[0].mxu0 %v4608
    %v8531 = vpop.f32.mrb[0].mxu0
    %v8532 = vadd.f32 %v8469, %v8531
    %v8533 = vpop.f32.mrb[0].mxu0
    %v8534 = vadd.f32 %v8471, %v8533
    %v8535 = vpop.f32.mrb[0].mxu0
    %v8536 = vadd.f32 %v8473, %v8535
    %v8537 = vpop.f32.mrb[0].mxu0
    %v8538 = vadd.f32 %v8475, %v8537
    %8539 = vdwg.mxu0
    %8540 = vmatprep.subr.bf16.mxu0 %v5828
    %8541 = vmatpush1.bf16.msra.mxu0 %v5827
    %8542 = vmatprep.subr.bf16.mxu0 %v5832
    %8543 = vmatpush1.bf16.msra.mxu0 %v5831
    %8544 = vmatprep.subr.bf16.mxu0 %v5836
    %8545 = vmatpush1.bf16.msra.mxu0 %v5835
    %8546 = vmatprep.subr.bf16.mxu0 %v5840
    %8547 = vmatpush1.bf16.msra.mxu0 %v5839
    %8548 = vmatprep.subr.bf16.mxu0 %v5844
    %8549 = vmatpush1.bf16.msra.mxu0 %v5843
    %8550 = vmatprep.subr.bf16.mxu0 %v5848
    %8551 = vmatpush1.bf16.msra.mxu0 %v5847
    %8552 = vmatprep.subr.bf16.mxu0 %v5852
    %8553 = vmatpush1.bf16.msra.mxu0 %v5851
    %8554 = vmatprep.subr.bf16.mxu0 %v5856
    %8555 = vmatpush1.bf16.msra.mxu0 %v5855
    %8556 = vmatprep.subr.bf16.mxu0 %v5860
    %8557 = vmatpush1.bf16.msra.mxu0 %v5859
    %8558 = vmatprep.subr.bf16.mxu0 %v5864
    %8559 = vmatpush1.bf16.msra.mxu0 %v5863
    %8560 = vmatprep.subr.bf16.mxu0 %v5868
    %8561 = vmatpush1.bf16.msra.mxu0 %v5867
    %8562 = vmatprep.subr.bf16.mxu0 %v5872
    %8563 = vmatpush1.bf16.msra.mxu0 %v5871
    %8564 = vmatprep.subr.bf16.mxu0 %v5876
    %8565 = vmatpush1.bf16.msra.mxu0 %v5875
    %8566 = vmatprep.subr.bf16.mxu0 %v5880
    %8567 = vmatpush1.bf16.msra.mxu0 %v5879
    %8568 = vmatprep.subr.bf16.mxu0 %v5884
    %8569 = vmatpush1.bf16.msra.mxu0 %v5883
    %8570 = vmatprep.subr.bf16.mxu0 %v5888
    %8571 = vmatpush1.bf16.msra.mxu0 %v5887
    %8572 = vmatprep.mubr.bf16.mxu0 %v4601
    %8573 = vmatmul.mubr.bf16.gmra.mrb[0].mxu0 %v4600
    %v8574 = vpop.f32.mrb[0].mxu0
    %v8575 = vadd.f32 %v8386, %v8574
    %v8576 = vpop.f32.mrb[0].mxu0
    %v8577 = vadd.f32 %v8388, %v8576
    %v8578 = vpop.f32.mrb[0].mxu0
    %v8579 = vadd.f32 %v8390, %v8578
    %v8580 = vpop.f32.mrb[0].mxu0
    %v8581 = vadd.f32 %v8392, %v8580
    %8582 = vmatprep.mubr.bf16.mxu0 %v4604
    %8583 = vmatmul.mubr.bf16.gmra.mrb[0].mxu0 %v4603
    %v8584 = vpop.f32.mrb[0].mxu0
    %v8585 = vadd.f32 %v8396, %v8584
    %v8586 = vpop.f32.mrb[0].mxu0
    %v8587 = vadd.f32 %v8398, %v8586
    %v8588 = vpop.f32.mrb[0].mxu0
    %v8589 = vadd.f32 %v8400, %v8588
    %v8590 = vpop.f32.mrb[0].mxu0
    %v8591 = vadd.f32 %v8402, %v8590
    %8592 = vmatprep.mubr.bf16.mxu0 %v4607
    %8593 = vmatmul.mubr.bf16.gmra.mrb[0].mxu0 %v4606
    %v8594 = vpop.f32.mrb[0].mxu0
    %v8595 = vadd.f32 %v8406, %v8594
    %v8596 = vpop.f32.mrb[0].mxu0
    %v8597 = vadd.f32 %v8408, %v8596
    %v8598 = vpop.f32.mrb[0].mxu0
    %v8599 = vadd.f32 %v8410, %v8598
    %v8600 = vpop.f32.mrb[0].mxu0
    %v8601 = vadd.f32 %v8412, %v8600
    %8602 = vdwg.mxu0
    %8603 = vmatprep.subr.bf16.mxu0 %v5892
    %8604 = vmatpush1.bf16.msra.mxu0 %v5891
    %8605 = vmatprep.subr.bf16.mxu0 %v5896
    %8606 = vmatpush1.bf16.msra.mxu0 %v5895
    %8607 = vmatprep.subr.bf16.mxu0 %v5900
    %8608 = vmatpush1.bf16.msra.mxu0 %v5899
    %8609 = vmatprep.subr.bf16.mxu0 %v5904
    %8610 = vmatpush1.bf16.msra.mxu0 %v5903
    %8611 = vmatprep.subr.bf16.mxu0 %v5908
    %8612 = vmatpush1.bf16.msra.mxu0 %v5907
    %8613 = vmatprep.subr.bf16.mxu0 %v5912
    %8614 = vmatpush1.bf16.msra.mxu0 %v5911
    %8615 = vmatprep.subr.bf16.mxu0 %v5916
    %8616 = vmatpush1.bf16.msra.mxu0 %v5915
    %8617 = vmatprep.subr.bf16.mxu0 %v5920
    %8618 = vmatpush1.bf16.msra.mxu0 %v5919
    %8619 = vmatprep.subr.bf16.mxu0 0
    %8620 = vmatpush1.bf16.msra.mxu0 0
    %8621 = vmatprep.subr.bf16.mxu0 0
    %8622 = vmatpush1.bf16.msra.mxu0 0
    %8623 = vmatprep.subr.bf16.mxu0 0
    %8624 = vmatpush1.bf16.msra.mxu0 0
    %8625 = vmatprep.subr.bf16.mxu0 0
    %8626 = vmatpush1.bf16.msra.mxu0 0
    %8627 = vmatprep.subr.bf16.mxu0 0
    %8628 = vmatpush1.bf16.msra.mxu0 0
    %8629 = vmatprep.subr.bf16.mxu0 0
    %8630 = vmatpush1.bf16.msra.mxu0 0
    %8631 = vmatprep.subr.bf16.mxu0 0
    %8632 = vmatpush1.bf16.msra.mxu0 0
    %8633 = vmatprep.subr.bf16.mxu0 0
    %8634 = vmatpush1.bf16.msra.mxu0 0
    %8635 = vmatprep.mubr.bf16.mxu0 0
    %8636 = vmatmul.mubr.bf16.gmra.mrb[0].mxu0 %v4602
    %v8637 = vpop.f32.mrb[0].mxu0
    %v8638 = vadd.f32 %v8575, %v8637
    %v8639 = vpop.f32.mrb[0].mxu0
    %v8640 = vadd.f32 %v8577, %v8639
    %v8641 = vpop.f32.mrb[0].mxu0
    %v8642 = vadd.f32 %v8579, %v8641
    %v8643 = vpop.f32.mrb[0].mxu0
    %v8644 = vadd.f32 %v8581, %v8643
    %8645 = vmatprep.mubr.bf16.mxu0 0
    %8646 = vmatmul.mubr.bf16.gmra.mrb[0].mxu0 %v4605
    %v8647 = vpop.f32.mrb[0].mxu0
    %v8648 = vadd.f32 %v8585, %v8647
    %v8649 = vpop.f32.mrb[0].mxu0
    %v8650 = vadd.f32 %v8587, %v8649
    %v8651 = vpop.f32.mrb[0].mxu0
    %v8652 = vadd.f32 %v8589, %v8651
    %v8653 = vpop.f32.mrb[0].mxu0
    %v8654 = vadd.f32 %v8591, %v8653
    %8655 = vmatprep.mubr.bf16.mxu0 0
    %8656 = vmatmul.mubr.bf16.gmra.mrb[0].mxu0 %v4608
    %v8657 = vpop.f32.mrb[0].mxu0
    %v8658 = vadd.f32 %v8595, %v8657
    %v8659 = vpop.f32.mrb[0].mxu0
    %v8660 = vadd.f32 %v8597, %v8659
    %v8661 = vpop.f32.mrb[0].mxu0
    %v8662 = vadd.f32 %v8599, %v8661
    %v8663 = vpop.f32.mrb[0].mxu0
    %v8664 = vadd.f32 %v8601, %v8663
    %8665 = vdwg.mxu0
    %8666 = vmatprep.subr.bf16.mxu0 %v6698
    %8667 = vmatpush1.bf16.msra.mxu0 %v6697
    %8668 = vmatprep.subr.bf16.mxu0 %v6702
    %8669 = vmatpush1.bf16.msra.mxu0 %v6701
    %8670 = vmatprep.subr.bf16.mxu0 %v6706
    %8671 = vmatpush1.bf16.msra.mxu0 %v6705
    %8672 = vmatprep.subr.bf16.mxu0 %v6710
    %8673 = vmatpush1.bf16.msra.mxu0 %v6709
    %8674 = vmatprep.subr.bf16.mxu0 %v6714
    %8675 = vmatpush1.bf16.msra.mxu0 %v6713
    %8676 = vmatprep.subr.bf16.mxu0 %v6718
    %8677 = vmatpush1.bf16.msra.mxu0 %v6717
    %8678 = vmatprep.subr.bf16.mxu0 %v6722
    %8679 = vmatpush1.bf16.msra.mxu0 %v6721
    %8680 = vmatprep.subr.bf16.mxu0 %v6726
    %8681 = vmatpush1.bf16.msra.mxu0 %v6725
    %8682 = vmatprep.subr.bf16.mxu0 %v6730
    %8683 = vmatpush1.bf16.msra.mxu0 %v6729
    %8684 = vmatprep.subr.bf16.mxu0 %v6734
    %8685 = vmatpush1.bf16.msra.mxu0 %v6733
    %8686 = vmatprep.subr.bf16.mxu0 %v6738
    %8687 = vmatpush1.bf16.msra.mxu0 %v6737
    %8688 = vmatprep.subr.bf16.mxu0 %v6742
    %8689 = vmatpush1.bf16.msra.mxu0 %v6741
    %8690 = vmatprep.subr.bf16.mxu0 %v6746
    %8691 = vmatpush1.bf16.msra.mxu0 %v6745
    %8692 = vmatprep.subr.bf16.mxu0 %v6750
    %8693 = vmatpush1.bf16.msra.mxu0 %v6749
    %8694 = vmatprep.subr.bf16.mxu0 %v6754
    %8695 = vmatpush1.bf16.msra.mxu0 %v6753
    %8696 = vmatprep.subr.bf16.mxu0 %v6758
    %8697 = vmatpush1.bf16.msra.mxu0 %v6757
    %8698 = vmatprep.mubr.bf16.mxu0 %v7279
    %8699 = vmatmul.mubr.bf16.gmra.mrb[0].mxu0 %v7276
    %v8700 = vpop.f32.mrb[0].mxu0
    %v8701 = vadd.f32 0.0, %v8700
    %v8702 = vpop.f32.mrb[0].mxu0
    %v8703 = vadd.f32 0.0, %v8702
    %v8704 = vpop.f32.mrb[0].mxu0
    %v8705 = vadd.f32 0.0, %v8704
    %v8706 = vpop.f32.mrb[0].mxu0
    %v8707 = vadd.f32 0.0, %v8706
    %8708 = vmatprep.mubr.bf16.mxu0 %v7286
    %8709 = vmatmul.mubr.bf16.gmra.mrb[0].mxu0 %v7284
    %v8710 = vpop.f32.mrb[0].mxu0
    %v8711 = vadd.f32 0.0, %v8710
    %v8712 = vpop.f32.mrb[0].mxu0
    %v8713 = vadd.f32 0.0, %v8712
    %v8714 = vpop.f32.mrb[0].mxu0
    %v8715 = vadd.f32 0.0, %v8714
    %v8716 = vpop.f32.mrb[0].mxu0
    %v8717 = vadd.f32 0.0, %v8716
    %8718 = vmatprep.mubr.bf16.mxu0 %v7292
    %8719 = vmatmul.mubr.bf16.gmra.mrb[0].mxu0 %v7290
    %v8720 = vpop.f32.mrb[0].mxu0
    %v8721 = vadd.f32 0.0, %v8720
    %v8722 = vpop.f32.mrb[0].mxu0
    %v8723 = vadd.f32 0.0, %v8722
    %v8724 = vpop.f32.mrb[0].mxu0
    %v8725 = vadd.f32 0.0, %v8724
    %v8726 = vpop.f32.mrb[0].mxu0
    %v8727 = vadd.f32 0.0, %v8726
    %8728 = vdwg.mxu0
    %8729 = vmatprep.subr.bf16.mxu0 %v6762
    %8730 = vmatpush1.bf16.msra.mxu0 %v6761
    %8731 = vmatprep.subr.bf16.mxu0 %v6766
    %8732 = vmatpush1.bf16.msra.mxu0 %v6765
    %8733 = vmatprep.subr.bf16.mxu0 %v6770
    %8734 = vmatpush1.bf16.msra.mxu0 %v6769
    %8735 = vmatprep.subr.bf16.mxu0 %v6774
    %8736 = vmatpush1.bf16.msra.mxu0 %v6773
    %8737 = vmatprep.subr.bf16.mxu0 %v6778
    %8738 = vmatpush1.bf16.msra.mxu0 %v6777
    %8739 = vmatprep.subr.bf16.mxu0 %v6782
    %8740 = vmatpush1.bf16.msra.mxu0 %v6781
    %8741 = vmatprep.subr.bf16.mxu0 %v6786
    %8742 = vmatpush1.bf16.msra.mxu0 %v6785
    %8743 = vmatprep.subr.bf16.mxu0 %v6790
    %8744 = vmatpush1.bf16.msra.mxu0 %v6789
    %8745 = vmatprep.subr.bf16.mxu0 0
    %8746 = vmatpush1.bf16.msra.mxu0 0
    %8747 = vmatprep.subr.bf16.mxu0 0
    %8748 = vmatpush1.bf16.msra.mxu0 0
    %8749 = vmatprep.subr.bf16.mxu0 0
    %8750 = vmatpush1.bf16.msra.mxu0 0
    %8751 = vmatprep.subr.bf16.mxu0 0
    %8752 = vmatpush1.bf16.msra.mxu0 0
    %8753 = vmatprep.subr.bf16.mxu0 0
    %8754 = vmatpush1.bf16.msra.mxu0 0
    %8755 = vmatprep.subr.bf16.mxu0 0
    %8756 = vmatpush1.bf16.msra.mxu0 0
    %8757 = vmatprep.subr.bf16.mxu0 0
    %8758 = vmatpush1.bf16.msra.mxu0 0
    %8759 = vmatprep.subr.bf16.mxu0 0
    %8760 = vmatpush1.bf16.msra.mxu0 0
    %8761 = vmatprep.mubr.bf16.mxu0 0
    %8762 = vmatmul.mubr.bf16.gmra.mrb[0].mxu0 %v7282
    %v8763 = vpop.f32.mrb[0].mxu0
    %v8764 = vadd.f32 %v8701, %v8763
    %v8765 = vpop.f32.mrb[0].mxu0
    %v8766 = vadd.f32 %v8703, %v8765
    %v8767 = vpop.f32.mrb[0].mxu0
    %v8768 = vadd.f32 %v8705, %v8767
    %v8769 = vpop.f32.mrb[0].mxu0
    %v8770 = vadd.f32 %v8707, %v8769
    %8771 = vmatprep.mubr.bf16.mxu0 0
    %8772 = vmatmul.mubr.bf16.gmra.mrb[0].mxu0 %v7288
    %v8773 = vpop.f32.mrb[0].mxu0
    %v8774 = vadd.f32 %v8711, %v8773
    %v8775 = vpop.f32.mrb[0].mxu0
    %v8776 = vadd.f32 %v8713, %v8775
    %v8777 = vpop.f32.mrb[0].mxu0
    %v8778 = vadd.f32 %v8715, %v8777
    %v8779 = vpop.f32.mrb[0].mxu0
    %v8780 = vadd.f32 %v8717, %v8779
    %8781 = vmatprep.mubr.bf16.mxu0 0
    %8782 = vmatmul.mubr.bf16.gmra.mrb[0].mxu0 %v7294
    %v8783 = vpop.f32.mrb[0].mxu0
    %v8784 = vadd.f32 %v8721, %v8783
    %v8785 = vpop.f32.mrb[0].mxu0
    %v8786 = vadd.f32 %v8723, %v8785
    %v8787 = vpop.f32.mrb[0].mxu0
    %v8788 = vadd.f32 %v8725, %v8787
    %v8789 = vpop.f32.mrb[0].mxu0
    %v8790 = vadd.f32 %v8727, %v8789
    %8791 = vdwg.mxu0
    %8792 = vmatprep.subr.bf16.mxu0 %v6700
    %8793 = vmatpush1.bf16.msra.mxu0 %v6699
    %8794 = vmatprep.subr.bf16.mxu0 %v6704
    %8795 = vmatpush1.bf16.msra.mxu0 %v6703
    %8796 = vmatprep.subr.bf16.mxu0 %v6708
    %8797 = vmatpush1.bf16.msra.mxu0 %v6707
    %8798 = vmatprep.subr.bf16.mxu0 %v6712
    %8799 = vmatpush1.bf16.msra.mxu0 %v6711
    %8800 = vmatprep.subr.bf16.mxu0 %v6716
    %8801 = vmatpush1.bf16.msra.mxu0 %v6715
    %8802 = vmatprep.subr.bf16.mxu0 %v6720
    %8803 = vmatpush1.bf16.msra.mxu0 %v6719
    %8804 = vmatprep.subr.bf16.mxu0 %v6724
    %8805 = vmatpush1.bf16.msra.mxu0 %v6723
    %8806 = vmatprep.subr.bf16.mxu0 %v6728
    %8807 = vmatpush1.bf16.msra.mxu0 %v6727
    %8808 = vmatprep.subr.bf16.mxu0 %v6732
    %8809 = vmatpush1.bf16.msra.mxu0 %v6731
    %8810 = vmatprep.subr.bf16.mxu0 %v6736
    %8811 = vmatpush1.bf16.msra.mxu0 %v6735
    %8812 = vmatprep.subr.bf16.mxu0 %v6740
    %8813 = vmatpush1.bf16.msra.mxu0 %v6739
    %8814 = vmatprep.subr.bf16.mxu0 %v6744
    %8815 = vmatpush1.bf16.msra.mxu0 %v6743
    %8816 = vmatprep.subr.bf16.mxu0 %v6748
    %8817 = vmatpush1.bf16.msra.mxu0 %v6747
    %8818 = vmatprep.subr.bf16.mxu0 %v6752
    %8819 = vmatpush1.bf16.msra.mxu0 %v6751
    %8820 = vmatprep.subr.bf16.mxu0 %v6756
    %8821 = vmatpush1.bf16.msra.mxu0 %v6755
    %8822 = vmatprep.subr.bf16.mxu0 %v6760
    %8823 = vmatpush1.bf16.msra.mxu0 %v6759
    %8824 = vmatprep.mubr.bf16.mxu0 %v7279
    %8825 = vmatmul.mubr.bf16.gmra.mrb[0].mxu0 %v7276
    %v8826 = vpop.f32.mrb[0].mxu0
    %v8827 = vadd.f32 0.0, %v8826
    %v8828 = vpop.f32.mrb[0].mxu0
    %v8829 = vadd.f32 0.0, %v8828
    %v8830 = vpop.f32.mrb[0].mxu0
    %v8831 = vadd.f32 0.0, %v8830
    %v8832 = vpop.f32.mrb[0].mxu0
    %v8833 = vadd.f32 0.0, %v8832
    %8834 = vmatprep.mubr.bf16.mxu0 %v7286
    %8835 = vmatmul.mubr.bf16.gmra.mrb[0].mxu0 %v7284
    %v8836 = vpop.f32.mrb[0].mxu0
    %v8837 = vadd.f32 0.0, %v8836
    %v8838 = vpop.f32.mrb[0].mxu0
    %v8839 = vadd.f32 0.0, %v8838
    %v8840 = vpop.f32.mrb[0].mxu0
    %v8841 = vadd.f32 0.0, %v8840
    %v8842 = vpop.f32.mrb[0].mxu0
    %v8843 = vadd.f32 0.0, %v8842
    %8844 = vmatprep.mubr.bf16.mxu0 %v7292
    %8845 = vmatmul.mubr.bf16.gmra.mrb[0].mxu0 %v7290
    %v8846 = vpop.f32.mrb[0].mxu0
    %v8847 = vadd.f32 0.0, %v8846
    %v8848 = vpop.f32.mrb[0].mxu0
    %v8849 = vadd.f32 0.0, %v8848
    %v8850 = vpop.f32.mrb[0].mxu0
    %v8851 = vadd.f32 0.0, %v8850
    %v8852 = vpop.f32.mrb[0].mxu0
    %v8853 = vadd.f32 0.0, %v8852
    %8854 = vdwg.mxu0
    %8855 = vmatprep.subr.bf16.mxu0 %v6764
    %8856 = vmatpush1.bf16.msra.mxu0 %v6763
    %8857 = vmatprep.subr.bf16.mxu0 %v6768
    %8858 = vmatpush1.bf16.msra.mxu0 %v6767
    %8859 = vmatprep.subr.bf16.mxu0 %v6772
    %8860 = vmatpush1.bf16.msra.mxu0 %v6771
    %8861 = vmatprep.subr.bf16.mxu0 %v6776
    %8862 = vmatpush1.bf16.msra.mxu0 %v6775
    %8863 = vmatprep.subr.bf16.mxu0 %v6780
    %8864 = vmatpush1.bf16.msra.mxu0 %v6779
    %8865 = vmatprep.subr.bf16.mxu0 %v6784
    %8866 = vmatpush1.bf16.msra.mxu0 %v6783
    %8867 = vmatprep.subr.bf16.mxu0 %v6788
    %8868 = vmatpush1.bf16.msra.mxu0 %v6787
    %8869 = vmatprep.subr.bf16.mxu0 %v6792
    %8870 = vmatpush1.bf16.msra.mxu0 %v6791
    %8871 = vmatprep.subr.bf16.mxu0 0
    %8872 = vmatpush1.bf16.msra.mxu0 0
    %8873 = vmatprep.subr.bf16.mxu0 0
    %8874 = vmatpush1.bf16.msra.mxu0 0
    %8875 = vmatprep.subr.bf16.mxu0 0
    %8876 = vmatpush1.bf16.msra.mxu0 0
    %8877 = vmatprep.subr.bf16.mxu0 0
    %8878 = vmatpush1.bf16.msra.mxu0 0
    %8879 = vmatprep.subr.bf16.mxu0 0
    %8880 = vmatpush1.bf16.msra.mxu0 0
    %8881 = vmatprep.subr.bf16.mxu0 0
    %8882 = vmatpush1.bf16.msra.mxu0 0
    %8883 = vmatprep.subr.bf16.mxu0 0
    %8884 = vmatpush1.bf16.msra.mxu0 0
    %8885 = vmatprep.subr.bf16.mxu0 0
    %8886 = vmatpush1.bf16.msra.mxu0 0
    %8887 = vmatprep.mubr.bf16.mxu0 0
    %8888 = vmatmul.mubr.bf16.gmra.mrb[0].mxu0 %v7282
    %v8889 = vpop.f32.mrb[0].mxu0
    %v8890 = vadd.f32 %v8827, %v8889
    %v8891 = vpop.f32.mrb[0].mxu0
    %v8892 = vadd.f32 %v8829, %v8891
    %v8893 = vpop.f32.mrb[0].mxu0
    %v8894 = vadd.f32 %v8831, %v8893
    %v8895 = vpop.f32.mrb[0].mxu0
    %v8896 = vadd.f32 %v8833, %v8895
    %8897 = vmatprep.mubr.bf16.mxu0 0
    %8898 = vmatmul.mubr.bf16.gmra.mrb[0].mxu0 %v7288
    %v8899 = vpop.f32.mrb[0].mxu0
    %v8900 = vadd.f32 %v8837, %v8899
    %v8901 = vpop.f32.mrb[0].mxu0
    %v8902 = vadd.f32 %v8839, %v8901
    %v8903 = vpop.f32.mrb[0].mxu0
    %v8904 = vadd.f32 %v8841, %v8903
    %v8905 = vpop.f32.mrb[0].mxu0
    %v8906 = vadd.f32 %v8843, %v8905
    %8907 = vmatprep.mubr.bf16.mxu0 0
    %8908 = vmatmul.mubr.bf16.gmra.mrb[0].mxu0 %v7294
    %v8909 = vpop.f32.mrb[0].mxu0
    %v8910 = vadd.f32 %v8847, %v8909
    %v8911 = vpop.f32.mrb[0].mxu0
    %v8912 = vadd.f32 %v8849, %v8911
    %v8913 = vpop.f32.mrb[0].mxu0
    %v8914 = vadd.f32 %v8851, %v8913
    %v8915 = vpop.f32.mrb[0].mxu0
    %v8916 = vadd.f32 %v8853, %v8915
    %8917 = vdwg.mxu0
    %v8918 = vadd.f32 %v8512, %v8764
    %v8919 = vadd.f32 %v8514, %v8766
    %v8920 = vadd.f32 %v8638, %v8890
    %v8921 = vadd.f32 %v8640, %v8892
    %v8922 = vadd.f32 %v8516, %v8768
    %v8923 = vadd.f32 %v8518, %v8770
    %v8924 = vadd.f32 %v8642, %v8894
    %v8925 = vadd.f32 %v8644, %v8896
    %v8926 = vadd.f32 %v8522, %v8774
    %v8927 = vadd.f32 %v8524, %v8776
    %v8928 = vadd.f32 %v8648, %v8900
    %v8929 = vadd.f32 %v8650, %v8902
    %v8930 = vadd.f32 %v8526, %v8778
    %v8931 = vadd.f32 %v8528, %v8780
    %v8932 = vadd.f32 %v8652, %v8904
    %v8933 = vadd.f32 %v8654, %v8906
    %v8934 = vadd.f32 %v8532, %v8784
    %v8935 = vadd.f32 %v8534, %v8786
    %v8936 = vadd.f32 %v8658, %v8910
    %v8937 = vadd.f32 %v8660, %v8912
    %v8938 = vadd.f32 %v8536, %v8788
    %v8939 = vadd.f32 %v8538, %v8790
    %v8940 = vadd.f32 %v8662, %v8914
    %v8941 = vadd.f32 %v8664, %v8916
    %8942 = vmatprep.subr.bf16.mxu0 %v7593
    %8943 = vmatpush1.bf16.msra.mxu0 %v7592
    %8944 = vmatprep.subr.bf16.mxu0 %v7597
    %8945 = vmatpush1.bf16.msra.mxu0 %v7596
    %8946 = vmatprep.subr.bf16.mxu0 %v7601
    %8947 = vmatpush1.bf16.msra.mxu0 %v7600
    %8948 = vmatprep.subr.bf16.mxu0 %v7605
    %8949 = vmatpush1.bf16.msra.mxu0 %v7604
    %8950 = vmatprep.subr.bf16.mxu0 %v7609
    %8951 = vmatpush1.bf16.msra.mxu0 %v7608
    %8952 = vmatprep.subr.bf16.mxu0 %v7613
    %8953 = vmatpush1.bf16.msra.mxu0 %v7612
    %8954 = vmatprep.subr.bf16.mxu0 %v7617
    %8955 = vmatpush1.bf16.msra.mxu0 %v7616
    %8956 = vmatprep.subr.bf16.mxu0 %v7621
    %8957 = vmatpush1.bf16.msra.mxu0 %v7620
    %8958 = vmatprep.subr.bf16.mxu0 %v7625
    %8959 = vmatpush1.bf16.msra.mxu0 %v7624
    %8960 = vmatprep.subr.bf16.mxu0 %v7629
    %8961 = vmatpush1.bf16.msra.mxu0 %v7628
    %8962 = vmatprep.subr.bf16.mxu0 %v7633
    %8963 = vmatpush1.bf16.msra.mxu0 %v7632
    %8964 = vmatprep.subr.bf16.mxu0 %v7637
    %8965 = vmatpush1.bf16.msra.mxu0 %v7636
    %8966 = vmatprep.subr.bf16.mxu0 %v7641
    %8967 = vmatpush1.bf16.msra.mxu0 %v7640
    %8968 = vmatprep.subr.bf16.mxu0 %v7645
    %8969 = vmatpush1.bf16.msra.mxu0 %v7644
    %8970 = vmatprep.subr.bf16.mxu0 %v7649
    %8971 = vmatpush1.bf16.msra.mxu0 %v7648
    %8972 = vmatprep.subr.bf16.mxu0 %v7653
    %8973 = vmatpush1.bf16.msra.mxu0 %v7652
    %8974 = vmatprep.mubr.bf16.mxu0 %v2958
    %8975 = vmatmul.mubr.bf16.gmra.mrb[0].mxu0 %v2957
    %v8976 = vpop.f32.mrb[0].mxu0
    %v8977 = vadd.f32 0.0, %v8976
    %v8978 = vpop.f32.mrb[0].mxu0
    %v8979 = vadd.f32 0.0, %v8978
    %v8980 = vpop.f32.mrb[0].mxu0
    %v8981 = vadd.f32 0.0, %v8980
    %v8982 = vpop.f32.mrb[0].mxu0
    %v8983 = vadd.f32 0.0, %v8982
    %8984 = vmatprep.mubr.bf16.mxu0 %v2961
    %8985 = vmatmul.mubr.bf16.gmra.mrb[0].mxu0 %v2960
    %v8986 = vpop.f32.mrb[0].mxu0
    %v8987 = vadd.f32 0.0, %v8986
    %v8988 = vpop.f32.mrb[0].mxu0
    %v8989 = vadd.f32 0.0, %v8988
    %v8990 = vpop.f32.mrb[0].mxu0
    %v8991 = vadd.f32 0.0, %v8990
    %v8992 = vpop.f32.mrb[0].mxu0
    %v8993 = vadd.f32 0.0, %v8992
    %8994 = vmatprep.mubr.bf16.mxu0 %v2964
    %8995 = vmatmul.mubr.bf16.gmra.mrb[0].mxu0 %v2963
    %v8996 = vpop.f32.mrb[0].mxu0
    %v8997 = vadd.f32 0.0, %v8996
    %v8998 = vpop.f32.mrb[0].mxu0
    %v8999 = vadd.f32 0.0, %v8998
    %v9000 = vpop.f32.mrb[0].mxu0
    %v9001 = vadd.f32 0.0, %v9000
    %v9002 = vpop.f32.mrb[0].mxu0
    %v9003 = vadd.f32 0.0, %v9002
    %9004 = vdwg.mxu0
    %9005 = vmatprep.subr.bf16.mxu0 %v7657
    %9006 = vmatpush1.bf16.msra.mxu0 %v7656
    %9007 = vmatprep.subr.bf16.mxu0 %v7661
    %9008 = vmatpush1.bf16.msra.mxu0 %v7660
    %9009 = vmatprep.subr.bf16.mxu0 %v7665
    %9010 = vmatpush1.bf16.msra.mxu0 %v7664
    %9011 = vmatprep.subr.bf16.mxu0 %v7669
    %9012 = vmatpush1.bf16.msra.mxu0 %v7668
    %9013 = vmatprep.subr.bf16.mxu0 %v7673
    %9014 = vmatpush1.bf16.msra.mxu0 %v7672
    %9015 = vmatprep.subr.bf16.mxu0 %v7677
    %9016 = vmatpush1.bf16.msra.mxu0 %v7676
    %9017 = vmatprep.subr.bf16.mxu0 %v7681
    %9018 = vmatpush1.bf16.msra.mxu0 %v7680
    %9019 = vmatprep.subr.bf16.mxu0 %v7685
    %9020 = vmatpush1.bf16.msra.mxu0 %v7684
    %9021 = vmatprep.subr.bf16.mxu0 0
    %9022 = vmatpush1.bf16.msra.mxu0 0
    %9023 = vmatprep.subr.bf16.mxu0 0
    %9024 = vmatpush1.bf16.msra.mxu0 0
    %9025 = vmatprep.subr.bf16.mxu0 0
    %9026 = vmatpush1.bf16.msra.mxu0 0
    %9027 = vmatprep.subr.bf16.mxu0 0
    %9028 = vmatpush1.bf16.msra.mxu0 0
    %9029 = vmatprep.subr.bf16.mxu0 0
    %9030 = vmatpush1.bf16.msra.mxu0 0
    %9031 = vmatprep.subr.bf16.mxu0 0
    %9032 = vmatpush1.bf16.msra.mxu0 0
    %9033 = vmatprep.subr.bf16.mxu0 0
    %9034 = vmatpush1.bf16.msra.mxu0 0
    %9035 = vmatprep.subr.bf16.mxu0 0
    %9036 = vmatpush1.bf16.msra.mxu0 0
    %9037 = vmatprep.mubr.bf16.mxu0 0
    %9038 = vmatmul.mubr.bf16.gmra.mrb[0].mxu0 %v2959
    %v9039 = vpop.f32.mrb[0].mxu0
    %v9040 = vadd.f32 %v8977, %v9039
    %v9041 = vpop.f32.mrb[0].mxu0
    %v9042 = vadd.f32 %v8979, %v9041
    %v9043 = vpop.f32.mrb[0].mxu0
    %v9044 = vadd.f32 %v8981, %v9043
    %v9045 = vpop.f32.mrb[0].mxu0
    %v9046 = vadd.f32 %v8983, %v9045
    %9047 = vmatprep.mubr.bf16.mxu0 0
    %9048 = vmatmul.mubr.bf16.gmra.mrb[0].mxu0 %v2962
    %v9049 = vpop.f32.mrb[0].mxu0
    %v9050 = vadd.f32 %v8987, %v9049
    %v9051 = vpop.f32.mrb[0].mxu0
    %v9052 = vadd.f32 %v8989, %v9051
    %v9053 = vpop.f32.mrb[0].mxu0
    %v9054 = vadd.f32 %v8991, %v9053
    %v9055 = vpop.f32.mrb[0].mxu0
    %v9056 = vadd.f32 %v8993, %v9055
    %9057 = vmatprep.mubr.bf16.mxu0 0
    %9058 = vmatmul.mubr.bf16.gmra.mrb[0].mxu0 %v2965
    %v9059 = vpop.f32.mrb[0].mxu0
    %v9060 = vadd.f32 %v8997, %v9059
    %v9061 = vpop.f32.mrb[0].mxu0
    %v9062 = vadd.f32 %v8999, %v9061
    %v9063 = vpop.f32.mrb[0].mxu0
    %v9064 = vadd.f32 %v9001, %v9063
    %v9065 = vpop.f32.mrb[0].mxu0
    %v9066 = vadd.f32 %v9003, %v9065
    %9067 = vdwg.mxu0
    %9068 = vmatprep.subr.bf16.mxu0 %v7595
    %9069 = vmatpush1.bf16.msra.mxu0 %v7594
    %9070 = vmatprep.subr.bf16.mxu0 %v7599
    %9071 = vmatpush1.bf16.msra.mxu0 %v7598
    %9072 = vmatprep.subr.bf16.mxu0 %v7603
    %9073 = vmatpush1.bf16.msra.mxu0 %v7602
    %9074 = vmatprep.subr.bf16.mxu0 %v7607
    %9075 = vmatpush1.bf16.msra.mxu0 %v7606
    %9076 = vmatprep.subr.bf16.mxu0 %v7611
    %9077 = vmatpush1.bf16.msra.mxu0 %v7610
    %9078 = vmatprep.subr.bf16.mxu0 %v7615
    %9079 = vmatpush1.bf16.msra.mxu0 %v7614
    %9080 = vmatprep.subr.bf16.mxu0 %v7619
    %9081 = vmatpush1.bf16.msra.mxu0 %v7618
    %9082 = vmatprep.subr.bf16.mxu0 %v7623
    %9083 = vmatpush1.bf16.msra.mxu0 %v7622
    %9084 = vmatprep.subr.bf16.mxu0 %v7627
    %9085 = vmatpush1.bf16.msra.mxu0 %v7626
    %9086 = vmatprep.subr.bf16.mxu0 %v7631
    %9087 = vmatpush1.bf16.msra.mxu0 %v7630
    %9088 = vmatprep.subr.bf16.mxu0 %v7635
    %9089 = vmatpush1.bf16.msra.mxu0 %v7634
    %9090 = vmatprep.subr.bf16.mxu0 %v7639
    %9091 = vmatpush1.bf16.msra.mxu0 %v7638
    %9092 = vmatprep.subr.bf16.mxu0 %v7643
    %9093 = vmatpush1.bf16.msra.mxu0 %v7642
    %9094 = vmatprep.subr.bf16.mxu0 %v7647
    %9095 = vmatpush1.bf16.msra.mxu0 %v7646
    %9096 = vmatprep.subr.bf16.mxu0 %v7651
    %9097 = vmatpush1.bf16.msra.mxu0 %v7650
    %9098 = vmatprep.subr.bf16.mxu0 %v7655
    %9099 = vmatpush1.bf16.msra.mxu0 %v7654
    %9100 = vmatprep.mubr.bf16.mxu0 %v2958
    %9101 = vmatmul.mubr.bf16.gmra.mrb[0].mxu0 %v2957
    %v9102 = vpop.f32.mrb[0].mxu0
    %v9103 = vadd.f32 0.0, %v9102
    %v9104 = vpop.f32.mrb[0].mxu0
    %v9105 = vadd.f32 0.0, %v9104
    %v9106 = vpop.f32.mrb[0].mxu0
    %v9107 = vadd.f32 0.0, %v9106
    %v9108 = vpop.f32.mrb[0].mxu0
    %v9109 = vadd.f32 0.0, %v9108
    %9110 = vmatprep.mubr.bf16.mxu0 %v2961
    %9111 = vmatmul.mubr.bf16.gmra.mrb[0].mxu0 %v2960
    %v9112 = vpop.f32.mrb[0].mxu0
    %v9113 = vadd.f32 0.0, %v9112
    %v9114 = vpop.f32.mrb[0].mxu0
    %v9115 = vadd.f32 0.0, %v9114
    %v9116 = vpop.f32.mrb[0].mxu0
    %v9117 = vadd.f32 0.0, %v9116
    %v9118 = vpop.f32.mrb[0].mxu0
    %v9119 = vadd.f32 0.0, %v9118
    %9120 = vmatprep.mubr.bf16.mxu0 %v2964
    %9121 = vmatmul.mubr.bf16.gmra.mrb[0].mxu0 %v2963
    %v9122 = vpop.f32.mrb[0].mxu0
    %v9123 = vadd.f32 0.0, %v9122
    %v9124 = vpop.f32.mrb[0].mxu0
    %v9125 = vadd.f32 0.0, %v9124
    %v9126 = vpop.f32.mrb[0].mxu0
    %v9127 = vadd.f32 0.0, %v9126
    %v9128 = vpop.f32.mrb[0].mxu0
    %v9129 = vadd.f32 0.0, %v9128
    %9130 = vdwg.mxu0
    %9131 = vmatprep.subr.bf16.mxu0 %v7659
    %9132 = vmatpush1.bf16.msra.mxu0 %v7658
    %9133 = vmatprep.subr.bf16.mxu0 %v7663
    %9134 = vmatpush1.bf16.msra.mxu0 %v7662
    %9135 = vmatprep.subr.bf16.mxu0 %v7667
    %9136 = vmatpush1.bf16.msra.mxu0 %v7666
    %9137 = vmatprep.subr.bf16.mxu0 %v7671
    %9138 = vmatpush1.bf16.msra.mxu0 %v7670
    %9139 = vmatprep.subr.bf16.mxu0 %v7675
    %9140 = vmatpush1.bf16.msra.mxu0 %v7674
    %9141 = vmatprep.subr.bf16.mxu0 %v7679
    %9142 = vmatpush1.bf16.msra.mxu0 %v7678
    %9143 = vmatprep.subr.bf16.mxu0 %v7683
    %9144 = vmatpush1.bf16.msra.mxu0 %v7682
    %9145 = vmatprep.subr.bf16.mxu0 %v7687
    %9146 = vmatpush1.bf16.msra.mxu0 %v7686
    %9147 = vmatprep.subr.bf16.mxu0 0
    %9148 = vmatpush1.bf16.msra.mxu0 0
    %9149 = vmatprep.subr.bf16.mxu0 0
    %9150 = vmatpush1.bf16.msra.mxu0 0
    %9151 = vmatprep.subr.bf16.mxu0 0
    %9152 = vmatpush1.bf16.msra.mxu0 0
    %9153 = vmatprep.subr.bf16.mxu0 0
    %9154 = vmatpush1.bf16.msra.mxu0 0
    %9155 = vmatprep.subr.bf16.mxu0 0
    %9156 = vmatpush1.bf16.msra.mxu0 0
    %9157 = vmatprep.subr.bf16.mxu0 0
    %9158 = vmatpush1.bf16.msra.mxu0 0
    %9159 = vmatprep.subr.bf16.mxu0 0
    %9160 = vmatpush1.bf16.msra.mxu0 0
    %9161 = vmatprep.subr.bf16.mxu0 0
    %9162 = vmatpush1.bf16.msra.mxu0 0
    %9163 = vmatprep.mubr.bf16.mxu0 0
    %9164 = vmatmul.mubr.bf16.gmra.mrb[0].mxu0 %v2959
    %v9165 = vpop.f32.mrb[0].mxu0
    %v9166 = vadd.f32 %v9103, %v9165
    %v9167 = vpop.f32.mrb[0].mxu0
    %v9168 = vadd.f32 %v9105, %v9167
    %v9169 = vpop.f32.mrb[0].mxu0
    %v9170 = vadd.f32 %v9107, %v9169
    %v9171 = vpop.f32.mrb[0].mxu0
    %v9172 = vadd.f32 %v9109, %v9171
    %9173 = vmatprep.mubr.bf16.mxu0 0
    %9174 = vmatmul.mubr.bf16.gmra.mrb[0].mxu0 %v2962
    %v9175 = vpop.f32.mrb[0].mxu0
    %v9176 = vadd.f32 %v9113, %v9175
    %v9177 = vpop.f32.mrb[0].mxu0
    %v9178 = vadd.f32 %v9115, %v9177
    %v9179 = vpop.f32.mrb[0].mxu0
    %v9180 = vadd.f32 %v9117, %v9179
    %v9181 = vpop.f32.mrb[0].mxu0
    %v9182 = vadd.f32 %v9119, %v9181
    %9183 = vmatprep.mubr.bf16.mxu0 0
    %9184 = vmatmul.mubr.bf16.gmra.mrb[0].mxu0 %v2965
    %v9185 = vpop.f32.mrb[0].mxu0
    %v9186 = vadd.f32 %v9123, %v9185
    %v9187 = vpop.f32.mrb[0].mxu0
    %v9188 = vadd.f32 %v9125, %v9187
    %v9189 = vpop.f32.mrb[0].mxu0
    %v9190 = vadd.f32 %v9127, %v9189
    %v9191 = vpop.f32.mrb[0].mxu0
    %v9192 = vadd.f32 %v9129, %v9191
    %9193 = vdwg.mxu0
    %v9194 = vadd.f32 %v8918, %v9040
    %v9195 = vadd.f32 %v8919, %v9042
    %v9196 = vadd.f32 %v8920, %v9166
    %v9197 = vadd.f32 %v8921, %v9168
    %v9198 = vadd.f32 %v8922, %v9044
    %v9199 = vadd.f32 %v8923, %v9046
    %v9200 = vadd.f32 %v8924, %v9170
    %v9201 = vadd.f32 %v8925, %v9172
    %v9202 = vadd.f32 %v8926, %v9050
    %v9203 = vadd.f32 %v8927, %v9052
    %v9204 = vadd.f32 %v8928, %v9176
    %v9205 = vadd.f32 %v8929, %v9178
    %v9206 = vadd.f32 %v8930, %v9054
    %v9207 = vadd.f32 %v8931, %v9056
    %v9208 = vadd.f32 %v8932, %v9180
    %v9209 = vadd.f32 %v8933, %v9182
    %v9210 = vadd.f32 %v8934, %v9060
    %v9211 = vadd.f32 %v8935, %v9062
    %v9212 = vadd.f32 %v8936, %v9186
    %v9213 = vadd.f32 %v8937, %v9188
    %v9214 = vadd.f32 %v8938, %v9064
    %v9215 = vadd.f32 %v8939, %v9066
    %v9216 = vadd.f32 %v8940, %v9190
    %v9217 = vadd.f32 %v8941, %v9192
    %v9218 = vmul.f32 %v9194, %v8064
    %v9219 = vmul.f32 %v9195, %v8068
    %v9220 = vmul.f32 %v9196, %v8072
    %v9221 = vmul.f32 %v9197, %v8076
    %v9222 = vmul.f32 %v9198, %v8064
    %v9223 = vmul.f32 %v9199, %v8068
    %v9224 = vmul.f32 %v9200, %v8072
    %v9225 = vmul.f32 %v9201, %v8076
    %v9226 = vmul.f32 %v9202, %v8064
    %v9227 = vmul.f32 %v9203, %v8068
    %v9228 = vmul.f32 %v9204, %v8072
    %v9229 = vmul.f32 %v9205, %v8076
    %v9230 = vmul.f32 %v9206, %v8064
    %v9231 = vmul.f32 %v9207, %v8068
    %v9232 = vmul.f32 %v9208, %v8072
    %v9233 = vmul.f32 %v9209, %v8076
    %v9234 = vmul.f32 %v9210, %v8064
    %v9235 = vmul.f32 %v9211, %v8068
    %v9236 = vmul.f32 %v9212, %v8072
    %v9237 = vmul.f32 %v9213, %v8076
    %v9238 = vmul.f32 %v9214, %v8064
    %v9239 = vmul.f32 %v9215, %v8068
    %v9240 = vmul.f32 %v9216, %v8072
    %v9241 = vmul.f32 %v9217, %v8076
    %v9242 = vadd.f32 %v9218, %v8109
    %v9243 = vadd.f32 %v9219, %v8113
    %v9244 = vadd.f32 %v9220, %v8117
    %v9245 = vadd.f32 %v9221, %v8121
    %v9246 = vadd.f32 %v9222, %v8109
    %v9247 = vadd.f32 %v9223, %v8113
    %v9248 = vadd.f32 %v9224, %v8117
    %v9249 = vadd.f32 %v9225, %v8121
    %v9250 = vadd.f32 %v9226, %v8109
    %v9251 = vadd.f32 %v9227, %v8113
    %v9252 = vadd.f32 %v9228, %v8117
    %v9253 = vadd.f32 %v9229, %v8121
    %v9254 = vadd.f32 %v9230, %v8109
    %v9255 = vadd.f32 %v9231, %v8113
    %v9256 = vadd.f32 %v9232, %v8117
    %v9257 = vadd.f32 %v9233, %v8121
    %v9258 = vadd.f32 %v9234, %v8109
    %v9259 = vadd.f32 %v9235, %v8113
    %v9260 = vadd.f32 %v9236, %v8117
    %v9261 = vadd.f32 %v9237, %v8121
    %v9262 = vadd.f32 %v9238, %v8109
    %v9263 = vadd.f32 %v9239, %v8113
    %v9264 = vadd.f32 %v9240, %v8117
    %v9265 = vadd.f32 %v9241, %v8121
    %v9266 = vmax.f32 %v9242, %v9244
    %v9267 = vmax.f32 %v9243, %v9245
    %v9268 = vmax.f32 %v9246, %v9248
    %v9269 = vmax.f32 %v9247, %v9249
    %v9270 = vmax.f32 %v9250, %v9252
    %v9271 = vmax.f32 %v9251, %v9253
    %v9272 = vmax.f32 %v9254, %v9256
    %v9273 = vmax.f32 %v9255, %v9257
    %v9274 = vmax.f32 %v9258, %v9260
    %v9275 = vmax.f32 %v9259, %v9261
    %v9276 = vmax.f32 %v9262, %v9264
    %v9277 = vmax.f32 %v9263, %v9265
    %v9278 = vmax.f32 %v8150, %v9266
    %v9279 = vmax.f32 %v8151, %v9267
    %v9280 = vmax.f32 %v8152, %v9268
    %v9281 = vmax.f32 %v8153, %v9269
    %v9282 = vmax.f32 %v8154, %v9270
    %v9283 = vmax.f32 %v8155, %v9271
    %v9284 = vmax.f32 %v8156, %v9272
    %v9285 = vmax.f32 %v8157, %v9273
    %v9286 = vmax.f32 %v8158, %v9274
    %v9287 = vmax.f32 %v8159, %v9275
    %v9288 = vmax.f32 %v8160, %v9276
    %v9289 = vmax.f32 %v8161, %v9277
    %v9290 = vmax.f32 %v9278, 0.0
    %v9291 = vmax.f32 %v9279, 0.0
    %v9292 = vmax.f32 %v9280, 0.0
    %v9293 = vmax.f32 %v9281, 0.0
    %v9294 = vmax.f32 %v9282, 0.0
    %v9295 = vmax.f32 %v9283, 0.0
    %v9296 = vmax.f32 %v9284, 0.0
    %v9297 = vmax.f32 %v9285, 0.0
    %v9298 = vmax.f32 %v9286, 0.0
    %v9299 = vmax.f32 %v9287, 0.0
    %v9300 = vmax.f32 %v9288, 0.0
    %v9301 = vmax.f32 %v9289, 0.0
    %v9302 = vpack.c.bf16 %v9292, %v9290
    %v9303 = vpack.c.bf16 %v9293, %v9291
    %v9304 = vpack.c.bf16 %v9296, %v9294
    %v9305 = vpack.c.bf16 %v9297, %v9295
    %v9306 = vpack.c.bf16 %v9300, %v9298
    %v9307 = vpack.c.bf16 %v9301, %v9299
    %v9308 = vld [vmem:[%s7] sm:$0xf]
    %v9309 = vld [vmem:[%s7 + $0x4] sm:$0xf]
    %v9310 = vld [vmem:[%s7 + $0x8] sm:$0xf]
    %v9311 = vld [vmem:[%s7 + $0xc] sm:$0xf]
    %v9312 = vld [vmem:[%s7 + $0x10] sm:$0xf]
    %v9313 = vld [vmem:[%s7 + $0x14] sm:$0xf]
    %v9314 = vld [vmem:[%s7 + $0x18] sm:$0xf]
    %v9315 = vld [vmem:[%s7 + $0x1c] sm:$0xf]
    %v9316 = vld [vmem:[%s7 + $0x20] sm:$0xf]
    %v9317 = vld [vmem:[%s7 + $0x24] sm:$0xf]
    %v9318 = vld [vmem:[%s7 + $0x28] sm:$0xf]
    %v9319 = vld [vmem:[%s7 + $0x2c] sm:$0xf]
    %v9320 = vld [vmem:[%s7 + $0x30] sm:$0xf]
    %v9321 = vld [vmem:[%s7 + $0x34] sm:$0xf]
    %v9322 = vld [vmem:[%s7 + $0x38] sm:$0xf]
    %v9323 = vld [vmem:[%s7 + $0x3c] sm:$0xf]
    %v9324 = vld [vmem:[%s7 + $0x40] sm:$0xf]
    %v9325 = vld [vmem:[%s7 + $0x44] sm:$0xf]
    %v9326 = vld [vmem:[%s7 + $0x48] sm:$0xf]
    %v9327 = vld [vmem:[%s7 + $0x4c] sm:$0xf]
    %v9328 = vld [vmem:[%s7 + $0x50] sm:$0xf]
    %v9329 = vld [vmem:[%s7 + $0x54] sm:$0xf]
    %v9330 = vld [vmem:[%s7 + $0x58] sm:$0xf]
    %v9331 = vld [vmem:[%s7 + $0x5c] sm:$0xf]
    %v9332 = vld [vmem:[%s7 + $0x60] sm:$0xf]
    %v9333 = vld [vmem:[%s7 + $0x64] sm:$0xf]
    %v9334 = vld [vmem:[%s7 + $0x68] sm:$0xf]
    %v9335 = vld [vmem:[%s7 + $0x6c] sm:$0xf]
    %v9336 = vld [vmem:[%s7 + $0x70] sm:$0xf]
    %v9337 = vld [vmem:[%s7 + $0x74] sm:$0xf]
    %v9338 = vld [vmem:[%s7 + $0x78] sm:$0xf]
    %v9339 = vld [vmem:[%s7 + $0x7c] sm:$0xf]
    %s9340 = scalar_lea.vmem %s7, 128
    %v9341 = vld [vmem:[%s9340] sm:$0xf]
    %v9342 = vld [vmem:[%s9340 + $0x4] sm:$0xf]
    %v9343 = vld [vmem:[%s9340 + $0x8] sm:$0xf]
    %v9344 = vld [vmem:[%s9340 + $0xc] sm:$0xf]
    %v9345 = vld [vmem:[%s9340 + $0x10] sm:$0xf]
    %v9346 = vld [vmem:[%s9340 + $0x14] sm:$0xf]
    %v9347 = vld [vmem:[%s9340 + $0x18] sm:$0xf]
    %v9348 = vld [vmem:[%s9340 + $0x1c] sm:$0xf]
    %v9349 = vld [vmem:[%s9340 + $0x20] sm:$0xf]
    %v9350 = vld [vmem:[%s9340 + $0x24] sm:$0xf]
    %v9351 = vld [vmem:[%s9340 + $0x28] sm:$0xf]
    %v9352 = vld [vmem:[%s9340 + $0x2c] sm:$0xf]
    %v9353 = vld [vmem:[%s9340 + $0x30] sm:$0xf]
    %v9354 = vld [vmem:[%s9340 + $0x34] sm:$0xf]
    %v9355 = vld [vmem:[%s9340 + $0x38] sm:$0xf]
    %v9356 = vld [vmem:[%s9340 + $0x3c] sm:$0xf]
    %v9357 = vld [vmem:[%s9340 + $0x40] sm:$0xf]
    %v9358 = vld [vmem:[%s9340 + $0x44] sm:$0xf]
    %v9359 = vld [vmem:[%s9340 + $0x48] sm:$0xf]
    %v9360 = vld [vmem:[%s9340 + $0x4c] sm:$0xf]
    %v9361 = vld [vmem:[%s9340 + $0x50] sm:$0xf]
    %v9362 = vld [vmem:[%s9340 + $0x54] sm:$0xf]
    %v9363 = vld [vmem:[%s9340 + $0x58] sm:$0xf]
    %v9364 = vld [vmem:[%s9340 + $0x5c] sm:$0xf]
    %v9365 = vld [vmem:[%s9340 + $0x60] sm:$0xf]
    %v9366 = vld [vmem:[%s9340 + $0x64] sm:$0xf]
    %v9367 = vld [vmem:[%s9340 + $0x68] sm:$0xf]
    %v9368 = vld [vmem:[%s9340 + $0x6c] sm:$0xf]
    %v9369 = vld [vmem:[%s9340 + $0x70] sm:$0xf]
    %v9370 = vld [vmem:[%s9340 + $0x74] sm:$0xf]
    %v9371 = vld [vmem:[%s9340 + $0x78] sm:$0xf]
    %v9372 = vld [vmem:[%s9340 + $0x7c] sm:$0xf]
    %v9375 = vrot.slane %v9302, 4
    %v9376 = vrot.slane %v9303, 4
    %v9411 = vunpack.c.l.b16 %v9341
    %v9412 = vunpack.c.l.b16 %v9342
    %v9413 = vunpack.c.l.b16 %v9343
    %v9414 = vunpack.c.l.b16 %v9344
    %v9415 = vunpack.c.l.b16 %v9345
    %v9416 = vunpack.c.l.b16 %v9346
    %v9417 = vunpack.c.l.b16 %v9347
    %v9418 = vunpack.c.l.b16 %v9348
    %v9419 = vunpack.c.l.b16 %v9349
    %v9420 = vunpack.c.l.b16 %v9350
    %v9421 = vunpack.c.l.b16 %v9351
    %v9422 = vunpack.c.l.b16 %v9352
    %v9423 = vunpack.c.l.b16 %v9353
    %v9424 = vunpack.c.l.b16 %v9354
    %v9425 = vunpack.c.l.b16 %v9355
    %v9426 = vunpack.c.l.b16 %v9356
    %v9427 = vunpack.c.l.b16 %v9357
    %v9428 = vunpack.c.l.b16 %v9358
    %v9429 = vunpack.c.l.b16 %v9359
    %v9430 = vunpack.c.l.b16 %v9360
    %v9431 = vunpack.c.l.b16 %v9361
    %v9432 = vunpack.c.l.b16 %v9362
    %v9433 = vunpack.c.l.b16 %v9363
    %v9434 = vunpack.c.l.b16 %v9364
    %v9435 = vunpack.c.l.b16 %v9365
    %v9436 = vunpack.c.l.b16 %v9366
    %v9437 = vunpack.c.l.b16 %v9367
    %v9438 = vunpack.c.l.b16 %v9368
    %v9439 = vunpack.c.l.b16 %v9369
    %v9440 = vunpack.c.l.b16 %v9370
    %v9441 = vunpack.c.l.b16 %v9371
    %v9442 = vunpack.c.l.b16 %v9372
    %v9443 = vpack.c.b16 %v9412, %v9411
    %v9444 = vpack.c.b16 %v9414, %v9413
    %v9445 = vpack.c.b16 %v9416, %v9415
    %v9446 = vpack.c.b16 %v9418, %v9417
    %v9447 = vpack.c.b16 %v9420, %v9419
    %v9448 = vpack.c.b16 %v9422, %v9421
    %v9449 = vpack.c.b16 %v9424, %v9423
    %v9450 = vpack.c.b16 %v9426, %v9425
    %v9451 = vpack.c.b16 %v9428, %v9427
    %v9452 = vpack.c.b16 %v9430, %v9429
    %v9453 = vpack.c.b16 %v9432, %v9431
    %v9454 = vpack.c.b16 %v9434, %v9433
    %v9455 = vpack.c.b16 %v9436, %v9435
    %v9456 = vpack.c.b16 %v9438, %v9437
    %v9457 = vpack.c.b16 %v9440, %v9439
    %v9458 = vpack.c.b16 %v9442, %v9441
    %9475 = vmatprep.subr.bf16.mxu0 0
    %9476 = vmatpush1.bf16.msra.mxu0 %v9443
    %9477 = vmatprep.subr.bf16.mxu0 0
    %9478 = vmatpush1.bf16.msra.mxu0 %v9444
    %9479 = vmatprep.subr.bf16.mxu0 0
    %9480 = vmatpush1.bf16.msra.mxu0 %v9445
    %9481 = vmatprep.subr.bf16.mxu0 0
    %9482 = vmatpush1.bf16.msra.mxu0 %v9446
    %9483 = vmatprep.subr.bf16.mxu0 0
    %9484 = vmatpush1.bf16.msra.mxu0 %v9447
    %9485 = vmatprep.subr.bf16.mxu0 0
    %9486 = vmatpush1.bf16.msra.mxu0 %v9448
    %9487 = vmatprep.subr.bf16.mxu0 0
    %9488 = vmatpush1.bf16.msra.mxu0 %v9449
    %9489 = vmatprep.subr.bf16.mxu0 0
    %9490 = vmatpush1.bf16.msra.mxu0 %v9450
    %9491 = vmatprep.subr.bf16.mxu0 0
    %9492 = vmatpush1.bf16.msra.mxu0 %v9451
    %9493 = vmatprep.subr.bf16.mxu0 0
    %9494 = vmatpush1.bf16.msra.mxu0 %v9452
    %9495 = vmatprep.subr.bf16.mxu0 0
    %9496 = vmatpush1.bf16.msra.mxu0 %v9453
    %9497 = vmatprep.subr.bf16.mxu0 0
    %9498 = vmatpush1.bf16.msra.mxu0 %v9454
    %9499 = vmatprep.subr.bf16.mxu0 0
    %9500 = vmatpush1.bf16.msra.mxu0 %v9455
    %9501 = vmatprep.subr.bf16.mxu0 0
    %9502 = vmatpush1.bf16.msra.mxu0 %v9456
    %9503 = vmatprep.subr.bf16.mxu0 0
    %9504 = vmatpush1.bf16.msra.mxu0 %v9457
    %9505 = vmatprep.subr.bf16.mxu0 0
    %9506 = vmatpush1.bf16.msra.mxu0 %v9458
    %9507 = vmatprep.mubr.bf16.mxu0 %v9376
    %9508 = vmatmul.mubr.bf16.gmra.mrb[0].mxu0 %v9375
    %v9509 = vpop.f32.mrb[0].mxu0
    %v9510 = vadd.f32 0.0, %v9509
    %v9511 = vpop.f32.mrb[0].mxu0
    %v9512 = vpop.f32.mrb[0].mxu0
    %v9513 = vpop.f32.mrb[0].mxu0
    %9514 = vdwg.mxu0
    %v9547 = vunpack.c.l.b16 %v9308
    %v9548 = vunpack.c.l.b16 %v9309
    %v9549 = vunpack.c.l.b16 %v9310
    %v9550 = vunpack.c.l.b16 %v9311
    %v9551 = vunpack.c.l.b16 %v9312
    %v9552 = vunpack.c.l.b16 %v9313
    %v9553 = vunpack.c.l.b16 %v9314
    %v9554 = vunpack.c.l.b16 %v9315
    %v9555 = vunpack.c.l.b16 %v9316
    %v9556 = vunpack.c.l.b16 %v9317
    %v9557 = vunpack.c.l.b16 %v9318
    %v9558 = vunpack.c.l.b16 %v9319
    %v9559 = vunpack.c.l.b16 %v9320
    %v9560 = vunpack.c.l.b16 %v9321
    %v9561 = vunpack.c.l.b16 %v9322
    %v9562 = vunpack.c.l.b16 %v9323
    %v9563 = vunpack.c.l.b16 %v9324
    %v9564 = vunpack.c.l.b16 %v9325
    %v9565 = vunpack.c.l.b16 %v9326
    %v9566 = vunpack.c.l.b16 %v9327
    %v9567 = vunpack.c.l.b16 %v9328
    %v9568 = vunpack.c.l.b16 %v9329
    %v9569 = vunpack.c.l.b16 %v9330
    %v9570 = vunpack.c.l.b16 %v9331
    %v9571 = vunpack.c.l.b16 %v9332
    %v9572 = vunpack.c.l.b16 %v9333
    %v9573 = vunpack.c.l.b16 %v9334
    %v9574 = vunpack.c.l.b16 %v9335
    %v9575 = vunpack.c.l.b16 %v9336
    %v9576 = vunpack.c.l.b16 %v9337
    %v9577 = vunpack.c.l.b16 %v9338
    %v9578 = vunpack.c.l.b16 %v9339
    %v9579 = vpack.c.b16 %v9548, %v9547
    %v9580 = vpack.c.b16 %v9550, %v9549
    %v9581 = vpack.c.b16 %v9552, %v9551
    %v9582 = vpack.c.b16 %v9554, %v9553
    %v9583 = vpack.c.b16 %v9556, %v9555
    %v9584 = vpack.c.b16 %v9558, %v9557
    %v9585 = vpack.c.b16 %v9560, %v9559
    %v9586 = vpack.c.b16 %v9562, %v9561
    %v9587 = vpack.c.b16 %v9564, %v9563
    %v9588 = vpack.c.b16 %v9566, %v9565
    %v9589 = vpack.c.b16 %v9568, %v9567
    %v9590 = vpack.c.b16 %v9570, %v9569
    %v9591 = vpack.c.b16 %v9572, %v9571
    %v9592 = vpack.c.b16 %v9574, %v9573
    %v9593 = vpack.c.b16 %v9576, %v9575
    %v9594 = vpack.c.b16 %v9578, %v9577
    %9611 = vmatprep.subr.bf16.mxu0 0
    %9612 = vmatpush1.bf16.msra.mxu0 %v9579
    %9613 = vmatprep.subr.bf16.mxu0 0
    %9614 = vmatpush1.bf16.msra.mxu0 %v9580
    %9615 = vmatprep.subr.bf16.mxu0 0
    %9616 = vmatpush1.bf16.msra.mxu0 %v9581
    %9617 = vmatprep.subr.bf16.mxu0 0
    %9618 = vmatpush1.bf16.msra.mxu0 %v9582
    %9619 = vmatprep.subr.bf16.mxu0 0
    %9620 = vmatpush1.bf16.msra.mxu0 %v9583
    %9621 = vmatprep.subr.bf16.mxu0 0
    %9622 = vmatpush1.bf16.msra.mxu0 %v9584
    %9623 = vmatprep.subr.bf16.mxu0 0
    %9624 = vmatpush1.bf16.msra.mxu0 %v9585
    %9625 = vmatprep.subr.bf16.mxu0 0
    %9626 = vmatpush1.bf16.msra.mxu0 %v9586
    %9627 = vmatprep.subr.bf16.mxu0 0
    %9628 = vmatpush1.bf16.msra.mxu0 %v9587
    %9629 = vmatprep.subr.bf16.mxu0 0
    %9630 = vmatpush1.bf16.msra.mxu0 %v9588
    %9631 = vmatprep.subr.bf16.mxu0 0
    %9632 = vmatpush1.bf16.msra.mxu0 %v9589
    %9633 = vmatprep.subr.bf16.mxu0 0
    %9634 = vmatpush1.bf16.msra.mxu0 %v9590
    %9635 = vmatprep.subr.bf16.mxu0 0
    %9636 = vmatpush1.bf16.msra.mxu0 %v9591
    %9637 = vmatprep.subr.bf16.mxu0 0
    %9638 = vmatpush1.bf16.msra.mxu0 %v9592
    %9639 = vmatprep.subr.bf16.mxu0 0
    %9640 = vmatpush1.bf16.msra.mxu0 %v9593
    %9641 = vmatprep.subr.bf16.mxu0 0
    %9642 = vmatpush1.bf16.msra.mxu0 %v9594
    %9643 = vmatprep.mubr.bf16.mxu0 %v9303
    %9644 = vmatmul.mubr.bf16.gmra.mrb[0].mxu0 %v9302
    %v9645 = vpop.f32.mrb[0].mxu0
    %v9646 = vadd.f32 %v9510, %v9645
    %v9647 = vpop.f32.mrb[0].mxu0
    %v9648 = vpop.f32.mrb[0].mxu0
    %v9649 = vpop.f32.mrb[0].mxu0
    %9650 = vdwg.mxu0
    %s9651 = scalar_lea.vmem %s7, 256
    %v9652 = vld [vmem:[%s9651] sm:$0xf]
    %v9653 = vld [vmem:[%s9651 + $0x4] sm:$0xf]
    %v9654 = vld [vmem:[%s9651 + $0x8] sm:$0xf]
    %v9655 = vld [vmem:[%s9651 + $0xc] sm:$0xf]
    %v9656 = vld [vmem:[%s9651 + $0x10] sm:$0xf]
    %v9657 = vld [vmem:[%s9651 + $0x14] sm:$0xf]
    %v9658 = vld [vmem:[%s9651 + $0x18] sm:$0xf]
    %v9659 = vld [vmem:[%s9651 + $0x1c] sm:$0xf]
    %v9660 = vld [vmem:[%s9651 + $0x20] sm:$0xf]
    %v9661 = vld [vmem:[%s9651 + $0x24] sm:$0xf]
    %v9662 = vld [vmem:[%s9651 + $0x28] sm:$0xf]
    %v9663 = vld [vmem:[%s9651 + $0x2c] sm:$0xf]
    %v9664 = vld [vmem:[%s9651 + $0x30] sm:$0xf]
    %v9665 = vld [vmem:[%s9651 + $0x34] sm:$0xf]
    %v9666 = vld [vmem:[%s9651 + $0x38] sm:$0xf]
    %v9667 = vld [vmem:[%s9651 + $0x3c] sm:$0xf]
    %v9668 = vld [vmem:[%s9651 + $0x40] sm:$0xf]
    %v9669 = vld [vmem:[%s9651 + $0x44] sm:$0xf]
    %v9670 = vld [vmem:[%s9651 + $0x48] sm:$0xf]
    %v9671 = vld [vmem:[%s9651 + $0x4c] sm:$0xf]
    %v9672 = vld [vmem:[%s9651 + $0x50] sm:$0xf]
    %v9673 = vld [vmem:[%s9651 + $0x54] sm:$0xf]
    %v9674 = vld [vmem:[%s9651 + $0x58] sm:$0xf]
    %v9675 = vld [vmem:[%s9651 + $0x5c] sm:$0xf]
    %v9676 = vld [vmem:[%s9651 + $0x60] sm:$0xf]
    %v9677 = vld [vmem:[%s9651 + $0x64] sm:$0xf]
    %v9678 = vld [vmem:[%s9651 + $0x68] sm:$0xf]
    %v9679 = vld [vmem:[%s9651 + $0x6c] sm:$0xf]
    %v9680 = vld [vmem:[%s9651 + $0x70] sm:$0xf]
    %v9681 = vld [vmem:[%s9651 + $0x74] sm:$0xf]
    %v9682 = vld [vmem:[%s9651 + $0x78] sm:$0xf]
    %v9683 = vld [vmem:[%s9651 + $0x7c] sm:$0xf]
    %v9716 = vunpack.c.l.b16 %v9652
    %v9717 = vunpack.c.l.b16 %v9653
    %v9718 = vunpack.c.l.b16 %v9654
    %v9719 = vunpack.c.l.b16 %v9655
    %v9720 = vunpack.c.l.b16 %v9656
    %v9721 = vunpack.c.l.b16 %v9657
    %v9722 = vunpack.c.l.b16 %v9658
    %v9723 = vunpack.c.l.b16 %v9659
    %v9724 = vunpack.c.l.b16 %v9660
    %v9725 = vunpack.c.l.b16 %v9661
    %v9726 = vunpack.c.l.b16 %v9662
    %v9727 = vunpack.c.l.b16 %v9663
    %v9728 = vunpack.c.l.b16 %v9664
    %v9729 = vunpack.c.l.b16 %v9665
    %v9730 = vunpack.c.l.b16 %v9666
    %v9731 = vunpack.c.l.b16 %v9667
    %v9732 = vunpack.c.l.b16 %v9668
    %v9733 = vunpack.c.l.b16 %v9669
    %v9734 = vunpack.c.l.b16 %v9670
    %v9735 = vunpack.c.l.b16 %v9671
    %v9736 = vunpack.c.l.b16 %v9672
    %v9737 = vunpack.c.l.b16 %v9673
    %v9738 = vunpack.c.l.b16 %v9674
    %v9739 = vunpack.c.l.b16 %v9675
    %v9740 = vunpack.c.l.b16 %v9676
    %v9741 = vunpack.c.l.b16 %v9677
    %v9742 = vunpack.c.l.b16 %v9678
    %v9743 = vunpack.c.l.b16 %v9679
    %v9744 = vunpack.c.l.b16 %v9680
    %v9745 = vunpack.c.l.b16 %v9681
    %v9746 = vunpack.c.l.b16 %v9682
    %v9747 = vunpack.c.l.b16 %v9683
    %v9748 = vpack.c.b16 %v9717, %v9716
    %v9749 = vpack.c.b16 %v9719, %v9718
    %v9750 = vpack.c.b16 %v9721, %v9720
    %v9751 = vpack.c.b16 %v9723, %v9722
    %v9752 = vpack.c.b16 %v9725, %v9724
    %v9753 = vpack.c.b16 %v9727, %v9726
    %v9754 = vpack.c.b16 %v9729, %v9728
    %v9755 = vpack.c.b16 %v9731, %v9730
    %v9756 = vpack.c.b16 %v9733, %v9732
    %v9757 = vpack.c.b16 %v9735, %v9734
    %v9758 = vpack.c.b16 %v9737, %v9736
    %v9759 = vpack.c.b16 %v9739, %v9738
    %v9760 = vpack.c.b16 %v9741, %v9740
    %v9761 = vpack.c.b16 %v9743, %v9742
    %v9762 = vpack.c.b16 %v9745, %v9744
    %v9763 = vpack.c.b16 %v9747, %v9746
    %9780 = vmatprep.subr.bf16.mxu0 0
    %9781 = vmatpush1.bf16.msra.mxu0 %v9748
    %9782 = vmatprep.subr.bf16.mxu0 0
    %9783 = vmatpush1.bf16.msra.mxu0 %v9749
    %9784 = vmatprep.subr.bf16.mxu0 0
    %9785 = vmatpush1.bf16.msra.mxu0 %v9750
    %9786 = vmatprep.subr.bf16.mxu0 0
    %9787 = vmatpush1.bf16.msra.mxu0 %v9751
    %9788 = vmatprep.subr.bf16.mxu0 0
    %9789 = vmatpush1.bf16.msra.mxu0 %v9752
    %9790 = vmatprep.subr.bf16.mxu0 0
    %9791 = vmatpush1.bf16.msra.mxu0 %v9753
    %9792 = vmatprep.subr.bf16.mxu0 0
    %9793 = vmatpush1.bf16.msra.mxu0 %v9754
    %9794 = vmatprep.subr.bf16.mxu0 0
    %9795 = vmatpush1.bf16.msra.mxu0 %v9755
    %9796 = vmatprep.subr.bf16.mxu0 0
    %9797 = vmatpush1.bf16.msra.mxu0 %v9756
    %9798 = vmatprep.subr.bf16.mxu0 0
    %9799 = vmatpush1.bf16.msra.mxu0 %v9757
    %9800 = vmatprep.subr.bf16.mxu0 0
    %9801 = vmatpush1.bf16.msra.mxu0 %v9758
    %9802 = vmatprep.subr.bf16.mxu0 0
    %9803 = vmatpush1.bf16.msra.mxu0 %v9759
    %9804 = vmatprep.subr.bf16.mxu0 0
    %9805 = vmatpush1.bf16.msra.mxu0 %v9760
    %9806 = vmatprep.subr.bf16.mxu0 0
    %9807 = vmatpush1.bf16.msra.mxu0 %v9761
    %9808 = vmatprep.subr.bf16.mxu0 0
    %9809 = vmatpush1.bf16.msra.mxu0 %v9762
    %9810 = vmatprep.subr.bf16.mxu0 0
    %9811 = vmatpush1.bf16.msra.mxu0 %v9763
    %9812 = vmatprep.mubr.bf16.mxu0 %v9305
    %9813 = vmatmul.mubr.bf16.gmra.mrb[0].mxu0 %v9304
    %v9814 = vpop.f32.mrb[0].mxu0
    %v9815 = vadd.f32 0.0, %v9814
    %v9816 = vpop.f32.mrb[0].mxu0
    %v9817 = vpop.f32.mrb[0].mxu0
    %v9818 = vpop.f32.mrb[0].mxu0
    %9819 = vdwg.mxu0
    %v9820 = vadd.f32 %v9646, %v9815
    %s9821 = scalar_lea.vmem %s7, 384
    %v9822 = vld [vmem:[%s9821] sm:$0xf]
    %v9823 = vld [vmem:[%s9821 + $0x4] sm:$0xf]
    %v9824 = vld [vmem:[%s9821 + $0x8] sm:$0xf]
    %v9825 = vld [vmem:[%s9821 + $0xc] sm:$0xf]
    %v9826 = vld [vmem:[%s9821 + $0x10] sm:$0xf]
    %v9827 = vld [vmem:[%s9821 + $0x14] sm:$0xf]
    %v9828 = vld [vmem:[%s9821 + $0x18] sm:$0xf]
    %v9829 = vld [vmem:[%s9821 + $0x1c] sm:$0xf]
    %v9830 = vld [vmem:[%s9821 + $0x20] sm:$0xf]
    %v9831 = vld [vmem:[%s9821 + $0x24] sm:$0xf]
    %v9832 = vld [vmem:[%s9821 + $0x28] sm:$0xf]
    %v9833 = vld [vmem:[%s9821 + $0x2c] sm:$0xf]
    %v9834 = vld [vmem:[%s9821 + $0x30] sm:$0xf]
    %v9835 = vld [vmem:[%s9821 + $0x34] sm:$0xf]
    %v9836 = vld [vmem:[%s9821 + $0x38] sm:$0xf]
    %v9837 = vld [vmem:[%s9821 + $0x3c] sm:$0xf]
    %v9838 = vld [vmem:[%s9821 + $0x40] sm:$0xf]
    %v9839 = vld [vmem:[%s9821 + $0x44] sm:$0xf]
    %v9840 = vld [vmem:[%s9821 + $0x48] sm:$0xf]
    %v9841 = vld [vmem:[%s9821 + $0x4c] sm:$0xf]
    %v9842 = vld [vmem:[%s9821 + $0x50] sm:$0xf]
    %v9843 = vld [vmem:[%s9821 + $0x54] sm:$0xf]
    %v9844 = vld [vmem:[%s9821 + $0x58] sm:$0xf]
    %v9845 = vld [vmem:[%s9821 + $0x5c] sm:$0xf]
    %v9846 = vld [vmem:[%s9821 + $0x60] sm:$0xf]
    %v9847 = vld [vmem:[%s9821 + $0x64] sm:$0xf]
    %v9848 = vld [vmem:[%s9821 + $0x68] sm:$0xf]
    %v9849 = vld [vmem:[%s9821 + $0x6c] sm:$0xf]
    %v9850 = vld [vmem:[%s9821 + $0x70] sm:$0xf]
    %v9851 = vld [vmem:[%s9821 + $0x74] sm:$0xf]
    %v9852 = vld [vmem:[%s9821 + $0x78] sm:$0xf]
    %v9853 = vld [vmem:[%s9821 + $0x7c] sm:$0xf]
    %v9856 = vrot.slane %v9304, 4
    %v9857 = vrot.slane %v9305, 4
    %v9892 = vunpack.c.l.b16 %v9822
    %v9893 = vunpack.c.l.b16 %v9823
    %v9894 = vunpack.c.l.b16 %v9824
    %v9895 = vunpack.c.l.b16 %v9825
    %v9896 = vunpack.c.l.b16 %v9826
    %v9897 = vunpack.c.l.b16 %v9827
    %v9898 = vunpack.c.l.b16 %v9828
    %v9899 = vunpack.c.l.b16 %v9829
    %v9900 = vunpack.c.l.b16 %v9830
    %v9901 = vunpack.c.l.b16 %v9831
    %v9902 = vunpack.c.l.b16 %v9832
    %v9903 = vunpack.c.l.b16 %v9833
    %v9904 = vunpack.c.l.b16 %v9834
    %v9905 = vunpack.c.l.b16 %v9835
    %v9906 = vunpack.c.l.b16 %v9836
    %v9907 = vunpack.c.l.b16 %v9837
    %v9908 = vunpack.c.l.b16 %v9838
    %v9909 = vunpack.c.l.b16 %v9839
    %v9910 = vunpack.c.l.b16 %v9840
    %v9911 = vunpack.c.l.b16 %v9841
    %v9912 = vunpack.c.l.b16 %v9842
    %v9913 = vunpack.c.l.b16 %v9843
    %v9914 = vunpack.c.l.b16 %v9844
    %v9915 = vunpack.c.l.b16 %v9845
    %v9916 = vunpack.c.l.b16 %v9846
    %v9917 = vunpack.c.l.b16 %v9847
    %v9918 = vunpack.c.l.b16 %v9848
    %v9919 = vunpack.c.l.b16 %v9849
    %v9920 = vunpack.c.l.b16 %v9850
    %v9921 = vunpack.c.l.b16 %v9851
    %v9922 = vunpack.c.l.b16 %v9852
    %v9923 = vunpack.c.l.b16 %v9853
    %v9924 = vpack.c.b16 %v9893, %v9892
    %v9925 = vpack.c.b16 %v9895, %v9894
    %v9926 = vpack.c.b16 %v9897, %v9896
    %v9927 = vpack.c.b16 %v9899, %v9898
    %v9928 = vpack.c.b16 %v9901, %v9900
    %v9929 = vpack.c.b16 %v9903, %v9902
    %v9930 = vpack.c.b16 %v9905, %v9904
    %v9931 = vpack.c.b16 %v9907, %v9906
    %v9932 = vpack.c.b16 %v9909, %v9908
    %v9933 = vpack.c.b16 %v9911, %v9910
    %v9934 = vpack.c.b16 %v9913, %v9912
    %v9935 = vpack.c.b16 %v9915, %v9914
    %v9936 = vpack.c.b16 %v9917, %v9916
    %v9937 = vpack.c.b16 %v9919, %v9918
    %v9938 = vpack.c.b16 %v9921, %v9920
    %v9939 = vpack.c.b16 %v9923, %v9922
    %9956 = vmatprep.subr.bf16.mxu0 0
    %9957 = vmatpush1.bf16.msra.mxu0 %v9924
    %9958 = vmatprep.subr.bf16.mxu0 0
    %9959 = vmatpush1.bf16.msra.mxu0 %v9925
    %9960 = vmatprep.subr.bf16.mxu0 0
    %9961 = vmatpush1.bf16.msra.mxu0 %v9926
    %9962 = vmatprep.subr.bf16.mxu0 0
    %9963 = vmatpush1.bf16.msra.mxu0 %v9927
    %9964 = vmatprep.subr.bf16.mxu0 0
    %9965 = vmatpush1.bf16.msra.mxu0 %v9928
    %9966 = vmatprep.subr.bf16.mxu0 0
    %9967 = vmatpush1.bf16.msra.mxu0 %v9929
    %9968 = vmatprep.subr.bf16.mxu0 0
    %9969 = vmatpush1.bf16.msra.mxu0 %v9930
    %9970 = vmatprep.subr.bf16.mxu0 0
    %9971 = vmatpush1.bf16.msra.mxu0 %v9931
    %9972 = vmatprep.subr.bf16.mxu0 0
    %9973 = vmatpush1.bf16.msra.mxu0 %v9932
    %9974 = vmatprep.subr.bf16.mxu0 0
    %9975 = vmatpush1.bf16.msra.mxu0 %v9933
    %9976 = vmatprep.subr.bf16.mxu0 0
    %9977 = vmatpush1.bf16.msra.mxu0 %v9934
    %9978 = vmatprep.subr.bf16.mxu0 0
    %9979 = vmatpush1.bf16.msra.mxu0 %v9935
    %9980 = vmatprep.subr.bf16.mxu0 0
    %9981 = vmatpush1.bf16.msra.mxu0 %v9936
    %9982 = vmatprep.subr.bf16.mxu0 0
    %9983 = vmatpush1.bf16.msra.mxu0 %v9937
    %9984 = vmatprep.subr.bf16.mxu0 0
    %9985 = vmatpush1.bf16.msra.mxu0 %v9938
    %9986 = vmatprep.subr.bf16.mxu0 0
    %9987 = vmatpush1.bf16.msra.mxu0 %v9939
    %9988 = vmatprep.mubr.bf16.mxu0 %v9857
    %9989 = vmatmul.mubr.bf16.gmra.mrb[0].mxu0 %v9856
    %v9990 = vpop.f32.mrb[0].mxu0
    %v9991 = vadd.f32 0.0, %v9990
    %v9992 = vpop.f32.mrb[0].mxu0
    %v9993 = vpop.f32.mrb[0].mxu0
    %v9994 = vpop.f32.mrb[0].mxu0
    %9995 = vdwg.mxu0
    %v9996 = vadd.f32 %v9820, %v9991
    %s9997 = scalar_lea.vmem %s7, 512
    %v9998 = vld [vmem:[%s9997] sm:$0xf]
    %v9999 = vld [vmem:[%s9997 + $0x4] sm:$0xf]
    %v10000 = vld [vmem:[%s9997 + $0x8] sm:$0xf]
    %v10001 = vld [vmem:[%s9997 + $0xc] sm:$0xf]
    %v10002 = vld [vmem:[%s9997 + $0x10] sm:$0xf]
    %v10003 = vld [vmem:[%s9997 + $0x14] sm:$0xf]
    %v10004 = vld [vmem:[%s9997 + $0x18] sm:$0xf]
    %v10005 = vld [vmem:[%s9997 + $0x1c] sm:$0xf]
    %v10006 = vld [vmem:[%s9997 + $0x20] sm:$0xf]
    %v10007 = vld [vmem:[%s9997 + $0x24] sm:$0xf]
    %v10008 = vld [vmem:[%s9997 + $0x28] sm:$0xf]
    %v10009 = vld [vmem:[%s9997 + $0x2c] sm:$0xf]
    %v10010 = vld [vmem:[%s9997 + $0x30] sm:$0xf]
    %v10011 = vld [vmem:[%s9997 + $0x34] sm:$0xf]
    %v10012 = vld [vmem:[%s9997 + $0x38] sm:$0xf]
    %v10013 = vld [vmem:[%s9997 + $0x3c] sm:$0xf]
    %v10014 = vld [vmem:[%s9997 + $0x40] sm:$0xf]
    %v10015 = vld [vmem:[%s9997 + $0x44] sm:$0xf]
    %v10016 = vld [vmem:[%s9997 + $0x48] sm:$0xf]
    %v10017 = vld [vmem:[%s9997 + $0x4c] sm:$0xf]
    %v10018 = vld [vmem:[%s9997 + $0x50] sm:$0xf]
    %v10019 = vld [vmem:[%s9997 + $0x54] sm:$0xf]
    %v10020 = vld [vmem:[%s9997 + $0x58] sm:$0xf]
    %v10021 = vld [vmem:[%s9997 + $0x5c] sm:$0xf]
    %v10022 = vld [vmem:[%s9997 + $0x60] sm:$0xf]
    %v10023 = vld [vmem:[%s9997 + $0x64] sm:$0xf]
    %v10024 = vld [vmem:[%s9997 + $0x68] sm:$0xf]
    %v10025 = vld [vmem:[%s9997 + $0x6c] sm:$0xf]
    %v10026 = vld [vmem:[%s9997 + $0x70] sm:$0xf]
    %v10027 = vld [vmem:[%s9997 + $0x74] sm:$0xf]
    %v10028 = vld [vmem:[%s9997 + $0x78] sm:$0xf]
    %v10029 = vld [vmem:[%s9997 + $0x7c] sm:$0xf]
    %v10062 = vunpack.c.l.b16 %v9998
    %v10063 = vunpack.c.l.b16 %v9999
    %v10064 = vunpack.c.l.b16 %v10000
    %v10065 = vunpack.c.l.b16 %v10001
    %v10066 = vunpack.c.l.b16 %v10002
    %v10067 = vunpack.c.l.b16 %v10003
    %v10068 = vunpack.c.l.b16 %v10004
    %v10069 = vunpack.c.l.b16 %v10005
    %v10070 = vunpack.c.l.b16 %v10006
    %v10071 = vunpack.c.l.b16 %v10007
    %v10072 = vunpack.c.l.b16 %v10008
    %v10073 = vunpack.c.l.b16 %v10009
    %v10074 = vunpack.c.l.b16 %v10010
    %v10075 = vunpack.c.l.b16 %v10011
    %v10076 = vunpack.c.l.b16 %v10012
    %v10077 = vunpack.c.l.b16 %v10013
    %v10078 = vunpack.c.l.b16 %v10014
    %v10079 = vunpack.c.l.b16 %v10015
    %v10080 = vunpack.c.l.b16 %v10016
    %v10081 = vunpack.c.l.b16 %v10017
    %v10082 = vunpack.c.l.b16 %v10018
    %v10083 = vunpack.c.l.b16 %v10019
    %v10084 = vunpack.c.l.b16 %v10020
    %v10085 = vunpack.c.l.b16 %v10021
    %v10086 = vunpack.c.l.b16 %v10022
    %v10087 = vunpack.c.l.b16 %v10023
    %v10088 = vunpack.c.l.b16 %v10024
    %v10089 = vunpack.c.l.b16 %v10025
    %v10090 = vunpack.c.l.b16 %v10026
    %v10091 = vunpack.c.l.b16 %v10027
    %v10092 = vunpack.c.l.b16 %v10028
    %v10093 = vunpack.c.l.b16 %v10029
    %v10094 = vpack.c.b16 %v10063, %v10062
    %v10095 = vpack.c.b16 %v10065, %v10064
    %v10096 = vpack.c.b16 %v10067, %v10066
    %v10097 = vpack.c.b16 %v10069, %v10068
    %v10098 = vpack.c.b16 %v10071, %v10070
    %v10099 = vpack.c.b16 %v10073, %v10072
    %v10100 = vpack.c.b16 %v10075, %v10074
    %v10101 = vpack.c.b16 %v10077, %v10076
    %v10102 = vpack.c.b16 %v10079, %v10078
    %v10103 = vpack.c.b16 %v10081, %v10080
    %v10104 = vpack.c.b16 %v10083, %v10082
    %v10105 = vpack.c.b16 %v10085, %v10084
    %v10106 = vpack.c.b16 %v10087, %v10086
    %v10107 = vpack.c.b16 %v10089, %v10088
    %v10108 = vpack.c.b16 %v10091, %v10090
    %v10109 = vpack.c.b16 %v10093, %v10092
    %10126 = vmatprep.subr.bf16.mxu0 0
    %10127 = vmatpush1.bf16.msra.mxu0 %v10094
    %10128 = vmatprep.subr.bf16.mxu0 0
    %10129 = vmatpush1.bf16.msra.mxu0 %v10095
    %10130 = vmatprep.subr.bf16.mxu0 0
    %10131 = vmatpush1.bf16.msra.mxu0 %v10096
    %10132 = vmatprep.subr.bf16.mxu0 0
    %10133 = vmatpush1.bf16.msra.mxu0 %v10097
    %10134 = vmatprep.subr.bf16.mxu0 0
    %10135 = vmatpush1.bf16.msra.mxu0 %v10098
    %10136 = vmatprep.subr.bf16.mxu0 0
    %10137 = vmatpush1.bf16.msra.mxu0 %v10099
    %10138 = vmatprep.subr.bf16.mxu0 0
    %10139 = vmatpush1.bf16.msra.mxu0 %v10100
    %10140 = vmatprep.subr.bf16.mxu0 0
    %10141 = vmatpush1.bf16.msra.mxu0 %v10101
    %10142 = vmatprep.subr.bf16.mxu0 0
    %10143 = vmatpush1.bf16.msra.mxu0 %v10102
    %10144 = vmatprep.subr.bf16.mxu0 0
    %10145 = vmatpush1.bf16.msra.mxu0 %v10103
    %10146 = vmatprep.subr.bf16.mxu0 0
    %10147 = vmatpush1.bf16.msra.mxu0 %v10104
    %10148 = vmatprep.subr.bf16.mxu0 0
    %10149 = vmatpush1.bf16.msra.mxu0 %v10105
    %10150 = vmatprep.subr.bf16.mxu0 0
    %10151 = vmatpush1.bf16.msra.mxu0 %v10106
    %10152 = vmatprep.subr.bf16.mxu0 0
    %10153 = vmatpush1.bf16.msra.mxu0 %v10107
    %10154 = vmatprep.subr.bf16.mxu0 0
    %10155 = vmatpush1.bf16.msra.mxu0 %v10108
    %10156 = vmatprep.subr.bf16.mxu0 0
    %10157 = vmatpush1.bf16.msra.mxu0 %v10109
    %10158 = vmatprep.mubr.bf16.mxu0 %v9307
    %10159 = vmatmul.mubr.bf16.gmra.mrb[0].mxu0 %v9306
    %v10160 = vpop.f32.mrb[0].mxu0
    %v10161 = vadd.f32 0.0, %v10160
    %v10162 = vpop.f32.mrb[0].mxu0
    %v10163 = vpop.f32.mrb[0].mxu0
    %v10164 = vpop.f32.mrb[0].mxu0
    %10165 = vdwg.mxu0
    %v10166 = vadd.f32 %v9996, %v10161
    %s10167 = scalar_lea.vmem %s7, 640
    %v10168 = vld [vmem:[%s10167] sm:$0xf]
    %v10169 = vld [vmem:[%s10167 + $0x4] sm:$0xf]
    %v10170 = vld [vmem:[%s10167 + $0x8] sm:$0xf]
    %v10171 = vld [vmem:[%s10167 + $0xc] sm:$0xf]
    %v10172 = vld [vmem:[%s10167 + $0x10] sm:$0xf]
    %v10173 = vld [vmem:[%s10167 + $0x14] sm:$0xf]
    %v10174 = vld [vmem:[%s10167 + $0x18] sm:$0xf]
    %v10175 = vld [vmem:[%s10167 + $0x1c] sm:$0xf]
    %v10176 = vld [vmem:[%s10167 + $0x20] sm:$0xf]
    %v10177 = vld [vmem:[%s10167 + $0x24] sm:$0xf]
    %v10178 = vld [vmem:[%s10167 + $0x28] sm:$0xf]
    %v10179 = vld [vmem:[%s10167 + $0x2c] sm:$0xf]
    %v10180 = vld [vmem:[%s10167 + $0x30] sm:$0xf]
    %v10181 = vld [vmem:[%s10167 + $0x34] sm:$0xf]
    %v10182 = vld [vmem:[%s10167 + $0x38] sm:$0xf]
    %v10183 = vld [vmem:[%s10167 + $0x3c] sm:$0xf]
    %v10184 = vld [vmem:[%s10167 + $0x40] sm:$0xf]
    %v10185 = vld [vmem:[%s10167 + $0x44] sm:$0xf]
    %v10186 = vld [vmem:[%s10167 + $0x48] sm:$0xf]
    %v10187 = vld [vmem:[%s10167 + $0x4c] sm:$0xf]
    %v10188 = vld [vmem:[%s10167 + $0x50] sm:$0xf]
    %v10189 = vld [vmem:[%s10167 + $0x54] sm:$0xf]
    %v10190 = vld [vmem:[%s10167 + $0x58] sm:$0xf]
    %v10191 = vld [vmem:[%s10167 + $0x5c] sm:$0xf]
    %v10192 = vld [vmem:[%s10167 + $0x60] sm:$0xf]
    %v10193 = vld [vmem:[%s10167 + $0x64] sm:$0xf]
    %v10194 = vld [vmem:[%s10167 + $0x68] sm:$0xf]
    %v10195 = vld [vmem:[%s10167 + $0x6c] sm:$0xf]
    %v10196 = vld [vmem:[%s10167 + $0x70] sm:$0xf]
    %v10197 = vld [vmem:[%s10167 + $0x74] sm:$0xf]
    %v10198 = vld [vmem:[%s10167 + $0x78] sm:$0xf]
    %v10199 = vld [vmem:[%s10167 + $0x7c] sm:$0xf]
    %v10202 = vrot.slane %v9306, 4
    %v10203 = vrot.slane %v9307, 4
    %v10238 = vunpack.c.l.b16 %v10168
    %v10239 = vunpack.c.l.b16 %v10169
    %v10240 = vunpack.c.l.b16 %v10170
    %v10241 = vunpack.c.l.b16 %v10171
    %v10242 = vunpack.c.l.b16 %v10172
    %v10243 = vunpack.c.l.b16 %v10173
    %v10244 = vunpack.c.l.b16 %v10174
    %v10245 = vunpack.c.l.b16 %v10175
    %v10246 = vunpack.c.l.b16 %v10176
    %v10247 = vunpack.c.l.b16 %v10177
    %v10248 = vunpack.c.l.b16 %v10178
    %v10249 = vunpack.c.l.b16 %v10179
    %v10250 = vunpack.c.l.b16 %v10180
    %v10251 = vunpack.c.l.b16 %v10181
    %v10252 = vunpack.c.l.b16 %v10182
    %v10253 = vunpack.c.l.b16 %v10183
    %v10254 = vunpack.c.l.b16 %v10184
    %v10255 = vunpack.c.l.b16 %v10185
    %v10256 = vunpack.c.l.b16 %v10186
    %v10257 = vunpack.c.l.b16 %v10187
    %v10258 = vunpack.c.l.b16 %v10188
    %v10259 = vunpack.c.l.b16 %v10189
    %v10260 = vunpack.c.l.b16 %v10190
    %v10261 = vunpack.c.l.b16 %v10191
    %v10262 = vunpack.c.l.b16 %v10192
    %v10263 = vunpack.c.l.b16 %v10193
    %v10264 = vunpack.c.l.b16 %v10194
    %v10265 = vunpack.c.l.b16 %v10195
    %v10266 = vunpack.c.l.b16 %v10196
    %v10267 = vunpack.c.l.b16 %v10197
    %v10268 = vunpack.c.l.b16 %v10198
    %v10269 = vunpack.c.l.b16 %v10199
    %v10270 = vpack.c.b16 %v10239, %v10238
    %v10271 = vpack.c.b16 %v10241, %v10240
    %v10272 = vpack.c.b16 %v10243, %v10242
    %v10273 = vpack.c.b16 %v10245, %v10244
    %v10274 = vpack.c.b16 %v10247, %v10246
    %v10275 = vpack.c.b16 %v10249, %v10248
    %v10276 = vpack.c.b16 %v10251, %v10250
    %v10277 = vpack.c.b16 %v10253, %v10252
    %v10278 = vpack.c.b16 %v10255, %v10254
    %v10279 = vpack.c.b16 %v10257, %v10256
    %v10280 = vpack.c.b16 %v10259, %v10258
    %v10281 = vpack.c.b16 %v10261, %v10260
    %v10282 = vpack.c.b16 %v10263, %v10262
    %v10283 = vpack.c.b16 %v10265, %v10264
    %v10284 = vpack.c.b16 %v10267, %v10266
    %v10285 = vpack.c.b16 %v10269, %v10268
    %10302 = vmatprep.subr.bf16.mxu0 0
    %10303 = vmatpush1.bf16.msra.mxu0 %v10270
    %10304 = vmatprep.subr.bf16.mxu0 0
    %10305 = vmatpush1.bf16.msra.mxu0 %v10271
    %10306 = vmatprep.subr.bf16.mxu0 0
    %10307 = vmatpush1.bf16.msra.mxu0 %v10272
    %10308 = vmatprep.subr.bf16.mxu0 0
    %10309 = vmatpush1.bf16.msra.mxu0 %v10273
    %10310 = vmatprep.subr.bf16.mxu0 0
    %10311 = vmatpush1.bf16.msra.mxu0 %v10274
    %10312 = vmatprep.subr.bf16.mxu0 0
    %10313 = vmatpush1.bf16.msra.mxu0 %v10275
    %10314 = vmatprep.subr.bf16.mxu0 0
    %10315 = vmatpush1.bf16.msra.mxu0 %v10276
    %10316 = vmatprep.subr.bf16.mxu0 0
    %10317 = vmatpush1.bf16.msra.mxu0 %v10277
    %10318 = vmatprep.subr.bf16.mxu0 0
    %10319 = vmatpush1.bf16.msra.mxu0 %v10278
    %10320 = vmatprep.subr.bf16.mxu0 0
    %10321 = vmatpush1.bf16.msra.mxu0 %v10279
    %10322 = vmatprep.subr.bf16.mxu0 0
    %10323 = vmatpush1.bf16.msra.mxu0 %v10280
    %10324 = vmatprep.subr.bf16.mxu0 0
    %10325 = vmatpush1.bf16.msra.mxu0 %v10281
    %10326 = vmatprep.subr.bf16.mxu0 0
    %10327 = vmatpush1.bf16.msra.mxu0 %v10282
    %10328 = vmatprep.subr.bf16.mxu0 0
    %10329 = vmatpush1.bf16.msra.mxu0 %v10283
    %10330 = vmatprep.subr.bf16.mxu0 0
    %10331 = vmatpush1.bf16.msra.mxu0 %v10284
    %10332 = vmatprep.subr.bf16.mxu0 0
    %10333 = vmatpush1.bf16.msra.mxu0 %v10285
    %10334 = vmatprep.mubr.bf16.mxu0 %v10203
    %10335 = vmatmul.mubr.bf16.gmra.mrb[0].mxu0 %v10202
    %v10336 = vpop.f32.mrb[0].mxu0
    %v10337 = vadd.f32 0.0, %v10336
    %v10338 = vpop.f32.mrb[0].mxu0
    %v10339 = vpop.f32.mrb[0].mxu0
    %v10340 = vpop.f32.mrb[0].mxu0
    %10341 = vdwg.mxu0
    %v10342 = vadd.f32 %v10166, %v10337
    %v10343 = vld [vmem:[#allocation10] sm:$0x1]
    %v10345 = vlaneseq
    %v10346 = vshrl.u32 %v10345, 7
    %v10347 = vsub.s32 0, %v10346
    %v10348 = vrot.slane %v10343, %v10347
    %v10350 = vmul.f32 %v10342, %v10348
    %v10351 = vld [vmem:[#allocation12] sm:$0x1]
    %v10353 = vlaneseq
    %v10354 = vshrl.u32 %v10353, 7
    %v10355 = vsub.s32 0, %v10354
    %v10356 = vrot.slane %v10351, %v10355
    %v10358 = vadd.f32 %v10350, %v10356
    %v10359 = vmax.f32 %v10358, 0.0
    %v10360 = vpack.c.bf16 %v10359, %v10359
    %v10361 = vld [vmem:[#allocation13] sm:$0xf]
    %v10362 = vld [vmem:[#allocation13 + $0x4] sm:$0xf]
    %v10363 = vld [vmem:[#allocation13 + $0x8] sm:$0xf]
    %v10364 = vld [vmem:[#allocation13 + $0xc] sm:$0xf]
    %v10365 = vld [vmem:[#allocation13 + $0x10] sm:$0xf]
    %v10366 = vld [vmem:[#allocation13 + $0x14] sm:$0xf]
    %v10367 = vld [vmem:[#allocation13 + $0x18] sm:$0xf]
    %v10368 = vld [vmem:[#allocation13 + $0x1c] sm:$0xf]
    %v10369 = vld [vmem:[#allocation13 + $0x20] sm:$0xf]
    %v10370 = vld [vmem:[#allocation13 + $0x24] sm:$0xf]
    %v10371 = vld [vmem:[#allocation13 + $0x28] sm:$0xf]
    %v10372 = vld [vmem:[#allocation13 + $0x2c] sm:$0xf]
    %v10373 = vld [vmem:[#allocation13 + $0x30] sm:$0xf]
    %v10374 = vld [vmem:[#allocation13 + $0x34] sm:$0xf]
    %v10375 = vld [vmem:[#allocation13 + $0x38] sm:$0xf]
    %v10376 = vld [vmem:[#allocation13 + $0x3c] sm:$0xf]
    %v10393 = vunpack.c.l.b16 %v10361
    %v10394 = vunpack.c.l.b16 %v10362
    %v10395 = vunpack.c.l.b16 %v10363
    %v10396 = vunpack.c.l.b16 %v10364
    %v10397 = vunpack.c.l.b16 %v10365
    %v10398 = vunpack.c.l.b16 %v10366
    %v10399 = vunpack.c.l.b16 %v10367
    %v10400 = vunpack.c.l.b16 %v10368
    %v10401 = vunpack.c.l.b16 %v10369
    %v10402 = vunpack.c.l.b16 %v10370
    %v10403 = vunpack.c.l.b16 %v10371
    %v10404 = vunpack.c.l.b16 %v10372
    %v10405 = vunpack.c.l.b16 %v10373
    %v10406 = vunpack.c.l.b16 %v10374
    %v10407 = vunpack.c.l.b16 %v10375
    %v10408 = vunpack.c.l.b16 %v10376
    %v10409 = vpack.c.b16 %v10394, %v10393
    %v10410 = vpack.c.b16 %v10396, %v10395
    %v10411 = vpack.c.b16 %v10398, %v10397
    %v10412 = vpack.c.b16 %v10400, %v10399
    %v10413 = vpack.c.b16 %v10402, %v10401
    %v10414 = vpack.c.b16 %v10404, %v10403
    %v10415 = vpack.c.b16 %v10406, %v10405
    %v10416 = vpack.c.b16 %v10408, %v10407
    %10425 = vmatprep.subr.bf16.mxu0 0
    %10426 = vmatpush1.bf16.msra.mxu0 %v10409
    %10427 = vmatprep.subr.bf16.mxu0 0
    %10428 = vmatpush1.bf16.msra.mxu0 %v10410
    %10429 = vmatprep.subr.bf16.mxu0 0
    %10430 = vmatpush1.bf16.msra.mxu0 %v10411
    %10431 = vmatprep.subr.bf16.mxu0 0
    %10432 = vmatpush1.bf16.msra.mxu0 %v10412
    %10433 = vmatprep.subr.bf16.mxu0 0
    %10434 = vmatpush1.bf16.msra.mxu0 %v10413
    %10435 = vmatprep.subr.bf16.mxu0 0
    %10436 = vmatpush1.bf16.msra.mxu0 %v10414
    %10437 = vmatprep.subr.bf16.mxu0 0
    %10438 = vmatpush1.bf16.msra.mxu0 %v10415
    %10439 = vmatprep.subr.bf16.mxu0 0
    %10440 = vmatpush1.bf16.msra.mxu0 %v10416
    %10441 = vmatprep.subr.bf16.mxu0 0
    %10442 = vmatpush1.bf16.msra.mxu0 0
    %10443 = vmatprep.subr.bf16.mxu0 0
    %10444 = vmatpush1.bf16.msra.mxu0 0
    %10445 = vmatprep.subr.bf16.mxu0 0
    %10446 = vmatpush1.bf16.msra.mxu0 0
    %10447 = vmatprep.subr.bf16.mxu0 0
    %10448 = vmatpush1.bf16.msra.mxu0 0
    %10449 = vmatprep.subr.bf16.mxu0 0
    %10450 = vmatpush1.bf16.msra.mxu0 0
    %10451 = vmatprep.subr.bf16.mxu0 0
    %10452 = vmatpush1.bf16.msra.mxu0 0
    %10453 = vmatprep.subr.bf16.mxu0 0
    %10454 = vmatpush1.bf16.msra.mxu0 0
    %10455 = vmatprep.subr.bf16.mxu0 0
    %10456 = vmatpush1.bf16.msra.mxu0 0
    %10457 = vmatprep.mubr.bf16.mxu0 0
    %10458 = vmatmul.mubr.bf16.gmra.mrb[0].mxu0 %v10360
    %v10459 = vpop.f32.mrb[0].mxu0
    %v10460 = vadd.f32 0.0, %v10459
    %v10461 = vpop.f32.mrb[0].mxu0
    %v10462 = vpop.f32.mrb[0].mxu0
    %v10463 = vpop.f32.mrb[0].mxu0
    %10464 = vdwg.mxu0
    %v10465 = vld [vmem:[#allocation15] sm:$0x1]
    %v10467 = vlaneseq
    %v10468 = vshrl.u32 %v10467, 7
    %v10469 = vsub.s32 0, %v10468
    %v10470 = vrot.slane %v10465, %v10469
    %v10472 = vmul.f32 %v10460, %v10470
    %v10473 = vld [vmem:[#allocation16] sm:$0x1]
    %v10475 = vlaneseq
    %v10476 = vshrl.u32 %v10475, 7
    %v10477 = vsub.s32 0, %v10476
    %v10478 = vrot.slane %v10473, %v10477
    %v10480 = vadd.f32 %v10472, %v10478
    %v10481 = vmax.f32 %v10480, 0.0
    %v10482 = vpack.c.bf16 %v10481, %v10481
    %v10483 = vld [vmem:[#allocation18] sm:$0xf]
    %v10484 = vld [vmem:[#allocation18 + $0x4] sm:$0xf]
    %v10485 = vld [vmem:[#allocation18 + $0x8] sm:$0xf]
    %v10486 = vld [vmem:[#allocation18 + $0xc] sm:$0xf]
    %v10487 = vld [vmem:[#allocation18 + $0x10] sm:$0xf]
    %v10488 = vld [vmem:[#allocation18 + $0x14] sm:$0xf]
    %v10489 = vld [vmem:[#allocation18 + $0x18] sm:$0xf]
    %v10490 = vld [vmem:[#allocation18 + $0x1c] sm:$0xf]
    %v10491 = vld [vmem:[#allocation18 + $0x20] sm:$0xf]
    %v10492 = vld [vmem:[#allocation18 + $0x24] sm:$0xf]
    %v10493 = vld [vmem:[#allocation18 + $0x28] sm:$0xf]
    %v10494 = vld [vmem:[#allocation18 + $0x2c] sm:$0xf]
    %v10495 = vld [vmem:[#allocation18 + $0x30] sm:$0xf]
    %v10496 = vld [vmem:[#allocation18 + $0x34] sm:$0xf]
    %v10497 = vld [vmem:[#allocation18 + $0x38] sm:$0xf]
    %v10498 = vld [vmem:[#allocation18 + $0x3c] sm:$0xf]
    %v10499 = vld [vmem:[#allocation19] sm:$0x1]
    %v10501 = vlaneseq
    %v10502 = vshrl.u32 %v10501, 7
    %v10503 = vsub.s32 0, %v10502
    %v10504 = vrot.slane %v10499, %v10503
    %v10522 = vunpack.c.l.b16 %v10483
    %v10523 = vunpack.c.l.b16 %v10484
    %v10524 = vunpack.c.l.b16 %v10485
    %v10525 = vunpack.c.l.b16 %v10486
    %v10526 = vunpack.c.l.b16 %v10487
    %v10527 = vunpack.c.l.b16 %v10488
    %v10528 = vunpack.c.l.b16 %v10489
    %v10529 = vunpack.c.l.b16 %v10490
    %v10530 = vunpack.c.l.b16 %v10491
    %v10531 = vunpack.c.l.b16 %v10492
    %v10532 = vunpack.c.l.b16 %v10493
    %v10533 = vunpack.c.l.b16 %v10494
    %v10534 = vunpack.c.l.b16 %v10495
    %v10535 = vunpack.c.l.b16 %v10496
    %v10536 = vunpack.c.l.b16 %v10497
    %v10537 = vunpack.c.l.b16 %v10498
    %v10538 = vpack.c.b16 %v10523, %v10522
    %v10539 = vpack.c.b16 %v10525, %v10524
    %v10540 = vpack.c.b16 %v10527, %v10526
    %v10541 = vpack.c.b16 %v10529, %v10528
    %v10542 = vpack.c.b16 %v10531, %v10530
    %v10543 = vpack.c.b16 %v10533, %v10532
    %v10544 = vpack.c.b16 %v10535, %v10534
    %v10545 = vpack.c.b16 %v10537, %v10536
    %10554 = vmatprep.subr.bf16.mxu0 0
    %10555 = vmatpush1.bf16.msra.mxu0 %v10538
    %10556 = vmatprep.subr.bf16.mxu0 0
    %10557 = vmatpush1.bf16.msra.mxu0 %v10539
    %10558 = vmatprep.subr.bf16.mxu0 0
    %10559 = vmatpush1.bf16.msra.mxu0 %v10540
    %10560 = vmatprep.subr.bf16.mxu0 0
    %10561 = vmatpush1.bf16.msra.mxu0 %v10541
    %10562 = vmatprep.subr.bf16.mxu0 0
    %10563 = vmatpush1.bf16.msra.mxu0 %v10542
    %10564 = vmatprep.subr.bf16.mxu0 0
    %10565 = vmatpush1.bf16.msra.mxu0 %v10543
    %10566 = vmatprep.subr.bf16.mxu0 0
    %10567 = vmatpush1.bf16.msra.mxu0 %v10544
    %10568 = vmatprep.subr.bf16.mxu0 0
    %10569 = vmatpush1.bf16.msra.mxu0 %v10545
    %10570 = vmatprep.subr.bf16.mxu0 0
    %10571 = vmatpush1.bf16.msra.mxu0 0
    %10572 = vmatprep.subr.bf16.mxu0 0
    %10573 = vmatpush1.bf16.msra.mxu0 0
    %10574 = vmatprep.subr.bf16.mxu0 0
    %10575 = vmatpush1.bf16.msra.mxu0 0
    %10576 = vmatprep.subr.bf16.mxu0 0
    %10577 = vmatpush1.bf16.msra.mxu0 0
    %10578 = vmatprep.subr.bf16.mxu0 0
    %10579 = vmatpush1.bf16.msra.mxu0 0
    %10580 = vmatprep.subr.bf16.mxu0 0
    %10581 = vmatpush1.bf16.msra.mxu0 0
    %10582 = vmatprep.subr.bf16.mxu0 0
    %10583 = vmatpush1.bf16.msra.mxu0 0
    %10584 = vmatprep.subr.bf16.mxu0 0
    %10585 = vmatpush1.bf16.msra.mxu0 0
    %10586 = vmatprep.mubr.bf16.mxu0 0
    %10587 = vmatmul.mubr.bf16.gmra.mrb[0].mxu0 %v10482
    %v10588 = vpop.f32.mrb[0].mxu0
    %v10589 = vadd.f32 %v10504, %v10588
    %v10590 = vpop.f32.mrb[0].mxu0
    %v10591 = vpop.f32.mrb[0].mxu0
    %v10592 = vpop.f32.mrb[0].mxu0
    %10593 = vdwg.mxu0
    %10594 = vst [vmem:[%s15] sm:$0xff] %v10589
    // Predicated region
    $region110: #{forward.1} parent=1 // pred_check
      _
    $region111: #{forward.1} parent=1 // pred_check_branch
      %10596 = sbr.rel (0) target = $region113
    $region112: #{forward.1} parent=1 // pred_region
      _
    $region113: #{forward.1} parent=1 // pred_fallthru
      _
    // Predicated region
    $region114: #{forward.1} parent=1 // pred_check
      _
    $region115: #{forward.1} parent=1 // pred_check_branch
      %10598 = sbr.rel (0) target = $region117
    $region116: #{forward.1} parent=1 // pred_region
      _
    $region117: #{forward.1} parent=1 // pred_fallthru
      _
    %10599 = vsyncpa [#allocation3], 1
    %10600 = vsyncpa [#allocation5], 1
    %10601 = vsyncpa [#allocation8], 1
    %10602 = vsyncpa [#allocation11], 1
    %10603 = vsyncpa [#allocation14], 1
    %10604 = vsyncpa [#allocation17], 1
    %10605 = vsyncpa [#allocation20], 1

</llo_original>
